<compile_context>
chip_gen: v7x
topology: tpu7x:2x2x1
jax: 0.10.0
libtpu: 0.0.40
codegen_flags: <defaults>
</compile_context>

<pallas_src>
import functools
import math

import jax
import jax.numpy as jnp
from jax.experimental import pallas as pl
from jax.experimental.pallas import tpu as pltpu

NORM_FACTOR = 100.0        # normalization_factor (aggregation_method='sum')
NORM_CONSTANT = 1.0        # norm_constant in coord2diff
INV_NORM_FACTOR = 1.0 / NORM_FACTOR

# Indices (into the packed weight list) of the large matmul weights that are
# fed to the MXU and may therefore be stored/shipped in bf16.
_MXU_WEIGHT_IDX = frozenset((0, 4, 6, 7, 9, 11, 15))


def _silu(v):
    return v * jax.nn.sigmoid(v)


# --------------------------------------------------------------------------
# Fused Pallas kernel: the full EGNN block stack for one block of configs.
# --------------------------------------------------------------------------
def egnn_kernel(h_ref, x_ref,
                geW1ab_ref, geW1r_ref, geW1d_ref, geb1_ref, geW2_ref, geb2_ref,
                gnW1h_ref, gnW1a_ref, gnb1_ref, gnW2_ref, gnb2_ref,
                eqW1ab_ref, eqW1r_ref, eqW1d_ref, eqb1_ref, eqW2_ref, eqb2_ref,
                eqW3_ref,
                x_out_ref,
                *, n_blocks, n_sub, j_tile, mxu_dtype):
    Cb, n, H = h_ref.shape
    md = mxu_dtype
    tj = j_tile
    n_jt = n // tj

    def mm(a, w):
        return jnp.dot(a.astype(md), w.astype(md),
                       preferred_element_type=jnp.float32)

    h = h_ref[...].astype(jnp.float32)            # (Cb, n, H)  residual stream
    xx = x_ref[...].astype(jnp.float32)           # (Cb, 3, n)  component planes
    xc = [xx[:, k, :] for k in range(3)]          # 3 x (Cb, n)

    d0 = None                                     # initial squared distances
    for b in range(n_blocks):
        # ---- coord2diff on this block's *input* coordinates ----
        dks = [xk[:, :, None] - xk[:, None, :] for xk in xc]     # 3 x (Cb,n,n)
        radial = dks[0] * dks[0] + dks[1] * dks[1] + dks[2] * dks[2]
        if b == 0:
            d0 = radial                           # fixed edge_attr, lane-dense
        inv = pl.reciprocal(jnp.sqrt(radial + 1e-8) + NORM_CONSTANT,
                            approx=True)          # one recip, reused 3x
        cdk = [d * inv for d in dks]              # coord_diff components

        # ---- inv_sublayers GCL layers (attention=False, no masks) ----
        for s in range(n_sub):
            idx = b * n_sub + s
            # fused first linear: h @ [W1_row | W1_col]  -> (Cb*n, 2H)
            AB = mm(h.reshape(Cb * n, H), geW1ab_ref[idx])
            A = AB[:, :H].reshape(Cb, n, 1, H)
            B = AB[:, H:].reshape(Cb, 1, n, H)
            Wr, Wd, b1 = geW1r_ref[idx], geW1d_ref[idx], geb1_ref[idx]
            agg = jnp.zeros((Cb, n, H), jnp.float32)
            for jt in range(n_jt):                # j-tiled pairwise edge math
                j0 = jt * tj
                pre = (A + B[:, :, j0:j0 + tj, :]
                       + radial[:, :, j0:j0 + tj, None] * Wr
                       + d0[:, :, j0:j0 + tj, None] * Wd
                       + b1)                       # (Cb, n, tj, H)
                e1 = _silu(pre).reshape(Cb * n * tj, H).astype(md)
                mij = _silu(mm(e1, geW2_ref[idx]) + geb2_ref[idx])
                # unsorted_segment_sum over `row` == sum over j.
                agg = agg + jnp.sum(mij.reshape(Cb, n, tj, H), axis=2)
            agg = agg * INV_NORM_FACTOR
            npre = (mm(h.reshape(Cb * n, H), gnW1h_ref[idx])
                    + mm(agg.reshape(Cb * n, H), gnW1a_ref[idx])
                    + gnb1_ref[idx])
            msg = mm(_silu(npre), gnW2_ref[idx]) + gnb2_ref[idx]
            h = h + msg.reshape(Cb, n, H)

        # ---- EquivariantUpdate (tanh=False) ----
        ABq = mm(h.reshape(Cb * n, H), eqW1ab_ref[b])
        Aq = ABq[:, :H].reshape(Cb, n, 1, H)
        Bq = ABq[:, H:].reshape(Cb, 1, n, H)
        Wr, Wd, b1 = eqW1r_ref[b], eqW1d_ref[b], eqb1_ref[b]
        w3 = eqW3_ref[b]                           # (1, H)
        dacc = [jnp.zeros((Cb, n), jnp.float32) for _ in range(3)]
        for jt in range(n_jt):
            j0 = jt * tj
            qpre = (Aq + Bq[:, :, j0:j0 + tj, :]
                    + radial[:, :, j0:j0 + tj, None] * Wr
                    + d0[:, :, j0:j0 + tj, None] * Wd
                    + b1)
            q1 = _silu(qpre).reshape(Cb * n * tj, H).astype(md)
            q2 = _silu(mm(q1, eqW2_ref[b]) + eqb2_ref[b])
            # (E,H) @ (H,1) replaced by VPU multiply + lane reduction.
            scal = jnp.sum(q2.reshape(Cb, n, tj, H) * w3, axis=-1)  # (Cb,n,tj)
            for k in range(3):
                dacc[k] = dacc[k] + jnp.sum(cdk[k][:, :, j0:j0 + tj] * scal,
                                            axis=2)
        xc = [xk + d * INV_NORM_FACTOR for xk, d in zip(xc, dacc)]

    # single contiguous store of all three coordinate planes.
    x_out_ref[...] = jnp.stack(xc, axis=1).astype(x_out_ref.dtype)


# --------------------------------------------------------------------------
# Weight packing: stack per-(sub)layer weights with a leading layer axis and
# fuse the row/col halves of the first edge linears.
# --------------------------------------------------------------------------
def _pack_weights(params, H):
    gcls = [g for blk in params['blocks'] for g in blk['gcl']]
    eqs = [blk['eq'] for blk in params['blocks']]

    def stk(fn, items):
        return jnp.stack([fn(it) for it in items], axis=0)

    return [
        stk(lambda g: jnp.concatenate([g['eW1'][:H], g['eW1'][H:2 * H]], 1), gcls),
        stk(lambda g: g['eW1'][2 * H:2 * H + 1], gcls),          # radial row
        stk(lambda g: g['eW1'][2 * H + 1:2 * H + 2], gcls),      # d0 row
        stk(lambda g: g['eb1'][None, :], gcls),
        stk(lambda g: g['eW2'], gcls),
        stk(lambda g: g['eb2'][None, :], gcls),
        stk(lambda g: g['nW1'][:H], gcls),
        stk(lambda g: g['nW1'][H:], gcls),
        stk(lambda g: g['nb1'][None, :], gcls),
        stk(lambda g: g['nW2'], gcls),
        stk(lambda g: g['nb2'][None, :], gcls),
        stk(lambda q: jnp.concatenate([q['W1'][:H], q['W1'][H:2 * H]], 1), eqs),
        stk(lambda q: q['W1'][2 * H:2 * H + 1], eqs),
        stk(lambda q: q['W1'][2 * H + 1:2 * H + 2], eqs),
        stk(lambda q: q['b1'][None, :], eqs),
        stk(lambda q: q['W2'], eqs),
        stk(lambda q: q['b2'][None, :], eqs),
        stk(lambda q: q['W3'].T, eqs),                           # (L, 1, H)
    ]


# --------------------------------------------------------------------------
# VMEM-aware sizing helpers.
# --------------------------------------------------------------------------
def _vmem_limit_bytes():
    cap = 64 * 1024 * 1024            # conservative fallback (v7x physical)
    try:
        cap = int(pltpu.get_tpu_info().vmem_capacity_bytes)
    except Exception:
        pass
    return int(min(cap * 3 // 4, 100 * 1024 * 1024))


def _pick_j_tile(n, j_tile):
    tj = min(j_tile, n)
    while n % tj:
        tj -= 1
    return tj


def _pick_config_block(C, n, H, tj, weight_bytes, vmem_limit):
    """Largest Cb whose *pairwise* live footprint fits VMEM, with >=2 steps."""
    f32 = 4
    budget = vmem_limit - 2 * weight_bytes - (2 << 20)   # dbl-buffered weights
    best = 1
    for cb in range(1, C + 1):
        if C % cb:
            continue
        pair = 4 * cb * n * tj * H * f32        # pre / e1 / mij / agg per tile
        node = 8 * cb * n * H * f32             # h, AB, npre, msg, ...
        geom = 8 * cb * n * n * f32             # radial, d0, diffs, coord_diff
        io = 4 * cb * n * H * f32 + 8 * cb * 3 * n * f32   # pipelined h/x bufs
        if pair + node + geom + io <= budget:
            best = cb
    if C >= 2:                                  # keep >=2 grid steps (dual TC)
        best = min(best, C // 2)
        while C % best:
            best -= 1
    return max(best, 1)


# --------------------------------------------------------------------------
# EGNN.forward: returns updated coordinates (C, n, 3).
# --------------------------------------------------------------------------
def egnn_forward(x, t, params, *, block_configs=None, j_tile=128,
                 mxu_dtype=jnp.bfloat16):
    C, n, _ = x.shape
    H = params['emb_W'].shape[1]
    L = len(params['blocks'])
    S = len(params['blocks'][0]['gcl'])
    assert n % 8 == 0, "pad n_nodes to a multiple of 8 sublanes"

    # node embedding Linear(1 -> H) on per-config t broadcast to nodes (glue).
    h = (t[:, None] @ params['emb_W'] + params['emb_b'])[:, None, :]
    h = jnp.broadcast_to(h, (C, n, H)).astype(jnp.float32)

    # coordinates as component planes (C, 3, n) for lane-dense pairwise math.
    xt = jnp.transpose(x, (0, 2, 1)).astype(jnp.float32)

    weights = _pack_weights(params, H)
    if mxu_dtype != jnp.float32:
        # ship the big matmul weights in bf16 (halves their VMEM / DMA cost);
        # biases and the radial/d0/W3 rows stay f32 for the VPU adds.
        weights = [w.astype(mxu_dtype) if i in _MXU_WEIGHT_IDX else w
                   for i, w in enumerate(weights)]
    weight_bytes = sum(int(w.size) * jnp.dtype(w.dtype).itemsize
                       for w in weights)

    tj = _pick_j_tile(n, j_tile)
    vlim = _vmem_limit_bytes()
    cb = (block_configs if block_configs is not None
          else _pick_config_block(C, n, H, tj, weight_bytes, vlim))
    assert C % cb == 0
    grid = (C // cb,)

    def wspec(w):
        return pl.BlockSpec(w.shape, lambda c, _nd=w.ndim: (0,) * _nd)

    in_specs = ([pl.BlockSpec((cb, n, H), lambda c: (c, 0, 0)),
                 pl.BlockSpec((cb, 3, n), lambda c: (c, 0, 0))]
                + [wspec(w) for w in weights])
    out_specs = pl.BlockSpec((cb, 3, n), lambda c: (c, 0, 0))
    out_shape = jax.ShapeDtypeStruct((C, 3, n), jnp.float32)

    kernel = functools.partial(egnn_kernel, n_blocks=L, n_sub=S,
                               j_tile=tj, mxu_dtype=mxu_dtype)
    x_out = pl.pallas_call(
        kernel,
        grid=grid,
        in_specs=in_specs,
        out_specs=out_specs,
        out_shape=out_shape,
        compiler_params=pltpu.CompilerParams(
            dimension_semantics=("parallel",),
            vmem_limit_bytes=vlim),
    )(h, xt, *weights)

    # The torch module also applies embedding_out(h) but returns only x, so
    # the unused output projection is skipped here.
    return jnp.transpose(x_out, (0, 2, 1))


# --------------------------------------------------------------------------
# Deterministic parameter initialization (shapes per the torch __init__).
# --------------------------------------------------------------------------
def _init_linear(key, fan_in, fan_out, bias=True):
    kw, kb = jax.random.split(key)
    a = math.sqrt(6.0 / (fan_in + fan_out))
    W = jax.random.uniform(kw, (fan_in, fan_out), jnp.float32, -a, a)
    if bias:
        bb = 1.0 / math.sqrt(fan_in)
        b = jax.random.uniform(kb, (fan_out,), jnp.float32, -bb, bb)
        return W, b
    return W, None


def init_params(key, H, n_layers=3, inv_sublayers=2, node_dim=1, out_node_nf=1):
    keys = jax.random.split(key, 2 + n_layers)
    emb_W, emb_b = _init_linear(keys[0], node_dim, H)
    out_W, out_b = _init_linear(keys[1], H, out_node_nf)
    blocks = []
    for i in range(n_layers):
        bk = jax.random.split(keys[2 + i], inv_sublayers + 1)
        gcls = []
        for l in range(inv_sublayers):
            ks = jax.random.split(bk[l], 4)
            eW1, eb1 = _init_linear(ks[0], 2 * H + 2, H)
            eW2, eb2 = _init_linear(ks[1], H, H)
            nW1, nb1 = _init_linear(ks[2], 2 * H, H)
            nW2, nb2 = _init_linear(ks[3], H, H)
            gcls.append(dict(eW1=eW1, eb1=eb1, eW2=eW2, eb2=eb2,
                             nW1=nW1, nb1=nb1, nW2=nW2, nb2=nb2))
        ks = jax.random.split(bk[inv_sublayers], 3)
        qW1, qb1 = _init_linear(ks[0], 2 * H + 2, H)
        qW2, qb2 = _init_linear(ks[1], H, H)
        qW3, _ = _init_linear(ks[2], H, 1, bias=False)
        blocks.append(dict(gcl=gcls,
                           eq=dict(W1=qW1, b1=qb1, W2=qW2, b2=qb2, W3=qW3)))
    return dict(emb_W=emb_W, emb_b=emb_b, out_W=out_W, out_b=out_b,
                blocks=blocks)


# --------------------------------------------------------------------------
# Pure-JAX reference (edge-list formulation, mirrors the torch code exactly).
# --------------------------------------------------------------------------
def ref_egnn(x_in, t, params):
    C, n, _ = x_in.shape
    H = params['emb_W'].shape[1]
    N = C * n
    x = x_in.reshape(N, 3)
    batch = jnp.repeat(jnp.arange(N // n), n)
    row = jnp.repeat(jnp.arange(N), n)
    col = jnp.repeat(batch * n, n) + jnp.tile(jnp.arange(n), N)
    h = jnp.repeat(t, n)[:, None] @ params['emb_W'] + params['emb_b']
    d0 = jnp.sum((x[row] - x[col]) ** 2, axis=1, keepdims=True)
    for blk in params['blocks']:
        diff = x[row] - x[col]
        radial = jnp.sum(diff ** 2, axis=1, keepdims=True)
        coord_diff = diff / (jnp.sqrt(radial + 1e-8) + NORM_CONSTANT)
        edge_attr = jnp.concatenate([radial, d0], axis=1)
        for l in range(len(blk['gcl'])):
            g = blk['gcl'][l]
            ein = jnp.concatenate([h[row], h[col], edge_attr], axis=1)
            mij = _silu(_silu(ein @ g['eW1'] + g['eb1']) @ g['eW2'] + g['eb2'])
            agg = jax.ops.segment_sum(mij, row, num_segments=N) / NORM_FACTOR
            nin = jnp.concatenate([h, agg], axis=1)
            h = h + (_silu(nin @ g['nW1'] + g['nb1']) @ g['nW2'] + g['nb2'])
        q = blk['eq']
        ein = jnp.concatenate([h[row], h[col], edge_attr], axis=1)
        scal = _silu(_silu(ein @ q['W1'] + q['b1']) @ q['W2'] + q['b2']) @ q['W3']
        trans = coord_diff * scal
        agg_x = jax.ops.segment_sum(trans, row, num_segments=N) / NORM_FACTOR
        x = x + agg_x
    return x.reshape(C, n, 3)


if __name__ == "__main__":
    C, n, H = 2, 8, 128        # n_configs, n_nodes, hidden_dim (small demo)
    key = jax.random.PRNGKey(0)
    kp, kx, kt = jax.random.split(key, 3)
    params = init_params(kp, H, n_layers=3, inv_sublayers=2)
    x = jax.random.normal(kx, (C, n, 3), jnp.float32)
    t = jax.random.uniform(kt, (C,), jnp.float32)

    x_ref = ref_egnn(x, t, params)

    # f32-MXU path: tight validation of the kernel math.
    fwd_f32 = jax.jit(functools.partial(egnn_forward, mxu_dtype=jnp.float32))
    x_f32 = jax.block_until_ready(fwd_f32(x, t, params))
    err_f32 = float(jnp.max(jnp.abs(x_f32 - x_ref)))
    assert err_f32 < 1e-2, f"f32 mismatch vs reference: {err_f32}"

    # default bf16-MXU path (production default): looser tolerance.
    fwd = jax.jit(egnn_forward)
    x_out = jax.block_until_ready(fwd(x, t, params))
    err_bf16 = float(jnp.max(jnp.abs(x_out - x_ref)))
    assert err_bf16 < 5e-2, f"bf16 mismatch vs reference: {err_bf16}"

    print("KERNEL_OK")
</pallas_src>

<mosaic_0001>
module attributes {stable_mosaic.version = 11 : i64} {
  func.func @egnn_kernel(%arg0: i32, %arg1: memref<1x8x128xf32, #tpu.memory_space<vmem>>, %arg2: memref<1x3x8xf32, #tpu.memory_space<vmem>>, %arg3: memref<6x128x256xf32, #tpu.memory_space<vmem>>, %arg4: memref<6x1x128xf32, #tpu.memory_space<vmem>>, %arg5: memref<6x1x128xf32, #tpu.memory_space<vmem>>, %arg6: memref<6x1x128xf32, #tpu.memory_space<vmem>>, %arg7: memref<6x128x128xf32, #tpu.memory_space<vmem>>, %arg8: memref<6x1x128xf32, #tpu.memory_space<vmem>>, %arg9: memref<6x128x128xf32, #tpu.memory_space<vmem>>, %arg10: memref<6x128x128xf32, #tpu.memory_space<vmem>>, %arg11: memref<6x1x128xf32, #tpu.memory_space<vmem>>, %arg12: memref<6x128x128xf32, #tpu.memory_space<vmem>>, %arg13: memref<6x1x128xf32, #tpu.memory_space<vmem>>, %arg14: memref<3x128x256xf32, #tpu.memory_space<vmem>>, %arg15: memref<3x1x128xf32, #tpu.memory_space<vmem>>, %arg16: memref<3x1x128xf32, #tpu.memory_space<vmem>>, %arg17: memref<3x1x128xf32, #tpu.memory_space<vmem>>, %arg18: memref<3x128x128xf32, #tpu.memory_space<vmem>>, %arg19: memref<3x1x128xf32, #tpu.memory_space<vmem>>, %arg20: memref<3x1x128xf32, #tpu.memory_space<vmem>>, %arg21: memref<1x3x8xf32, #tpu.memory_space<vmem>>) attributes {dimension_semantics = [#tpu.dimension_semantics<parallel>], iteration_bounds = array<i64: 2>, scalar_prefetch = 0 : i64, scratch_operands = 0 : i64, tpu.core_type = #tpu.core_type<tc>, window_params = [{transform_indices = @transform_0, window_bounds = array<i64: 1, 8, 128>}, {transform_indices = @transform_1, window_bounds = array<i64: 1, 3, 8>}, {pipeline_mode = #tpu.pipeline_mode<synchronous>, transform_indices = @transform_2, window_bounds = array<i64: 6, 128, 256>}, {pipeline_mode = #tpu.pipeline_mode<synchronous>, transform_indices = @transform_3, window_bounds = array<i64: 6, 1, 128>}, {pipeline_mode = #tpu.pipeline_mode<synchronous>, transform_indices = @transform_4, window_bounds = array<i64: 6, 1, 128>}, {pipeline_mode = #tpu.pipeline_mode<synchronous>, transform_indices = @transform_5, window_bounds = array<i64: 6, 1, 128>}, {pipeline_mode = #tpu.pipeline_mode<synchronous>, transform_indices = @transform_6, window_bounds = array<i64: 6, 128, 128>}, {pipeline_mode = #tpu.pipeline_mode<synchronous>, transform_indices = @transform_7, window_bounds = array<i64: 6, 1, 128>}, {pipeline_mode = #tpu.pipeline_mode<synchronous>, transform_indices = @transform_8, window_bounds = array<i64: 6, 128, 128>}, {pipeline_mode = #tpu.pipeline_mode<synchronous>, transform_indices = @transform_9, window_bounds = array<i64: 6, 128, 128>}, {pipeline_mode = #tpu.pipeline_mode<synchronous>, transform_indices = @transform_10, window_bounds = array<i64: 6, 1, 128>}, {pipeline_mode = #tpu.pipeline_mode<synchronous>, transform_indices = @transform_11, window_bounds = array<i64: 6, 128, 128>}, {pipeline_mode = #tpu.pipeline_mode<synchronous>, transform_indices = @transform_12, window_bounds = array<i64: 6, 1, 128>}, {pipeline_mode = #tpu.pipeline_mode<synchronous>, transform_indices = @transform_13, window_bounds = array<i64: 3, 128, 256>}, {pipeline_mode = #tpu.pipeline_mode<synchronous>, transform_indices = @transform_14, window_bounds = array<i64: 3, 1, 128>}, {pipeline_mode = #tpu.pipeline_mode<synchronous>, transform_indices = @transform_15, window_bounds = array<i64: 3, 1, 128>}, {pipeline_mode = #tpu.pipeline_mode<synchronous>, transform_indices = @transform_16, window_bounds = array<i64: 3, 1, 128>}, {pipeline_mode = #tpu.pipeline_mode<synchronous>, transform_indices = @transform_17, window_bounds = array<i64: 3, 128, 128>}, {pipeline_mode = #tpu.pipeline_mode<synchronous>, transform_indices = @transform_18, window_bounds = array<i64: 3, 1, 128>}, {pipeline_mode = #tpu.pipeline_mode<synchronous>, transform_indices = @transform_19, window_bounds = array<i64: 3, 1, 128>}, {transform_indices = @transform_20, window_bounds = array<i64: 1, 3, 8>}]} {
    %c0 = arith.constant 0 : index
    %c0_0 = arith.constant 0 : index
    %c0_1 = arith.constant 0 : index
    %0 = vector.load %arg1[%c0, %c0_0, %c0_1] : memref<1x8x128xf32, #tpu.memory_space<vmem>>, vector<1x8x128xf32>
    %c0_2 = arith.constant 0 : index
    %c0_3 = arith.constant 0 : index
    %c0_4 = arith.constant 0 : index
    %1 = vector.load %arg2[%c0_2, %c0_3, %c0_4] : memref<1x3x8xf32, #tpu.memory_space<vmem>>, vector<1x3x8xf32>
    %2 = vector.extract_strided_slice %1 {offsets = [0, 0, 0], sizes = [1, 1, 8], strides = [1, 1, 1]} : vector<1x3x8xf32> to vector<1x1x8xf32>
    %3 = vector.shape_cast %2 : vector<1x1x8xf32> to vector<1x8xf32>
    %4 = vector.extract_strided_slice %1 {offsets = [0, 1, 0], sizes = [1, 1, 8], strides = [1, 1, 1]} : vector<1x3x8xf32> to vector<1x1x8xf32>
    %5 = vector.shape_cast %4 : vector<1x1x8xf32> to vector<1x8xf32>
    %6 = vector.extract_strided_slice %1 {offsets = [0, 2, 0], sizes = [1, 1, 8], strides = [1, 1, 1]} : vector<1x3x8xf32> to vector<1x1x8xf32>
    %7 = vector.shape_cast %6 : vector<1x1x8xf32> to vector<1x8xf32>
    %8 = vector.shape_cast %3 : vector<1x8xf32> to vector<1x8x1xf32>
    %9 = vector.shape_cast %3 : vector<1x8xf32> to vector<1x1x8xf32>
    %10 = vector.broadcast %8 : vector<1x8x1xf32> to vector<1x8x8xf32>
    %11 = vector.broadcast %9 : vector<1x1x8xf32> to vector<1x8x8xf32>
    %12 = arith.subf %10, %11 : vector<1x8x8xf32>
    %13 = vector.shape_cast %5 : vector<1x8xf32> to vector<1x8x1xf32>
    %14 = vector.shape_cast %5 : vector<1x8xf32> to vector<1x1x8xf32>
    %15 = vector.broadcast %13 : vector<1x8x1xf32> to vector<1x8x8xf32>
    %16 = vector.broadcast %14 : vector<1x1x8xf32> to vector<1x8x8xf32>
    %17 = arith.subf %15, %16 : vector<1x8x8xf32>
    %18 = vector.shape_cast %7 : vector<1x8xf32> to vector<1x8x1xf32>
    %19 = vector.shape_cast %7 : vector<1x8xf32> to vector<1x1x8xf32>
    %20 = vector.broadcast %18 : vector<1x8x1xf32> to vector<1x8x8xf32>
    %21 = vector.broadcast %19 : vector<1x1x8xf32> to vector<1x8x8xf32>
    %22 = arith.subf %20, %21 : vector<1x8x8xf32>
    %23 = arith.mulf %12, %12 : vector<1x8x8xf32>
    %24 = arith.mulf %17, %17 : vector<1x8x8xf32>
    %25 = arith.addf %23, %24 : vector<1x8x8xf32>
    %26 = arith.mulf %22, %22 : vector<1x8x8xf32>
    %27 = arith.addf %25, %26 : vector<1x8x8xf32>
    %cst = arith.constant 9.99999993E-9 : f32
    %28 = vector.broadcast %cst : f32 to vector<1x8x8xf32>
    %29 = arith.addf %27, %28 : vector<1x8x8xf32>
    %30 = math.sqrt %29 : vector<1x8x8xf32>
    %cst_5 = arith.constant 1.000000e+00 : f32
    %31 = vector.broadcast %cst_5 : f32 to vector<1x8x8xf32>
    %32 = arith.addf %30, %31 : vector<1x8x8xf32>
    %33 = tpu.reciprocal %32 {approx = true} : vector<1x8x8xf32> -> vector<1x8x8xf32>
    %34 = arith.mulf %12, %33 : vector<1x8x8xf32>
    %35 = arith.mulf %17, %33 : vector<1x8x8xf32>
    %36 = arith.mulf %22, %33 : vector<1x8x8xf32>
    %37 = vector.shape_cast %0 : vector<1x8x128xf32> to vector<8x128xf32>
    %c0_6 = arith.constant 0 : index
    %c0_7 = arith.constant 0 : index
    %c0_8 = arith.constant 0 : index
    %38 = vector.load %arg3[%c0_6, %c0_7, %c0_8] : memref<6x128x256xf32, #tpu.memory_space<vmem>>, vector<1x128x256xf32>
    %39 = vector.shape_cast %38 : vector<1x128x256xf32> to vector<128x256xf32>
    %cst_9 = arith.constant dense<0.000000e+00> : vector<8x256xf32>
    %40 = tpu.matmul %37, %39, %cst_9 {dimension_numbers = #tpu.dot_dimension_numbers<[1], [0], [0], [1], [0, 0, 1, 1], [], []>} : vector<8x128xf32>, vector<128x256xf32>, vector<8x256xf32> -> vector<8x256xf32>
    %41 = vector.extract_strided_slice %40 {offsets = [0, 0], sizes = [8, 128], strides = [1, 1]} : vector<8x256xf32> to vector<8x128xf32>
    %42 = vector.shape_cast %41 : vector<8x128xf32> to vector<1x8x1x128xf32>
    %43 = vector.extract_strided_slice %40 {offsets = [0, 128], sizes = [8, 128], strides = [1, 1]} : vector<8x256xf32> to vector<8x128xf32>
    %44 = vector.shape_cast %43 : vector<8x128xf32> to vector<1x1x8x128xf32>
    %c0_10 = arith.constant 0 : index
    %c0_11 = arith.constant 0 : index
    %c0_12 = arith.constant 0 : index
    %45 = vector.load %arg4[%c0_10, %c0_11, %c0_12] : memref<6x1x128xf32, #tpu.memory_space<vmem>>, vector<1x1x128xf32>
    %46 = vector.shape_cast %45 : vector<1x1x128xf32> to vector<1x128xf32>
    %c0_13 = arith.constant 0 : index
    %c0_14 = arith.constant 0 : index
    %c0_15 = arith.constant 0 : index
    %47 = vector.load %arg5[%c0_13, %c0_14, %c0_15] : memref<6x1x128xf32, #tpu.memory_space<vmem>>, vector<1x1x128xf32>
    %48 = vector.shape_cast %47 : vector<1x1x128xf32> to vector<1x128xf32>
    %c0_16 = arith.constant 0 : index
    %c0_17 = arith.constant 0 : index
    %c0_18 = arith.constant 0 : index
    %49 = vector.load %arg6[%c0_16, %c0_17, %c0_18] : memref<6x1x128xf32, #tpu.memory_space<vmem>>, vector<1x1x128xf32>
    %50 = vector.shape_cast %49 : vector<1x1x128xf32> to vector<1x128xf32>
    %cst_19 = arith.constant 0.000000e+00 : f32
    %51 = vector.broadcast %cst_19 : f32 to vector<1x8x128xf32>
    %52 = vector.broadcast %42 : vector<1x8x1x128xf32> to vector<1x8x8x128xf32>
    %53 = vector.broadcast %44 : vector<1x1x8x128xf32> to vector<1x8x8x128xf32>
    %54 = arith.addf %52, %53 : vector<1x8x8x128xf32>
    %55 = vector.shape_cast %27 : vector<1x8x8xf32> to vector<1x8x8x1xf32>
    %56 = vector.shape_cast %46 : vector<1x128xf32> to vector<1x1x1x128xf32>
    %57 = vector.broadcast %55 : vector<1x8x8x1xf32> to vector<1x8x8x128xf32>
    %58 = vector.broadcast %56 : vector<1x1x1x128xf32> to vector<1x8x8x128xf32>
    %59 = arith.mulf %57, %58 : vector<1x8x8x128xf32>
    %60 = arith.addf %54, %59 : vector<1x8x8x128xf32>
    %61 = vector.shape_cast %27 : vector<1x8x8xf32> to vector<1x8x8x1xf32>
    %62 = vector.shape_cast %48 : vector<1x128xf32> to vector<1x1x1x128xf32>
    %63 = vector.broadcast %61 : vector<1x8x8x1xf32> to vector<1x8x8x128xf32>
    %64 = vector.broadcast %62 : vector<1x1x1x128xf32> to vector<1x8x8x128xf32>
    %65 = arith.mulf %63, %64 : vector<1x8x8x128xf32>
    %66 = arith.addf %60, %65 : vector<1x8x8x128xf32>
    %67 = vector.shape_cast %50 : vector<1x128xf32> to vector<1x1x1x128xf32>
    %68 = vector.broadcast %67 : vector<1x1x1x128xf32> to vector<1x8x8x128xf32>
    %69 = arith.addf %66, %68 : vector<1x8x8x128xf32>
    %70 = arith.negf %69 : vector<1x8x8x128xf32>
    %71 = math.exp %70 : vector<1x8x8x128xf32>
    %cst_20 = arith.constant 1.000000e+00 : f32
    %72 = vector.broadcast %cst_20 : f32 to vector<1x8x8x128xf32>
    %73 = arith.addf %72, %71 : vector<1x8x8x128xf32>
    %74 = arith.divf %72, %73 : vector<1x8x8x128xf32>
    %75 = arith.mulf %69, %74 : vector<1x8x8x128xf32>
    %76 = vector.shape_cast %75 : vector<1x8x8x128xf32> to vector<64x128xf32>
    %c0_21 = arith.constant 0 : index
    %c0_22 = arith.constant 0 : index
    %c0_23 = arith.constant 0 : index
    %77 = vector.load %arg7[%c0_21, %c0_22, %c0_23] : memref<6x128x128xf32, #tpu.memory_space<vmem>>, vector<1x128x128xf32>
    %78 = vector.shape_cast %77 : vector<1x128x128xf32> to vector<128x128xf32>
    %cst_24 = arith.constant dense<0.000000e+00> : vector<64x128xf32>
    %79 = tpu.matmul %76, %78, %cst_24 {dimension_numbers = #tpu.dot_dimension_numbers<[1], [0], [0], [1], [0, 0, 1, 1], [], []>} : vector<64x128xf32>, vector<128x128xf32>, vector<64x128xf32> -> vector<64x128xf32>
    %c0_25 = arith.constant 0 : index
    %c0_26 = arith.constant 0 : index
    %c0_27 = arith.constant 0 : index
    %80 = vector.load %arg8[%c0_25, %c0_26, %c0_27] : memref<6x1x128xf32, #tpu.memory_space<vmem>>, vector<1x1x128xf32>
    %81 = vector.shape_cast %80 : vector<1x1x128xf32> to vector<1x128xf32>
    %82 = vector.broadcast %81 : vector<1x128xf32> to vector<64x128xf32>
    %83 = arith.addf %79, %82 : vector<64x128xf32>
    %84 = arith.negf %83 : vector<64x128xf32>
    %85 = math.exp %84 : vector<64x128xf32>
    %cst_28 = arith.constant 1.000000e+00 : f32
    %86 = vector.broadcast %cst_28 : f32 to vector<64x128xf32>
    %87 = arith.addf %86, %85 : vector<64x128xf32>
    %88 = arith.divf %86, %87 : vector<64x128xf32>
    %89 = arith.mulf %83, %88 : vector<64x128xf32>
    %90 = vector.shape_cast %89 : vector<64x128xf32> to vector<1x8x8x128xf32>
    %cst_29 = arith.constant dense<0.000000e+00> : vector<1x8x128xf32>
    %91 = vector.multi_reduction <add>, %90, %cst_29 [2] : vector<1x8x8x128xf32> to vector<1x8x128xf32>
    %92 = arith.addf %51, %91 : vector<1x8x128xf32>
    %cst_30 = arith.constant 0.00999999977 : f32
    %93 = vector.broadcast %cst_30 : f32 to vector<1x8x128xf32>
    %94 = arith.mulf %92, %93 : vector<1x8x128xf32>
    %95 = vector.shape_cast %0 : vector<1x8x128xf32> to vector<8x128xf32>
    %c0_31 = arith.constant 0 : index
    %c0_32 = arith.constant 0 : index
    %c0_33 = arith.constant 0 : index
    %96 = vector.load %arg9[%c0_31, %c0_32, %c0_33] : memref<6x128x128xf32, #tpu.memory_space<vmem>>, vector<1x128x128xf32>
    %97 = vector.shape_cast %96 : vector<1x128x128xf32> to vector<128x128xf32>
    %cst_34 = arith.constant dense<0.000000e+00> : vector<8x128xf32>
    %98 = tpu.matmul %95, %97, %cst_34 {dimension_numbers = #tpu.dot_dimension_numbers<[1], [0], [0], [1], [0, 0, 1, 1], [], []>} : vector<8x128xf32>, vector<128x128xf32>, vector<8x128xf32> -> vector<8x128xf32>
    %99 = vector.shape_cast %94 : vector<1x8x128xf32> to vector<8x128xf32>
    %c0_35 = arith.constant 0 : index
    %c0_36 = arith.constant 0 : index
    %c0_37 = arith.constant 0 : index
    %100 = vector.load %arg10[%c0_35, %c0_36, %c0_37] : memref<6x128x128xf32, #tpu.memory_space<vmem>>, vector<1x128x128xf32>
    %101 = vector.shape_cast %100 : vector<1x128x128xf32> to vector<128x128xf32>
    %cst_38 = arith.constant dense<0.000000e+00> : vector<8x128xf32>
    %102 = tpu.matmul %99, %101, %cst_38 {dimension_numbers = #tpu.dot_dimension_numbers<[1], [0], [0], [1], [0, 0, 1, 1], [], []>} : vector<8x128xf32>, vector<128x128xf32>, vector<8x128xf32> -> vector<8x128xf32>
    %103 = arith.addf %98, %102 : vector<8x128xf32>
    %c0_39 = arith.constant 0 : index
    %c0_40 = arith.constant 0 : index
    %c0_41 = arith.constant 0 : index
    %104 = vector.load %arg11[%c0_39, %c0_40, %c0_41] : memref<6x1x128xf32, #tpu.memory_space<vmem>>, vector<1x1x128xf32>
    %105 = vector.shape_cast %104 : vector<1x1x128xf32> to vector<1x128xf32>
    %106 = vector.broadcast %105 : vector<1x128xf32> to vector<8x128xf32>
    %107 = arith.addf %103, %106 : vector<8x128xf32>
    %108 = arith.negf %107 : vector<8x128xf32>
    %109 = math.exp %108 : vector<8x128xf32>
    %cst_42 = arith.constant 1.000000e+00 : f32
    %110 = vector.broadcast %cst_42 : f32 to vector<8x128xf32>
    %111 = arith.addf %110, %109 : vector<8x128xf32>
    %112 = arith.divf %110, %111 : vector<8x128xf32>
    %113 = arith.mulf %107, %112 : vector<8x128xf32>
    %c0_43 = arith.constant 0 : index
    %c0_44 = arith.constant 0 : index
    %c0_45 = arith.constant 0 : index
    %114 = vector.load %arg12[%c0_43, %c0_44, %c0_45] : memref<6x128x128xf32, #tpu.memory_space<vmem>>, vector<1x128x128xf32>
    %115 = vector.shape_cast %114 : vector<1x128x128xf32> to vector<128x128xf32>
    %cst_46 = arith.constant dense<0.000000e+00> : vector<8x128xf32>
    %116 = tpu.matmul %113, %115, %cst_46 {dimension_numbers = #tpu.dot_dimension_numbers<[1], [0], [0], [1], [0, 0, 1, 1], [], []>} : vector<8x128xf32>, vector<128x128xf32>, vector<8x128xf32> -> vector<8x128xf32>
    %c0_47 = arith.constant 0 : index
    %c0_48 = arith.constant 0 : index
    %c0_49 = arith.constant 0 : index
    %117 = vector.load %arg13[%c0_47, %c0_48, %c0_49] : memref<6x1x128xf32, #tpu.memory_space<vmem>>, vector<1x1x128xf32>
    %118 = vector.shape_cast %117 : vector<1x1x128xf32> to vector<1x128xf32>
    %119 = vector.broadcast %118 : vector<1x128xf32> to vector<8x128xf32>
    %120 = arith.addf %116, %119 : vector<8x128xf32>
    %121 = vector.shape_cast %120 : vector<8x128xf32> to vector<1x8x128xf32>
    %122 = arith.addf %0, %121 : vector<1x8x128xf32>
    %123 = vector.shape_cast %122 : vector<1x8x128xf32> to vector<8x128xf32>
    %c1 = arith.constant 1 : index
    %c0_50 = arith.constant 0 : index
    %c0_51 = arith.constant 0 : index
    %124 = vector.load %arg3[%c1, %c0_50, %c0_51] : memref<6x128x256xf32, #tpu.memory_space<vmem>>, vector<1x128x256xf32>
    %125 = vector.shape_cast %124 : vector<1x128x256xf32> to vector<128x256xf32>
    %cst_52 = arith.constant dense<0.000000e+00> : vector<8x256xf32>
    %126 = tpu.matmul %123, %125, %cst_52 {dimension_numbers = #tpu.dot_dimension_numbers<[1], [0], [0], [1], [0, 0, 1, 1], [], []>} : vector<8x128xf32>, vector<128x256xf32>, vector<8x256xf32> -> vector<8x256xf32>
    %127 = vector.extract_strided_slice %126 {offsets = [0, 0], sizes = [8, 128], strides = [1, 1]} : vector<8x256xf32> to vector<8x128xf32>
    %128 = vector.shape_cast %127 : vector<8x128xf32> to vector<1x8x1x128xf32>
    %129 = vector.extract_strided_slice %126 {offsets = [0, 128], sizes = [8, 128], strides = [1, 1]} : vector<8x256xf32> to vector<8x128xf32>
    %130 = vector.shape_cast %129 : vector<8x128xf32> to vector<1x1x8x128xf32>
    %c1_53 = arith.constant 1 : index
    %c0_54 = arith.constant 0 : index
    %c0_55 = arith.constant 0 : index
    %131 = vector.load %arg4[%c1_53, %c0_54, %c0_55] : memref<6x1x128xf32, #tpu.memory_space<vmem>>, vector<1x1x128xf32>
    %132 = vector.shape_cast %131 : vector<1x1x128xf32> to vector<1x128xf32>
    %c1_56 = arith.constant 1 : index
    %c0_57 = arith.constant 0 : index
    %c0_58 = arith.constant 0 : index
    %133 = vector.load %arg5[%c1_56, %c0_57, %c0_58] : memref<6x1x128xf32, #tpu.memory_space<vmem>>, vector<1x1x128xf32>
    %134 = vector.shape_cast %133 : vector<1x1x128xf32> to vector<1x128xf32>
    %c1_59 = arith.constant 1 : index
    %c0_60 = arith.constant 0 : index
    %c0_61 = arith.constant 0 : index
    %135 = vector.load %arg6[%c1_59, %c0_60, %c0_61] : memref<6x1x128xf32, #tpu.memory_space<vmem>>, vector<1x1x128xf32>
    %136 = vector.shape_cast %135 : vector<1x1x128xf32> to vector<1x128xf32>
    %cst_62 = arith.constant 0.000000e+00 : f32
    %137 = vector.broadcast %cst_62 : f32 to vector<1x8x128xf32>
    %138 = vector.broadcast %128 : vector<1x8x1x128xf32> to vector<1x8x8x128xf32>
    %139 = vector.broadcast %130 : vector<1x1x8x128xf32> to vector<1x8x8x128xf32>
    %140 = arith.addf %138, %139 : vector<1x8x8x128xf32>
    %141 = vector.shape_cast %27 : vector<1x8x8xf32> to vector<1x8x8x1xf32>
    %142 = vector.shape_cast %132 : vector<1x128xf32> to vector<1x1x1x128xf32>
    %143 = vector.broadcast %141 : vector<1x8x8x1xf32> to vector<1x8x8x128xf32>
    %144 = vector.broadcast %142 : vector<1x1x1x128xf32> to vector<1x8x8x128xf32>
    %145 = arith.mulf %143, %144 : vector<1x8x8x128xf32>
    %146 = arith.addf %140, %145 : vector<1x8x8x128xf32>
    %147 = vector.shape_cast %27 : vector<1x8x8xf32> to vector<1x8x8x1xf32>
    %148 = vector.shape_cast %134 : vector<1x128xf32> to vector<1x1x1x128xf32>
    %149 = vector.broadcast %147 : vector<1x8x8x1xf32> to vector<1x8x8x128xf32>
    %150 = vector.broadcast %148 : vector<1x1x1x128xf32> to vector<1x8x8x128xf32>
    %151 = arith.mulf %149, %150 : vector<1x8x8x128xf32>
    %152 = arith.addf %146, %151 : vector<1x8x8x128xf32>
    %153 = vector.shape_cast %136 : vector<1x128xf32> to vector<1x1x1x128xf32>
    %154 = vector.broadcast %153 : vector<1x1x1x128xf32> to vector<1x8x8x128xf32>
    %155 = arith.addf %152, %154 : vector<1x8x8x128xf32>
    %156 = arith.negf %155 : vector<1x8x8x128xf32>
    %157 = math.exp %156 : vector<1x8x8x128xf32>
    %cst_63 = arith.constant 1.000000e+00 : f32
    %158 = vector.broadcast %cst_63 : f32 to vector<1x8x8x128xf32>
    %159 = arith.addf %158, %157 : vector<1x8x8x128xf32>
    %160 = arith.divf %158, %159 : vector<1x8x8x128xf32>
    %161 = arith.mulf %155, %160 : vector<1x8x8x128xf32>
    %162 = vector.shape_cast %161 : vector<1x8x8x128xf32> to vector<64x128xf32>
    %c1_64 = arith.constant 1 : index
    %c0_65 = arith.constant 0 : index
    %c0_66 = arith.constant 0 : index
    %163 = vector.load %arg7[%c1_64, %c0_65, %c0_66] : memref<6x128x128xf32, #tpu.memory_space<vmem>>, vector<1x128x128xf32>
    %164 = vector.shape_cast %163 : vector<1x128x128xf32> to vector<128x128xf32>
    %cst_67 = arith.constant dense<0.000000e+00> : vector<64x128xf32>
    %165 = tpu.matmul %162, %164, %cst_67 {dimension_numbers = #tpu.dot_dimension_numbers<[1], [0], [0], [1], [0, 0, 1, 1], [], []>} : vector<64x128xf32>, vector<128x128xf32>, vector<64x128xf32> -> vector<64x128xf32>
    %c1_68 = arith.constant 1 : index
    %c0_69 = arith.constant 0 : index
    %c0_70 = arith.constant 0 : index
    %166 = vector.load %arg8[%c1_68, %c0_69, %c0_70] : memref<6x1x128xf32, #tpu.memory_space<vmem>>, vector<1x1x128xf32>
    %167 = vector.shape_cast %166 : vector<1x1x128xf32> to vector<1x128xf32>
    %168 = vector.broadcast %167 : vector<1x128xf32> to vector<64x128xf32>
    %169 = arith.addf %165, %168 : vector<64x128xf32>
    %170 = arith.negf %169 : vector<64x128xf32>
    %171 = math.exp %170 : vector<64x128xf32>
    %cst_71 = arith.constant 1.000000e+00 : f32
    %172 = vector.broadcast %cst_71 : f32 to vector<64x128xf32>
    %173 = arith.addf %172, %171 : vector<64x128xf32>
    %174 = arith.divf %172, %173 : vector<64x128xf32>
    %175 = arith.mulf %169, %174 : vector<64x128xf32>
    %176 = vector.shape_cast %175 : vector<64x128xf32> to vector<1x8x8x128xf32>
    %cst_72 = arith.constant dense<0.000000e+00> : vector<1x8x128xf32>
    %177 = vector.multi_reduction <add>, %176, %cst_72 [2] : vector<1x8x8x128xf32> to vector<1x8x128xf32>
    %178 = arith.addf %137, %177 : vector<1x8x128xf32>
    %cst_73 = arith.constant 0.00999999977 : f32
    %179 = vector.broadcast %cst_73 : f32 to vector<1x8x128xf32>
    %180 = arith.mulf %178, %179 : vector<1x8x128xf32>
    %181 = vector.shape_cast %122 : vector<1x8x128xf32> to vector<8x128xf32>
    %c1_74 = arith.constant 1 : index
    %c0_75 = arith.constant 0 : index
    %c0_76 = arith.constant 0 : index
    %182 = vector.load %arg9[%c1_74, %c0_75, %c0_76] : memref<6x128x128xf32, #tpu.memory_space<vmem>>, vector<1x128x128xf32>
    %183 = vector.shape_cast %182 : vector<1x128x128xf32> to vector<128x128xf32>
    %cst_77 = arith.constant dense<0.000000e+00> : vector<8x128xf32>
    %184 = tpu.matmul %181, %183, %cst_77 {dimension_numbers = #tpu.dot_dimension_numbers<[1], [0], [0], [1], [0, 0, 1, 1], [], []>} : vector<8x128xf32>, vector<128x128xf32>, vector<8x128xf32> -> vector<8x128xf32>
    %185 = vector.shape_cast %180 : vector<1x8x128xf32> to vector<8x128xf32>
    %c1_78 = arith.constant 1 : index
    %c0_79 = arith.constant 0 : index
    %c0_80 = arith.constant 0 : index
    %186 = vector.load %arg10[%c1_78, %c0_79, %c0_80] : memref<6x128x128xf32, #tpu.memory_space<vmem>>, vector<1x128x128xf32>
    %187 = vector.shape_cast %186 : vector<1x128x128xf32> to vector<128x128xf32>
    %cst_81 = arith.constant dense<0.000000e+00> : vector<8x128xf32>
    %188 = tpu.matmul %185, %187, %cst_81 {dimension_numbers = #tpu.dot_dimension_numbers<[1], [0], [0], [1], [0, 0, 1, 1], [], []>} : vector<8x128xf32>, vector<128x128xf32>, vector<8x128xf32> -> vector<8x128xf32>
    %189 = arith.addf %184, %188 : vector<8x128xf32>
    %c1_82 = arith.constant 1 : index
    %c0_83 = arith.constant 0 : index
    %c0_84 = arith.constant 0 : index
    %190 = vector.load %arg11[%c1_82, %c0_83, %c0_84] : memref<6x1x128xf32, #tpu.memory_space<vmem>>, vector<1x1x128xf32>
    %191 = vector.shape_cast %190 : vector<1x1x128xf32> to vector<1x128xf32>
    %192 = vector.broadcast %191 : vector<1x128xf32> to vector<8x128xf32>
    %193 = arith.addf %189, %192 : vector<8x128xf32>
    %194 = arith.negf %193 : vector<8x128xf32>
    %195 = math.exp %194 : vector<8x128xf32>
    %cst_85 = arith.constant 1.000000e+00 : f32
    %196 = vector.broadcast %cst_85 : f32 to vector<8x128xf32>
    %197 = arith.addf %196, %195 : vector<8x128xf32>
    %198 = arith.divf %196, %197 : vector<8x128xf32>
    %199 = arith.mulf %193, %198 : vector<8x128xf32>
    %c1_86 = arith.constant 1 : index
    %c0_87 = arith.constant 0 : index
    %c0_88 = arith.constant 0 : index
    %200 = vector.load %arg12[%c1_86, %c0_87, %c0_88] : memref<6x128x128xf32, #tpu.memory_space<vmem>>, vector<1x128x128xf32>
    %201 = vector.shape_cast %200 : vector<1x128x128xf32> to vector<128x128xf32>
    %cst_89 = arith.constant dense<0.000000e+00> : vector<8x128xf32>
    %202 = tpu.matmul %199, %201, %cst_89 {dimension_numbers = #tpu.dot_dimension_numbers<[1], [0], [0], [1], [0, 0, 1, 1], [], []>} : vector<8x128xf32>, vector<128x128xf32>, vector<8x128xf32> -> vector<8x128xf32>
    %c1_90 = arith.constant 1 : index
    %c0_91 = arith.constant 0 : index
    %c0_92 = arith.constant 0 : index
    %203 = vector.load %arg13[%c1_90, %c0_91, %c0_92] : memref<6x1x128xf32, #tpu.memory_space<vmem>>, vector<1x1x128xf32>
    %204 = vector.shape_cast %203 : vector<1x1x128xf32> to vector<1x128xf32>
    %205 = vector.broadcast %204 : vector<1x128xf32> to vector<8x128xf32>
    %206 = arith.addf %202, %205 : vector<8x128xf32>
    %207 = vector.shape_cast %206 : vector<8x128xf32> to vector<1x8x128xf32>
    %208 = arith.addf %122, %207 : vector<1x8x128xf32>
    %209 = vector.shape_cast %208 : vector<1x8x128xf32> to vector<8x128xf32>
    %c0_93 = arith.constant 0 : index
    %c0_94 = arith.constant 0 : index
    %c0_95 = arith.constant 0 : index
    %210 = vector.load %arg14[%c0_93, %c0_94, %c0_95] : memref<3x128x256xf32, #tpu.memory_space<vmem>>, vector<1x128x256xf32>
    %211 = vector.shape_cast %210 : vector<1x128x256xf32> to vector<128x256xf32>
    %cst_96 = arith.constant dense<0.000000e+00> : vector<8x256xf32>
    %212 = tpu.matmul %209, %211, %cst_96 {dimension_numbers = #tpu.dot_dimension_numbers<[1], [0], [0], [1], [0, 0, 1, 1], [], []>} : vector<8x128xf32>, vector<128x256xf32>, vector<8x256xf32> -> vector<8x256xf32>
    %213 = vector.extract_strided_slice %212 {offsets = [0, 0], sizes = [8, 128], strides = [1, 1]} : vector<8x256xf32> to vector<8x128xf32>
    %214 = vector.shape_cast %213 : vector<8x128xf32> to vector<1x8x1x128xf32>
    %215 = vector.extract_strided_slice %212 {offsets = [0, 128], sizes = [8, 128], strides = [1, 1]} : vector<8x256xf32> to vector<8x128xf32>
    %216 = vector.shape_cast %215 : vector<8x128xf32> to vector<1x1x8x128xf32>
    %c0_97 = arith.constant 0 : index
    %c0_98 = arith.constant 0 : index
    %c0_99 = arith.constant 0 : index
    %217 = vector.load %arg15[%c0_97, %c0_98, %c0_99] : memref<3x1x128xf32, #tpu.memory_space<vmem>>, vector<1x1x128xf32>
    %218 = vector.shape_cast %217 : vector<1x1x128xf32> to vector<1x128xf32>
    %c0_100 = arith.constant 0 : index
    %c0_101 = arith.constant 0 : index
    %c0_102 = arith.constant 0 : index
    %219 = vector.load %arg16[%c0_100, %c0_101, %c0_102] : memref<3x1x128xf32, #tpu.memory_space<vmem>>, vector<1x1x128xf32>
    %220 = vector.shape_cast %219 : vector<1x1x128xf32> to vector<1x128xf32>
    %c0_103 = arith.constant 0 : index
    %c0_104 = arith.constant 0 : index
    %c0_105 = arith.constant 0 : index
    %221 = vector.load %arg17[%c0_103, %c0_104, %c0_105] : memref<3x1x128xf32, #tpu.memory_space<vmem>>, vector<1x1x128xf32>
    %222 = vector.shape_cast %221 : vector<1x1x128xf32> to vector<1x128xf32>
    %c0_106 = arith.constant 0 : index
    %c0_107 = arith.constant 0 : index
    %c0_108 = arith.constant 0 : index
    %223 = vector.load %arg20[%c0_106, %c0_107, %c0_108] : memref<3x1x128xf32, #tpu.memory_space<vmem>>, vector<1x1x128xf32>
    %224 = vector.shape_cast %223 : vector<1x1x128xf32> to vector<1x128xf32>
    %cst_109 = arith.constant 0.000000e+00 : f32
    %225 = vector.broadcast %cst_109 : f32 to vector<1x8xf32>
    %cst_110 = arith.constant 0.000000e+00 : f32
    %226 = vector.broadcast %cst_110 : f32 to vector<1x8xf32>
    %cst_111 = arith.constant 0.000000e+00 : f32
    %227 = vector.broadcast %cst_111 : f32 to vector<1x8xf32>
    %228 = vector.broadcast %214 : vector<1x8x1x128xf32> to vector<1x8x8x128xf32>
    %229 = vector.broadcast %216 : vector<1x1x8x128xf32> to vector<1x8x8x128xf32>
    %230 = arith.addf %228, %229 : vector<1x8x8x128xf32>
    %231 = vector.shape_cast %27 : vector<1x8x8xf32> to vector<1x8x8x1xf32>
    %232 = vector.shape_cast %218 : vector<1x128xf32> to vector<1x1x1x128xf32>
    %233 = vector.broadcast %231 : vector<1x8x8x1xf32> to vector<1x8x8x128xf32>
    %234 = vector.broadcast %232 : vector<1x1x1x128xf32> to vector<1x8x8x128xf32>
    %235 = arith.mulf %233, %234 : vector<1x8x8x128xf32>
    %236 = arith.addf %230, %235 : vector<1x8x8x128xf32>
    %237 = vector.shape_cast %27 : vector<1x8x8xf32> to vector<1x8x8x1xf32>
    %238 = vector.shape_cast %220 : vector<1x128xf32> to vector<1x1x1x128xf32>
    %239 = vector.broadcast %237 : vector<1x8x8x1xf32> to vector<1x8x8x128xf32>
    %240 = vector.broadcast %238 : vector<1x1x1x128xf32> to vector<1x8x8x128xf32>
    %241 = arith.mulf %239, %240 : vector<1x8x8x128xf32>
    %242 = arith.addf %236, %241 : vector<1x8x8x128xf32>
    %243 = vector.shape_cast %222 : vector<1x128xf32> to vector<1x1x1x128xf32>
    %244 = vector.broadcast %243 : vector<1x1x1x128xf32> to vector<1x8x8x128xf32>
    %245 = arith.addf %242, %244 : vector<1x8x8x128xf32>
    %246 = arith.negf %245 : vector<1x8x8x128xf32>
    %247 = math.exp %246 : vector<1x8x8x128xf32>
    %cst_112 = arith.constant 1.000000e+00 : f32
    %248 = vector.broadcast %cst_112 : f32 to vector<1x8x8x128xf32>
    %249 = arith.addf %248, %247 : vector<1x8x8x128xf32>
    %250 = arith.divf %248, %249 : vector<1x8x8x128xf32>
    %251 = arith.mulf %245, %250 : vector<1x8x8x128xf32>
    %252 = vector.shape_cast %251 : vector<1x8x8x128xf32> to vector<64x128xf32>
    %c0_113 = arith.constant 0 : index
    %c0_114 = arith.constant 0 : index
    %c0_115 = arith.constant 0 : index
    %253 = vector.load %arg18[%c0_113, %c0_114, %c0_115] : memref<3x128x128xf32, #tpu.memory_space<vmem>>, vector<1x128x128xf32>
    %254 = vector.shape_cast %253 : vector<1x128x128xf32> to vector<128x128xf32>
    %cst_116 = arith.constant dense<0.000000e+00> : vector<64x128xf32>
    %255 = tpu.matmul %252, %254, %cst_116 {dimension_numbers = #tpu.dot_dimension_numbers<[1], [0], [0], [1], [0, 0, 1, 1], [], []>} : vector<64x128xf32>, vector<128x128xf32>, vector<64x128xf32> -> vector<64x128xf32>
    %c0_117 = arith.constant 0 : index
    %c0_118 = arith.constant 0 : index
    %c0_119 = arith.constant 0 : index
    %256 = vector.load %arg19[%c0_117, %c0_118, %c0_119] : memref<3x1x128xf32, #tpu.memory_space<vmem>>, vector<1x1x128xf32>
    %257 = vector.shape_cast %256 : vector<1x1x128xf32> to vector<1x128xf32>
    %258 = vector.broadcast %257 : vector<1x128xf32> to vector<64x128xf32>
    %259 = arith.addf %255, %258 : vector<64x128xf32>
    %260 = arith.negf %259 : vector<64x128xf32>
    %261 = math.exp %260 : vector<64x128xf32>
    %cst_120 = arith.constant 1.000000e+00 : f32
    %262 = vector.broadcast %cst_120 : f32 to vector<64x128xf32>
    %263 = arith.addf %262, %261 : vector<64x128xf32>
    %264 = arith.divf %262, %263 : vector<64x128xf32>
    %265 = arith.mulf %259, %264 : vector<64x128xf32>
    %266 = vector.shape_cast %265 : vector<64x128xf32> to vector<1x8x8x128xf32>
    %267 = vector.shape_cast %224 : vector<1x128xf32> to vector<1x1x1x128xf32>
    %268 = vector.broadcast %267 : vector<1x1x1x128xf32> to vector<1x8x8x128xf32>
    %269 = arith.mulf %266, %268 : vector<1x8x8x128xf32>
    %cst_121 = arith.constant dense<0.000000e+00> : vector<1x8x8xf32>
    %270 = vector.multi_reduction <add>, %269, %cst_121 [3] : vector<1x8x8x128xf32> to vector<1x8x8xf32>
    %271 = arith.mulf %34, %270 : vector<1x8x8xf32>
    %cst_122 = arith.constant dense<0.000000e+00> : vector<1x8xf32>
    %272 = vector.multi_reduction <add>, %271, %cst_122 [2] : vector<1x8x8xf32> to vector<1x8xf32>
    %273 = arith.addf %225, %272 : vector<1x8xf32>
    %274 = arith.mulf %35, %270 : vector<1x8x8xf32>
    %cst_123 = arith.constant dense<0.000000e+00> : vector<1x8xf32>
    %275 = vector.multi_reduction <add>, %274, %cst_123 [2] : vector<1x8x8xf32> to vector<1x8xf32>
    %276 = arith.addf %226, %275 : vector<1x8xf32>
    %277 = arith.mulf %36, %270 : vector<1x8x8xf32>
    %cst_124 = arith.constant dense<0.000000e+00> : vector<1x8xf32>
    %278 = vector.multi_reduction <add>, %277, %cst_124 [2] : vector<1x8x8xf32> to vector<1x8xf32>
    %279 = arith.addf %227, %278 : vector<1x8xf32>
    %cst_125 = arith.constant 0.00999999977 : f32
    %280 = vector.broadcast %cst_125 : f32 to vector<1x8xf32>
    %281 = arith.mulf %273, %280 : vector<1x8xf32>
    %282 = arith.addf %3, %281 : vector<1x8xf32>
    %cst_126 = arith.constant 0.00999999977 : f32
    %283 = vector.broadcast %cst_126 : f32 to vector<1x8xf32>
    %284 = arith.mulf %276, %283 : vector<1x8xf32>
    %285 = arith.addf %5, %284 : vector<1x8xf32>
    %cst_127 = arith.constant 0.00999999977 : f32
    %286 = vector.broadcast %cst_127 : f32 to vector<1x8xf32>
    %287 = arith.mulf %279, %286 : vector<1x8xf32>
    %288 = arith.addf %7, %287 : vector<1x8xf32>
    %289 = vector.shape_cast %282 : vector<1x8xf32> to vector<1x8x1xf32>
    %290 = vector.shape_cast %282 : vector<1x8xf32> to vector<1x1x8xf32>
    %291 = vector.broadcast %289 : vector<1x8x1xf32> to vector<1x8x8xf32>
    %292 = vector.broadcast %290 : vector<1x1x8xf32> to vector<1x8x8xf32>
    %293 = arith.subf %291, %292 : vector<1x8x8xf32>
    %294 = vector.shape_cast %285 : vector<1x8xf32> to vector<1x8x1xf32>
    %295 = vector.shape_cast %285 : vector<1x8xf32> to vector<1x1x8xf32>
    %296 = vector.broadcast %294 : vector<1x8x1xf32> to vector<1x8x8xf32>
    %297 = vector.broadcast %295 : vector<1x1x8xf32> to vector<1x8x8xf32>
    %298 = arith.subf %296, %297 : vector<1x8x8xf32>
    %299 = vector.shape_cast %288 : vector<1x8xf32> to vector<1x8x1xf32>
    %300 = vector.shape_cast %288 : vector<1x8xf32> to vector<1x1x8xf32>
    %301 = vector.broadcast %299 : vector<1x8x1xf32> to vector<1x8x8xf32>
    %302 = vector.broadcast %300 : vector<1x1x8xf32> to vector<1x8x8xf32>
    %303 = arith.subf %301, %302 : vector<1x8x8xf32>
    %304 = arith.mulf %293, %293 : vector<1x8x8xf32>
    %305 = arith.mulf %298, %298 : vector<1x8x8xf32>
    %306 = arith.addf %304, %305 : vector<1x8x8xf32>
    %307 = arith.mulf %303, %303 : vector<1x8x8xf32>
    %308 = arith.addf %306, %307 : vector<1x8x8xf32>
    %cst_128 = arith.constant 9.99999993E-9 : f32
    %309 = vector.broadcast %cst_128 : f32 to vector<1x8x8xf32>
    %310 = arith.addf %308, %309 : vector<1x8x8xf32>
    %311 = math.sqrt %310 : vector<1x8x8xf32>
    %cst_129 = arith.constant 1.000000e+00 : f32
    %312 = vector.broadcast %cst_129 : f32 to vector<1x8x8xf32>
    %313 = arith.addf %311, %312 : vector<1x8x8xf32>
    %314 = tpu.reciprocal %313 {approx = true} : vector<1x8x8xf32> -> vector<1x8x8xf32>
    %315 = arith.mulf %293, %314 : vector<1x8x8xf32>
    %316 = arith.mulf %298, %314 : vector<1x8x8xf32>
    %317 = arith.mulf %303, %314 : vector<1x8x8xf32>
    %318 = vector.shape_cast %208 : vector<1x8x128xf32> to vector<8x128xf32>
    %c2 = arith.constant 2 : index
    %c0_130 = arith.constant 0 : index
    %c0_131 = arith.constant 0 : index
    %319 = vector.load %arg3[%c2, %c0_130, %c0_131] : memref<6x128x256xf32, #tpu.memory_space<vmem>>, vector<1x128x256xf32>
    %320 = vector.shape_cast %319 : vector<1x128x256xf32> to vector<128x256xf32>
    %cst_132 = arith.constant dense<0.000000e+00> : vector<8x256xf32>
    %321 = tpu.matmul %318, %320, %cst_132 {dimension_numbers = #tpu.dot_dimension_numbers<[1], [0], [0], [1], [0, 0, 1, 1], [], []>} : vector<8x128xf32>, vector<128x256xf32>, vector<8x256xf32> -> vector<8x256xf32>
    %322 = vector.extract_strided_slice %321 {offsets = [0, 0], sizes = [8, 128], strides = [1, 1]} : vector<8x256xf32> to vector<8x128xf32>
    %323 = vector.shape_cast %322 : vector<8x128xf32> to vector<1x8x1x128xf32>
    %324 = vector.extract_strided_slice %321 {offsets = [0, 128], sizes = [8, 128], strides = [1, 1]} : vector<8x256xf32> to vector<8x128xf32>
    %325 = vector.shape_cast %324 : vector<8x128xf32> to vector<1x1x8x128xf32>
    %c2_133 = arith.constant 2 : index
    %c0_134 = arith.constant 0 : index
    %c0_135 = arith.constant 0 : index
    %326 = vector.load %arg4[%c2_133, %c0_134, %c0_135] : memref<6x1x128xf32, #tpu.memory_space<vmem>>, vector<1x1x128xf32>
    %327 = vector.shape_cast %326 : vector<1x1x128xf32> to vector<1x128xf32>
    %c2_136 = arith.constant 2 : index
    %c0_137 = arith.constant 0 : index
    %c0_138 = arith.constant 0 : index
    %328 = vector.load %arg5[%c2_136, %c0_137, %c0_138] : memref<6x1x128xf32, #tpu.memory_space<vmem>>, vector<1x1x128xf32>
    %329 = vector.shape_cast %328 : vector<1x1x128xf32> to vector<1x128xf32>
    %c2_139 = arith.constant 2 : index
    %c0_140 = arith.constant 0 : index
    %c0_141 = arith.constant 0 : index
    %330 = vector.load %arg6[%c2_139, %c0_140, %c0_141] : memref<6x1x128xf32, #tpu.memory_space<vmem>>, vector<1x1x128xf32>
    %331 = vector.shape_cast %330 : vector<1x1x128xf32> to vector<1x128xf32>
    %cst_142 = arith.constant 0.000000e+00 : f32
    %332 = vector.broadcast %cst_142 : f32 to vector<1x8x128xf32>
    %333 = vector.broadcast %323 : vector<1x8x1x128xf32> to vector<1x8x8x128xf32>
    %334 = vector.broadcast %325 : vector<1x1x8x128xf32> to vector<1x8x8x128xf32>
    %335 = arith.addf %333, %334 : vector<1x8x8x128xf32>
    %336 = vector.shape_cast %308 : vector<1x8x8xf32> to vector<1x8x8x1xf32>
    %337 = vector.shape_cast %327 : vector<1x128xf32> to vector<1x1x1x128xf32>
    %338 = vector.broadcast %336 : vector<1x8x8x1xf32> to vector<1x8x8x128xf32>
    %339 = vector.broadcast %337 : vector<1x1x1x128xf32> to vector<1x8x8x128xf32>
    %340 = arith.mulf %338, %339 : vector<1x8x8x128xf32>
    %341 = arith.addf %335, %340 : vector<1x8x8x128xf32>
    %342 = vector.shape_cast %27 : vector<1x8x8xf32> to vector<1x8x8x1xf32>
    %343 = vector.shape_cast %329 : vector<1x128xf32> to vector<1x1x1x128xf32>
    %344 = vector.broadcast %342 : vector<1x8x8x1xf32> to vector<1x8x8x128xf32>
    %345 = vector.broadcast %343 : vector<1x1x1x128xf32> to vector<1x8x8x128xf32>
    %346 = arith.mulf %344, %345 : vector<1x8x8x128xf32>
    %347 = arith.addf %341, %346 : vector<1x8x8x128xf32>
    %348 = vector.shape_cast %331 : vector<1x128xf32> to vector<1x1x1x128xf32>
    %349 = vector.broadcast %348 : vector<1x1x1x128xf32> to vector<1x8x8x128xf32>
    %350 = arith.addf %347, %349 : vector<1x8x8x128xf32>
    %351 = arith.negf %350 : vector<1x8x8x128xf32>
    %352 = math.exp %351 : vector<1x8x8x128xf32>
    %cst_143 = arith.constant 1.000000e+00 : f32
    %353 = vector.broadcast %cst_143 : f32 to vector<1x8x8x128xf32>
    %354 = arith.addf %353, %352 : vector<1x8x8x128xf32>
    %355 = arith.divf %353, %354 : vector<1x8x8x128xf32>
    %356 = arith.mulf %350, %355 : vector<1x8x8x128xf32>
    %357 = vector.shape_cast %356 : vector<1x8x8x128xf32> to vector<64x128xf32>
    %c2_144 = arith.constant 2 : index
    %c0_145 = arith.constant 0 : index
    %c0_146 = arith.constant 0 : index
    %358 = vector.load %arg7[%c2_144, %c0_145, %c0_146] : memref<6x128x128xf32, #tpu.memory_space<vmem>>, vector<1x128x128xf32>
    %359 = vector.shape_cast %358 : vector<1x128x128xf32> to vector<128x128xf32>
    %cst_147 = arith.constant dense<0.000000e+00> : vector<64x128xf32>
    %360 = tpu.matmul %357, %359, %cst_147 {dimension_numbers = #tpu.dot_dimension_numbers<[1], [0], [0], [1], [0, 0, 1, 1], [], []>} : vector<64x128xf32>, vector<128x128xf32>, vector<64x128xf32> -> vector<64x128xf32>
    %c2_148 = arith.constant 2 : index
    %c0_149 = arith.constant 0 : index
    %c0_150 = arith.constant 0 : index
    %361 = vector.load %arg8[%c2_148, %c0_149, %c0_150] : memref<6x1x128xf32, #tpu.memory_space<vmem>>, vector<1x1x128xf32>
    %362 = vector.shape_cast %361 : vector<1x1x128xf32> to vector<1x128xf32>
    %363 = vector.broadcast %362 : vector<1x128xf32> to vector<64x128xf32>
    %364 = arith.addf %360, %363 : vector<64x128xf32>
    %365 = arith.negf %364 : vector<64x128xf32>
    %366 = math.exp %365 : vector<64x128xf32>
    %cst_151 = arith.constant 1.000000e+00 : f32
    %367 = vector.broadcast %cst_151 : f32 to vector<64x128xf32>
    %368 = arith.addf %367, %366 : vector<64x128xf32>
    %369 = arith.divf %367, %368 : vector<64x128xf32>
    %370 = arith.mulf %364, %369 : vector<64x128xf32>
    %371 = vector.shape_cast %370 : vector<64x128xf32> to vector<1x8x8x128xf32>
    %cst_152 = arith.constant dense<0.000000e+00> : vector<1x8x128xf32>
    %372 = vector.multi_reduction <add>, %371, %cst_152 [2] : vector<1x8x8x128xf32> to vector<1x8x128xf32>
    %373 = arith.addf %332, %372 : vector<1x8x128xf32>
    %cst_153 = arith.constant 0.00999999977 : f32
    %374 = vector.broadcast %cst_153 : f32 to vector<1x8x128xf32>
    %375 = arith.mulf %373, %374 : vector<1x8x128xf32>
    %376 = vector.shape_cast %208 : vector<1x8x128xf32> to vector<8x128xf32>
    %c2_154 = arith.constant 2 : index
    %c0_155 = arith.constant 0 : index
    %c0_156 = arith.constant 0 : index
    %377 = vector.load %arg9[%c2_154, %c0_155, %c0_156] : memref<6x128x128xf32, #tpu.memory_space<vmem>>, vector<1x128x128xf32>
    %378 = vector.shape_cast %377 : vector<1x128x128xf32> to vector<128x128xf32>
    %cst_157 = arith.constant dense<0.000000e+00> : vector<8x128xf32>
    %379 = tpu.matmul %376, %378, %cst_157 {dimension_numbers = #tpu.dot_dimension_numbers<[1], [0], [0], [1], [0, 0, 1, 1], [], []>} : vector<8x128xf32>, vector<128x128xf32>, vector<8x128xf32> -> vector<8x128xf32>
    %380 = vector.shape_cast %375 : vector<1x8x128xf32> to vector<8x128xf32>
    %c2_158 = arith.constant 2 : index
    %c0_159 = arith.constant 0 : index
    %c0_160 = arith.constant 0 : index
    %381 = vector.load %arg10[%c2_158, %c0_159, %c0_160] : memref<6x128x128xf32, #tpu.memory_space<vmem>>, vector<1x128x128xf32>
    %382 = vector.shape_cast %381 : vector<1x128x128xf32> to vector<128x128xf32>
    %cst_161 = arith.constant dense<0.000000e+00> : vector<8x128xf32>
    %383 = tpu.matmul %380, %382, %cst_161 {dimension_numbers = #tpu.dot_dimension_numbers<[1], [0], [0], [1], [0, 0, 1, 1], [], []>} : vector<8x128xf32>, vector<128x128xf32>, vector<8x128xf32> -> vector<8x128xf32>
    %384 = arith.addf %379, %383 : vector<8x128xf32>
    %c2_162 = arith.constant 2 : index
    %c0_163 = arith.constant 0 : index
    %c0_164 = arith.constant 0 : index
    %385 = vector.load %arg11[%c2_162, %c0_163, %c0_164] : memref<6x1x128xf32, #tpu.memory_space<vmem>>, vector<1x1x128xf32>
    %386 = vector.shape_cast %385 : vector<1x1x128xf32> to vector<1x128xf32>
    %387 = vector.broadcast %386 : vector<1x128xf32> to vector<8x128xf32>
    %388 = arith.addf %384, %387 : vector<8x128xf32>
    %389 = arith.negf %388 : vector<8x128xf32>
    %390 = math.exp %389 : vector<8x128xf32>
    %cst_165 = arith.constant 1.000000e+00 : f32
    %391 = vector.broadcast %cst_165 : f32 to vector<8x128xf32>
    %392 = arith.addf %391, %390 : vector<8x128xf32>
    %393 = arith.divf %391, %392 : vector<8x128xf32>
    %394 = arith.mulf %388, %393 : vector<8x128xf32>
    %c2_166 = arith.constant 2 : index
    %c0_167 = arith.constant 0 : index
    %c0_168 = arith.constant 0 : index
    %395 = vector.load %arg12[%c2_166, %c0_167, %c0_168] : memref<6x128x128xf32, #tpu.memory_space<vmem>>, vector<1x128x128xf32>
    %396 = vector.shape_cast %395 : vector<1x128x128xf32> to vector<128x128xf32>
    %cst_169 = arith.constant dense<0.000000e+00> : vector<8x128xf32>
    %397 = tpu.matmul %394, %396, %cst_169 {dimension_numbers = #tpu.dot_dimension_numbers<[1], [0], [0], [1], [0, 0, 1, 1], [], []>} : vector<8x128xf32>, vector<128x128xf32>, vector<8x128xf32> -> vector<8x128xf32>
    %c2_170 = arith.constant 2 : index
    %c0_171 = arith.constant 0 : index
    %c0_172 = arith.constant 0 : index
    %398 = vector.load %arg13[%c2_170, %c0_171, %c0_172] : memref<6x1x128xf32, #tpu.memory_space<vmem>>, vector<1x1x128xf32>
    %399 = vector.shape_cast %398 : vector<1x1x128xf32> to vector<1x128xf32>
    %400 = vector.broadcast %399 : vector<1x128xf32> to vector<8x128xf32>
    %401 = arith.addf %397, %400 : vector<8x128xf32>
    %402 = vector.shape_cast %401 : vector<8x128xf32> to vector<1x8x128xf32>
    %403 = arith.addf %208, %402 : vector<1x8x128xf32>
    %404 = vector.shape_cast %403 : vector<1x8x128xf32> to vector<8x128xf32>
    %c3 = arith.constant 3 : index
    %c0_173 = arith.constant 0 : index
    %c0_174 = arith.constant 0 : index
    %405 = vector.load %arg3[%c3, %c0_173, %c0_174] : memref<6x128x256xf32, #tpu.memory_space<vmem>>, vector<1x128x256xf32>
    %406 = vector.shape_cast %405 : vector<1x128x256xf32> to vector<128x256xf32>
    %cst_175 = arith.constant dense<0.000000e+00> : vector<8x256xf32>
    %407 = tpu.matmul %404, %406, %cst_175 {dimension_numbers = #tpu.dot_dimension_numbers<[1], [0], [0], [1], [0, 0, 1, 1], [], []>} : vector<8x128xf32>, vector<128x256xf32>, vector<8x256xf32> -> vector<8x256xf32>
    %408 = vector.extract_strided_slice %407 {offsets = [0, 0], sizes = [8, 128], strides = [1, 1]} : vector<8x256xf32> to vector<8x128xf32>
    %409 = vector.shape_cast %408 : vector<8x128xf32> to vector<1x8x1x128xf32>
    %410 = vector.extract_strided_slice %407 {offsets = [0, 128], sizes = [8, 128], strides = [1, 1]} : vector<8x256xf32> to vector<8x128xf32>
    %411 = vector.shape_cast %410 : vector<8x128xf32> to vector<1x1x8x128xf32>
    %c3_176 = arith.constant 3 : index
    %c0_177 = arith.constant 0 : index
    %c0_178 = arith.constant 0 : index
    %412 = vector.load %arg4[%c3_176, %c0_177, %c0_178] : memref<6x1x128xf32, #tpu.memory_space<vmem>>, vector<1x1x128xf32>
    %413 = vector.shape_cast %412 : vector<1x1x128xf32> to vector<1x128xf32>
    %c3_179 = arith.constant 3 : index
    %c0_180 = arith.constant 0 : index
    %c0_181 = arith.constant 0 : index
    %414 = vector.load %arg5[%c3_179, %c0_180, %c0_181] : memref<6x1x128xf32, #tpu.memory_space<vmem>>, vector<1x1x128xf32>
    %415 = vector.shape_cast %414 : vector<1x1x128xf32> to vector<1x128xf32>
    %c3_182 = arith.constant 3 : index
    %c0_183 = arith.constant 0 : index
    %c0_184 = arith.constant 0 : index
    %416 = vector.load %arg6[%c3_182, %c0_183, %c0_184] : memref<6x1x128xf32, #tpu.memory_space<vmem>>, vector<1x1x128xf32>
    %417 = vector.shape_cast %416 : vector<1x1x128xf32> to vector<1x128xf32>
    %cst_185 = arith.constant 0.000000e+00 : f32
    %418 = vector.broadcast %cst_185 : f32 to vector<1x8x128xf32>
    %419 = vector.broadcast %409 : vector<1x8x1x128xf32> to vector<1x8x8x128xf32>
    %420 = vector.broadcast %411 : vector<1x1x8x128xf32> to vector<1x8x8x128xf32>
    %421 = arith.addf %419, %420 : vector<1x8x8x128xf32>
    %422 = vector.shape_cast %308 : vector<1x8x8xf32> to vector<1x8x8x1xf32>
    %423 = vector.shape_cast %413 : vector<1x128xf32> to vector<1x1x1x128xf32>
    %424 = vector.broadcast %422 : vector<1x8x8x1xf32> to vector<1x8x8x128xf32>
    %425 = vector.broadcast %423 : vector<1x1x1x128xf32> to vector<1x8x8x128xf32>
    %426 = arith.mulf %424, %425 : vector<1x8x8x128xf32>
    %427 = arith.addf %421, %426 : vector<1x8x8x128xf32>
    %428 = vector.shape_cast %27 : vector<1x8x8xf32> to vector<1x8x8x1xf32>
    %429 = vector.shape_cast %415 : vector<1x128xf32> to vector<1x1x1x128xf32>
    %430 = vector.broadcast %428 : vector<1x8x8x1xf32> to vector<1x8x8x128xf32>
    %431 = vector.broadcast %429 : vector<1x1x1x128xf32> to vector<1x8x8x128xf32>
    %432 = arith.mulf %430, %431 : vector<1x8x8x128xf32>
    %433 = arith.addf %427, %432 : vector<1x8x8x128xf32>
    %434 = vector.shape_cast %417 : vector<1x128xf32> to vector<1x1x1x128xf32>
    %435 = vector.broadcast %434 : vector<1x1x1x128xf32> to vector<1x8x8x128xf32>
    %436 = arith.addf %433, %435 : vector<1x8x8x128xf32>
    %437 = arith.negf %436 : vector<1x8x8x128xf32>
    %438 = math.exp %437 : vector<1x8x8x128xf32>
    %cst_186 = arith.constant 1.000000e+00 : f32
    %439 = vector.broadcast %cst_186 : f32 to vector<1x8x8x128xf32>
    %440 = arith.addf %439, %438 : vector<1x8x8x128xf32>
    %441 = arith.divf %439, %440 : vector<1x8x8x128xf32>
    %442 = arith.mulf %436, %441 : vector<1x8x8x128xf32>
    %443 = vector.shape_cast %442 : vector<1x8x8x128xf32> to vector<64x128xf32>
    %c3_187 = arith.constant 3 : index
    %c0_188 = arith.constant 0 : index
    %c0_189 = arith.constant 0 : index
    %444 = vector.load %arg7[%c3_187, %c0_188, %c0_189] : memref<6x128x128xf32, #tpu.memory_space<vmem>>, vector<1x128x128xf32>
    %445 = vector.shape_cast %444 : vector<1x128x128xf32> to vector<128x128xf32>
    %cst_190 = arith.constant dense<0.000000e+00> : vector<64x128xf32>
    %446 = tpu.matmul %443, %445, %cst_190 {dimension_numbers = #tpu.dot_dimension_numbers<[1], [0], [0], [1], [0, 0, 1, 1], [], []>} : vector<64x128xf32>, vector<128x128xf32>, vector<64x128xf32> -> vector<64x128xf32>
    %c3_191 = arith.constant 3 : index
    %c0_192 = arith.constant 0 : index
    %c0_193 = arith.constant 0 : index
    %447 = vector.load %arg8[%c3_191, %c0_192, %c0_193] : memref<6x1x128xf32, #tpu.memory_space<vmem>>, vector<1x1x128xf32>
    %448 = vector.shape_cast %447 : vector<1x1x128xf32> to vector<1x128xf32>
    %449 = vector.broadcast %448 : vector<1x128xf32> to vector<64x128xf32>
    %450 = arith.addf %446, %449 : vector<64x128xf32>
    %451 = arith.negf %450 : vector<64x128xf32>
    %452 = math.exp %451 : vector<64x128xf32>
    %cst_194 = arith.constant 1.000000e+00 : f32
    %453 = vector.broadcast %cst_194 : f32 to vector<64x128xf32>
    %454 = arith.addf %453, %452 : vector<64x128xf32>
    %455 = arith.divf %453, %454 : vector<64x128xf32>
    %456 = arith.mulf %450, %455 : vector<64x128xf32>
    %457 = vector.shape_cast %456 : vector<64x128xf32> to vector<1x8x8x128xf32>
    %cst_195 = arith.constant dense<0.000000e+00> : vector<1x8x128xf32>
    %458 = vector.multi_reduction <add>, %457, %cst_195 [2] : vector<1x8x8x128xf32> to vector<1x8x128xf32>
    %459 = arith.addf %418, %458 : vector<1x8x128xf32>
    %cst_196 = arith.constant 0.00999999977 : f32
    %460 = vector.broadcast %cst_196 : f32 to vector<1x8x128xf32>
    %461 = arith.mulf %459, %460 : vector<1x8x128xf32>
    %462 = vector.shape_cast %403 : vector<1x8x128xf32> to vector<8x128xf32>
    %c3_197 = arith.constant 3 : index
    %c0_198 = arith.constant 0 : index
    %c0_199 = arith.constant 0 : index
    %463 = vector.load %arg9[%c3_197, %c0_198, %c0_199] : memref<6x128x128xf32, #tpu.memory_space<vmem>>, vector<1x128x128xf32>
    %464 = vector.shape_cast %463 : vector<1x128x128xf32> to vector<128x128xf32>
    %cst_200 = arith.constant dense<0.000000e+00> : vector<8x128xf32>
    %465 = tpu.matmul %462, %464, %cst_200 {dimension_numbers = #tpu.dot_dimension_numbers<[1], [0], [0], [1], [0, 0, 1, 1], [], []>} : vector<8x128xf32>, vector<128x128xf32>, vector<8x128xf32> -> vector<8x128xf32>
    %466 = vector.shape_cast %461 : vector<1x8x128xf32> to vector<8x128xf32>
    %c3_201 = arith.constant 3 : index
    %c0_202 = arith.constant 0 : index
    %c0_203 = arith.constant 0 : index
    %467 = vector.load %arg10[%c3_201, %c0_202, %c0_203] : memref<6x128x128xf32, #tpu.memory_space<vmem>>, vector<1x128x128xf32>
    %468 = vector.shape_cast %467 : vector<1x128x128xf32> to vector<128x128xf32>
    %cst_204 = arith.constant dense<0.000000e+00> : vector<8x128xf32>
    %469 = tpu.matmul %466, %468, %cst_204 {dimension_numbers = #tpu.dot_dimension_numbers<[1], [0], [0], [1], [0, 0, 1, 1], [], []>} : vector<8x128xf32>, vector<128x128xf32>, vector<8x128xf32> -> vector<8x128xf32>
    %470 = arith.addf %465, %469 : vector<8x128xf32>
    %c3_205 = arith.constant 3 : index
    %c0_206 = arith.constant 0 : index
    %c0_207 = arith.constant 0 : index
    %471 = vector.load %arg11[%c3_205, %c0_206, %c0_207] : memref<6x1x128xf32, #tpu.memory_space<vmem>>, vector<1x1x128xf32>
    %472 = vector.shape_cast %471 : vector<1x1x128xf32> to vector<1x128xf32>
    %473 = vector.broadcast %472 : vector<1x128xf32> to vector<8x128xf32>
    %474 = arith.addf %470, %473 : vector<8x128xf32>
    %475 = arith.negf %474 : vector<8x128xf32>
    %476 = math.exp %475 : vector<8x128xf32>
    %cst_208 = arith.constant 1.000000e+00 : f32
    %477 = vector.broadcast %cst_208 : f32 to vector<8x128xf32>
    %478 = arith.addf %477, %476 : vector<8x128xf32>
    %479 = arith.divf %477, %478 : vector<8x128xf32>
    %480 = arith.mulf %474, %479 : vector<8x128xf32>
    %c3_209 = arith.constant 3 : index
    %c0_210 = arith.constant 0 : index
    %c0_211 = arith.constant 0 : index
    %481 = vector.load %arg12[%c3_209, %c0_210, %c0_211] : memref<6x128x128xf32, #tpu.memory_space<vmem>>, vector<1x128x128xf32>
    %482 = vector.shape_cast %481 : vector<1x128x128xf32> to vector<128x128xf32>
    %cst_212 = arith.constant dense<0.000000e+00> : vector<8x128xf32>
    %483 = tpu.matmul %480, %482, %cst_212 {dimension_numbers = #tpu.dot_dimension_numbers<[1], [0], [0], [1], [0, 0, 1, 1], [], []>} : vector<8x128xf32>, vector<128x128xf32>, vector<8x128xf32> -> vector<8x128xf32>
    %c3_213 = arith.constant 3 : index
    %c0_214 = arith.constant 0 : index
    %c0_215 = arith.constant 0 : index
    %484 = vector.load %arg13[%c3_213, %c0_214, %c0_215] : memref<6x1x128xf32, #tpu.memory_space<vmem>>, vector<1x1x128xf32>
    %485 = vector.shape_cast %484 : vector<1x1x128xf32> to vector<1x128xf32>
    %486 = vector.broadcast %485 : vector<1x128xf32> to vector<8x128xf32>
    %487 = arith.addf %483, %486 : vector<8x128xf32>
    %488 = vector.shape_cast %487 : vector<8x128xf32> to vector<1x8x128xf32>
    %489 = arith.addf %403, %488 : vector<1x8x128xf32>
    %490 = vector.shape_cast %489 : vector<1x8x128xf32> to vector<8x128xf32>
    %c1_216 = arith.constant 1 : index
    %c0_217 = arith.constant 0 : index
    %c0_218 = arith.constant 0 : index
    %491 = vector.load %arg14[%c1_216, %c0_217, %c0_218] : memref<3x128x256xf32, #tpu.memory_space<vmem>>, vector<1x128x256xf32>
    %492 = vector.shape_cast %491 : vector<1x128x256xf32> to vector<128x256xf32>
    %cst_219 = arith.constant dense<0.000000e+00> : vector<8x256xf32>
    %493 = tpu.matmul %490, %492, %cst_219 {dimension_numbers = #tpu.dot_dimension_numbers<[1], [0], [0], [1], [0, 0, 1, 1], [], []>} : vector<8x128xf32>, vector<128x256xf32>, vector<8x256xf32> -> vector<8x256xf32>
    %494 = vector.extract_strided_slice %493 {offsets = [0, 0], sizes = [8, 128], strides = [1, 1]} : vector<8x256xf32> to vector<8x128xf32>
    %495 = vector.shape_cast %494 : vector<8x128xf32> to vector<1x8x1x128xf32>
    %496 = vector.extract_strided_slice %493 {offsets = [0, 128], sizes = [8, 128], strides = [1, 1]} : vector<8x256xf32> to vector<8x128xf32>
    %497 = vector.shape_cast %496 : vector<8x128xf32> to vector<1x1x8x128xf32>
    %c1_220 = arith.constant 1 : index
    %c0_221 = arith.constant 0 : index
    %c0_222 = arith.constant 0 : index
    %498 = vector.load %arg15[%c1_220, %c0_221, %c0_222] : memref<3x1x128xf32, #tpu.memory_space<vmem>>, vector<1x1x128xf32>
    %499 = vector.shape_cast %498 : vector<1x1x128xf32> to vector<1x128xf32>
    %c1_223 = arith.constant 1 : index
    %c0_224 = arith.constant 0 : index
    %c0_225 = arith.constant 0 : index
    %500 = vector.load %arg16[%c1_223, %c0_224, %c0_225] : memref<3x1x128xf32, #tpu.memory_space<vmem>>, vector<1x1x128xf32>
    %501 = vector.shape_cast %500 : vector<1x1x128xf32> to vector<1x128xf32>
    %c1_226 = arith.constant 1 : index
    %c0_227 = arith.constant 0 : index
    %c0_228 = arith.constant 0 : index
    %502 = vector.load %arg17[%c1_226, %c0_227, %c0_228] : memref<3x1x128xf32, #tpu.memory_space<vmem>>, vector<1x1x128xf32>
    %503 = vector.shape_cast %502 : vector<1x1x128xf32> to vector<1x128xf32>
    %c1_229 = arith.constant 1 : index
    %c0_230 = arith.constant 0 : index
    %c0_231 = arith.constant 0 : index
    %504 = vector.load %arg20[%c1_229, %c0_230, %c0_231] : memref<3x1x128xf32, #tpu.memory_space<vmem>>, vector<1x1x128xf32>
    %505 = vector.shape_cast %504 : vector<1x1x128xf32> to vector<1x128xf32>
    %cst_232 = arith.constant 0.000000e+00 : f32
    %506 = vector.broadcast %cst_232 : f32 to vector<1x8xf32>
    %cst_233 = arith.constant 0.000000e+00 : f32
    %507 = vector.broadcast %cst_233 : f32 to vector<1x8xf32>
    %cst_234 = arith.constant 0.000000e+00 : f32
    %508 = vector.broadcast %cst_234 : f32 to vector<1x8xf32>
    %509 = vector.broadcast %495 : vector<1x8x1x128xf32> to vector<1x8x8x128xf32>
    %510 = vector.broadcast %497 : vector<1x1x8x128xf32> to vector<1x8x8x128xf32>
    %511 = arith.addf %509, %510 : vector<1x8x8x128xf32>
    %512 = vector.shape_cast %308 : vector<1x8x8xf32> to vector<1x8x8x1xf32>
    %513 = vector.shape_cast %499 : vector<1x128xf32> to vector<1x1x1x128xf32>
    %514 = vector.broadcast %512 : vector<1x8x8x1xf32> to vector<1x8x8x128xf32>
    %515 = vector.broadcast %513 : vector<1x1x1x128xf32> to vector<1x8x8x128xf32>
    %516 = arith.mulf %514, %515 : vector<1x8x8x128xf32>
    %517 = arith.addf %511, %516 : vector<1x8x8x128xf32>
    %518 = vector.shape_cast %27 : vector<1x8x8xf32> to vector<1x8x8x1xf32>
    %519 = vector.shape_cast %501 : vector<1x128xf32> to vector<1x1x1x128xf32>
    %520 = vector.broadcast %518 : vector<1x8x8x1xf32> to vector<1x8x8x128xf32>
    %521 = vector.broadcast %519 : vector<1x1x1x128xf32> to vector<1x8x8x128xf32>
    %522 = arith.mulf %520, %521 : vector<1x8x8x128xf32>
    %523 = arith.addf %517, %522 : vector<1x8x8x128xf32>
    %524 = vector.shape_cast %503 : vector<1x128xf32> to vector<1x1x1x128xf32>
    %525 = vector.broadcast %524 : vector<1x1x1x128xf32> to vector<1x8x8x128xf32>
    %526 = arith.addf %523, %525 : vector<1x8x8x128xf32>
    %527 = arith.negf %526 : vector<1x8x8x128xf32>
    %528 = math.exp %527 : vector<1x8x8x128xf32>
    %cst_235 = arith.constant 1.000000e+00 : f32
    %529 = vector.broadcast %cst_235 : f32 to vector<1x8x8x128xf32>
    %530 = arith.addf %529, %528 : vector<1x8x8x128xf32>
    %531 = arith.divf %529, %530 : vector<1x8x8x128xf32>
    %532 = arith.mulf %526, %531 : vector<1x8x8x128xf32>
    %533 = vector.shape_cast %532 : vector<1x8x8x128xf32> to vector<64x128xf32>
    %c1_236 = arith.constant 1 : index
    %c0_237 = arith.constant 0 : index
    %c0_238 = arith.constant 0 : index
    %534 = vector.load %arg18[%c1_236, %c0_237, %c0_238] : memref<3x128x128xf32, #tpu.memory_space<vmem>>, vector<1x128x128xf32>
    %535 = vector.shape_cast %534 : vector<1x128x128xf32> to vector<128x128xf32>
    %cst_239 = arith.constant dense<0.000000e+00> : vector<64x128xf32>
    %536 = tpu.matmul %533, %535, %cst_239 {dimension_numbers = #tpu.dot_dimension_numbers<[1], [0], [0], [1], [0, 0, 1, 1], [], []>} : vector<64x128xf32>, vector<128x128xf32>, vector<64x128xf32> -> vector<64x128xf32>
    %c1_240 = arith.constant 1 : index
    %c0_241 = arith.constant 0 : index
    %c0_242 = arith.constant 0 : index
    %537 = vector.load %arg19[%c1_240, %c0_241, %c0_242] : memref<3x1x128xf32, #tpu.memory_space<vmem>>, vector<1x1x128xf32>
    %538 = vector.shape_cast %537 : vector<1x1x128xf32> to vector<1x128xf32>
    %539 = vector.broadcast %538 : vector<1x128xf32> to vector<64x128xf32>
    %540 = arith.addf %536, %539 : vector<64x128xf32>
    %541 = arith.negf %540 : vector<64x128xf32>
    %542 = math.exp %541 : vector<64x128xf32>
    %cst_243 = arith.constant 1.000000e+00 : f32
    %543 = vector.broadcast %cst_243 : f32 to vector<64x128xf32>
    %544 = arith.addf %543, %542 : vector<64x128xf32>
    %545 = arith.divf %543, %544 : vector<64x128xf32>
    %546 = arith.mulf %540, %545 : vector<64x128xf32>
    %547 = vector.shape_cast %546 : vector<64x128xf32> to vector<1x8x8x128xf32>
    %548 = vector.shape_cast %505 : vector<1x128xf32> to vector<1x1x1x128xf32>
    %549 = vector.broadcast %548 : vector<1x1x1x128xf32> to vector<1x8x8x128xf32>
    %550 = arith.mulf %547, %549 : vector<1x8x8x128xf32>
    %cst_244 = arith.constant dense<0.000000e+00> : vector<1x8x8xf32>
    %551 = vector.multi_reduction <add>, %550, %cst_244 [3] : vector<1x8x8x128xf32> to vector<1x8x8xf32>
    %552 = arith.mulf %315, %551 : vector<1x8x8xf32>
    %cst_245 = arith.constant dense<0.000000e+00> : vector<1x8xf32>
    %553 = vector.multi_reduction <add>, %552, %cst_245 [2] : vector<1x8x8xf32> to vector<1x8xf32>
    %554 = arith.addf %506, %553 : vector<1x8xf32>
    %555 = arith.mulf %316, %551 : vector<1x8x8xf32>
    %cst_246 = arith.constant dense<0.000000e+00> : vector<1x8xf32>
    %556 = vector.multi_reduction <add>, %555, %cst_246 [2] : vector<1x8x8xf32> to vector<1x8xf32>
    %557 = arith.addf %507, %556 : vector<1x8xf32>
    %558 = arith.mulf %317, %551 : vector<1x8x8xf32>
    %cst_247 = arith.constant dense<0.000000e+00> : vector<1x8xf32>
    %559 = vector.multi_reduction <add>, %558, %cst_247 [2] : vector<1x8x8xf32> to vector<1x8xf32>
    %560 = arith.addf %508, %559 : vector<1x8xf32>
    %cst_248 = arith.constant 0.00999999977 : f32
    %561 = vector.broadcast %cst_248 : f32 to vector<1x8xf32>
    %562 = arith.mulf %554, %561 : vector<1x8xf32>
    %563 = arith.addf %282, %562 : vector<1x8xf32>
    %cst_249 = arith.constant 0.00999999977 : f32
    %564 = vector.broadcast %cst_249 : f32 to vector<1x8xf32>
    %565 = arith.mulf %557, %564 : vector<1x8xf32>
    %566 = arith.addf %285, %565 : vector<1x8xf32>
    %cst_250 = arith.constant 0.00999999977 : f32
    %567 = vector.broadcast %cst_250 : f32 to vector<1x8xf32>
    %568 = arith.mulf %560, %567 : vector<1x8xf32>
    %569 = arith.addf %288, %568 : vector<1x8xf32>
    %570 = vector.shape_cast %563 : vector<1x8xf32> to vector<1x8x1xf32>
    %571 = vector.shape_cast %563 : vector<1x8xf32> to vector<1x1x8xf32>
    %572 = vector.broadcast %570 : vector<1x8x1xf32> to vector<1x8x8xf32>
    %573 = vector.broadcast %571 : vector<1x1x8xf32> to vector<1x8x8xf32>
    %574 = arith.subf %572, %573 : vector<1x8x8xf32>
    %575 = vector.shape_cast %566 : vector<1x8xf32> to vector<1x8x1xf32>
    %576 = vector.shape_cast %566 : vector<1x8xf32> to vector<1x1x8xf32>
    %577 = vector.broadcast %575 : vector<1x8x1xf32> to vector<1x8x8xf32>
    %578 = vector.broadcast %576 : vector<1x1x8xf32> to vector<1x8x8xf32>
    %579 = arith.subf %577, %578 : vector<1x8x8xf32>
    %580 = vector.shape_cast %569 : vector<1x8xf32> to vector<1x8x1xf32>
    %581 = vector.shape_cast %569 : vector<1x8xf32> to vector<1x1x8xf32>
    %582 = vector.broadcast %580 : vector<1x8x1xf32> to vector<1x8x8xf32>
    %583 = vector.broadcast %581 : vector<1x1x8xf32> to vector<1x8x8xf32>
    %584 = arith.subf %582, %583 : vector<1x8x8xf32>
    %585 = arith.mulf %574, %574 : vector<1x8x8xf32>
    %586 = arith.mulf %579, %579 : vector<1x8x8xf32>
    %587 = arith.addf %585, %586 : vector<1x8x8xf32>
    %588 = arith.mulf %584, %584 : vector<1x8x8xf32>
    %589 = arith.addf %587, %588 : vector<1x8x8xf32>
    %cst_251 = arith.constant 9.99999993E-9 : f32
    %590 = vector.broadcast %cst_251 : f32 to vector<1x8x8xf32>
    %591 = arith.addf %589, %590 : vector<1x8x8xf32>
    %592 = math.sqrt %591 : vector<1x8x8xf32>
    %cst_252 = arith.constant 1.000000e+00 : f32
    %593 = vector.broadcast %cst_252 : f32 to vector<1x8x8xf32>
    %594 = arith.addf %592, %593 : vector<1x8x8xf32>
    %595 = tpu.reciprocal %594 {approx = true} : vector<1x8x8xf32> -> vector<1x8x8xf32>
    %596 = arith.mulf %574, %595 : vector<1x8x8xf32>
    %597 = arith.mulf %579, %595 : vector<1x8x8xf32>
    %598 = arith.mulf %584, %595 : vector<1x8x8xf32>
    %599 = vector.shape_cast %489 : vector<1x8x128xf32> to vector<8x128xf32>
    %c4 = arith.constant 4 : index
    %c0_253 = arith.constant 0 : index
    %c0_254 = arith.constant 0 : index
    %600 = vector.load %arg3[%c4, %c0_253, %c0_254] : memref<6x128x256xf32, #tpu.memory_space<vmem>>, vector<1x128x256xf32>
    %601 = vector.shape_cast %600 : vector<1x128x256xf32> to vector<128x256xf32>
    %cst_255 = arith.constant dense<0.000000e+00> : vector<8x256xf32>
    %602 = tpu.matmul %599, %601, %cst_255 {dimension_numbers = #tpu.dot_dimension_numbers<[1], [0], [0], [1], [0, 0, 1, 1], [], []>} : vector<8x128xf32>, vector<128x256xf32>, vector<8x256xf32> -> vector<8x256xf32>
    %603 = vector.extract_strided_slice %602 {offsets = [0, 0], sizes = [8, 128], strides = [1, 1]} : vector<8x256xf32> to vector<8x128xf32>
    %604 = vector.shape_cast %603 : vector<8x128xf32> to vector<1x8x1x128xf32>
    %605 = vector.extract_strided_slice %602 {offsets = [0, 128], sizes = [8, 128], strides = [1, 1]} : vector<8x256xf32> to vector<8x128xf32>
    %606 = vector.shape_cast %605 : vector<8x128xf32> to vector<1x1x8x128xf32>
    %c4_256 = arith.constant 4 : index
    %c0_257 = arith.constant 0 : index
    %c0_258 = arith.constant 0 : index
    %607 = vector.load %arg4[%c4_256, %c0_257, %c0_258] : memref<6x1x128xf32, #tpu.memory_space<vmem>>, vector<1x1x128xf32>
    %608 = vector.shape_cast %607 : vector<1x1x128xf32> to vector<1x128xf32>
    %c4_259 = arith.constant 4 : index
    %c0_260 = arith.constant 0 : index
    %c0_261 = arith.constant 0 : index
    %609 = vector.load %arg5[%c4_259, %c0_260, %c0_261] : memref<6x1x128xf32, #tpu.memory_space<vmem>>, vector<1x1x128xf32>
    %610 = vector.shape_cast %609 : vector<1x1x128xf32> to vector<1x128xf32>
    %c4_262 = arith.constant 4 : index
    %c0_263 = arith.constant 0 : index
    %c0_264 = arith.constant 0 : index
    %611 = vector.load %arg6[%c4_262, %c0_263, %c0_264] : memref<6x1x128xf32, #tpu.memory_space<vmem>>, vector<1x1x128xf32>
    %612 = vector.shape_cast %611 : vector<1x1x128xf32> to vector<1x128xf32>
    %cst_265 = arith.constant 0.000000e+00 : f32
    %613 = vector.broadcast %cst_265 : f32 to vector<1x8x128xf32>
    %614 = vector.broadcast %604 : vector<1x8x1x128xf32> to vector<1x8x8x128xf32>
    %615 = vector.broadcast %606 : vector<1x1x8x128xf32> to vector<1x8x8x128xf32>
    %616 = arith.addf %614, %615 : vector<1x8x8x128xf32>
    %617 = vector.shape_cast %589 : vector<1x8x8xf32> to vector<1x8x8x1xf32>
    %618 = vector.shape_cast %608 : vector<1x128xf32> to vector<1x1x1x128xf32>
    %619 = vector.broadcast %617 : vector<1x8x8x1xf32> to vector<1x8x8x128xf32>
    %620 = vector.broadcast %618 : vector<1x1x1x128xf32> to vector<1x8x8x128xf32>
    %621 = arith.mulf %619, %620 : vector<1x8x8x128xf32>
    %622 = arith.addf %616, %621 : vector<1x8x8x128xf32>
    %623 = vector.shape_cast %27 : vector<1x8x8xf32> to vector<1x8x8x1xf32>
    %624 = vector.shape_cast %610 : vector<1x128xf32> to vector<1x1x1x128xf32>
    %625 = vector.broadcast %623 : vector<1x8x8x1xf32> to vector<1x8x8x128xf32>
    %626 = vector.broadcast %624 : vector<1x1x1x128xf32> to vector<1x8x8x128xf32>
    %627 = arith.mulf %625, %626 : vector<1x8x8x128xf32>
    %628 = arith.addf %622, %627 : vector<1x8x8x128xf32>
    %629 = vector.shape_cast %612 : vector<1x128xf32> to vector<1x1x1x128xf32>
    %630 = vector.broadcast %629 : vector<1x1x1x128xf32> to vector<1x8x8x128xf32>
    %631 = arith.addf %628, %630 : vector<1x8x8x128xf32>
    %632 = arith.negf %631 : vector<1x8x8x128xf32>
    %633 = math.exp %632 : vector<1x8x8x128xf32>
    %cst_266 = arith.constant 1.000000e+00 : f32
    %634 = vector.broadcast %cst_266 : f32 to vector<1x8x8x128xf32>
    %635 = arith.addf %634, %633 : vector<1x8x8x128xf32>
    %636 = arith.divf %634, %635 : vector<1x8x8x128xf32>
    %637 = arith.mulf %631, %636 : vector<1x8x8x128xf32>
    %638 = vector.shape_cast %637 : vector<1x8x8x128xf32> to vector<64x128xf32>
    %c4_267 = arith.constant 4 : index
    %c0_268 = arith.constant 0 : index
    %c0_269 = arith.constant 0 : index
    %639 = vector.load %arg7[%c4_267, %c0_268, %c0_269] : memref<6x128x128xf32, #tpu.memory_space<vmem>>, vector<1x128x128xf32>
    %640 = vector.shape_cast %639 : vector<1x128x128xf32> to vector<128x128xf32>
    %cst_270 = arith.constant dense<0.000000e+00> : vector<64x128xf32>
    %641 = tpu.matmul %638, %640, %cst_270 {dimension_numbers = #tpu.dot_dimension_numbers<[1], [0], [0], [1], [0, 0, 1, 1], [], []>} : vector<64x128xf32>, vector<128x128xf32>, vector<64x128xf32> -> vector<64x128xf32>
    %c4_271 = arith.constant 4 : index
    %c0_272 = arith.constant 0 : index
    %c0_273 = arith.constant 0 : index
    %642 = vector.load %arg8[%c4_271, %c0_272, %c0_273] : memref<6x1x128xf32, #tpu.memory_space<vmem>>, vector<1x1x128xf32>
    %643 = vector.shape_cast %642 : vector<1x1x128xf32> to vector<1x128xf32>
    %644 = vector.broadcast %643 : vector<1x128xf32> to vector<64x128xf32>
    %645 = arith.addf %641, %644 : vector<64x128xf32>
    %646 = arith.negf %645 : vector<64x128xf32>
    %647 = math.exp %646 : vector<64x128xf32>
    %cst_274 = arith.constant 1.000000e+00 : f32
    %648 = vector.broadcast %cst_274 : f32 to vector<64x128xf32>
    %649 = arith.addf %648, %647 : vector<64x128xf32>
    %650 = arith.divf %648, %649 : vector<64x128xf32>
    %651 = arith.mulf %645, %650 : vector<64x128xf32>
    %652 = vector.shape_cast %651 : vector<64x128xf32> to vector<1x8x8x128xf32>
    %cst_275 = arith.constant dense<0.000000e+00> : vector<1x8x128xf32>
    %653 = vector.multi_reduction <add>, %652, %cst_275 [2] : vector<1x8x8x128xf32> to vector<1x8x128xf32>
    %654 = arith.addf %613, %653 : vector<1x8x128xf32>
    %cst_276 = arith.constant 0.00999999977 : f32
    %655 = vector.broadcast %cst_276 : f32 to vector<1x8x128xf32>
    %656 = arith.mulf %654, %655 : vector<1x8x128xf32>
    %657 = vector.shape_cast %489 : vector<1x8x128xf32> to vector<8x128xf32>
    %c4_277 = arith.constant 4 : index
    %c0_278 = arith.constant 0 : index
    %c0_279 = arith.constant 0 : index
    %658 = vector.load %arg9[%c4_277, %c0_278, %c0_279] : memref<6x128x128xf32, #tpu.memory_space<vmem>>, vector<1x128x128xf32>
    %659 = vector.shape_cast %658 : vector<1x128x128xf32> to vector<128x128xf32>
    %cst_280 = arith.constant dense<0.000000e+00> : vector<8x128xf32>
    %660 = tpu.matmul %657, %659, %cst_280 {dimension_numbers = #tpu.dot_dimension_numbers<[1], [0], [0], [1], [0, 0, 1, 1], [], []>} : vector<8x128xf32>, vector<128x128xf32>, vector<8x128xf32> -> vector<8x128xf32>
    %661 = vector.shape_cast %656 : vector<1x8x128xf32> to vector<8x128xf32>
    %c4_281 = arith.constant 4 : index
    %c0_282 = arith.constant 0 : index
    %c0_283 = arith.constant 0 : index
    %662 = vector.load %arg10[%c4_281, %c0_282, %c0_283] : memref<6x128x128xf32, #tpu.memory_space<vmem>>, vector<1x128x128xf32>
    %663 = vector.shape_cast %662 : vector<1x128x128xf32> to vector<128x128xf32>
    %cst_284 = arith.constant dense<0.000000e+00> : vector<8x128xf32>
    %664 = tpu.matmul %661, %663, %cst_284 {dimension_numbers = #tpu.dot_dimension_numbers<[1], [0], [0], [1], [0, 0, 1, 1], [], []>} : vector<8x128xf32>, vector<128x128xf32>, vector<8x128xf32> -> vector<8x128xf32>
    %665 = arith.addf %660, %664 : vector<8x128xf32>
    %c4_285 = arith.constant 4 : index
    %c0_286 = arith.constant 0 : index
    %c0_287 = arith.constant 0 : index
    %666 = vector.load %arg11[%c4_285, %c0_286, %c0_287] : memref<6x1x128xf32, #tpu.memory_space<vmem>>, vector<1x1x128xf32>
    %667 = vector.shape_cast %666 : vector<1x1x128xf32> to vector<1x128xf32>
    %668 = vector.broadcast %667 : vector<1x128xf32> to vector<8x128xf32>
    %669 = arith.addf %665, %668 : vector<8x128xf32>
    %670 = arith.negf %669 : vector<8x128xf32>
    %671 = math.exp %670 : vector<8x128xf32>
    %cst_288 = arith.constant 1.000000e+00 : f32
    %672 = vector.broadcast %cst_288 : f32 to vector<8x128xf32>
    %673 = arith.addf %672, %671 : vector<8x128xf32>
    %674 = arith.divf %672, %673 : vector<8x128xf32>
    %675 = arith.mulf %669, %674 : vector<8x128xf32>
    %c4_289 = arith.constant 4 : index
    %c0_290 = arith.constant 0 : index
    %c0_291 = arith.constant 0 : index
    %676 = vector.load %arg12[%c4_289, %c0_290, %c0_291] : memref<6x128x128xf32, #tpu.memory_space<vmem>>, vector<1x128x128xf32>
    %677 = vector.shape_cast %676 : vector<1x128x128xf32> to vector<128x128xf32>
    %cst_292 = arith.constant dense<0.000000e+00> : vector<8x128xf32>
    %678 = tpu.matmul %675, %677, %cst_292 {dimension_numbers = #tpu.dot_dimension_numbers<[1], [0], [0], [1], [0, 0, 1, 1], [], []>} : vector<8x128xf32>, vector<128x128xf32>, vector<8x128xf32> -> vector<8x128xf32>
    %c4_293 = arith.constant 4 : index
    %c0_294 = arith.constant 0 : index
    %c0_295 = arith.constant 0 : index
    %679 = vector.load %arg13[%c4_293, %c0_294, %c0_295] : memref<6x1x128xf32, #tpu.memory_space<vmem>>, vector<1x1x128xf32>
    %680 = vector.shape_cast %679 : vector<1x1x128xf32> to vector<1x128xf32>
    %681 = vector.broadcast %680 : vector<1x128xf32> to vector<8x128xf32>
    %682 = arith.addf %678, %681 : vector<8x128xf32>
    %683 = vector.shape_cast %682 : vector<8x128xf32> to vector<1x8x128xf32>
    %684 = arith.addf %489, %683 : vector<1x8x128xf32>
    %685 = vector.shape_cast %684 : vector<1x8x128xf32> to vector<8x128xf32>
    %c5 = arith.constant 5 : index
    %c0_296 = arith.constant 0 : index
    %c0_297 = arith.constant 0 : index
    %686 = vector.load %arg3[%c5, %c0_296, %c0_297] : memref<6x128x256xf32, #tpu.memory_space<vmem>>, vector<1x128x256xf32>
    %687 = vector.shape_cast %686 : vector<1x128x256xf32> to vector<128x256xf32>
    %cst_298 = arith.constant dense<0.000000e+00> : vector<8x256xf32>
    %688 = tpu.matmul %685, %687, %cst_298 {dimension_numbers = #tpu.dot_dimension_numbers<[1], [0], [0], [1], [0, 0, 1, 1], [], []>} : vector<8x128xf32>, vector<128x256xf32>, vector<8x256xf32> -> vector<8x256xf32>
    %689 = vector.extract_strided_slice %688 {offsets = [0, 0], sizes = [8, 128], strides = [1, 1]} : vector<8x256xf32> to vector<8x128xf32>
    %690 = vector.shape_cast %689 : vector<8x128xf32> to vector<1x8x1x128xf32>
    %691 = vector.extract_strided_slice %688 {offsets = [0, 128], sizes = [8, 128], strides = [1, 1]} : vector<8x256xf32> to vector<8x128xf32>
    %692 = vector.shape_cast %691 : vector<8x128xf32> to vector<1x1x8x128xf32>
    %c5_299 = arith.constant 5 : index
    %c0_300 = arith.constant 0 : index
    %c0_301 = arith.constant 0 : index
    %693 = vector.load %arg4[%c5_299, %c0_300, %c0_301] : memref<6x1x128xf32, #tpu.memory_space<vmem>>, vector<1x1x128xf32>
    %694 = vector.shape_cast %693 : vector<1x1x128xf32> to vector<1x128xf32>
    %c5_302 = arith.constant 5 : index
    %c0_303 = arith.constant 0 : index
    %c0_304 = arith.constant 0 : index
    %695 = vector.load %arg5[%c5_302, %c0_303, %c0_304] : memref<6x1x128xf32, #tpu.memory_space<vmem>>, vector<1x1x128xf32>
    %696 = vector.shape_cast %695 : vector<1x1x128xf32> to vector<1x128xf32>
    %c5_305 = arith.constant 5 : index
    %c0_306 = arith.constant 0 : index
    %c0_307 = arith.constant 0 : index
    %697 = vector.load %arg6[%c5_305, %c0_306, %c0_307] : memref<6x1x128xf32, #tpu.memory_space<vmem>>, vector<1x1x128xf32>
    %698 = vector.shape_cast %697 : vector<1x1x128xf32> to vector<1x128xf32>
    %cst_308 = arith.constant 0.000000e+00 : f32
    %699 = vector.broadcast %cst_308 : f32 to vector<1x8x128xf32>
    %700 = vector.broadcast %690 : vector<1x8x1x128xf32> to vector<1x8x8x128xf32>
    %701 = vector.broadcast %692 : vector<1x1x8x128xf32> to vector<1x8x8x128xf32>
    %702 = arith.addf %700, %701 : vector<1x8x8x128xf32>
    %703 = vector.shape_cast %589 : vector<1x8x8xf32> to vector<1x8x8x1xf32>
    %704 = vector.shape_cast %694 : vector<1x128xf32> to vector<1x1x1x128xf32>
    %705 = vector.broadcast %703 : vector<1x8x8x1xf32> to vector<1x8x8x128xf32>
    %706 = vector.broadcast %704 : vector<1x1x1x128xf32> to vector<1x8x8x128xf32>
    %707 = arith.mulf %705, %706 : vector<1x8x8x128xf32>
    %708 = arith.addf %702, %707 : vector<1x8x8x128xf32>
    %709 = vector.shape_cast %27 : vector<1x8x8xf32> to vector<1x8x8x1xf32>
    %710 = vector.shape_cast %696 : vector<1x128xf32> to vector<1x1x1x128xf32>
    %711 = vector.broadcast %709 : vector<1x8x8x1xf32> to vector<1x8x8x128xf32>
    %712 = vector.broadcast %710 : vector<1x1x1x128xf32> to vector<1x8x8x128xf32>
    %713 = arith.mulf %711, %712 : vector<1x8x8x128xf32>
    %714 = arith.addf %708, %713 : vector<1x8x8x128xf32>
    %715 = vector.shape_cast %698 : vector<1x128xf32> to vector<1x1x1x128xf32>
    %716 = vector.broadcast %715 : vector<1x1x1x128xf32> to vector<1x8x8x128xf32>
    %717 = arith.addf %714, %716 : vector<1x8x8x128xf32>
    %718 = arith.negf %717 : vector<1x8x8x128xf32>
    %719 = math.exp %718 : vector<1x8x8x128xf32>
    %cst_309 = arith.constant 1.000000e+00 : f32
    %720 = vector.broadcast %cst_309 : f32 to vector<1x8x8x128xf32>
    %721 = arith.addf %720, %719 : vector<1x8x8x128xf32>
    %722 = arith.divf %720, %721 : vector<1x8x8x128xf32>
    %723 = arith.mulf %717, %722 : vector<1x8x8x128xf32>
    %724 = vector.shape_cast %723 : vector<1x8x8x128xf32> to vector<64x128xf32>
    %c5_310 = arith.constant 5 : index
    %c0_311 = arith.constant 0 : index
    %c0_312 = arith.constant 0 : index
    %725 = vector.load %arg7[%c5_310, %c0_311, %c0_312] : memref<6x128x128xf32, #tpu.memory_space<vmem>>, vector<1x128x128xf32>
    %726 = vector.shape_cast %725 : vector<1x128x128xf32> to vector<128x128xf32>
    %cst_313 = arith.constant dense<0.000000e+00> : vector<64x128xf32>
    %727 = tpu.matmul %724, %726, %cst_313 {dimension_numbers = #tpu.dot_dimension_numbers<[1], [0], [0], [1], [0, 0, 1, 1], [], []>} : vector<64x128xf32>, vector<128x128xf32>, vector<64x128xf32> -> vector<64x128xf32>
    %c5_314 = arith.constant 5 : index
    %c0_315 = arith.constant 0 : index
    %c0_316 = arith.constant 0 : index
    %728 = vector.load %arg8[%c5_314, %c0_315, %c0_316] : memref<6x1x128xf32, #tpu.memory_space<vmem>>, vector<1x1x128xf32>
    %729 = vector.shape_cast %728 : vector<1x1x128xf32> to vector<1x128xf32>
    %730 = vector.broadcast %729 : vector<1x128xf32> to vector<64x128xf32>
    %731 = arith.addf %727, %730 : vector<64x128xf32>
    %732 = arith.negf %731 : vector<64x128xf32>
    %733 = math.exp %732 : vector<64x128xf32>
    %cst_317 = arith.constant 1.000000e+00 : f32
    %734 = vector.broadcast %cst_317 : f32 to vector<64x128xf32>
    %735 = arith.addf %734, %733 : vector<64x128xf32>
    %736 = arith.divf %734, %735 : vector<64x128xf32>
    %737 = arith.mulf %731, %736 : vector<64x128xf32>
    %738 = vector.shape_cast %737 : vector<64x128xf32> to vector<1x8x8x128xf32>
    %cst_318 = arith.constant dense<0.000000e+00> : vector<1x8x128xf32>
    %739 = vector.multi_reduction <add>, %738, %cst_318 [2] : vector<1x8x8x128xf32> to vector<1x8x128xf32>
    %740 = arith.addf %699, %739 : vector<1x8x128xf32>
    %cst_319 = arith.constant 0.00999999977 : f32
    %741 = vector.broadcast %cst_319 : f32 to vector<1x8x128xf32>
    %742 = arith.mulf %740, %741 : vector<1x8x128xf32>
    %743 = vector.shape_cast %684 : vector<1x8x128xf32> to vector<8x128xf32>
    %c5_320 = arith.constant 5 : index
    %c0_321 = arith.constant 0 : index
    %c0_322 = arith.constant 0 : index
    %744 = vector.load %arg9[%c5_320, %c0_321, %c0_322] : memref<6x128x128xf32, #tpu.memory_space<vmem>>, vector<1x128x128xf32>
    %745 = vector.shape_cast %744 : vector<1x128x128xf32> to vector<128x128xf32>
    %cst_323 = arith.constant dense<0.000000e+00> : vector<8x128xf32>
    %746 = tpu.matmul %743, %745, %cst_323 {dimension_numbers = #tpu.dot_dimension_numbers<[1], [0], [0], [1], [0, 0, 1, 1], [], []>} : vector<8x128xf32>, vector<128x128xf32>, vector<8x128xf32> -> vector<8x128xf32>
    %747 = vector.shape_cast %742 : vector<1x8x128xf32> to vector<8x128xf32>
    %c5_324 = arith.constant 5 : index
    %c0_325 = arith.constant 0 : index
    %c0_326 = arith.constant 0 : index
    %748 = vector.load %arg10[%c5_324, %c0_325, %c0_326] : memref<6x128x128xf32, #tpu.memory_space<vmem>>, vector<1x128x128xf32>
    %749 = vector.shape_cast %748 : vector<1x128x128xf32> to vector<128x128xf32>
    %cst_327 = arith.constant dense<0.000000e+00> : vector<8x128xf32>
    %750 = tpu.matmul %747, %749, %cst_327 {dimension_numbers = #tpu.dot_dimension_numbers<[1], [0], [0], [1], [0, 0, 1, 1], [], []>} : vector<8x128xf32>, vector<128x128xf32>, vector<8x128xf32> -> vector<8x128xf32>
    %751 = arith.addf %746, %750 : vector<8x128xf32>
    %c5_328 = arith.constant 5 : index
    %c0_329 = arith.constant 0 : index
    %c0_330 = arith.constant 0 : index
    %752 = vector.load %arg11[%c5_328, %c0_329, %c0_330] : memref<6x1x128xf32, #tpu.memory_space<vmem>>, vector<1x1x128xf32>
    %753 = vector.shape_cast %752 : vector<1x1x128xf32> to vector<1x128xf32>
    %754 = vector.broadcast %753 : vector<1x128xf32> to vector<8x128xf32>
    %755 = arith.addf %751, %754 : vector<8x128xf32>
    %756 = arith.negf %755 : vector<8x128xf32>
    %757 = math.exp %756 : vector<8x128xf32>
    %cst_331 = arith.constant 1.000000e+00 : f32
    %758 = vector.broadcast %cst_331 : f32 to vector<8x128xf32>
    %759 = arith.addf %758, %757 : vector<8x128xf32>
    %760 = arith.divf %758, %759 : vector<8x128xf32>
    %761 = arith.mulf %755, %760 : vector<8x128xf32>
    %c5_332 = arith.constant 5 : index
    %c0_333 = arith.constant 0 : index
    %c0_334 = arith.constant 0 : index
    %762 = vector.load %arg12[%c5_332, %c0_333, %c0_334] : memref<6x128x128xf32, #tpu.memory_space<vmem>>, vector<1x128x128xf32>
    %763 = vector.shape_cast %762 : vector<1x128x128xf32> to vector<128x128xf32>
    %cst_335 = arith.constant dense<0.000000e+00> : vector<8x128xf32>
    %764 = tpu.matmul %761, %763, %cst_335 {dimension_numbers = #tpu.dot_dimension_numbers<[1], [0], [0], [1], [0, 0, 1, 1], [], []>} : vector<8x128xf32>, vector<128x128xf32>, vector<8x128xf32> -> vector<8x128xf32>
    %c5_336 = arith.constant 5 : index
    %c0_337 = arith.constant 0 : index
    %c0_338 = arith.constant 0 : index
    %765 = vector.load %arg13[%c5_336, %c0_337, %c0_338] : memref<6x1x128xf32, #tpu.memory_space<vmem>>, vector<1x1x128xf32>
    %766 = vector.shape_cast %765 : vector<1x1x128xf32> to vector<1x128xf32>
    %767 = vector.broadcast %766 : vector<1x128xf32> to vector<8x128xf32>
    %768 = arith.addf %764, %767 : vector<8x128xf32>
    %769 = vector.shape_cast %768 : vector<8x128xf32> to vector<1x8x128xf32>
    %770 = arith.addf %684, %769 : vector<1x8x128xf32>
    %771 = vector.shape_cast %770 : vector<1x8x128xf32> to vector<8x128xf32>
    %c2_339 = arith.constant 2 : index
    %c0_340 = arith.constant 0 : index
    %c0_341 = arith.constant 0 : index
    %772 = vector.load %arg14[%c2_339, %c0_340, %c0_341] : memref<3x128x256xf32, #tpu.memory_space<vmem>>, vector<1x128x256xf32>
    %773 = vector.shape_cast %772 : vector<1x128x256xf32> to vector<128x256xf32>
    %cst_342 = arith.constant dense<0.000000e+00> : vector<8x256xf32>
    %774 = tpu.matmul %771, %773, %cst_342 {dimension_numbers = #tpu.dot_dimension_numbers<[1], [0], [0], [1], [0, 0, 1, 1], [], []>} : vector<8x128xf32>, vector<128x256xf32>, vector<8x256xf32> -> vector<8x256xf32>
    %775 = vector.extract_strided_slice %774 {offsets = [0, 0], sizes = [8, 128], strides = [1, 1]} : vector<8x256xf32> to vector<8x128xf32>
    %776 = vector.shape_cast %775 : vector<8x128xf32> to vector<1x8x1x128xf32>
    %777 = vector.extract_strided_slice %774 {offsets = [0, 128], sizes = [8, 128], strides = [1, 1]} : vector<8x256xf32> to vector<8x128xf32>
    %778 = vector.shape_cast %777 : vector<8x128xf32> to vector<1x1x8x128xf32>
    %c2_343 = arith.constant 2 : index
    %c0_344 = arith.constant 0 : index
    %c0_345 = arith.constant 0 : index
    %779 = vector.load %arg15[%c2_343, %c0_344, %c0_345] : memref<3x1x128xf32, #tpu.memory_space<vmem>>, vector<1x1x128xf32>
    %780 = vector.shape_cast %779 : vector<1x1x128xf32> to vector<1x128xf32>
    %c2_346 = arith.constant 2 : index
    %c0_347 = arith.constant 0 : index
    %c0_348 = arith.constant 0 : index
    %781 = vector.load %arg16[%c2_346, %c0_347, %c0_348] : memref<3x1x128xf32, #tpu.memory_space<vmem>>, vector<1x1x128xf32>
    %782 = vector.shape_cast %781 : vector<1x1x128xf32> to vector<1x128xf32>
    %c2_349 = arith.constant 2 : index
    %c0_350 = arith.constant 0 : index
    %c0_351 = arith.constant 0 : index
    %783 = vector.load %arg17[%c2_349, %c0_350, %c0_351] : memref<3x1x128xf32, #tpu.memory_space<vmem>>, vector<1x1x128xf32>
    %784 = vector.shape_cast %783 : vector<1x1x128xf32> to vector<1x128xf32>
    %c2_352 = arith.constant 2 : index
    %c0_353 = arith.constant 0 : index
    %c0_354 = arith.constant 0 : index
    %785 = vector.load %arg20[%c2_352, %c0_353, %c0_354] : memref<3x1x128xf32, #tpu.memory_space<vmem>>, vector<1x1x128xf32>
    %786 = vector.shape_cast %785 : vector<1x1x128xf32> to vector<1x128xf32>
    %cst_355 = arith.constant 0.000000e+00 : f32
    %787 = vector.broadcast %cst_355 : f32 to vector<1x8xf32>
    %cst_356 = arith.constant 0.000000e+00 : f32
    %788 = vector.broadcast %cst_356 : f32 to vector<1x8xf32>
    %cst_357 = arith.constant 0.000000e+00 : f32
    %789 = vector.broadcast %cst_357 : f32 to vector<1x8xf32>
    %790 = vector.broadcast %776 : vector<1x8x1x128xf32> to vector<1x8x8x128xf32>
    %791 = vector.broadcast %778 : vector<1x1x8x128xf32> to vector<1x8x8x128xf32>
    %792 = arith.addf %790, %791 : vector<1x8x8x128xf32>
    %793 = vector.shape_cast %589 : vector<1x8x8xf32> to vector<1x8x8x1xf32>
    %794 = vector.shape_cast %780 : vector<1x128xf32> to vector<1x1x1x128xf32>
    %795 = vector.broadcast %793 : vector<1x8x8x1xf32> to vector<1x8x8x128xf32>
    %796 = vector.broadcast %794 : vector<1x1x1x128xf32> to vector<1x8x8x128xf32>
    %797 = arith.mulf %795, %796 : vector<1x8x8x128xf32>
    %798 = arith.addf %792, %797 : vector<1x8x8x128xf32>
    %799 = vector.shape_cast %27 : vector<1x8x8xf32> to vector<1x8x8x1xf32>
    %800 = vector.shape_cast %782 : vector<1x128xf32> to vector<1x1x1x128xf32>
    %801 = vector.broadcast %799 : vector<1x8x8x1xf32> to vector<1x8x8x128xf32>
    %802 = vector.broadcast %800 : vector<1x1x1x128xf32> to vector<1x8x8x128xf32>
    %803 = arith.mulf %801, %802 : vector<1x8x8x128xf32>
    %804 = arith.addf %798, %803 : vector<1x8x8x128xf32>
    %805 = vector.shape_cast %784 : vector<1x128xf32> to vector<1x1x1x128xf32>
    %806 = vector.broadcast %805 : vector<1x1x1x128xf32> to vector<1x8x8x128xf32>
    %807 = arith.addf %804, %806 : vector<1x8x8x128xf32>
    %808 = arith.negf %807 : vector<1x8x8x128xf32>
    %809 = math.exp %808 : vector<1x8x8x128xf32>
    %cst_358 = arith.constant 1.000000e+00 : f32
    %810 = vector.broadcast %cst_358 : f32 to vector<1x8x8x128xf32>
    %811 = arith.addf %810, %809 : vector<1x8x8x128xf32>
    %812 = arith.divf %810, %811 : vector<1x8x8x128xf32>
    %813 = arith.mulf %807, %812 : vector<1x8x8x128xf32>
    %814 = vector.shape_cast %813 : vector<1x8x8x128xf32> to vector<64x128xf32>
    %c2_359 = arith.constant 2 : index
    %c0_360 = arith.constant 0 : index
    %c0_361 = arith.constant 0 : index
    %815 = vector.load %arg18[%c2_359, %c0_360, %c0_361] : memref<3x128x128xf32, #tpu.memory_space<vmem>>, vector<1x128x128xf32>
    %816 = vector.shape_cast %815 : vector<1x128x128xf32> to vector<128x128xf32>
    %cst_362 = arith.constant dense<0.000000e+00> : vector<64x128xf32>
    %817 = tpu.matmul %814, %816, %cst_362 {dimension_numbers = #tpu.dot_dimension_numbers<[1], [0], [0], [1], [0, 0, 1, 1], [], []>} : vector<64x128xf32>, vector<128x128xf32>, vector<64x128xf32> -> vector<64x128xf32>
    %c2_363 = arith.constant 2 : index
    %c0_364 = arith.constant 0 : index
    %c0_365 = arith.constant 0 : index
    %818 = vector.load %arg19[%c2_363, %c0_364, %c0_365] : memref<3x1x128xf32, #tpu.memory_space<vmem>>, vector<1x1x128xf32>
    %819 = vector.shape_cast %818 : vector<1x1x128xf32> to vector<1x128xf32>
    %820 = vector.broadcast %819 : vector<1x128xf32> to vector<64x128xf32>
    %821 = arith.addf %817, %820 : vector<64x128xf32>
    %822 = arith.negf %821 : vector<64x128xf32>
    %823 = math.exp %822 : vector<64x128xf32>
    %cst_366 = arith.constant 1.000000e+00 : f32
    %824 = vector.broadcast %cst_366 : f32 to vector<64x128xf32>
    %825 = arith.addf %824, %823 : vector<64x128xf32>
    %826 = arith.divf %824, %825 : vector<64x128xf32>
    %827 = arith.mulf %821, %826 : vector<64x128xf32>
    %828 = vector.shape_cast %827 : vector<64x128xf32> to vector<1x8x8x128xf32>
    %829 = vector.shape_cast %786 : vector<1x128xf32> to vector<1x1x1x128xf32>
    %830 = vector.broadcast %829 : vector<1x1x1x128xf32> to vector<1x8x8x128xf32>
    %831 = arith.mulf %828, %830 : vector<1x8x8x128xf32>
    %cst_367 = arith.constant dense<0.000000e+00> : vector<1x8x8xf32>
    %832 = vector.multi_reduction <add>, %831, %cst_367 [3] : vector<1x8x8x128xf32> to vector<1x8x8xf32>
    %833 = arith.mulf %596, %832 : vector<1x8x8xf32>
    %cst_368 = arith.constant dense<0.000000e+00> : vector<1x8xf32>
    %834 = vector.multi_reduction <add>, %833, %cst_368 [2] : vector<1x8x8xf32> to vector<1x8xf32>
    %835 = arith.addf %787, %834 : vector<1x8xf32>
    %836 = arith.mulf %597, %832 : vector<1x8x8xf32>
    %cst_369 = arith.constant dense<0.000000e+00> : vector<1x8xf32>
    %837 = vector.multi_reduction <add>, %836, %cst_369 [2] : vector<1x8x8xf32> to vector<1x8xf32>
    %838 = arith.addf %788, %837 : vector<1x8xf32>
    %839 = arith.mulf %598, %832 : vector<1x8x8xf32>
    %cst_370 = arith.constant dense<0.000000e+00> : vector<1x8xf32>
    %840 = vector.multi_reduction <add>, %839, %cst_370 [2] : vector<1x8x8xf32> to vector<1x8xf32>
    %841 = arith.addf %789, %840 : vector<1x8xf32>
    %cst_371 = arith.constant 0.00999999977 : f32
    %842 = vector.broadcast %cst_371 : f32 to vector<1x8xf32>
    %843 = arith.mulf %835, %842 : vector<1x8xf32>
    %844 = arith.addf %563, %843 : vector<1x8xf32>
    %cst_372 = arith.constant 0.00999999977 : f32
    %845 = vector.broadcast %cst_372 : f32 to vector<1x8xf32>
    %846 = arith.mulf %838, %845 : vector<1x8xf32>
    %847 = arith.addf %566, %846 : vector<1x8xf32>
    %cst_373 = arith.constant 0.00999999977 : f32
    %848 = vector.broadcast %cst_373 : f32 to vector<1x8xf32>
    %849 = arith.mulf %841, %848 : vector<1x8xf32>
    %850 = arith.addf %569, %849 : vector<1x8xf32>
    %851 = vector.shape_cast %844 : vector<1x8xf32> to vector<1x1x8xf32>
    %852 = vector.shape_cast %847 : vector<1x8xf32> to vector<1x1x8xf32>
    %853 = vector.shape_cast %850 : vector<1x8xf32> to vector<1x1x8xf32>
    %854 = tpu.concatenate %851, %852, %853 in 1 : vector<1x1x8xf32>, vector<1x1x8xf32>, vector<1x1x8xf32> -> vector<1x3x8xf32>
    %c0_374 = arith.constant 0 : index
    %c0_375 = arith.constant 0 : index
    %c0_376 = arith.constant 0 : index
    %855 = vector.load %arg21[%c0_374, %c0_375, %c0_376] : memref<1x3x8xf32, #tpu.memory_space<vmem>>, vector<1x3x8xf32>
    tpu.vector_store %arg21[%c0_374, %c0_375, %c0_376], %854 {strides = array<i32>} : memref<1x3x8xf32, #tpu.memory_space<vmem>>, vector<1x3x8xf32>,
    return
  }
  func.func @transform_0(%arg0: i32) -> (i32, i32, i32) {
    %c0_i32 = arith.constant 0 : i32
    %c0_i32_0 = arith.constant 0 : i32
    %c0_i32_1 = arith.constant 0 : i32
    return %arg0, %c0_i32, %c0_i32_0 : i32, i32, i32
  }
  func.func @transform_1(%arg0: i32) -> (i32, i32, i32) {
    %c0_i32 = arith.constant 0 : i32
    %c0_i32_0 = arith.constant 0 : i32
    %c0_i32_1 = arith.constant 0 : i32
    return %arg0, %c0_i32, %c0_i32_0 : i32, i32, i32
  }
  func.func @transform_2(%arg0: i32) -> (i32, i32, i32) {
    %c0_i32 = arith.constant 0 : i32
    %c0_i32_0 = arith.constant 0 : i32
    %c0_i32_1 = arith.constant 0 : i32
    %c0_i32_2 = arith.constant 0 : i32
    return %c0_i32, %c0_i32_0, %c0_i32_1 : i32, i32, i32
  }
  func.func @transform_3(%arg0: i32) -> (i32, i32, i32) {
    %c0_i32 = arith.constant 0 : i32
    %c0_i32_0 = arith.constant 0 : i32
    %c0_i32_1 = arith.constant 0 : i32
    %c0_i32_2 = arith.constant 0 : i32
    return %c0_i32, %c0_i32_0, %c0_i32_1 : i32, i32, i32
  }
  func.func @transform_4(%arg0: i32) -> (i32, i32, i32) {
    %c0_i32 = arith.constant 0 : i32
    %c0_i32_0 = arith.constant 0 : i32
    %c0_i32_1 = arith.constant 0 : i32
    %c0_i32_2 = arith.constant 0 : i32
    return %c0_i32, %c0_i32_0, %c0_i32_1 : i32, i32, i32
  }
  func.func @transform_5(%arg0: i32) -> (i32, i32, i32) {
    %c0_i32 = arith.constant 0 : i32
    %c0_i32_0 = arith.constant 0 : i32
    %c0_i32_1 = arith.constant 0 : i32
    %c0_i32_2 = arith.constant 0 : i32
    return %c0_i32, %c0_i32_0, %c0_i32_1 : i32, i32, i32
  }
  func.func @transform_6(%arg0: i32) -> (i32, i32, i32) {
    %c0_i32 = arith.constant 0 : i32
    %c0_i32_0 = arith.constant 0 : i32
    %c0_i32_1 = arith.constant 0 : i32
    %c0_i32_2 = arith.constant 0 : i32
    return %c0_i32, %c0_i32_0, %c0_i32_1 : i32, i32, i32
  }
  func.func @transform_7(%arg0: i32) -> (i32, i32, i32) {
    %c0_i32 = arith.constant 0 : i32
    %c0_i32_0 = arith.constant 0 : i32
    %c0_i32_1 = arith.constant 0 : i32
    %c0_i32_2 = arith.constant 0 : i32
    return %c0_i32, %c0_i32_0, %c0_i32_1 : i32, i32, i32
  }
  func.func @transform_8(%arg0: i32) -> (i32, i32, i32) {
    %c0_i32 = arith.constant 0 : i32
    %c0_i32_0 = arith.constant 0 : i32
    %c0_i32_1 = arith.constant 0 : i32
    %c0_i32_2 = arith.constant 0 : i32
    return %c0_i32, %c0_i32_0, %c0_i32_1 : i32, i32, i32
  }
  func.func @transform_9(%arg0: i32) -> (i32, i32, i32) {
    %c0_i32 = arith.constant 0 : i32
    %c0_i32_0 = arith.constant 0 : i32
    %c0_i32_1 = arith.constant 0 : i32
    %c0_i32_2 = arith.constant 0 : i32
    return %c0_i32, %c0_i32_0, %c0_i32_1 : i32, i32, i32
  }
  func.func @transform_10(%arg0: i32) -> (i32, i32, i32) {
    %c0_i32 = arith.constant 0 : i32
    %c0_i32_0 = arith.constant 0 : i32
    %c0_i32_1 = arith.constant 0 : i32
    %c0_i32_2 = arith.constant 0 : i32
    return %c0_i32, %c0_i32_0, %c0_i32_1 : i32, i32, i32
  }
  func.func @transform_11(%arg0: i32) -> (i32, i32, i32) {
    %c0_i32 = arith.constant 0 : i32
    %c0_i32_0 = arith.constant 0 : i32
    %c0_i32_1 = arith.constant 0 : i32
    %c0_i32_2 = arith.constant 0 : i32
    return %c0_i32, %c0_i32_0, %c0_i32_1 : i32, i32, i32
  }
  func.func @transform_12(%arg0: i32) -> (i32, i32, i32) {
    %c0_i32 = arith.constant 0 : i32
    %c0_i32_0 = arith.constant 0 : i32
    %c0_i32_1 = arith.constant 0 : i32
    %c0_i32_2 = arith.constant 0 : i32
    return %c0_i32, %c0_i32_0, %c0_i32_1 : i32, i32, i32
  }
  func.func @transform_13(%arg0: i32) -> (i32, i32, i32) {
    %c0_i32 = arith.constant 0 : i32
    %c0_i32_0 = arith.constant 0 : i32
    %c0_i32_1 = arith.constant 0 : i32
    %c0_i32_2 = arith.constant 0 : i32
    return %c0_i32, %c0_i32_0, %c0_i32_1 : i32, i32, i32
  }
  func.func @transform_14(%arg0: i32) -> (i32, i32, i32) {
    %c0_i32 = arith.constant 0 : i32
    %c0_i32_0 = arith.constant 0 : i32
    %c0_i32_1 = arith.constant 0 : i32
    %c0_i32_2 = arith.constant 0 : i32
    return %c0_i32, %c0_i32_0, %c0_i32_1 : i32, i32, i32
  }
  func.func @transform_15(%arg0: i32) -> (i32, i32, i32) {
    %c0_i32 = arith.constant 0 : i32
    %c0_i32_0 = arith.constant 0 : i32
    %c0_i32_1 = arith.constant 0 : i32
    %c0_i32_2 = arith.constant 0 : i32
    return %c0_i32, %c0_i32_0, %c0_i32_1 : i32, i32, i32
  }
  func.func @transform_16(%arg0: i32) -> (i32, i32, i32) {
    %c0_i32 = arith.constant 0 : i32
    %c0_i32_0 = arith.constant 0 : i32
    %c0_i32_1 = arith.constant 0 : i32
    %c0_i32_2 = arith.constant 0 : i32
    return %c0_i32, %c0_i32_0, %c0_i32_1 : i32, i32, i32
  }
  func.func @transform_17(%arg0: i32) -> (i32, i32, i32) {
    %c0_i32 = arith.constant 0 : i32
    %c0_i32_0 = arith.constant 0 : i32
    %c0_i32_1 = arith.constant 0 : i32
    %c0_i32_2 = arith.constant 0 : i32
    return %c0_i32, %c0_i32_0, %c0_i32_1 : i32, i32, i32
  }
  func.func @transform_18(%arg0: i32) -> (i32, i32, i32) {
    %c0_i32 = arith.constant 0 : i32
    %c0_i32_0 = arith.constant 0 : i32
    %c0_i32_1 = arith.constant 0 : i32
    %c0_i32_2 = arith.constant 0 : i32
    return %c0_i32, %c0_i32_0, %c0_i32_1 : i32, i32, i32
  }
  func.func @transform_19(%arg0: i32) -> (i32, i32, i32) {
    %c0_i32 = arith.constant 0 : i32
    %c0_i32_0 = arith.constant 0 : i32
    %c0_i32_1 = arith.constant 0 : i32
    %c0_i32_2 = arith.constant 0 : i32
    return %c0_i32, %c0_i32_0, %c0_i32_1 : i32, i32, i32
  }
  func.func @transform_20(%arg0: i32) -> (i32, i32, i32) {
    %c0_i32 = arith.constant 0 : i32
    %c0_i32_0 = arith.constant 0 : i32
    %c0_i32_1 = arith.constant 0 : i32
    return %arg0, %c0_i32, %c0_i32_0 : i32, i32, i32
  }
}

</mosaic_0001>

<llo_original>
// kernel: egnn_forward.1
$region0: #{egnn_forward.1}
  #allocation0 [shape = 'u32[]', space=smem, size = 0x4, offset = 0x4, fixed_abs, tag = 'smem constant byte address 0x4 - core index']
  #allocation1 [shape = 'u32[144,128]{1,0:T(1,128)}', space=vmem, size = 0x12000, scoped, tag = 'internal scratch']
  %s0 = inlined_call_operand.vmem [shape: f32[2,8,128], index: 0, kind: input, shape index: {}]
  %s1 = inlined_call_operand.vmem [shape: f32[2,3,8], index: 1, kind: input, shape index: {}]
  %s2 = inlined_call_operand.vmem [shape: f32[6,128,256], index: 2, kind: input, shape index: {}]
  %s3 = inlined_call_operand.vmem [shape: f32[6,1,128], index: 3, kind: input, shape index: {}]
  %s4 = inlined_call_operand.vmem [shape: f32[6,1,128], index: 4, kind: input, shape index: {}]
  %s5 = inlined_call_operand.vmem [shape: f32[6,1,128], index: 5, kind: input, shape index: {}]
  %s6 = inlined_call_operand.vmem [shape: f32[6,128,128], index: 6, kind: input, shape index: {}]
  %s7 = inlined_call_operand.vmem [shape: f32[6,1,128], index: 7, kind: input, shape index: {}]
  %s8 = inlined_call_operand.vmem [shape: f32[6,128,128], index: 8, kind: input, shape index: {}]
  %s9 = inlined_call_operand.vmem [shape: f32[6,128,128], index: 9, kind: input, shape index: {}]
  %s10 = inlined_call_operand.vmem [shape: f32[6,1,128], index: 10, kind: input, shape index: {}]
  %s11 = inlined_call_operand.vmem [shape: f32[6,128,128], index: 11, kind: input, shape index: {}]
  %s12 = inlined_call_operand.vmem [shape: f32[6,1,128], index: 12, kind: input, shape index: {}]
  %s13 = inlined_call_operand.vmem [shape: f32[3,128,256], index: 13, kind: input, shape index: {}]
  %s14 = inlined_call_operand.vmem [shape: f32[3,1,128], index: 14, kind: input, shape index: {}]
  %s15 = inlined_call_operand.vmem [shape: f32[3,1,128], index: 15, kind: input, shape index: {}]
  %s16 = inlined_call_operand.vmem [shape: f32[3,1,128], index: 16, kind: input, shape index: {}]
  %s17 = inlined_call_operand.vmem [shape: f32[3,128,128], index: 17, kind: input, shape index: {}]
  %s18 = inlined_call_operand.vmem [shape: f32[3,1,128], index: 18, kind: input, shape index: {}]
  %s19 = inlined_call_operand.vmem [shape: f32[3,1,128], index: 19, kind: input, shape index: {}]
  %s20 = inlined_call_operand.vmem [shape: f32[2,3,8], index: 20, kind: output, shape index: {}]
  %s21 = sld [smem:[#allocation0]]
  $region113: #{egnn_forward.1} parent=0
    _
  %s23 = ssub.s32 1, %s21
  %s24 = scalar_select 0, %s23, %s21
  loop: start=0, step=1, limit=4
  $region2: #{egnn_forward.1} parent=0 // loop_pre_header
    _
  $region3: #{egnn_forward.1} parent=0 // loop_header
    %s26 = sphi 0, %s30
    %p27 = scmp.ge.s32.totalorder %s26, 4
    %s36 = sphi 0, %s38
    %s39 = sphi 0, %s36
    %s40 = sphi 0, %s39
    %s56 = sphi 0, %s40
    %s62 = sphi 0, %s64
    %s65 = sphi 0, %s62
    %s66 = sphi 0, %s65
    %s82 = sphi 0, %s66
    %s86 = sphi 0, %s86
    %s88 = sphi 0, %s86
    %s89 = sphi 0, %s88
    %s103 = sphi 0, %s89
    %s107 = sphi 0, %s107
    %s109 = sphi 0, %s107
    %s110 = sphi 0, %s109
    %s124 = sphi 0, %s110
    %s128 = sphi 0, %s128
    %s130 = sphi 0, %s128
    %s131 = sphi 0, %s130
    %s145 = sphi 0, %s131
    %s149 = sphi 0, %s149
    %s151 = sphi 0, %s149
    %s152 = sphi 0, %s151
    %s166 = sphi 0, %s152
    %s170 = sphi 0, %s170
    %s172 = sphi 0, %s170
    %s173 = sphi 0, %s172
    %s187 = sphi 0, %s173
    %s191 = sphi 0, %s191
    %s193 = sphi 0, %s191
    %s194 = sphi 0, %s193
    %s208 = sphi 0, %s194
    %s212 = sphi 0, %s212
    %s214 = sphi 0, %s212
    %s215 = sphi 0, %s214
    %s229 = sphi 0, %s215
    %s233 = sphi 0, %s233
    %s235 = sphi 0, %s233
    %s236 = sphi 0, %s235
    %s250 = sphi 0, %s236
    %s254 = sphi 0, %s254
    %s256 = sphi 0, %s254
    %s257 = sphi 0, %s256
    %s271 = sphi 0, %s257
    %s275 = sphi 0, %s275
    %s277 = sphi 0, %s275
    %s278 = sphi 0, %s277
    %s292 = sphi 0, %s278
    %s296 = sphi 0, %s296
    %s298 = sphi 0, %s296
    %s299 = sphi 0, %s298
    %s313 = sphi 0, %s299
    %s317 = sphi 0, %s317
    %s319 = sphi 0, %s317
    %s320 = sphi 0, %s319
    %s334 = sphi 0, %s320
    %s338 = sphi 0, %s338
    %s340 = sphi 0, %s338
    %s341 = sphi 0, %s340
    %s355 = sphi 0, %s341
    %s359 = sphi 0, %s359
    %s361 = sphi 0, %s359
    %s362 = sphi 0, %s361
    %s376 = sphi 0, %s362
    %s380 = sphi 0, %s380
    %s382 = sphi 0, %s380
    %s383 = sphi 0, %s382
    %s397 = sphi 0, %s383
    %s401 = sphi 0, %s401
    %s403 = sphi 0, %s401
    %s404 = sphi 0, %s403
    %s418 = sphi 0, %s404
    %s422 = sphi 0, %s422
    %s424 = sphi 0, %s422
    %s425 = sphi 0, %s424
    %s439 = sphi 0, %s425
    %s443 = sphi 0, %s443
    %s445 = sphi 0, %s443
    %s446 = sphi 0, %s445
    %s460 = sphi 0, %s446
    %s466 = sphi 0, %s468
    %s469 = sphi 0, %s466
    %s470 = sphi 0, %s469
    %s486 = sphi 0, %s470
  $region4: #{egnn_forward.1} parent=0 // loop_header_branch
    %29 = sbr.rel (%p27) target = $region8
  $region5: #{egnn_forward.1} parent=0 // loop_body
    %s31 = ssub.s32 %s26, 1
    %s32 = ssub.s32 %s26, 2
    %s33 = sadd.s32 %s26, 1
    %s34 = ssub.s32 %s26, %s33
    %p35 = scmp.eq.s32.totalorder %s34, 0
    %s37 = sadd.s32 %s36, 1
    %s38 = scalar_select %p35, %s36, %s37
    %p41 = pneg %p35
    %p42 = scmp.eq.s32.totalorder %s26, 1
    %p43 = por %p41, %p42
    %p44 = scmp.ne.s32.totalorder %s36, %s39
    %p45 = scmp.eq.s32.totalorder %s26, 0
    %p46 = por %p44, %p45
    %p47 = scmp.ne.s32.totalorder %s36, %s39
    %p48 = scmp.eq.s32.totalorder %s31, 1
    %p49 = por %p47, %p48
    %p50 = scmp.ne.s32.totalorder %s39, %s40
    %p51 = scmp.eq.s32.totalorder %s31, 0
    %p52 = por %p50, %p51
    %p53 = scmp.ne.s32.totalorder %s39, %s40
    %p54 = scmp.eq.s32.totalorder %s32, 1
    %p55 = por %p53, %p54
    %p57 = scmp.ne.s32.totalorder %s40, %s56
    %p58 = scmp.eq.s32.totalorder %s32, 0
    %p59 = por %p57, %p58
    %s60 = ssub.s32 %s26, %s33
    %p61 = scmp.eq.s32.totalorder %s60, 0
    %s63 = sadd.s32 %s62, 1
    %s64 = scalar_select %p61, %s62, %s63
    %p67 = pneg %p61
    %p68 = scmp.eq.s32.totalorder %s26, 1
    %p69 = por %p67, %p68
    %p70 = scmp.ne.s32.totalorder %s62, %s65
    %p71 = scmp.eq.s32.totalorder %s26, 0
    %p72 = por %p70, %p71
    %p73 = scmp.ne.s32.totalorder %s62, %s65
    %p74 = scmp.eq.s32.totalorder %s31, 1
    %p75 = por %p73, %p74
    %p76 = scmp.ne.s32.totalorder %s65, %s66
    %p77 = scmp.eq.s32.totalorder %s31, 0
    %p78 = por %p76, %p77
    %p79 = scmp.ne.s32.totalorder %s65, %s66
    %p80 = scmp.eq.s32.totalorder %s32, 1
    %p81 = por %p79, %p80
    %p83 = scmp.ne.s32.totalorder %s66, %s82
    %p84 = scmp.eq.s32.totalorder %s32, 0
    %p85 = por %p83, %p84
    %s87 = sadd.s32 %s86, 1
    %p90 = scmp.eq.s32.totalorder %s26, 1
    %p91 = scmp.ne.s32.totalorder %s86, %s88
    %p92 = scmp.eq.s32.totalorder %s26, 0
    %p93 = por %p91, %p92
    %p94 = scmp.ne.s32.totalorder %s86, %s88
    %p95 = scmp.eq.s32.totalorder %s31, 1
    %p96 = por %p94, %p95
    %p97 = scmp.ne.s32.totalorder %s88, %s89
    %p98 = scmp.eq.s32.totalorder %s31, 0
    %p99 = por %p97, %p98
    %p100 = scmp.ne.s32.totalorder %s88, %s89
    %p101 = scmp.eq.s32.totalorder %s32, 1
    %p102 = por %p100, %p101
    %p104 = scmp.ne.s32.totalorder %s89, %s103
    %p105 = scmp.eq.s32.totalorder %s32, 0
    %p106 = por %p104, %p105
    %s108 = sadd.s32 %s107, 1
    %p111 = scmp.eq.s32.totalorder %s26, 1
    %p112 = scmp.ne.s32.totalorder %s107, %s109
    %p113 = scmp.eq.s32.totalorder %s26, 0
    %p114 = por %p112, %p113
    %p115 = scmp.ne.s32.totalorder %s107, %s109
    %p116 = scmp.eq.s32.totalorder %s31, 1
    %p117 = por %p115, %p116
    %p118 = scmp.ne.s32.totalorder %s109, %s110
    %p119 = scmp.eq.s32.totalorder %s31, 0
    %p120 = por %p118, %p119
    %p121 = scmp.ne.s32.totalorder %s109, %s110
    %p122 = scmp.eq.s32.totalorder %s32, 1
    %p123 = por %p121, %p122
    %p125 = scmp.ne.s32.totalorder %s110, %s124
    %p126 = scmp.eq.s32.totalorder %s32, 0
    %p127 = por %p125, %p126
    %s129 = sadd.s32 %s128, 1
    %p132 = scmp.eq.s32.totalorder %s26, 1
    %p133 = scmp.ne.s32.totalorder %s128, %s130
    %p134 = scmp.eq.s32.totalorder %s26, 0
    %p135 = por %p133, %p134
    %p136 = scmp.ne.s32.totalorder %s128, %s130
    %p137 = scmp.eq.s32.totalorder %s31, 1
    %p138 = por %p136, %p137
    %p139 = scmp.ne.s32.totalorder %s130, %s131
    %p140 = scmp.eq.s32.totalorder %s31, 0
    %p141 = por %p139, %p140
    %p142 = scmp.ne.s32.totalorder %s130, %s131
    %p143 = scmp.eq.s32.totalorder %s32, 1
    %p144 = por %p142, %p143
    %p146 = scmp.ne.s32.totalorder %s131, %s145
    %p147 = scmp.eq.s32.totalorder %s32, 0
    %p148 = por %p146, %p147
    %s150 = sadd.s32 %s149, 1
    %p153 = scmp.eq.s32.totalorder %s26, 1
    %p154 = scmp.ne.s32.totalorder %s149, %s151
    %p155 = scmp.eq.s32.totalorder %s26, 0
    %p156 = por %p154, %p155
    %p157 = scmp.ne.s32.totalorder %s149, %s151
    %p158 = scmp.eq.s32.totalorder %s31, 1
    %p159 = por %p157, %p158
    %p160 = scmp.ne.s32.totalorder %s151, %s152
    %p161 = scmp.eq.s32.totalorder %s31, 0
    %p162 = por %p160, %p161
    %p163 = scmp.ne.s32.totalorder %s151, %s152
    %p164 = scmp.eq.s32.totalorder %s32, 1
    %p165 = por %p163, %p164
    %p167 = scmp.ne.s32.totalorder %s152, %s166
    %p168 = scmp.eq.s32.totalorder %s32, 0
    %p169 = por %p167, %p168
    %s171 = sadd.s32 %s170, 1
    %p174 = scmp.eq.s32.totalorder %s26, 1
    %p175 = scmp.ne.s32.totalorder %s170, %s172
    %p176 = scmp.eq.s32.totalorder %s26, 0
    %p177 = por %p175, %p176
    %p178 = scmp.ne.s32.totalorder %s170, %s172
    %p179 = scmp.eq.s32.totalorder %s31, 1
    %p180 = por %p178, %p179
    %p181 = scmp.ne.s32.totalorder %s172, %s173
    %p182 = scmp.eq.s32.totalorder %s31, 0
    %p183 = por %p181, %p182
    %p184 = scmp.ne.s32.totalorder %s172, %s173
    %p185 = scmp.eq.s32.totalorder %s32, 1
    %p186 = por %p184, %p185
    %p188 = scmp.ne.s32.totalorder %s173, %s187
    %p189 = scmp.eq.s32.totalorder %s32, 0
    %p190 = por %p188, %p189
    %s192 = sadd.s32 %s191, 1
    %p195 = scmp.eq.s32.totalorder %s26, 1
    %p196 = scmp.ne.s32.totalorder %s191, %s193
    %p197 = scmp.eq.s32.totalorder %s26, 0
    %p198 = por %p196, %p197
    %p199 = scmp.ne.s32.totalorder %s191, %s193
    %p200 = scmp.eq.s32.totalorder %s31, 1
    %p201 = por %p199, %p200
    %p202 = scmp.ne.s32.totalorder %s193, %s194
    %p203 = scmp.eq.s32.totalorder %s31, 0
    %p204 = por %p202, %p203
    %p205 = scmp.ne.s32.totalorder %s193, %s194
    %p206 = scmp.eq.s32.totalorder %s32, 1
    %p207 = por %p205, %p206
    %p209 = scmp.ne.s32.totalorder %s194, %s208
    %p210 = scmp.eq.s32.totalorder %s32, 0
    %p211 = por %p209, %p210
    %s213 = sadd.s32 %s212, 1
    %p216 = scmp.eq.s32.totalorder %s26, 1
    %p217 = scmp.ne.s32.totalorder %s212, %s214
    %p218 = scmp.eq.s32.totalorder %s26, 0
    %p219 = por %p217, %p218
    %p220 = scmp.ne.s32.totalorder %s212, %s214
    %p221 = scmp.eq.s32.totalorder %s31, 1
    %p222 = por %p220, %p221
    %p223 = scmp.ne.s32.totalorder %s214, %s215
    %p224 = scmp.eq.s32.totalorder %s31, 0
    %p225 = por %p223, %p224
    %p226 = scmp.ne.s32.totalorder %s214, %s215
    %p227 = scmp.eq.s32.totalorder %s32, 1
    %p228 = por %p226, %p227
    %p230 = scmp.ne.s32.totalorder %s215, %s229
    %p231 = scmp.eq.s32.totalorder %s32, 0
    %p232 = por %p230, %p231
    %s234 = sadd.s32 %s233, 1
    %p237 = scmp.eq.s32.totalorder %s26, 1
    %p238 = scmp.ne.s32.totalorder %s233, %s235
    %p239 = scmp.eq.s32.totalorder %s26, 0
    %p240 = por %p238, %p239
    %p241 = scmp.ne.s32.totalorder %s233, %s235
    %p242 = scmp.eq.s32.totalorder %s31, 1
    %p243 = por %p241, %p242
    %p244 = scmp.ne.s32.totalorder %s235, %s236
    %p245 = scmp.eq.s32.totalorder %s31, 0
    %p246 = por %p244, %p245
    %p247 = scmp.ne.s32.totalorder %s235, %s236
    %p248 = scmp.eq.s32.totalorder %s32, 1
    %p249 = por %p247, %p248
    %p251 = scmp.ne.s32.totalorder %s236, %s250
    %p252 = scmp.eq.s32.totalorder %s32, 0
    %p253 = por %p251, %p252
    %s255 = sadd.s32 %s254, 1
    %p258 = scmp.eq.s32.totalorder %s26, 1
    %p259 = scmp.ne.s32.totalorder %s254, %s256
    %p260 = scmp.eq.s32.totalorder %s26, 0
    %p261 = por %p259, %p260
    %p262 = scmp.ne.s32.totalorder %s254, %s256
    %p263 = scmp.eq.s32.totalorder %s31, 1
    %p264 = por %p262, %p263
    %p265 = scmp.ne.s32.totalorder %s256, %s257
    %p266 = scmp.eq.s32.totalorder %s31, 0
    %p267 = por %p265, %p266
    %p268 = scmp.ne.s32.totalorder %s256, %s257
    %p269 = scmp.eq.s32.totalorder %s32, 1
    %p270 = por %p268, %p269
    %p272 = scmp.ne.s32.totalorder %s257, %s271
    %p273 = scmp.eq.s32.totalorder %s32, 0
    %p274 = por %p272, %p273
    %s276 = sadd.s32 %s275, 1
    %p279 = scmp.eq.s32.totalorder %s26, 1
    %p280 = scmp.ne.s32.totalorder %s275, %s277
    %p281 = scmp.eq.s32.totalorder %s26, 0
    %p282 = por %p280, %p281
    %p283 = scmp.ne.s32.totalorder %s275, %s277
    %p284 = scmp.eq.s32.totalorder %s31, 1
    %p285 = por %p283, %p284
    %p286 = scmp.ne.s32.totalorder %s277, %s278
    %p287 = scmp.eq.s32.totalorder %s31, 0
    %p288 = por %p286, %p287
    %p289 = scmp.ne.s32.totalorder %s277, %s278
    %p290 = scmp.eq.s32.totalorder %s32, 1
    %p291 = por %p289, %p290
    %p293 = scmp.ne.s32.totalorder %s278, %s292
    %p294 = scmp.eq.s32.totalorder %s32, 0
    %p295 = por %p293, %p294
    %s297 = sadd.s32 %s296, 1
    %p300 = scmp.eq.s32.totalorder %s26, 1
    %p301 = scmp.ne.s32.totalorder %s296, %s298
    %p302 = scmp.eq.s32.totalorder %s26, 0
    %p303 = por %p301, %p302
    %p304 = scmp.ne.s32.totalorder %s296, %s298
    %p305 = scmp.eq.s32.totalorder %s31, 1
    %p306 = por %p304, %p305
    %p307 = scmp.ne.s32.totalorder %s298, %s299
    %p308 = scmp.eq.s32.totalorder %s31, 0
    %p309 = por %p307, %p308
    %p310 = scmp.ne.s32.totalorder %s298, %s299
    %p311 = scmp.eq.s32.totalorder %s32, 1
    %p312 = por %p310, %p311
    %p314 = scmp.ne.s32.totalorder %s299, %s313
    %p315 = scmp.eq.s32.totalorder %s32, 0
    %p316 = por %p314, %p315
    %s318 = sadd.s32 %s317, 1
    %p321 = scmp.eq.s32.totalorder %s26, 1
    %p322 = scmp.ne.s32.totalorder %s317, %s319
    %p323 = scmp.eq.s32.totalorder %s26, 0
    %p324 = por %p322, %p323
    %p325 = scmp.ne.s32.totalorder %s317, %s319
    %p326 = scmp.eq.s32.totalorder %s31, 1
    %p327 = por %p325, %p326
    %p328 = scmp.ne.s32.totalorder %s319, %s320
    %p329 = scmp.eq.s32.totalorder %s31, 0
    %p330 = por %p328, %p329
    %p331 = scmp.ne.s32.totalorder %s319, %s320
    %p332 = scmp.eq.s32.totalorder %s32, 1
    %p333 = por %p331, %p332
    %p335 = scmp.ne.s32.totalorder %s320, %s334
    %p336 = scmp.eq.s32.totalorder %s32, 0
    %p337 = por %p335, %p336
    %s339 = sadd.s32 %s338, 1
    %p342 = scmp.eq.s32.totalorder %s26, 1
    %p343 = scmp.ne.s32.totalorder %s338, %s340
    %p344 = scmp.eq.s32.totalorder %s26, 0
    %p345 = por %p343, %p344
    %p346 = scmp.ne.s32.totalorder %s338, %s340
    %p347 = scmp.eq.s32.totalorder %s31, 1
    %p348 = por %p346, %p347
    %p349 = scmp.ne.s32.totalorder %s340, %s341
    %p350 = scmp.eq.s32.totalorder %s31, 0
    %p351 = por %p349, %p350
    %p352 = scmp.ne.s32.totalorder %s340, %s341
    %p353 = scmp.eq.s32.totalorder %s32, 1
    %p354 = por %p352, %p353
    %p356 = scmp.ne.s32.totalorder %s341, %s355
    %p357 = scmp.eq.s32.totalorder %s32, 0
    %p358 = por %p356, %p357
    %s360 = sadd.s32 %s359, 1
    %p363 = scmp.eq.s32.totalorder %s26, 1
    %p364 = scmp.ne.s32.totalorder %s359, %s361
    %p365 = scmp.eq.s32.totalorder %s26, 0
    %p366 = por %p364, %p365
    %p367 = scmp.ne.s32.totalorder %s359, %s361
    %p368 = scmp.eq.s32.totalorder %s31, 1
    %p369 = por %p367, %p368
    %p370 = scmp.ne.s32.totalorder %s361, %s362
    %p371 = scmp.eq.s32.totalorder %s31, 0
    %p372 = por %p370, %p371
    %p373 = scmp.ne.s32.totalorder %s361, %s362
    %p374 = scmp.eq.s32.totalorder %s32, 1
    %p375 = por %p373, %p374
    %p377 = scmp.ne.s32.totalorder %s362, %s376
    %p378 = scmp.eq.s32.totalorder %s32, 0
    %p379 = por %p377, %p378
    %s381 = sadd.s32 %s380, 1
    %p384 = scmp.eq.s32.totalorder %s26, 1
    %p385 = scmp.ne.s32.totalorder %s380, %s382
    %p386 = scmp.eq.s32.totalorder %s26, 0
    %p387 = por %p385, %p386
    %p388 = scmp.ne.s32.totalorder %s380, %s382
    %p389 = scmp.eq.s32.totalorder %s31, 1
    %p390 = por %p388, %p389
    %p391 = scmp.ne.s32.totalorder %s382, %s383
    %p392 = scmp.eq.s32.totalorder %s31, 0
    %p393 = por %p391, %p392
    %p394 = scmp.ne.s32.totalorder %s382, %s383
    %p395 = scmp.eq.s32.totalorder %s32, 1
    %p396 = por %p394, %p395
    %p398 = scmp.ne.s32.totalorder %s383, %s397
    %p399 = scmp.eq.s32.totalorder %s32, 0
    %p400 = por %p398, %p399
    %s402 = sadd.s32 %s401, 1
    %p405 = scmp.eq.s32.totalorder %s26, 1
    %p406 = scmp.ne.s32.totalorder %s401, %s403
    %p407 = scmp.eq.s32.totalorder %s26, 0
    %p408 = por %p406, %p407
    %p409 = scmp.ne.s32.totalorder %s401, %s403
    %p410 = scmp.eq.s32.totalorder %s31, 1
    %p411 = por %p409, %p410
    %p412 = scmp.ne.s32.totalorder %s403, %s404
    %p413 = scmp.eq.s32.totalorder %s31, 0
    %p414 = por %p412, %p413
    %p415 = scmp.ne.s32.totalorder %s403, %s404
    %p416 = scmp.eq.s32.totalorder %s32, 1
    %p417 = por %p415, %p416
    %p419 = scmp.ne.s32.totalorder %s404, %s418
    %p420 = scmp.eq.s32.totalorder %s32, 0
    %p421 = por %p419, %p420
    %s423 = sadd.s32 %s422, 1
    %p426 = scmp.eq.s32.totalorder %s26, 1
    %p427 = scmp.ne.s32.totalorder %s422, %s424
    %p428 = scmp.eq.s32.totalorder %s26, 0
    %p429 = por %p427, %p428
    %p430 = scmp.ne.s32.totalorder %s422, %s424
    %p431 = scmp.eq.s32.totalorder %s31, 1
    %p432 = por %p430, %p431
    %p433 = scmp.ne.s32.totalorder %s424, %s425
    %p434 = scmp.eq.s32.totalorder %s31, 0
    %p435 = por %p433, %p434
    %p436 = scmp.ne.s32.totalorder %s424, %s425
    %p437 = scmp.eq.s32.totalorder %s32, 1
    %p438 = por %p436, %p437
    %p440 = scmp.ne.s32.totalorder %s425, %s439
    %p441 = scmp.eq.s32.totalorder %s32, 0
    %p442 = por %p440, %p441
    %s444 = sadd.s32 %s443, 1
    %p447 = scmp.eq.s32.totalorder %s26, 1
    %p448 = scmp.ne.s32.totalorder %s443, %s445
    %p449 = scmp.eq.s32.totalorder %s26, 0
    %p450 = por %p448, %p449
    %p451 = scmp.ne.s32.totalorder %s443, %s445
    %p452 = scmp.eq.s32.totalorder %s31, 1
    %p453 = por %p451, %p452
    %p454 = scmp.ne.s32.totalorder %s445, %s446
    %p455 = scmp.eq.s32.totalorder %s31, 0
    %p456 = por %p454, %p455
    %p457 = scmp.ne.s32.totalorder %s445, %s446
    %p458 = scmp.eq.s32.totalorder %s32, 1
    %p459 = por %p457, %p458
    %p461 = scmp.ne.s32.totalorder %s446, %s460
    %p462 = scmp.eq.s32.totalorder %s32, 0
    %p463 = por %p461, %p462
    %s464 = ssub.s32 %s26, %s33
    %p465 = scmp.eq.s32.totalorder %s464, 0
    %s467 = sadd.s32 %s466, 1
    %s468 = scalar_select %p465, %s466, %s467
    %p471 = pneg %p465
    %p472 = scmp.eq.s32.totalorder %s26, 1
    %p473 = por %p471, %p472
    %p474 = scmp.ne.s32.totalorder %s466, %s469
    %p475 = scmp.eq.s32.totalorder %s26, 0
    %p476 = por %p474, %p475
    %p477 = scmp.ne.s32.totalorder %s466, %s469
    %p478 = scmp.eq.s32.totalorder %s31, 1
    %p479 = por %p477, %p478
    %p480 = scmp.ne.s32.totalorder %s469, %s470
    %p481 = scmp.eq.s32.totalorder %s31, 0
    %p482 = por %p480, %p481
    %p483 = scmp.ne.s32.totalorder %s469, %s470
    %p484 = scmp.eq.s32.totalorder %s32, 1
    %p485 = por %p483, %p484
    %p487 = scmp.ne.s32.totalorder %s470, %s486
    %p488 = scmp.eq.s32.totalorder %s32, 0
    %p489 = por %p487, %p488
    %p490 = scmp.le.s32.totalorder 1, %s26
    %p491 = scmp.lt.s32.totalorder %s26, 3
    %p492 = pnand %p490, %p491
    %p493 = pneg %p492
    // Predicated region
    $region9: #{egnn_forward.1} parent=5 // pred_check
      _
    $region10: #{egnn_forward.1} parent=5 // pred_check_branch
      %495 = sbr.rel (%p492) target = $region12
    $region11: #{egnn_forward.1} parent=5 // pred_region
      %s496 = ssub.s32 %s26, 1
      // Predicated region
      $region13: #{egnn_forward.1} parent=11 // pred_check
        %p497 = pneg %p99
      $region14: #{egnn_forward.1} parent=11 // pred_check_branch
        %499 = sbr.rel (%p497) target = $region16
      $region15: #{egnn_forward.1} parent=11 // pred_region
        _
      $region16: #{egnn_forward.1} parent=11 // pred_fallthru
        _
      // Predicated region
      $region17: #{egnn_forward.1} parent=11 // pred_check
        %p500 = pneg %p120
      $region18: #{egnn_forward.1} parent=11 // pred_check_branch
        %502 = sbr.rel (%p500) target = $region20
      $region19: #{egnn_forward.1} parent=11 // pred_region
        _
      $region20: #{egnn_forward.1} parent=11 // pred_fallthru
        _
      // Predicated region
      $region21: #{egnn_forward.1} parent=11 // pred_check
        %p503 = pneg %p141
      $region22: #{egnn_forward.1} parent=11 // pred_check_branch
        %505 = sbr.rel (%p503) target = $region24
      $region23: #{egnn_forward.1} parent=11 // pred_region
        _
      $region24: #{egnn_forward.1} parent=11 // pred_fallthru
        _
      // Predicated region
      $region25: #{egnn_forward.1} parent=11 // pred_check
        %p506 = pneg %p162
      $region26: #{egnn_forward.1} parent=11 // pred_check_branch
        %508 = sbr.rel (%p506) target = $region28
      $region27: #{egnn_forward.1} parent=11 // pred_region
        _
      $region28: #{egnn_forward.1} parent=11 // pred_fallthru
        _
      // Predicated region
      $region29: #{egnn_forward.1} parent=11 // pred_check
        %p509 = pneg %p183
      $region30: #{egnn_forward.1} parent=11 // pred_check_branch
        %511 = sbr.rel (%p509) target = $region32
      $region31: #{egnn_forward.1} parent=11 // pred_region
        _
      $region32: #{egnn_forward.1} parent=11 // pred_fallthru
        _
      // Predicated region
      $region33: #{egnn_forward.1} parent=11 // pred_check
        %p512 = pneg %p204
      $region34: #{egnn_forward.1} parent=11 // pred_check_branch
        %514 = sbr.rel (%p512) target = $region36
      $region35: #{egnn_forward.1} parent=11 // pred_region
        _
      $region36: #{egnn_forward.1} parent=11 // pred_fallthru
        _
      // Predicated region
      $region37: #{egnn_forward.1} parent=11 // pred_check
        %p515 = pneg %p225
      $region38: #{egnn_forward.1} parent=11 // pred_check_branch
        %517 = sbr.rel (%p515) target = $region40
      $region39: #{egnn_forward.1} parent=11 // pred_region
        _
      $region40: #{egnn_forward.1} parent=11 // pred_fallthru
        _
      // Predicated region
      $region41: #{egnn_forward.1} parent=11 // pred_check
        %p518 = pneg %p246
      $region42: #{egnn_forward.1} parent=11 // pred_check_branch
        %520 = sbr.rel (%p518) target = $region44
      $region43: #{egnn_forward.1} parent=11 // pred_region
        _
      $region44: #{egnn_forward.1} parent=11 // pred_fallthru
        _
      // Predicated region
      $region45: #{egnn_forward.1} parent=11 // pred_check
        %p521 = pneg %p267
      $region46: #{egnn_forward.1} parent=11 // pred_check_branch
        %523 = sbr.rel (%p521) target = $region48
      $region47: #{egnn_forward.1} parent=11 // pred_region
        _
      $region48: #{egnn_forward.1} parent=11 // pred_fallthru
        _
      // Predicated region
      $region49: #{egnn_forward.1} parent=11 // pred_check
        %p524 = pneg %p288
      $region50: #{egnn_forward.1} parent=11 // pred_check_branch
        %526 = sbr.rel (%p524) target = $region52
      $region51: #{egnn_forward.1} parent=11 // pred_region
        _
      $region52: #{egnn_forward.1} parent=11 // pred_fallthru
        _
      // Predicated region
      $region53: #{egnn_forward.1} parent=11 // pred_check
        %p527 = pneg %p309
      $region54: #{egnn_forward.1} parent=11 // pred_check_branch
        %529 = sbr.rel (%p527) target = $region56
      $region55: #{egnn_forward.1} parent=11 // pred_region
        _
      $region56: #{egnn_forward.1} parent=11 // pred_fallthru
        _
      // Predicated region
      $region57: #{egnn_forward.1} parent=11 // pred_check
        %p530 = pneg %p330
      $region58: #{egnn_forward.1} parent=11 // pred_check_branch
        %532 = sbr.rel (%p530) target = $region60
      $region59: #{egnn_forward.1} parent=11 // pred_region
        _
      $region60: #{egnn_forward.1} parent=11 // pred_fallthru
        _
      // Predicated region
      $region61: #{egnn_forward.1} parent=11 // pred_check
        %p533 = pneg %p351
      $region62: #{egnn_forward.1} parent=11 // pred_check_branch
        %535 = sbr.rel (%p533) target = $region64
      $region63: #{egnn_forward.1} parent=11 // pred_region
        _
      $region64: #{egnn_forward.1} parent=11 // pred_fallthru
        _
      // Predicated region
      $region65: #{egnn_forward.1} parent=11 // pred_check
        %p536 = pneg %p372
      $region66: #{egnn_forward.1} parent=11 // pred_check_branch
        %538 = sbr.rel (%p536) target = $region68
      $region67: #{egnn_forward.1} parent=11 // pred_region
        _
      $region68: #{egnn_forward.1} parent=11 // pred_fallthru
        _
      // Predicated region
      $region69: #{egnn_forward.1} parent=11 // pred_check
        %p539 = pneg %p393
      $region70: #{egnn_forward.1} parent=11 // pred_check_branch
        %541 = sbr.rel (%p539) target = $region72
      $region71: #{egnn_forward.1} parent=11 // pred_region
        _
      $region72: #{egnn_forward.1} parent=11 // pred_fallthru
        _
      // Predicated region
      $region73: #{egnn_forward.1} parent=11 // pred_check
        %p542 = pneg %p414
      $region74: #{egnn_forward.1} parent=11 // pred_check_branch
        %544 = sbr.rel (%p542) target = $region76
      $region75: #{egnn_forward.1} parent=11 // pred_region
        _
      $region76: #{egnn_forward.1} parent=11 // pred_fallthru
        _
      // Predicated region
      $region77: #{egnn_forward.1} parent=11 // pred_check
        %p545 = pneg %p435
      $region78: #{egnn_forward.1} parent=11 // pred_check_branch
        %547 = sbr.rel (%p545) target = $region80
      $region79: #{egnn_forward.1} parent=11 // pred_region
        _
      $region80: #{egnn_forward.1} parent=11 // pred_fallthru
        _
      // Predicated region
      $region81: #{egnn_forward.1} parent=11 // pred_check
        %p548 = pneg %p456
      $region82: #{egnn_forward.1} parent=11 // pred_check_branch
        %550 = sbr.rel (%p548) target = $region84
      $region83: #{egnn_forward.1} parent=11 // pred_region
        _
      $region84: #{egnn_forward.1} parent=11 // pred_fallthru
        _
    $region12: #{egnn_forward.1} parent=5 // pred_fallthru
      _
    %p551 = scmp.lt.s32.totalorder %s26, 2
    // Predicated region
    $region85: #{egnn_forward.1} parent=5 // pred_check
      %p552 = pneg %p551
    $region86: #{egnn_forward.1} parent=5 // pred_check_branch
      %554 = sbr.rel (%p552) target = $region88
    $region87: #{egnn_forward.1} parent=5 // pred_region
      // Predicated region
      $region89: #{egnn_forward.1} parent=87 // pred_check
        %p555 = pneg %p46
      $region90: #{egnn_forward.1} parent=87 // pred_check_branch
        %557 = sbr.rel (%p555) target = $region92
      $region91: #{egnn_forward.1} parent=87 // pred_region
        %p558 = scmp.lt.s32.totalorder %s26, 1
        %s559 = scalar_select %p558, %s26, 1
        %s560 = smul.addr %s559, 8
        %s561 = scalar_lea.vmem %s0, %s560
      $region92: #{egnn_forward.1} parent=87 // pred_fallthru
        _
      // Predicated region
      $region93: #{egnn_forward.1} parent=87 // pred_check
        %p562 = pneg %p72
      $region94: #{egnn_forward.1} parent=87 // pred_check_branch
        %564 = sbr.rel (%p562) target = $region96
      $region95: #{egnn_forward.1} parent=87 // pred_region
        %p565 = scmp.lt.s32.totalorder %s26, 1
        %s566 = scalar_select %p565, %s26, 1
        %s567 = smul.addr %s566, 4
        %s568 = scalar_lea.vmem %s1, %s567
      $region96: #{egnn_forward.1} parent=87 // pred_fallthru
        _
    $region88: #{egnn_forward.1} parent=5 // pred_fallthru
      _
    %p569 = scmp.le.s32.totalorder 1, %s26
    %p570 = scmp.lt.s32.totalorder %s26, 3
    %p571 = pnand %p569, %p570
    %p572 = pneg %p571
    // Predicated region
    $region97: #{egnn_forward.1} parent=5 // pred_check
      _
    $region98: #{egnn_forward.1} parent=5 // pred_check_branch
      %574 = sbr.rel (%p571) target = $region100
    $region99: #{egnn_forward.1} parent=5 // pred_region
      %s575 = ssub.s32 %s26, 1
      %p576 = scmp.lt.s32.totalorder %s31, 1
      %s577 = scalar_select %p576, %s31, 1
      %s578 = smul.addr %s577, 8
      %s579 = scalar_lea.vmem %s0, %s578
      %p580 = pneg %p52
      %p581 = pneg %p49
      %p582 = scmp.lt.s32.totalorder %s31, 1
      %s583 = scalar_select %p582, %s31, 1
      %s584 = smul.addr %s583, 4
      %s585 = scalar_lea.vmem %s1, %s584
      %p586 = pneg %p78
      %p587 = pneg %p75
      %p588 = pneg %p99
      %p589 = pneg %p96
      %p590 = pneg %p120
      %p591 = pneg %p117
      %p592 = pneg %p141
      %p593 = pneg %p138
      %p594 = pneg %p162
      %p595 = pneg %p159
      %p596 = pneg %p183
      %p597 = pneg %p180
      %p598 = pneg %p204
      %p599 = pneg %p201
      %p600 = pneg %p225
      %p601 = pneg %p222
      %p602 = pneg %p246
      %p603 = pneg %p243
      %p604 = pneg %p267
      %p605 = pneg %p264
      %p606 = pneg %p288
      %p607 = pneg %p285
      %p608 = pneg %p309
      %p609 = pneg %p306
      %p610 = pneg %p330
      %p611 = pneg %p327
      %p612 = pneg %p351
      %p613 = pneg %p348
      %p614 = pneg %p372
      %p615 = pneg %p369
      %p616 = pneg %p393
      %p617 = pneg %p390
      %p618 = pneg %p414
      %p619 = pneg %p411
      %p620 = pneg %p435
      %p621 = pneg %p432
      %p622 = pneg %p456
      %p623 = pneg %p453
      %p624 = pneg %p482
      %p625 = pneg %p479
      %p626 = scmp.lt.s32.totalorder %s31, 1
      %s627 = scalar_select %p626, %s31, 1
      %s628 = smul.addr %s627, 4
      %s629 = scalar_lea.vmem %s20, %s628
      %p630 = scmp.lt.s32.totalorder %s31, 1
      %s631 = scalar_select %p630, %s31, 1
      %s632 = smul.addr %s631, 8
      %s633 = scalar_lea.vmem %s0, %s632
      %p634 = scmp.lt.s32.totalorder %s31, 1
      %s635 = scalar_select %p634, %s31, 1
      %s636 = smul.addr %s635, 4
      %s637 = scalar_lea.vmem %s1, %s636
      %p638 = scmp.lt.s32.totalorder %s31, 1
      %s639 = scalar_select %p638, %s31, 1
      %s640 = smul.addr %s639, 4
      %s641 = scalar_lea.vmem %s20, %s640
      %v642 = vld [vmem:[%s633] sm:$0xff]
      %v643 = vld [vmem:[%s637] sm:$0x7]
      %v644 = vlaneseq
      %v645 = vshrl.u32 %v644, 7
      %v646 = vsub.s32 0, %v645
      %v647 = vrot.slane %v643, %v646
      %649 = vbcast.lane.b32.xlu0 %v647, 256
      %v650 = vpop.permute.xlu0 %649
      %v651 = vsub.f32 %v650, %v647
      %v652 = vlaneseq
      %v653 = vshrl.u32 %v652, 7
      %v654 = vsub.s32 1, %v653
      %v655 = vrot.slane %v643, %v654
      %657 = vbcast.lane.b32.xlu0 %v655, 256
      %v658 = vpop.permute.xlu0 %657
      %v659 = vsub.f32 %v658, %v655
      %v660 = vlaneseq
      %v661 = vshrl.u32 %v660, 7
      %v662 = vsub.s32 2, %v661
      %v663 = vrot.slane %v643, %v662
      %665 = vbcast.lane.b32.xlu0 %v663, 256
      %v666 = vpop.permute.xlu0 %665
      %v667 = vsub.f32 %v666, %v663
      %v668 = vmul.f32 %v651, %v651
      %v669 = vmul.f32 %v659, %v659
      %v670 = vadd.f32 %v668, %v669
      %v671 = vmul.f32 %v667, %v667
      %v672 = vadd.f32 %v670, %v671
      %v673 = vadd.f32 %v672, 1e-08
      %v674 = vrsqrt.pop %v673
      %v675 = vmul.f32 %v673, %v674
      %vm676 = vcmp.eq.f32.partialorder %v673, inf
      %v677 = vsel %vm676, %v673, %v675
      %vm678 = vcmp.eq.f32.partialorder %v673, 0.0
      %v679 = vand.u32 %v673, 2147483648
      %v680 = vsel %vm678, %v679, %v677
      %v681 = vadd.f32 %v680, 1.0
      %v682 = vrcp.pop %v681
      %v683 = vmul.f32 %v651, %v682
      %v684 = vmul.f32 %v659, %v682
      %v685 = vmul.f32 %v667, %v682
      %v686 = vld [vmem:[%s2] sm:$0xff]
      %v687 = vld [vmem:[%s2 + $0x8] sm:$0xff]
      %v688 = vld [vmem:[%s2 + $0x10] sm:$0xff]
      %v689 = vld [vmem:[%s2 + $0x18] sm:$0xff]
      %v690 = vld [vmem:[%s2 + $0x20] sm:$0xff]
      %v691 = vld [vmem:[%s2 + $0x28] sm:$0xff]
      %v692 = vld [vmem:[%s2 + $0x30] sm:$0xff]
      %v693 = vld [vmem:[%s2 + $0x38] sm:$0xff]
      %v694 = vld [vmem:[%s2 + $0x40] sm:$0xff]
      %v695 = vld [vmem:[%s2 + $0x48] sm:$0xff]
      %v696 = vld [vmem:[%s2 + $0x50] sm:$0xff]
      %v697 = vld [vmem:[%s2 + $0x58] sm:$0xff]
      %v698 = vld [vmem:[%s2 + $0x60] sm:$0xff]
      %v699 = vld [vmem:[%s2 + $0x68] sm:$0xff]
      %v700 = vld [vmem:[%s2 + $0x70] sm:$0xff]
      %v701 = vld [vmem:[%s2 + $0x78] sm:$0xff]
      %v702 = vld [vmem:[%s2 + $0x80] sm:$0xff]
      %v703 = vld [vmem:[%s2 + $0x88] sm:$0xff]
      %v704 = vld [vmem:[%s2 + $0x90] sm:$0xff]
      %v705 = vld [vmem:[%s2 + $0x98] sm:$0xff]
      %v706 = vld [vmem:[%s2 + $0xa0] sm:$0xff]
      %v707 = vld [vmem:[%s2 + $0xa8] sm:$0xff]
      %v708 = vld [vmem:[%s2 + $0xb0] sm:$0xff]
      %v709 = vld [vmem:[%s2 + $0xb8] sm:$0xff]
      %v710 = vld [vmem:[%s2 + $0xc0] sm:$0xff]
      %v711 = vld [vmem:[%s2 + $0xc8] sm:$0xff]
      %v712 = vld [vmem:[%s2 + $0xd0] sm:$0xff]
      %v713 = vld [vmem:[%s2 + $0xd8] sm:$0xff]
      %v714 = vld [vmem:[%s2 + $0xe0] sm:$0xff]
      %v715 = vld [vmem:[%s2 + $0xe8] sm:$0xff]
      %v716 = vld [vmem:[%s2 + $0xf0] sm:$0xff]
      %v717 = vld [vmem:[%s2 + $0xf8] sm:$0xff]
      %718 = vmatprep.subr.mxu0 %v687
      %719 = vmatpush1.msra.mxu0 %v686
      %720 = vmatprep.subr.mxu0 %v689
      %721 = vmatpush1.msra.mxu0 %v688
      %722 = vmatprep.subr.mxu0 %v691
      %723 = vmatpush1.msra.mxu0 %v690
      %724 = vmatprep.subr.mxu0 %v693
      %725 = vmatpush1.msra.mxu0 %v692
      %726 = vmatprep.subr.mxu0 %v695
      %727 = vmatpush1.msra.mxu0 %v694
      %728 = vmatprep.subr.mxu0 %v697
      %729 = vmatpush1.msra.mxu0 %v696
      %730 = vmatprep.subr.mxu0 %v699
      %731 = vmatpush1.msra.mxu0 %v698
      %732 = vmatprep.subr.mxu0 %v701
      %733 = vmatpush1.msra.mxu0 %v700
      %734 = vmatprep.subr.mxu0 %v703
      %735 = vmatpush1.msra.mxu0 %v702
      %736 = vmatprep.subr.mxu0 %v705
      %737 = vmatpush1.msra.mxu0 %v704
      %738 = vmatprep.subr.mxu0 %v707
      %739 = vmatpush1.msra.mxu0 %v706
      %740 = vmatprep.subr.mxu0 %v709
      %741 = vmatpush1.msra.mxu0 %v708
      %742 = vmatprep.subr.mxu0 %v711
      %743 = vmatpush1.msra.mxu0 %v710
      %744 = vmatprep.subr.mxu0 %v713
      %745 = vmatpush1.msra.mxu0 %v712
      %746 = vmatprep.subr.mxu0 %v715
      %747 = vmatpush1.msra.mxu0 %v714
      %748 = vmatprep.subr.mxu0 %v717
      %749 = vmatpush1.msra.mxu0 %v716
      %750 = vmatprep.subr.mxu0 0.0
      %751 = vmatpush1.msra.mxu0 0.0
      %752 = vmatprep.subr.mxu0 0.0
      %753 = vmatpush1.msra.mxu0 0.0
      %754 = vmatprep.subr.mxu0 0.0
      %755 = vmatpush1.msra.mxu0 0.0
      %756 = vmatprep.subr.mxu0 0.0
      %757 = vmatpush1.msra.mxu0 0.0
      %758 = vmatprep.subr.mxu0 0.0
      %759 = vmatpush1.msra.mxu0 0.0
      %760 = vmatprep.subr.mxu0 0.0
      %761 = vmatpush1.msra.mxu0 0.0
      %762 = vmatprep.subr.mxu0 0.0
      %763 = vmatpush1.msra.mxu0 0.0
      %764 = vmatprep.subr.mxu0 0.0
      %765 = vmatpush1.msra.mxu0 0.0
      %766 = vmatprep.subr.mxu0 0.0
      %767 = vmatpush1.msra.mxu0 0.0
      %768 = vmatprep.subr.mxu0 0.0
      %769 = vmatpush1.msra.mxu0 0.0
      %770 = vmatprep.subr.mxu0 0.0
      %771 = vmatpush1.msra.mxu0 0.0
      %772 = vmatprep.subr.mxu0 0.0
      %773 = vmatpush1.msra.mxu0 0.0
      %774 = vmatprep.subr.mxu0 0.0
      %775 = vmatpush1.msra.mxu0 0.0
      %776 = vmatprep.subr.mxu0 0.0
      %777 = vmatpush1.msra.mxu0 0.0
      %778 = vmatprep.subr.mxu0 0.0
      %779 = vmatpush1.msra.mxu0 0.0
      %780 = vmatprep.subr.mxu0 0.0
      %781 = vmatpush1.msra.mxu0 0.0
      %782 = vmatprep.mubr.f32.mxu0 0.0
      %783 = vmatmul.mubr.f32.gmra.mrb[0].mxu0 %v642
      %v784 = vpop.f32.mrb[0].mxu0
      %v785 = vadd.f32 0.0, %v784
      %v786 = vpop.f32.mrb[0].mxu0
      %v787 = vadd.f32 0.0, %v786
      %788 = vdwg.mxu0
      %v790 = vcombine.high %v785, %v785
      %v792 = vunpack.c.l.s4 1966171168
      %v793 = vunpack.c.0.s8 %v792
      %v794 = vlaneseq
      %v795 = vshrl.u32 %v794, 7
      %v796 = vsub.s32 %v793, %v795
      %v797 = vrot.slane %v785, %v796
      %v799 = vunpack.c.l.s4 1966171168
      %v800 = vunpack.c.0.s8 %v799
      %v801 = vlaneseq
      %v802 = vshrl.u32 %v801, 7
      %v803 = vsub.s32 %v800, %v802
      %v804 = vrot.slane %v790, %v803
      %v805 = vcombine.high %v797, %v797
      %v806 = vcombine.high %v804, %v804
      %v808 = vunpack.c.l.s4 1966171168
      %v809 = vunpack.c.0.s8 %v808
      %v810 = vlaneseq
      %v811 = vshrl.u32 %v810, 7
      %v812 = vsub.s32 %v809, %v811
      %v813 = vrot.slane %v797, %v812
      %v815 = vunpack.c.l.s4 1966171168
      %v816 = vunpack.c.0.s8 %v815
      %v817 = vlaneseq
      %v818 = vshrl.u32 %v817, 7
      %v819 = vsub.s32 %v816, %v818
      %v820 = vrot.slane %v804, %v819
      %v822 = vunpack.c.l.s4 1966171168
      %v823 = vunpack.c.0.s8 %v822
      %v824 = vlaneseq
      %v825 = vshrl.u32 %v824, 7
      %v826 = vsub.s32 %v823, %v825
      %v827 = vrot.slane %v805, %v826
      %v829 = vunpack.c.l.s4 1966171168
      %v830 = vunpack.c.0.s8 %v829
      %v831 = vlaneseq
      %v832 = vshrl.u32 %v831, 7
      %v833 = vsub.s32 %v830, %v832
      %v834 = vrot.slane %v806, %v833
      %v835 = vcombine.high %v813, %v813
      %v836 = vcombine.high %v820, %v820
      %v837 = vcombine.high %v827, %v827
      %v838 = vcombine.high %v834, %v834
      %v839 = vld [vmem:[%s3] sm:$0x1]
      %v840 = vld [vmem:[%s4] sm:$0x1]
      %v841 = vld [vmem:[%s5] sm:$0x1]
      %v842 = vlaneseq
      %v843 = vshrl.u32 %v842, 7
      %v844 = vsub.s32 0, %v843
      %v845 = vrot.slane %v813, %v844
      %v846 = vlaneseq
      %v847 = vshrl.u32 %v846, 7
      %v848 = vsub.s32 0, %v847
      %v849 = vrot.slane %v827, %v848
      %v850 = vlaneseq
      %v851 = vshrl.u32 %v850, 7
      %v852 = vsub.s32 0, %v851
      %v853 = vrot.slane %v835, %v852
      %v854 = vlaneseq
      %v855 = vshrl.u32 %v854, 7
      %v856 = vsub.s32 0, %v855
      %v857 = vrot.slane %v837, %v856
      %v858 = vlaneseq
      %v859 = vshrl.u32 %v858, 7
      %v860 = vsub.s32 0, %v859
      %v861 = vrot.slane %v820, %v860
      %v862 = vlaneseq
      %v863 = vshrl.u32 %v862, 7
      %v864 = vsub.s32 0, %v863
      %v865 = vrot.slane %v834, %v864
      %v866 = vlaneseq
      %v867 = vshrl.u32 %v866, 7
      %v868 = vsub.s32 0, %v867
      %v869 = vrot.slane %v836, %v868
      %v870 = vlaneseq
      %v871 = vshrl.u32 %v870, 7
      %v872 = vsub.s32 0, %v871
      %v873 = vrot.slane %v838, %v872
      %v882 = vadd.f32 %v845, %v787
      %v883 = vadd.f32 %v849, %v787
      %v884 = vadd.f32 %v853, %v787
      %v885 = vadd.f32 %v857, %v787
      %v886 = vadd.f32 %v861, %v787
      %v887 = vadd.f32 %v865, %v787
      %v888 = vadd.f32 %v869, %v787
      %v889 = vadd.f32 %v873, %v787
      %v890 = vlaneseq
      %v891 = vshrl.u32 %v890, 7
      %v892 = vsub.s32 0, %v891
      %v893 = vrot.slane %v672, %v892
      %895 = vbcast.lane.b32.xlu0 %v893, 256
      %v896 = vpop.permute.xlu0 %895
      %v897 = vlaneseq
      %v898 = vshrl.u32 %v897, 7
      %v899 = vsub.s32 1, %v898
      %v900 = vrot.slane %v672, %v899
      %902 = vbcast.lane.b32.xlu0 %v900, 256
      %v903 = vpop.permute.xlu0 %902
      %v904 = vlaneseq
      %v905 = vshrl.u32 %v904, 7
      %v906 = vsub.s32 2, %v905
      %v907 = vrot.slane %v672, %v906
      %909 = vbcast.lane.b32.xlu0 %v907, 256
      %v910 = vpop.permute.xlu0 %909
      %v911 = vlaneseq
      %v912 = vshrl.u32 %v911, 7
      %v913 = vsub.s32 3, %v912
      %v914 = vrot.slane %v672, %v913
      %916 = vbcast.lane.b32.xlu0 %v914, 256
      %v917 = vpop.permute.xlu0 %916
      %v918 = vlaneseq
      %v919 = vshrl.u32 %v918, 7
      %v920 = vsub.s32 4, %v919
      %v921 = vrot.slane %v672, %v920
      %923 = vbcast.lane.b32.xlu0 %v921, 256
      %v924 = vpop.permute.xlu0 %923
      %v925 = vlaneseq
      %v926 = vshrl.u32 %v925, 7
      %v927 = vsub.s32 5, %v926
      %v928 = vrot.slane %v672, %v927
      %930 = vbcast.lane.b32.xlu0 %v928, 256
      %v931 = vpop.permute.xlu0 %930
      %v932 = vlaneseq
      %v933 = vshrl.u32 %v932, 7
      %v934 = vsub.s32 6, %v933
      %v935 = vrot.slane %v672, %v934
      %937 = vbcast.lane.b32.xlu0 %v935, 256
      %v938 = vpop.permute.xlu0 %937
      %v939 = vlaneseq
      %v940 = vshrl.u32 %v939, 7
      %v941 = vsub.s32 7, %v940
      %v942 = vrot.slane %v672, %v941
      %944 = vbcast.lane.b32.xlu0 %v942, 256
      %v945 = vpop.permute.xlu0 %944
      %v947 = vlaneseq
      %v948 = vshrl.u32 %v947, 7
      %v949 = vsub.s32 0, %v948
      %v950 = vrot.slane %v839, %v949
      %v952 = vmul.f32 %v896, %v950
      %v953 = vmul.f32 %v903, %v950
      %v954 = vmul.f32 %v910, %v950
      %v955 = vmul.f32 %v917, %v950
      %v956 = vmul.f32 %v924, %v950
      %v957 = vmul.f32 %v931, %v950
      %v958 = vmul.f32 %v938, %v950
      %v959 = vmul.f32 %v945, %v950
      %v960 = vadd.f32 %v882, %v952
      %v961 = vadd.f32 %v883, %v953
      %v962 = vadd.f32 %v884, %v954
      %v963 = vadd.f32 %v885, %v955
      %v964 = vadd.f32 %v886, %v956
      %v965 = vadd.f32 %v887, %v957
      %v966 = vadd.f32 %v888, %v958
      %v967 = vadd.f32 %v889, %v959
      %v969 = vlaneseq
      %v970 = vshrl.u32 %v969, 7
      %v971 = vsub.s32 0, %v970
      %v972 = vrot.slane %v840, %v971
      %v974 = vmul.f32 %v896, %v972
      %v975 = vmul.f32 %v903, %v972
      %v976 = vmul.f32 %v910, %v972
      %v977 = vmul.f32 %v917, %v972
      %v978 = vmul.f32 %v924, %v972
      %v979 = vmul.f32 %v931, %v972
      %v980 = vmul.f32 %v938, %v972
      %v981 = vmul.f32 %v945, %v972
      %v982 = vadd.f32 %v960, %v974
      %v983 = vadd.f32 %v961, %v975
      %v984 = vadd.f32 %v962, %v976
      %v985 = vadd.f32 %v963, %v977
      %v986 = vadd.f32 %v964, %v978
      %v987 = vadd.f32 %v965, %v979
      %v988 = vadd.f32 %v966, %v980
      %v989 = vadd.f32 %v967, %v981
      %v991 = vlaneseq
      %v992 = vshrl.u32 %v991, 7
      %v993 = vsub.s32 0, %v992
      %v994 = vrot.slane %v841, %v993
      %v996 = vadd.f32 %v982, %v994
      %v997 = vadd.f32 %v983, %v994
      %v998 = vadd.f32 %v984, %v994
      %v999 = vadd.f32 %v985, %v994
      %v1000 = vadd.f32 %v986, %v994
      %v1001 = vadd.f32 %v987, %v994
      %v1002 = vadd.f32 %v988, %v994
      %v1003 = vadd.f32 %v989, %v994
      %v1004 = vxor.u32 %v996, 2147483648
      %v1005 = vxor.u32 %v997, 2147483648
      %v1006 = vxor.u32 %v998, 2147483648
      %v1007 = vxor.u32 %v999, 2147483648
      %v1008 = vxor.u32 %v1000, 2147483648
      %v1009 = vxor.u32 %v1001, 2147483648
      %v1010 = vxor.u32 %v1002, 2147483648
      %v1011 = vxor.u32 %v1003, 2147483648
      %v1012 = vmul.f32 %v1004, 1.442695
      %v1013 = vpow.pop %v1012
      %v1014 = vmul.f32 %v1005, 1.442695
      %v1015 = vpow.pop %v1014
      %v1016 = vmul.f32 %v1006, 1.442695
      %v1017 = vpow.pop %v1016
      %v1018 = vmul.f32 %v1007, 1.442695
      %v1019 = vpow.pop %v1018
      %v1020 = vmul.f32 %v1008, 1.442695
      %v1021 = vpow.pop %v1020
      %v1022 = vmul.f32 %v1009, 1.442695
      %v1023 = vpow.pop %v1022
      %v1024 = vmul.f32 %v1010, 1.442695
      %v1025 = vpow.pop %v1024
      %v1026 = vmul.f32 %v1011, 1.442695
      %v1027 = vpow.pop %v1026
      %v1028 = vadd.f32 %v1013, 1.0
      %v1029 = vadd.f32 %v1015, 1.0
      %v1030 = vadd.f32 %v1017, 1.0
      %v1031 = vadd.f32 %v1019, 1.0
      %v1032 = vadd.f32 %v1021, 1.0
      %v1033 = vadd.f32 %v1023, 1.0
      %v1034 = vadd.f32 %v1025, 1.0
      %v1035 = vadd.f32 %v1027, 1.0
      %v1036 = vrcp.pop %v1028
      %v1037 = vmul.f32 1.0, %v1036
      %v1038 = vrcp.pop %v1029
      %v1039 = vmul.f32 1.0, %v1038
      %v1040 = vrcp.pop %v1030
      %v1041 = vmul.f32 1.0, %v1040
      %v1042 = vrcp.pop %v1031
      %v1043 = vmul.f32 1.0, %v1042
      %v1044 = vrcp.pop %v1032
      %v1045 = vmul.f32 1.0, %v1044
      %v1046 = vrcp.pop %v1033
      %v1047 = vmul.f32 1.0, %v1046
      %v1048 = vrcp.pop %v1034
      %v1049 = vmul.f32 1.0, %v1048
      %v1050 = vrcp.pop %v1035
      %v1051 = vmul.f32 1.0, %v1050
      %v1052 = vmul.f32 %v996, %v1037
      %v1053 = vmul.f32 %v997, %v1039
      %v1054 = vmul.f32 %v998, %v1041
      %v1055 = vmul.f32 %v999, %v1043
      %v1056 = vmul.f32 %v1000, %v1045
      %v1057 = vmul.f32 %v1001, %v1047
      %v1058 = vmul.f32 %v1002, %v1049
      %v1059 = vmul.f32 %v1003, %v1051
      %v1060 = vld [vmem:[%s6] sm:$0xff]
      %v1061 = vld [vmem:[%s6 + $0x8] sm:$0xff]
      %v1062 = vld [vmem:[%s6 + $0x10] sm:$0xff]
      %v1063 = vld [vmem:[%s6 + $0x18] sm:$0xff]
      %v1064 = vld [vmem:[%s6 + $0x20] sm:$0xff]
      %v1065 = vld [vmem:[%s6 + $0x28] sm:$0xff]
      %v1066 = vld [vmem:[%s6 + $0x30] sm:$0xff]
      %v1067 = vld [vmem:[%s6 + $0x38] sm:$0xff]
      %v1068 = vld [vmem:[%s6 + $0x40] sm:$0xff]
      %v1069 = vld [vmem:[%s6 + $0x48] sm:$0xff]
      %v1070 = vld [vmem:[%s6 + $0x50] sm:$0xff]
      %v1071 = vld [vmem:[%s6 + $0x58] sm:$0xff]
      %v1072 = vld [vmem:[%s6 + $0x60] sm:$0xff]
      %v1073 = vld [vmem:[%s6 + $0x68] sm:$0xff]
      %v1074 = vld [vmem:[%s6 + $0x70] sm:$0xff]
      %v1075 = vld [vmem:[%s6 + $0x78] sm:$0xff]
      %v1076 = vld [vmem:[%s7] sm:$0x1]
      %v1078 = vlaneseq
      %v1079 = vshrl.u32 %v1078, 7
      %v1080 = vsub.s32 0, %v1079
      %v1081 = vrot.slane %v1076, %v1080
      %1083 = vmatprep.subr.mxu0 0.0
      %1084 = vmatpush1.msra.mxu0 %v1060
      %1085 = vmatprep.subr.mxu0 0.0
      %1086 = vmatpush1.msra.mxu0 %v1061
      %1087 = vmatprep.subr.mxu0 0.0
      %1088 = vmatpush1.msra.mxu0 %v1062
      %1089 = vmatprep.subr.mxu0 0.0
      %1090 = vmatpush1.msra.mxu0 %v1063
      %1091 = vmatprep.subr.mxu0 0.0
      %1092 = vmatpush1.msra.mxu0 %v1064
      %1093 = vmatprep.subr.mxu0 0.0
      %1094 = vmatpush1.msra.mxu0 %v1065
      %1095 = vmatprep.subr.mxu0 0.0
      %1096 = vmatpush1.msra.mxu0 %v1066
      %1097 = vmatprep.subr.mxu0 0.0
      %1098 = vmatpush1.msra.mxu0 %v1067
      %1099 = vmatprep.subr.mxu0 0.0
      %1100 = vmatpush1.msra.mxu0 %v1068
      %1101 = vmatprep.subr.mxu0 0.0
      %1102 = vmatpush1.msra.mxu0 %v1069
      %1103 = vmatprep.subr.mxu0 0.0
      %1104 = vmatpush1.msra.mxu0 %v1070
      %1105 = vmatprep.subr.mxu0 0.0
      %1106 = vmatpush1.msra.mxu0 %v1071
      %1107 = vmatprep.subr.mxu0 0.0
      %1108 = vmatpush1.msra.mxu0 %v1072
      %1109 = vmatprep.subr.mxu0 0.0
      %1110 = vmatpush1.msra.mxu0 %v1073
      %1111 = vmatprep.subr.mxu0 0.0
      %1112 = vmatpush1.msra.mxu0 %v1074
      %1113 = vmatprep.subr.mxu0 0.0
      %1114 = vmatpush1.msra.mxu0 %v1075
      %1115 = vmatprep.subr.mxu0 0.0
      %1116 = vmatpush1.msra.mxu0 0.0
      %1117 = vmatprep.subr.mxu0 0.0
      %1118 = vmatpush1.msra.mxu0 0.0
      %1119 = vmatprep.subr.mxu0 0.0
      %1120 = vmatpush1.msra.mxu0 0.0
      %1121 = vmatprep.subr.mxu0 0.0
      %1122 = vmatpush1.msra.mxu0 0.0
      %1123 = vmatprep.subr.mxu0 0.0
      %1124 = vmatpush1.msra.mxu0 0.0
      %1125 = vmatprep.subr.mxu0 0.0
      %1126 = vmatpush1.msra.mxu0 0.0
      %1127 = vmatprep.subr.mxu0 0.0
      %1128 = vmatpush1.msra.mxu0 0.0
      %1129 = vmatprep.subr.mxu0 0.0
      %1130 = vmatpush1.msra.mxu0 0.0
      %1131 = vmatprep.subr.mxu0 0.0
      %1132 = vmatpush1.msra.mxu0 0.0
      %1133 = vmatprep.subr.mxu0 0.0
      %1134 = vmatpush1.msra.mxu0 0.0
      %1135 = vmatprep.subr.mxu0 0.0
      %1136 = vmatpush1.msra.mxu0 0.0
      %1137 = vmatprep.subr.mxu0 0.0
      %1138 = vmatpush1.msra.mxu0 0.0
      %1139 = vmatprep.subr.mxu0 0.0
      %1140 = vmatpush1.msra.mxu0 0.0
      %1141 = vmatprep.subr.mxu0 0.0
      %1142 = vmatpush1.msra.mxu0 0.0
      %1143 = vmatprep.subr.mxu0 0.0
      %1144 = vmatpush1.msra.mxu0 0.0
      %1145 = vmatprep.subr.mxu0 0.0
      %1146 = vmatpush1.msra.mxu0 0.0
      %1147 = vmatprep.mubr.f32.mxu0 0.0
      %1148 = vmatmul.mubr.f32.gmra.mrb[0].mxu0 %v1052
      %v1149 = vpop.f32.mrb[0].mxu0
      %v1150 = vadd.f32 %v1081, %v1149
      %v1151 = vpop.f32.mrb[0].mxu0
      %1152 = vmatprep.mubr.f32.mxu0 0.0
      %1153 = vmatmul.mubr.f32.gmra.mrb[0].mxu0 %v1053
      %v1154 = vpop.f32.mrb[0].mxu0
      %v1155 = vadd.f32 %v1081, %v1154
      %v1156 = vpop.f32.mrb[0].mxu0
      %1157 = vmatprep.mubr.f32.mxu0 0.0
      %1158 = vmatmul.mubr.f32.gmra.mrb[0].mxu0 %v1054
      %v1159 = vpop.f32.mrb[0].mxu0
      %v1160 = vadd.f32 %v1081, %v1159
      %v1161 = vpop.f32.mrb[0].mxu0
      %1162 = vmatprep.mubr.f32.mxu0 0.0
      %1163 = vmatmul.mubr.f32.gmra.mrb[0].mxu0 %v1055
      %v1164 = vpop.f32.mrb[0].mxu0
      %v1165 = vadd.f32 %v1081, %v1164
      %v1166 = vpop.f32.mrb[0].mxu0
      %1167 = vmatprep.mubr.f32.mxu0 0.0
      %1168 = vmatmul.mubr.f32.gmra.mrb[0].mxu0 %v1056
      %v1169 = vpop.f32.mrb[0].mxu0
      %v1170 = vadd.f32 %v1081, %v1169
      %v1171 = vpop.f32.mrb[0].mxu0
      %1172 = vmatprep.mubr.f32.mxu0 0.0
      %1173 = vmatmul.mubr.f32.gmra.mrb[0].mxu0 %v1057
      %v1174 = vpop.f32.mrb[0].mxu0
      %v1175 = vadd.f32 %v1081, %v1174
      %v1176 = vpop.f32.mrb[0].mxu0
      %1177 = vmatprep.mubr.f32.mxu0 0.0
      %1178 = vmatmul.mubr.f32.gmra.mrb[0].mxu0 %v1058
      %v1179 = vpop.f32.mrb[0].mxu0
      %v1180 = vadd.f32 %v1081, %v1179
      %v1181 = vpop.f32.mrb[0].mxu0
      %1182 = vmatprep.mubr.f32.mxu0 0.0
      %1183 = vmatmul.mubr.f32.gmra.mrb[0].mxu0 %v1059
      %v1184 = vpop.f32.mrb[0].mxu0
      %v1185 = vadd.f32 %v1081, %v1184
      %v1186 = vpop.f32.mrb[0].mxu0
      %1187 = vdwg.mxu0
      %v1188 = vxor.u32 %v1150, 2147483648
      %v1189 = vxor.u32 %v1155, 2147483648
      %v1190 = vxor.u32 %v1160, 2147483648
      %v1191 = vxor.u32 %v1165, 2147483648
      %v1192 = vxor.u32 %v1170, 2147483648
      %v1193 = vxor.u32 %v1175, 2147483648
      %v1194 = vxor.u32 %v1180, 2147483648
      %v1195 = vxor.u32 %v1185, 2147483648
      %v1196 = vmul.f32 %v1188, 1.442695
      %v1197 = vpow.pop %v1196
      %v1198 = vmul.f32 %v1189, 1.442695
      %v1199 = vpow.pop %v1198
      %v1200 = vmul.f32 %v1190, 1.442695
      %v1201 = vpow.pop %v1200
      %v1202 = vmul.f32 %v1191, 1.442695
      %v1203 = vpow.pop %v1202
      %v1204 = vmul.f32 %v1192, 1.442695
      %v1205 = vpow.pop %v1204
      %v1206 = vmul.f32 %v1193, 1.442695
      %v1207 = vpow.pop %v1206
      %v1208 = vmul.f32 %v1194, 1.442695
      %v1209 = vpow.pop %v1208
      %v1210 = vmul.f32 %v1195, 1.442695
      %v1211 = vpow.pop %v1210
      %v1212 = vadd.f32 %v1197, 1.0
      %v1213 = vadd.f32 %v1199, 1.0
      %v1214 = vadd.f32 %v1201, 1.0
      %v1215 = vadd.f32 %v1203, 1.0
      %v1216 = vadd.f32 %v1205, 1.0
      %v1217 = vadd.f32 %v1207, 1.0
      %v1218 = vadd.f32 %v1209, 1.0
      %v1219 = vadd.f32 %v1211, 1.0
      %v1220 = vrcp.pop %v1212
      %v1221 = vmul.f32 1.0, %v1220
      %v1222 = vrcp.pop %v1213
      %v1223 = vmul.f32 1.0, %v1222
      %v1224 = vrcp.pop %v1214
      %v1225 = vmul.f32 1.0, %v1224
      %v1226 = vrcp.pop %v1215
      %v1227 = vmul.f32 1.0, %v1226
      %v1228 = vrcp.pop %v1216
      %v1229 = vmul.f32 1.0, %v1228
      %v1230 = vrcp.pop %v1217
      %v1231 = vmul.f32 1.0, %v1230
      %v1232 = vrcp.pop %v1218
      %v1233 = vmul.f32 1.0, %v1232
      %v1234 = vrcp.pop %v1219
      %v1235 = vmul.f32 1.0, %v1234
      %v1236 = vmul.f32 %v1150, %v1221
      %v1237 = vmul.f32 %v1155, %v1223
      %v1238 = vmul.f32 %v1160, %v1225
      %v1239 = vmul.f32 %v1165, %v1227
      %v1240 = vmul.f32 %v1170, %v1229
      %v1241 = vmul.f32 %v1175, %v1231
      %v1242 = vmul.f32 %v1180, %v1233
      %v1243 = vmul.f32 %v1185, %v1235
      %v1244 = vrot.slane %v1236, 4
      %v1245 = vadd.f32 %v1236, %v1244
      %v1246 = vrot.slane %v1245, 2
      %v1247 = vadd.f32 %v1245, %v1246
      %v1248 = vrot.slane %v1247, 1
      %v1249 = vadd.f32 %v1247, %v1248
      %v1250 = vrot.slane %v1237, 4
      %v1251 = vadd.f32 %v1237, %v1250
      %v1252 = vrot.slane %v1251, 2
      %v1253 = vadd.f32 %v1251, %v1252
      %v1254 = vrot.slane %v1253, 1
      %v1255 = vadd.f32 %v1253, %v1254
      %v1256 = vrot.slane %v1238, 4
      %v1257 = vadd.f32 %v1238, %v1256
      %v1258 = vrot.slane %v1257, 2
      %v1259 = vadd.f32 %v1257, %v1258
      %v1260 = vrot.slane %v1259, 1
      %v1261 = vadd.f32 %v1259, %v1260
      %v1262 = vrot.slane %v1239, 4
      %v1263 = vadd.f32 %v1239, %v1262
      %v1264 = vrot.slane %v1263, 2
      %v1265 = vadd.f32 %v1263, %v1264
      %v1266 = vrot.slane %v1265, 1
      %v1267 = vadd.f32 %v1265, %v1266
      %v1268 = vrot.slane %v1240, 4
      %v1269 = vadd.f32 %v1240, %v1268
      %v1270 = vrot.slane %v1269, 2
      %v1271 = vadd.f32 %v1269, %v1270
      %v1272 = vrot.slane %v1271, 1
      %v1273 = vadd.f32 %v1271, %v1272
      %v1274 = vrot.slane %v1241, 4
      %v1275 = vadd.f32 %v1241, %v1274
      %v1276 = vrot.slane %v1275, 2
      %v1277 = vadd.f32 %v1275, %v1276
      %v1278 = vrot.slane %v1277, 1
      %v1279 = vadd.f32 %v1277, %v1278
      %v1280 = vrot.slane %v1242, 4
      %v1281 = vadd.f32 %v1242, %v1280
      %v1282 = vrot.slane %v1281, 2
      %v1283 = vadd.f32 %v1281, %v1282
      %v1284 = vrot.slane %v1283, 1
      %v1285 = vadd.f32 %v1283, %v1284
      %v1286 = vrot.slane %v1243, 4
      %v1287 = vadd.f32 %v1243, %v1286
      %v1288 = vrot.slane %v1287, 2
      %v1289 = vadd.f32 %v1287, %v1288
      %v1290 = vrot.slane %v1289, 1
      %v1291 = vadd.f32 %v1289, %v1290
      %v1292 = vadd.f32 %v1249, 0.0
      %v1293 = vadd.f32 %v1255, 0.0
      %v1294 = vadd.f32 %v1261, 0.0
      %v1295 = vadd.f32 %v1267, 0.0
      %v1296 = vadd.f32 %v1273, 0.0
      %v1297 = vadd.f32 %v1279, 0.0
      %v1298 = vadd.f32 %v1285, 0.0
      %v1299 = vadd.f32 %v1291, 0.0
      %v1300 = vmul.f32 %v1292, 0.01
      %v1301 = vmul.f32 %v1293, 0.01
      %v1302 = vmul.f32 %v1294, 0.01
      %v1303 = vmul.f32 %v1295, 0.01
      %v1304 = vmul.f32 %v1296, 0.01
      %v1305 = vmul.f32 %v1297, 0.01
      %v1306 = vmul.f32 %v1298, 0.01
      %v1307 = vmul.f32 %v1299, 0.01
      %v1308 = vld [vmem:[%s8] sm:$0xff]
      %v1309 = vld [vmem:[%s8 + $0x8] sm:$0xff]
      %v1310 = vld [vmem:[%s8 + $0x10] sm:$0xff]
      %v1311 = vld [vmem:[%s8 + $0x18] sm:$0xff]
      %v1312 = vld [vmem:[%s8 + $0x20] sm:$0xff]
      %v1313 = vld [vmem:[%s8 + $0x28] sm:$0xff]
      %v1314 = vld [vmem:[%s8 + $0x30] sm:$0xff]
      %v1315 = vld [vmem:[%s8 + $0x38] sm:$0xff]
      %v1316 = vld [vmem:[%s8 + $0x40] sm:$0xff]
      %v1317 = vld [vmem:[%s8 + $0x48] sm:$0xff]
      %v1318 = vld [vmem:[%s8 + $0x50] sm:$0xff]
      %v1319 = vld [vmem:[%s8 + $0x58] sm:$0xff]
      %v1320 = vld [vmem:[%s8 + $0x60] sm:$0xff]
      %v1321 = vld [vmem:[%s8 + $0x68] sm:$0xff]
      %v1322 = vld [vmem:[%s8 + $0x70] sm:$0xff]
      %v1323 = vld [vmem:[%s8 + $0x78] sm:$0xff]
      %v1324 = vld [vmem:[%s9] sm:$0xff]
      %v1325 = vld [vmem:[%s9 + $0x8] sm:$0xff]
      %v1326 = vld [vmem:[%s9 + $0x10] sm:$0xff]
      %v1327 = vld [vmem:[%s9 + $0x18] sm:$0xff]
      %v1328 = vld [vmem:[%s9 + $0x20] sm:$0xff]
      %v1329 = vld [vmem:[%s9 + $0x28] sm:$0xff]
      %v1330 = vld [vmem:[%s9 + $0x30] sm:$0xff]
      %v1331 = vld [vmem:[%s9 + $0x38] sm:$0xff]
      %v1332 = vld [vmem:[%s9 + $0x40] sm:$0xff]
      %v1333 = vld [vmem:[%s9 + $0x48] sm:$0xff]
      %v1334 = vld [vmem:[%s9 + $0x50] sm:$0xff]
      %v1335 = vld [vmem:[%s9 + $0x58] sm:$0xff]
      %v1336 = vld [vmem:[%s9 + $0x60] sm:$0xff]
      %v1337 = vld [vmem:[%s9 + $0x68] sm:$0xff]
      %v1338 = vld [vmem:[%s9 + $0x70] sm:$0xff]
      %v1339 = vld [vmem:[%s9 + $0x78] sm:$0xff]
      %vm1348 = vcmask 1041409
      %v1349 = vsel %vm1348, %v1301, %v1300
      %vm1350 = vcmask 1042434
      %v1351 = vsel %vm1350, %v1302, %v1349
      %vm1352 = vcmask 1043459
      %v1353 = vsel %vm1352, %v1303, %v1351
      %vm1354 = vcmask 1044484
      %v1355 = vsel %vm1354, %v1304, %v1353
      %vm1356 = vcmask 1045509
      %v1357 = vsel %vm1356, %v1305, %v1355
      %vm1358 = vcmask 1046534
      %v1359 = vsel %vm1358, %v1306, %v1357
      %vm1360 = vcmask 1047559
      %v1361 = vsel %vm1360, %v1307, %v1359
      %1363 = vmatprep.subr.mxu0 0.0
      %1364 = vmatpush1.msra.mxu0 %v1324
      %1365 = vmatprep.subr.mxu0 0.0
      %1366 = vmatpush1.msra.mxu0 %v1325
      %1367 = vmatprep.subr.mxu0 0.0
      %1368 = vmatpush1.msra.mxu0 %v1326
      %1369 = vmatprep.subr.mxu0 0.0
      %1370 = vmatpush1.msra.mxu0 %v1327
      %1371 = vmatprep.subr.mxu0 0.0
      %1372 = vmatpush1.msra.mxu0 %v1328
      %1373 = vmatprep.subr.mxu0 0.0
      %1374 = vmatpush1.msra.mxu0 %v1329
      %1375 = vmatprep.subr.mxu0 0.0
      %1376 = vmatpush1.msra.mxu0 %v1330
      %1377 = vmatprep.subr.mxu0 0.0
      %1378 = vmatpush1.msra.mxu0 %v1331
      %1379 = vmatprep.subr.mxu0 0.0
      %1380 = vmatpush1.msra.mxu0 %v1332
      %1381 = vmatprep.subr.mxu0 0.0
      %1382 = vmatpush1.msra.mxu0 %v1333
      %1383 = vmatprep.subr.mxu0 0.0
      %1384 = vmatpush1.msra.mxu0 %v1334
      %1385 = vmatprep.subr.mxu0 0.0
      %1386 = vmatpush1.msra.mxu0 %v1335
      %1387 = vmatprep.subr.mxu0 0.0
      %1388 = vmatpush1.msra.mxu0 %v1336
      %1389 = vmatprep.subr.mxu0 0.0
      %1390 = vmatpush1.msra.mxu0 %v1337
      %1391 = vmatprep.subr.mxu0 0.0
      %1392 = vmatpush1.msra.mxu0 %v1338
      %1393 = vmatprep.subr.mxu0 0.0
      %1394 = vmatpush1.msra.mxu0 %v1339
      %1395 = vmatprep.subr.mxu0 0.0
      %1396 = vmatpush1.msra.mxu0 0.0
      %1397 = vmatprep.subr.mxu0 0.0
      %1398 = vmatpush1.msra.mxu0 0.0
      %1399 = vmatprep.subr.mxu0 0.0
      %1400 = vmatpush1.msra.mxu0 0.0
      %1401 = vmatprep.subr.mxu0 0.0
      %1402 = vmatpush1.msra.mxu0 0.0
      %1403 = vmatprep.subr.mxu0 0.0
      %1404 = vmatpush1.msra.mxu0 0.0
      %1405 = vmatprep.subr.mxu0 0.0
      %1406 = vmatpush1.msra.mxu0 0.0
      %1407 = vmatprep.subr.mxu0 0.0
      %1408 = vmatpush1.msra.mxu0 0.0
      %1409 = vmatprep.subr.mxu0 0.0
      %1410 = vmatpush1.msra.mxu0 0.0
      %1411 = vmatprep.subr.mxu0 0.0
      %1412 = vmatpush1.msra.mxu0 0.0
      %1413 = vmatprep.subr.mxu0 0.0
      %1414 = vmatpush1.msra.mxu0 0.0
      %1415 = vmatprep.subr.mxu0 0.0
      %1416 = vmatpush1.msra.mxu0 0.0
      %1417 = vmatprep.subr.mxu0 0.0
      %1418 = vmatpush1.msra.mxu0 0.0
      %1419 = vmatprep.subr.mxu0 0.0
      %1420 = vmatpush1.msra.mxu0 0.0
      %1421 = vmatprep.subr.mxu0 0.0
      %1422 = vmatpush1.msra.mxu0 0.0
      %1423 = vmatprep.subr.mxu0 0.0
      %1424 = vmatpush1.msra.mxu0 0.0
      %1425 = vmatprep.subr.mxu0 0.0
      %1426 = vmatpush1.msra.mxu0 0.0
      %1427 = vmatprep.mubr.f32.mxu0 0.0
      %1428 = vmatmul.mubr.f32.gmra.mrb[0].mxu0 %v1361
      %v1429 = vpop.f32.mrb[0].mxu0
      %v1430 = vadd.f32 0.0, %v1429
      %v1431 = vpop.f32.mrb[0].mxu0
      %1432 = vdwg.mxu0
      %1433 = vmatprep.subr.mxu0 0.0
      %1434 = vmatpush1.msra.mxu0 %v1308
      %1435 = vmatprep.subr.mxu0 0.0
      %1436 = vmatpush1.msra.mxu0 %v1309
      %1437 = vmatprep.subr.mxu0 0.0
      %1438 = vmatpush1.msra.mxu0 %v1310
      %1439 = vmatprep.subr.mxu0 0.0
      %1440 = vmatpush1.msra.mxu0 %v1311
      %1441 = vmatprep.subr.mxu0 0.0
      %1442 = vmatpush1.msra.mxu0 %v1312
      %1443 = vmatprep.subr.mxu0 0.0
      %1444 = vmatpush1.msra.mxu0 %v1313
      %1445 = vmatprep.subr.mxu0 0.0
      %1446 = vmatpush1.msra.mxu0 %v1314
      %1447 = vmatprep.subr.mxu0 0.0
      %1448 = vmatpush1.msra.mxu0 %v1315
      %1449 = vmatprep.subr.mxu0 0.0
      %1450 = vmatpush1.msra.mxu0 %v1316
      %1451 = vmatprep.subr.mxu0 0.0
      %1452 = vmatpush1.msra.mxu0 %v1317
      %1453 = vmatprep.subr.mxu0 0.0
      %1454 = vmatpush1.msra.mxu0 %v1318
      %1455 = vmatprep.subr.mxu0 0.0
      %1456 = vmatpush1.msra.mxu0 %v1319
      %1457 = vmatprep.subr.mxu0 0.0
      %1458 = vmatpush1.msra.mxu0 %v1320
      %1459 = vmatprep.subr.mxu0 0.0
      %1460 = vmatpush1.msra.mxu0 %v1321
      %1461 = vmatprep.subr.mxu0 0.0
      %1462 = vmatpush1.msra.mxu0 %v1322
      %1463 = vmatprep.subr.mxu0 0.0
      %1464 = vmatpush1.msra.mxu0 %v1323
      %1465 = vmatprep.subr.mxu0 0.0
      %1466 = vmatpush1.msra.mxu0 0.0
      %1467 = vmatprep.subr.mxu0 0.0
      %1468 = vmatpush1.msra.mxu0 0.0
      %1469 = vmatprep.subr.mxu0 0.0
      %1470 = vmatpush1.msra.mxu0 0.0
      %1471 = vmatprep.subr.mxu0 0.0
      %1472 = vmatpush1.msra.mxu0 0.0
      %1473 = vmatprep.subr.mxu0 0.0
      %1474 = vmatpush1.msra.mxu0 0.0
      %1475 = vmatprep.subr.mxu0 0.0
      %1476 = vmatpush1.msra.mxu0 0.0
      %1477 = vmatprep.subr.mxu0 0.0
      %1478 = vmatpush1.msra.mxu0 0.0
      %1479 = vmatprep.subr.mxu0 0.0
      %1480 = vmatpush1.msra.mxu0 0.0
      %1481 = vmatprep.subr.mxu0 0.0
      %1482 = vmatpush1.msra.mxu0 0.0
      %1483 = vmatprep.subr.mxu0 0.0
      %1484 = vmatpush1.msra.mxu0 0.0
      %1485 = vmatprep.subr.mxu0 0.0
      %1486 = vmatpush1.msra.mxu0 0.0
      %1487 = vmatprep.subr.mxu0 0.0
      %1488 = vmatpush1.msra.mxu0 0.0
      %1489 = vmatprep.subr.mxu0 0.0
      %1490 = vmatpush1.msra.mxu0 0.0
      %1491 = vmatprep.subr.mxu0 0.0
      %1492 = vmatpush1.msra.mxu0 0.0
      %1493 = vmatprep.subr.mxu0 0.0
      %1494 = vmatpush1.msra.mxu0 0.0
      %1495 = vmatprep.subr.mxu0 0.0
      %1496 = vmatpush1.msra.mxu0 0.0
      %1497 = vmatprep.mubr.f32.mxu0 0.0
      %1498 = vmatmul.mubr.f32.gmra.mrb[0].mxu0 %v642
      %v1499 = vpop.f32.mrb[0].mxu0
      %v1500 = vadd.f32 %v1430, %v1499
      %v1501 = vpop.f32.mrb[0].mxu0
      %1502 = vdwg.mxu0
      %v1503 = vld [vmem:[%s10] sm:$0x1]
      %v1505 = vlaneseq
      %v1506 = vshrl.u32 %v1505, 7
      %v1507 = vsub.s32 0, %v1506
      %v1508 = vrot.slane %v1503, %v1507
      %v1510 = vadd.f32 %v1500, %v1508
      %v1511 = vxor.u32 %v1510, 2147483648
      %v1512 = vmul.f32 %v1511, 1.442695
      %v1513 = vpow.pop %v1512
      %v1514 = vadd.f32 %v1513, 1.0
      %v1515 = vrcp.pop %v1514
      %v1516 = vmul.f32 1.0, %v1515
      %v1517 = vmul.f32 %v1510, %v1516
      %v1518 = vld [vmem:[%s11] sm:$0xff]
      %v1519 = vld [vmem:[%s11 + $0x8] sm:$0xff]
      %v1520 = vld [vmem:[%s11 + $0x10] sm:$0xff]
      %v1521 = vld [vmem:[%s11 + $0x18] sm:$0xff]
      %v1522 = vld [vmem:[%s11 + $0x20] sm:$0xff]
      %v1523 = vld [vmem:[%s11 + $0x28] sm:$0xff]
      %v1524 = vld [vmem:[%s11 + $0x30] sm:$0xff]
      %v1525 = vld [vmem:[%s11 + $0x38] sm:$0xff]
      %v1526 = vld [vmem:[%s11 + $0x40] sm:$0xff]
      %v1527 = vld [vmem:[%s11 + $0x48] sm:$0xff]
      %v1528 = vld [vmem:[%s11 + $0x50] sm:$0xff]
      %v1529 = vld [vmem:[%s11 + $0x58] sm:$0xff]
      %v1530 = vld [vmem:[%s11 + $0x60] sm:$0xff]
      %v1531 = vld [vmem:[%s11 + $0x68] sm:$0xff]
      %v1532 = vld [vmem:[%s11 + $0x70] sm:$0xff]
      %v1533 = vld [vmem:[%s11 + $0x78] sm:$0xff]
      %v1534 = vld [vmem:[%s12] sm:$0x1]
      %v1536 = vlaneseq
      %v1537 = vshrl.u32 %v1536, 7
      %v1538 = vsub.s32 0, %v1537
      %v1539 = vrot.slane %v1534, %v1538
      %1541 = vmatprep.subr.mxu0 0.0
      %1542 = vmatpush1.msra.mxu0 %v1518
      %1543 = vmatprep.subr.mxu0 0.0
      %1544 = vmatpush1.msra.mxu0 %v1519
      %1545 = vmatprep.subr.mxu0 0.0
      %1546 = vmatpush1.msra.mxu0 %v1520
      %1547 = vmatprep.subr.mxu0 0.0
      %1548 = vmatpush1.msra.mxu0 %v1521
      %1549 = vmatprep.subr.mxu0 0.0
      %1550 = vmatpush1.msra.mxu0 %v1522
      %1551 = vmatprep.subr.mxu0 0.0
      %1552 = vmatpush1.msra.mxu0 %v1523
      %1553 = vmatprep.subr.mxu0 0.0
      %1554 = vmatpush1.msra.mxu0 %v1524
      %1555 = vmatprep.subr.mxu0 0.0
      %1556 = vmatpush1.msra.mxu0 %v1525
      %1557 = vmatprep.subr.mxu0 0.0
      %1558 = vmatpush1.msra.mxu0 %v1526
      %1559 = vmatprep.subr.mxu0 0.0
      %1560 = vmatpush1.msra.mxu0 %v1527
      %1561 = vmatprep.subr.mxu0 0.0
      %1562 = vmatpush1.msra.mxu0 %v1528
      %1563 = vmatprep.subr.mxu0 0.0
      %1564 = vmatpush1.msra.mxu0 %v1529
      %1565 = vmatprep.subr.mxu0 0.0
      %1566 = vmatpush1.msra.mxu0 %v1530
      %1567 = vmatprep.subr.mxu0 0.0
      %1568 = vmatpush1.msra.mxu0 %v1531
      %1569 = vmatprep.subr.mxu0 0.0
      %1570 = vmatpush1.msra.mxu0 %v1532
      %1571 = vmatprep.subr.mxu0 0.0
      %1572 = vmatpush1.msra.mxu0 %v1533
      %1573 = vmatprep.subr.mxu0 0.0
      %1574 = vmatpush1.msra.mxu0 0.0
      %1575 = vmatprep.subr.mxu0 0.0
      %1576 = vmatpush1.msra.mxu0 0.0
      %1577 = vmatprep.subr.mxu0 0.0
      %1578 = vmatpush1.msra.mxu0 0.0
      %1579 = vmatprep.subr.mxu0 0.0
      %1580 = vmatpush1.msra.mxu0 0.0
      %1581 = vmatprep.subr.mxu0 0.0
      %1582 = vmatpush1.msra.mxu0 0.0
      %1583 = vmatprep.subr.mxu0 0.0
      %1584 = vmatpush1.msra.mxu0 0.0
      %1585 = vmatprep.subr.mxu0 0.0
      %1586 = vmatpush1.msra.mxu0 0.0
      %1587 = vmatprep.subr.mxu0 0.0
      %1588 = vmatpush1.msra.mxu0 0.0
      %1589 = vmatprep.subr.mxu0 0.0
      %1590 = vmatpush1.msra.mxu0 0.0
      %1591 = vmatprep.subr.mxu0 0.0
      %1592 = vmatpush1.msra.mxu0 0.0
      %1593 = vmatprep.subr.mxu0 0.0
      %1594 = vmatpush1.msra.mxu0 0.0
      %1595 = vmatprep.subr.mxu0 0.0
      %1596 = vmatpush1.msra.mxu0 0.0
      %1597 = vmatprep.subr.mxu0 0.0
      %1598 = vmatpush1.msra.mxu0 0.0
      %1599 = vmatprep.subr.mxu0 0.0
      %1600 = vmatpush1.msra.mxu0 0.0
      %1601 = vmatprep.subr.mxu0 0.0
      %1602 = vmatpush1.msra.mxu0 0.0
      %1603 = vmatprep.subr.mxu0 0.0
      %1604 = vmatpush1.msra.mxu0 0.0
      %1605 = vmatprep.mubr.f32.mxu0 0.0
      %1606 = vmatmul.mubr.f32.gmra.mrb[0].mxu0 %v1517
      %v1607 = vpop.f32.mrb[0].mxu0
      %v1608 = vadd.f32 %v1539, %v1607
      %v1609 = vpop.f32.mrb[0].mxu0
      %1610 = vdwg.mxu0
      %v1611 = vadd.f32 %v642, %v1608
      %s1612 = scalar_lea.vmem %s2, 256
      %v1613 = vld [vmem:[%s1612] sm:$0xff]
      %v1614 = vld [vmem:[%s1612 + $0x8] sm:$0xff]
      %v1615 = vld [vmem:[%s1612 + $0x10] sm:$0xff]
      %v1616 = vld [vmem:[%s1612 + $0x18] sm:$0xff]
      %v1617 = vld [vmem:[%s1612 + $0x20] sm:$0xff]
      %v1618 = vld [vmem:[%s1612 + $0x28] sm:$0xff]
      %v1619 = vld [vmem:[%s1612 + $0x30] sm:$0xff]
      %v1620 = vld [vmem:[%s1612 + $0x38] sm:$0xff]
      %v1621 = vld [vmem:[%s1612 + $0x40] sm:$0xff]
      %v1622 = vld [vmem:[%s1612 + $0x48] sm:$0xff]
      %v1623 = vld [vmem:[%s1612 + $0x50] sm:$0xff]
      %v1624 = vld [vmem:[%s1612 + $0x58] sm:$0xff]
      %v1625 = vld [vmem:[%s1612 + $0x60] sm:$0xff]
      %v1626 = vld [vmem:[%s1612 + $0x68] sm:$0xff]
      %v1627 = vld [vmem:[%s1612 + $0x70] sm:$0xff]
      %v1628 = vld [vmem:[%s1612 + $0x78] sm:$0xff]
      %v1629 = vld [vmem:[%s1612 + $0x80] sm:$0xff]
      %v1630 = vld [vmem:[%s1612 + $0x88] sm:$0xff]
      %v1631 = vld [vmem:[%s1612 + $0x90] sm:$0xff]
      %v1632 = vld [vmem:[%s1612 + $0x98] sm:$0xff]
      %v1633 = vld [vmem:[%s1612 + $0xa0] sm:$0xff]
      %v1634 = vld [vmem:[%s1612 + $0xa8] sm:$0xff]
      %v1635 = vld [vmem:[%s1612 + $0xb0] sm:$0xff]
      %v1636 = vld [vmem:[%s1612 + $0xb8] sm:$0xff]
      %v1637 = vld [vmem:[%s1612 + $0xc0] sm:$0xff]
      %v1638 = vld [vmem:[%s1612 + $0xc8] sm:$0xff]
      %v1639 = vld [vmem:[%s1612 + $0xd0] sm:$0xff]
      %v1640 = vld [vmem:[%s1612 + $0xd8] sm:$0xff]
      %v1641 = vld [vmem:[%s1612 + $0xe0] sm:$0xff]
      %v1642 = vld [vmem:[%s1612 + $0xe8] sm:$0xff]
      %v1643 = vld [vmem:[%s1612 + $0xf0] sm:$0xff]
      %v1644 = vld [vmem:[%s1612 + $0xf8] sm:$0xff]
      %1645 = vmatprep.subr.mxu0 %v1614
      %1646 = vmatpush1.msra.mxu0 %v1613
      %1647 = vmatprep.subr.mxu0 %v1616
      %1648 = vmatpush1.msra.mxu0 %v1615
      %1649 = vmatprep.subr.mxu0 %v1618
      %1650 = vmatpush1.msra.mxu0 %v1617
      %1651 = vmatprep.subr.mxu0 %v1620
      %1652 = vmatpush1.msra.mxu0 %v1619
      %1653 = vmatprep.subr.mxu0 %v1622
      %1654 = vmatpush1.msra.mxu0 %v1621
      %1655 = vmatprep.subr.mxu0 %v1624
      %1656 = vmatpush1.msra.mxu0 %v1623
      %1657 = vmatprep.subr.mxu0 %v1626
      %1658 = vmatpush1.msra.mxu0 %v1625
      %1659 = vmatprep.subr.mxu0 %v1628
      %1660 = vmatpush1.msra.mxu0 %v1627
      %1661 = vmatprep.subr.mxu0 %v1630
      %1662 = vmatpush1.msra.mxu0 %v1629
      %1663 = vmatprep.subr.mxu0 %v1632
      %1664 = vmatpush1.msra.mxu0 %v1631
      %1665 = vmatprep.subr.mxu0 %v1634
      %1666 = vmatpush1.msra.mxu0 %v1633
      %1667 = vmatprep.subr.mxu0 %v1636
      %1668 = vmatpush1.msra.mxu0 %v1635
      %1669 = vmatprep.subr.mxu0 %v1638
      %1670 = vmatpush1.msra.mxu0 %v1637
      %1671 = vmatprep.subr.mxu0 %v1640
      %1672 = vmatpush1.msra.mxu0 %v1639
      %1673 = vmatprep.subr.mxu0 %v1642
      %1674 = vmatpush1.msra.mxu0 %v1641
      %1675 = vmatprep.subr.mxu0 %v1644
      %1676 = vmatpush1.msra.mxu0 %v1643
      %1677 = vmatprep.subr.mxu0 0.0
      %1678 = vmatpush1.msra.mxu0 0.0
      %1679 = vmatprep.subr.mxu0 0.0
      %1680 = vmatpush1.msra.mxu0 0.0
      %1681 = vmatprep.subr.mxu0 0.0
      %1682 = vmatpush1.msra.mxu0 0.0
      %1683 = vmatprep.subr.mxu0 0.0
      %1684 = vmatpush1.msra.mxu0 0.0
      %1685 = vmatprep.subr.mxu0 0.0
      %1686 = vmatpush1.msra.mxu0 0.0
      %1687 = vmatprep.subr.mxu0 0.0
      %1688 = vmatpush1.msra.mxu0 0.0
      %1689 = vmatprep.subr.mxu0 0.0
      %1690 = vmatpush1.msra.mxu0 0.0
      %1691 = vmatprep.subr.mxu0 0.0
      %1692 = vmatpush1.msra.mxu0 0.0
      %1693 = vmatprep.subr.mxu0 0.0
      %1694 = vmatpush1.msra.mxu0 0.0
      %1695 = vmatprep.subr.mxu0 0.0
      %1696 = vmatpush1.msra.mxu0 0.0
      %1697 = vmatprep.subr.mxu0 0.0
      %1698 = vmatpush1.msra.mxu0 0.0
      %1699 = vmatprep.subr.mxu0 0.0
      %1700 = vmatpush1.msra.mxu0 0.0
      %1701 = vmatprep.subr.mxu0 0.0
      %1702 = vmatpush1.msra.mxu0 0.0
      %1703 = vmatprep.subr.mxu0 0.0
      %1704 = vmatpush1.msra.mxu0 0.0
      %1705 = vmatprep.subr.mxu0 0.0
      %1706 = vmatpush1.msra.mxu0 0.0
      %1707 = vmatprep.subr.mxu0 0.0
      %1708 = vmatpush1.msra.mxu0 0.0
      %1709 = vmatprep.mubr.f32.mxu0 0.0
      %1710 = vmatmul.mubr.f32.gmra.mrb[0].mxu0 %v1611
      %v1711 = vpop.f32.mrb[0].mxu0
      %v1712 = vadd.f32 0.0, %v1711
      %v1713 = vpop.f32.mrb[0].mxu0
      %v1714 = vadd.f32 0.0, %v1713
      %1715 = vdwg.mxu0
      %v1717 = vcombine.high %v1712, %v1712
      %v1719 = vunpack.c.l.s4 1966171168
      %v1720 = vunpack.c.0.s8 %v1719
      %v1721 = vlaneseq
      %v1722 = vshrl.u32 %v1721, 7
      %v1723 = vsub.s32 %v1720, %v1722
      %v1724 = vrot.slane %v1712, %v1723
      %v1726 = vunpack.c.l.s4 1966171168
      %v1727 = vunpack.c.0.s8 %v1726
      %v1728 = vlaneseq
      %v1729 = vshrl.u32 %v1728, 7
      %v1730 = vsub.s32 %v1727, %v1729
      %v1731 = vrot.slane %v1717, %v1730
      %v1732 = vcombine.high %v1724, %v1724
      %v1733 = vcombine.high %v1731, %v1731
      %v1735 = vunpack.c.l.s4 1966171168
      %v1736 = vunpack.c.0.s8 %v1735
      %v1737 = vlaneseq
      %v1738 = vshrl.u32 %v1737, 7
      %v1739 = vsub.s32 %v1736, %v1738
      %v1740 = vrot.slane %v1724, %v1739
      %v1742 = vunpack.c.l.s4 1966171168
      %v1743 = vunpack.c.0.s8 %v1742
      %v1744 = vlaneseq
      %v1745 = vshrl.u32 %v1744, 7
      %v1746 = vsub.s32 %v1743, %v1745
      %v1747 = vrot.slane %v1731, %v1746
      %v1749 = vunpack.c.l.s4 1966171168
      %v1750 = vunpack.c.0.s8 %v1749
      %v1751 = vlaneseq
      %v1752 = vshrl.u32 %v1751, 7
      %v1753 = vsub.s32 %v1750, %v1752
      %v1754 = vrot.slane %v1732, %v1753
      %v1756 = vunpack.c.l.s4 1966171168
      %v1757 = vunpack.c.0.s8 %v1756
      %v1758 = vlaneseq
      %v1759 = vshrl.u32 %v1758, 7
      %v1760 = vsub.s32 %v1757, %v1759
      %v1761 = vrot.slane %v1733, %v1760
      %v1762 = vcombine.high %v1740, %v1740
      %v1763 = vcombine.high %v1747, %v1747
      %v1764 = vcombine.high %v1754, %v1754
      %v1765 = vcombine.high %v1761, %v1761
      %s1766 = scalar_lea.vmem %s3, 1
      %v1767 = vld [vmem:[%s1766] sm:$0x1]
      %s1768 = scalar_lea.vmem %s4, 1
      %v1769 = vld [vmem:[%s1768] sm:$0x1]
      %s1770 = scalar_lea.vmem %s5, 1
      %v1771 = vld [vmem:[%s1770] sm:$0x1]
      %v1772 = vlaneseq
      %v1773 = vshrl.u32 %v1772, 7
      %v1774 = vsub.s32 0, %v1773
      %v1775 = vrot.slane %v1740, %v1774
      %v1776 = vlaneseq
      %v1777 = vshrl.u32 %v1776, 7
      %v1778 = vsub.s32 0, %v1777
      %v1779 = vrot.slane %v1754, %v1778
      %v1780 = vlaneseq
      %v1781 = vshrl.u32 %v1780, 7
      %v1782 = vsub.s32 0, %v1781
      %v1783 = vrot.slane %v1762, %v1782
      %v1784 = vlaneseq
      %v1785 = vshrl.u32 %v1784, 7
      %v1786 = vsub.s32 0, %v1785
      %v1787 = vrot.slane %v1764, %v1786
      %v1788 = vlaneseq
      %v1789 = vshrl.u32 %v1788, 7
      %v1790 = vsub.s32 0, %v1789
      %v1791 = vrot.slane %v1747, %v1790
      %v1792 = vlaneseq
      %v1793 = vshrl.u32 %v1792, 7
      %v1794 = vsub.s32 0, %v1793
      %v1795 = vrot.slane %v1761, %v1794
      %v1796 = vlaneseq
      %v1797 = vshrl.u32 %v1796, 7
      %v1798 = vsub.s32 0, %v1797
      %v1799 = vrot.slane %v1763, %v1798
      %v1800 = vlaneseq
      %v1801 = vshrl.u32 %v1800, 7
      %v1802 = vsub.s32 0, %v1801
      %v1803 = vrot.slane %v1765, %v1802
      %v1812 = vadd.f32 %v1775, %v1714
      %v1813 = vadd.f32 %v1779, %v1714
      %v1814 = vadd.f32 %v1783, %v1714
      %v1815 = vadd.f32 %v1787, %v1714
      %v1816 = vadd.f32 %v1791, %v1714
      %v1817 = vadd.f32 %v1795, %v1714
      %v1818 = vadd.f32 %v1799, %v1714
      %v1819 = vadd.f32 %v1803, %v1714
      %v1821 = vlaneseq
      %v1822 = vshrl.u32 %v1821, 7
      %v1823 = vsub.s32 0, %v1822
      %v1824 = vrot.slane %v1767, %v1823
      %v1826 = vmul.f32 %v896, %v1824
      %v1827 = vmul.f32 %v903, %v1824
      %v1828 = vmul.f32 %v910, %v1824
      %v1829 = vmul.f32 %v917, %v1824
      %v1830 = vmul.f32 %v924, %v1824
      %v1831 = vmul.f32 %v931, %v1824
      %v1832 = vmul.f32 %v938, %v1824
      %v1833 = vmul.f32 %v945, %v1824
      %v1834 = vadd.f32 %v1812, %v1826
      %v1835 = vadd.f32 %v1813, %v1827
      %v1836 = vadd.f32 %v1814, %v1828
      %v1837 = vadd.f32 %v1815, %v1829
      %v1838 = vadd.f32 %v1816, %v1830
      %v1839 = vadd.f32 %v1817, %v1831
      %v1840 = vadd.f32 %v1818, %v1832
      %v1841 = vadd.f32 %v1819, %v1833
      %v1843 = vlaneseq
      %v1844 = vshrl.u32 %v1843, 7
      %v1845 = vsub.s32 0, %v1844
      %v1846 = vrot.slane %v1769, %v1845
      %v1848 = vmul.f32 %v896, %v1846
      %v1849 = vmul.f32 %v903, %v1846
      %v1850 = vmul.f32 %v910, %v1846
      %v1851 = vmul.f32 %v917, %v1846
      %v1852 = vmul.f32 %v924, %v1846
      %v1853 = vmul.f32 %v931, %v1846
      %v1854 = vmul.f32 %v938, %v1846
      %v1855 = vmul.f32 %v945, %v1846
      %v1856 = vadd.f32 %v1834, %v1848
      %v1857 = vadd.f32 %v1835, %v1849
      %v1858 = vadd.f32 %v1836, %v1850
      %v1859 = vadd.f32 %v1837, %v1851
      %v1860 = vadd.f32 %v1838, %v1852
      %v1861 = vadd.f32 %v1839, %v1853
      %v1862 = vadd.f32 %v1840, %v1854
      %v1863 = vadd.f32 %v1841, %v1855
      %v1865 = vlaneseq
      %v1866 = vshrl.u32 %v1865, 7
      %v1867 = vsub.s32 0, %v1866
      %v1868 = vrot.slane %v1771, %v1867
      %v1870 = vadd.f32 %v1856, %v1868
      %v1871 = vadd.f32 %v1857, %v1868
      %v1872 = vadd.f32 %v1858, %v1868
      %v1873 = vadd.f32 %v1859, %v1868
      %v1874 = vadd.f32 %v1860, %v1868
      %v1875 = vadd.f32 %v1861, %v1868
      %v1876 = vadd.f32 %v1862, %v1868
      %v1877 = vadd.f32 %v1863, %v1868
      %v1878 = vxor.u32 %v1870, 2147483648
      %v1879 = vxor.u32 %v1871, 2147483648
      %v1880 = vxor.u32 %v1872, 2147483648
      %v1881 = vxor.u32 %v1873, 2147483648
      %v1882 = vxor.u32 %v1874, 2147483648
      %v1883 = vxor.u32 %v1875, 2147483648
      %v1884 = vxor.u32 %v1876, 2147483648
      %v1885 = vxor.u32 %v1877, 2147483648
      %v1886 = vmul.f32 %v1878, 1.442695
      %v1887 = vpow.pop %v1886
      %v1888 = vmul.f32 %v1879, 1.442695
      %v1889 = vpow.pop %v1888
      %v1890 = vmul.f32 %v1880, 1.442695
      %v1891 = vpow.pop %v1890
      %v1892 = vmul.f32 %v1881, 1.442695
      %v1893 = vpow.pop %v1892
      %v1894 = vmul.f32 %v1882, 1.442695
      %v1895 = vpow.pop %v1894
      %v1896 = vmul.f32 %v1883, 1.442695
      %v1897 = vpow.pop %v1896
      %v1898 = vmul.f32 %v1884, 1.442695
      %v1899 = vpow.pop %v1898
      %v1900 = vmul.f32 %v1885, 1.442695
      %v1901 = vpow.pop %v1900
      %v1902 = vadd.f32 %v1887, 1.0
      %v1903 = vadd.f32 %v1889, 1.0
      %v1904 = vadd.f32 %v1891, 1.0
      %v1905 = vadd.f32 %v1893, 1.0
      %v1906 = vadd.f32 %v1895, 1.0
      %v1907 = vadd.f32 %v1897, 1.0
      %v1908 = vadd.f32 %v1899, 1.0
      %v1909 = vadd.f32 %v1901, 1.0
      %v1910 = vrcp.pop %v1902
      %v1911 = vmul.f32 1.0, %v1910
      %v1912 = vrcp.pop %v1903
      %v1913 = vmul.f32 1.0, %v1912
      %v1914 = vrcp.pop %v1904
      %v1915 = vmul.f32 1.0, %v1914
      %v1916 = vrcp.pop %v1905
      %v1917 = vmul.f32 1.0, %v1916
      %v1918 = vrcp.pop %v1906
      %v1919 = vmul.f32 1.0, %v1918
      %v1920 = vrcp.pop %v1907
      %v1921 = vmul.f32 1.0, %v1920
      %v1922 = vrcp.pop %v1908
      %v1923 = vmul.f32 1.0, %v1922
      %v1924 = vrcp.pop %v1909
      %v1925 = vmul.f32 1.0, %v1924
      %v1926 = vmul.f32 %v1870, %v1911
      %v1927 = vmul.f32 %v1871, %v1913
      %v1928 = vmul.f32 %v1872, %v1915
      %v1929 = vmul.f32 %v1873, %v1917
      %v1930 = vmul.f32 %v1874, %v1919
      %v1931 = vmul.f32 %v1875, %v1921
      %v1932 = vmul.f32 %v1876, %v1923
      %v1933 = vmul.f32 %v1877, %v1925
      %s1934 = scalar_lea.vmem %s6, 128
      %v1935 = vld [vmem:[%s1934] sm:$0xff]
      %v1936 = vld [vmem:[%s1934 + $0x8] sm:$0xff]
      %v1937 = vld [vmem:[%s1934 + $0x10] sm:$0xff]
      %v1938 = vld [vmem:[%s1934 + $0x18] sm:$0xff]
      %v1939 = vld [vmem:[%s1934 + $0x20] sm:$0xff]
      %v1940 = vld [vmem:[%s1934 + $0x28] sm:$0xff]
      %v1941 = vld [vmem:[%s1934 + $0x30] sm:$0xff]
      %v1942 = vld [vmem:[%s1934 + $0x38] sm:$0xff]
      %v1943 = vld [vmem:[%s1934 + $0x40] sm:$0xff]
      %v1944 = vld [vmem:[%s1934 + $0x48] sm:$0xff]
      %v1945 = vld [vmem:[%s1934 + $0x50] sm:$0xff]
      %v1946 = vld [vmem:[%s1934 + $0x58] sm:$0xff]
      %v1947 = vld [vmem:[%s1934 + $0x60] sm:$0xff]
      %v1948 = vld [vmem:[%s1934 + $0x68] sm:$0xff]
      %v1949 = vld [vmem:[%s1934 + $0x70] sm:$0xff]
      %v1950 = vld [vmem:[%s1934 + $0x78] sm:$0xff]
      %s1951 = scalar_lea.vmem %s7, 1
      %v1952 = vld [vmem:[%s1951] sm:$0x1]
      %v1954 = vlaneseq
      %v1955 = vshrl.u32 %v1954, 7
      %v1956 = vsub.s32 0, %v1955
      %v1957 = vrot.slane %v1952, %v1956
      %1959 = vmatprep.subr.mxu0 0.0
      %1960 = vmatpush1.msra.mxu0 %v1935
      %1961 = vmatprep.subr.mxu0 0.0
      %1962 = vmatpush1.msra.mxu0 %v1936
      %1963 = vmatprep.subr.mxu0 0.0
      %1964 = vmatpush1.msra.mxu0 %v1937
      %1965 = vmatprep.subr.mxu0 0.0
      %1966 = vmatpush1.msra.mxu0 %v1938
      %1967 = vmatprep.subr.mxu0 0.0
      %1968 = vmatpush1.msra.mxu0 %v1939
      %1969 = vmatprep.subr.mxu0 0.0
      %1970 = vmatpush1.msra.mxu0 %v1940
      %1971 = vmatprep.subr.mxu0 0.0
      %1972 = vmatpush1.msra.mxu0 %v1941
      %1973 = vmatprep.subr.mxu0 0.0
      %1974 = vmatpush1.msra.mxu0 %v1942
      %1975 = vmatprep.subr.mxu0 0.0
      %1976 = vmatpush1.msra.mxu0 %v1943
      %1977 = vmatprep.subr.mxu0 0.0
      %1978 = vmatpush1.msra.mxu0 %v1944
      %1979 = vmatprep.subr.mxu0 0.0
      %1980 = vmatpush1.msra.mxu0 %v1945
      %1981 = vmatprep.subr.mxu0 0.0
      %1982 = vmatpush1.msra.mxu0 %v1946
      %1983 = vmatprep.subr.mxu0 0.0
      %1984 = vmatpush1.msra.mxu0 %v1947
      %1985 = vmatprep.subr.mxu0 0.0
      %1986 = vmatpush1.msra.mxu0 %v1948
      %1987 = vmatprep.subr.mxu0 0.0
      %1988 = vmatpush1.msra.mxu0 %v1949
      %1989 = vmatprep.subr.mxu0 0.0
      %1990 = vmatpush1.msra.mxu0 %v1950
      %1991 = vmatprep.subr.mxu0 0.0
      %1992 = vmatpush1.msra.mxu0 0.0
      %1993 = vmatprep.subr.mxu0 0.0
      %1994 = vmatpush1.msra.mxu0 0.0
      %1995 = vmatprep.subr.mxu0 0.0
      %1996 = vmatpush1.msra.mxu0 0.0
      %1997 = vmatprep.subr.mxu0 0.0
      %1998 = vmatpush1.msra.mxu0 0.0
      %1999 = vmatprep.subr.mxu0 0.0
      %2000 = vmatpush1.msra.mxu0 0.0
      %2001 = vmatprep.subr.mxu0 0.0
      %2002 = vmatpush1.msra.mxu0 0.0
      %2003 = vmatprep.subr.mxu0 0.0
      %2004 = vmatpush1.msra.mxu0 0.0
      %2005 = vmatprep.subr.mxu0 0.0
      %2006 = vmatpush1.msra.mxu0 0.0
      %2007 = vmatprep.subr.mxu0 0.0
      %2008 = vmatpush1.msra.mxu0 0.0
      %2009 = vmatprep.subr.mxu0 0.0
      %2010 = vmatpush1.msra.mxu0 0.0
      %2011 = vmatprep.subr.mxu0 0.0
      %2012 = vmatpush1.msra.mxu0 0.0
      %2013 = vmatprep.subr.mxu0 0.0
      %2014 = vmatpush1.msra.mxu0 0.0
      %2015 = vmatprep.subr.mxu0 0.0
      %2016 = vmatpush1.msra.mxu0 0.0
      %2017 = vmatprep.subr.mxu0 0.0
      %2018 = vmatpush1.msra.mxu0 0.0
      %2019 = vmatprep.subr.mxu0 0.0
      %2020 = vmatpush1.msra.mxu0 0.0
      %2021 = vmatprep.subr.mxu0 0.0
      %2022 = vmatpush1.msra.mxu0 0.0
      %2023 = vmatprep.mubr.f32.mxu0 0.0
      %2024 = vmatmul.mubr.f32.gmra.mrb[0].mxu0 %v1926
      %v2025 = vpop.f32.mrb[0].mxu0
      %v2026 = vadd.f32 %v1957, %v2025
      %v2027 = vpop.f32.mrb[0].mxu0
      %2028 = vmatprep.mubr.f32.mxu0 0.0
      %2029 = vmatmul.mubr.f32.gmra.mrb[0].mxu0 %v1927
      %v2030 = vpop.f32.mrb[0].mxu0
      %v2031 = vadd.f32 %v1957, %v2030
      %v2032 = vpop.f32.mrb[0].mxu0
      %2033 = vmatprep.mubr.f32.mxu0 0.0
      %2034 = vmatmul.mubr.f32.gmra.mrb[0].mxu0 %v1928
      %v2035 = vpop.f32.mrb[0].mxu0
      %v2036 = vadd.f32 %v1957, %v2035
      %v2037 = vpop.f32.mrb[0].mxu0
      %2038 = vmatprep.mubr.f32.mxu0 0.0
      %2039 = vmatmul.mubr.f32.gmra.mrb[0].mxu0 %v1929
      %v2040 = vpop.f32.mrb[0].mxu0
      %v2041 = vadd.f32 %v1957, %v2040
      %v2042 = vpop.f32.mrb[0].mxu0
      %2043 = vmatprep.mubr.f32.mxu0 0.0
      %2044 = vmatmul.mubr.f32.gmra.mrb[0].mxu0 %v1930
      %v2045 = vpop.f32.mrb[0].mxu0
      %v2046 = vadd.f32 %v1957, %v2045
      %v2047 = vpop.f32.mrb[0].mxu0
      %2048 = vmatprep.mubr.f32.mxu0 0.0
      %2049 = vmatmul.mubr.f32.gmra.mrb[0].mxu0 %v1931
      %v2050 = vpop.f32.mrb[0].mxu0
      %v2051 = vadd.f32 %v1957, %v2050
      %v2052 = vpop.f32.mrb[0].mxu0
      %2053 = vmatprep.mubr.f32.mxu0 0.0
      %2054 = vmatmul.mubr.f32.gmra.mrb[0].mxu0 %v1932
      %v2055 = vpop.f32.mrb[0].mxu0
      %v2056 = vadd.f32 %v1957, %v2055
      %v2057 = vpop.f32.mrb[0].mxu0
      %2058 = vmatprep.mubr.f32.mxu0 0.0
      %2059 = vmatmul.mubr.f32.gmra.mrb[0].mxu0 %v1933
      %v2060 = vpop.f32.mrb[0].mxu0
      %v2061 = vadd.f32 %v1957, %v2060
      %v2062 = vpop.f32.mrb[0].mxu0
      %2063 = vdwg.mxu0
      %v2064 = vxor.u32 %v2026, 2147483648
      %v2065 = vxor.u32 %v2031, 2147483648
      %v2066 = vxor.u32 %v2036, 2147483648
      %v2067 = vxor.u32 %v2041, 2147483648
      %v2068 = vxor.u32 %v2046, 2147483648
      %v2069 = vxor.u32 %v2051, 2147483648
      %v2070 = vxor.u32 %v2056, 2147483648
      %v2071 = vxor.u32 %v2061, 2147483648
      %v2072 = vmul.f32 %v2064, 1.442695
      %v2073 = vpow.pop %v2072
      %v2074 = vmul.f32 %v2065, 1.442695
      %v2075 = vpow.pop %v2074
      %v2076 = vmul.f32 %v2066, 1.442695
      %v2077 = vpow.pop %v2076
      %v2078 = vmul.f32 %v2067, 1.442695
      %v2079 = vpow.pop %v2078
      %v2080 = vmul.f32 %v2068, 1.442695
      %v2081 = vpow.pop %v2080
      %v2082 = vmul.f32 %v2069, 1.442695
      %v2083 = vpow.pop %v2082
      %v2084 = vmul.f32 %v2070, 1.442695
      %v2085 = vpow.pop %v2084
      %v2086 = vmul.f32 %v2071, 1.442695
      %v2087 = vpow.pop %v2086
      %v2088 = vadd.f32 %v2073, 1.0
      %v2089 = vadd.f32 %v2075, 1.0
      %v2090 = vadd.f32 %v2077, 1.0
      %v2091 = vadd.f32 %v2079, 1.0
      %v2092 = vadd.f32 %v2081, 1.0
      %v2093 = vadd.f32 %v2083, 1.0
      %v2094 = vadd.f32 %v2085, 1.0
      %v2095 = vadd.f32 %v2087, 1.0
      %v2096 = vrcp.pop %v2088
      %v2097 = vmul.f32 1.0, %v2096
      %v2098 = vrcp.pop %v2089
      %v2099 = vmul.f32 1.0, %v2098
      %v2100 = vrcp.pop %v2090
      %v2101 = vmul.f32 1.0, %v2100
      %v2102 = vrcp.pop %v2091
      %v2103 = vmul.f32 1.0, %v2102
      %v2104 = vrcp.pop %v2092
      %v2105 = vmul.f32 1.0, %v2104
      %v2106 = vrcp.pop %v2093
      %v2107 = vmul.f32 1.0, %v2106
      %v2108 = vrcp.pop %v2094
      %v2109 = vmul.f32 1.0, %v2108
      %v2110 = vrcp.pop %v2095
      %v2111 = vmul.f32 1.0, %v2110
      %v2112 = vmul.f32 %v2026, %v2097
      %v2113 = vmul.f32 %v2031, %v2099
      %v2114 = vmul.f32 %v2036, %v2101
      %v2115 = vmul.f32 %v2041, %v2103
      %v2116 = vmul.f32 %v2046, %v2105
      %v2117 = vmul.f32 %v2051, %v2107
      %v2118 = vmul.f32 %v2056, %v2109
      %v2119 = vmul.f32 %v2061, %v2111
      %v2120 = vrot.slane %v2112, 4
      %v2121 = vadd.f32 %v2112, %v2120
      %v2122 = vrot.slane %v2121, 2
      %v2123 = vadd.f32 %v2121, %v2122
      %v2124 = vrot.slane %v2123, 1
      %v2125 = vadd.f32 %v2123, %v2124
      %v2126 = vrot.slane %v2113, 4
      %v2127 = vadd.f32 %v2113, %v2126
      %v2128 = vrot.slane %v2127, 2
      %v2129 = vadd.f32 %v2127, %v2128
      %v2130 = vrot.slane %v2129, 1
      %v2131 = vadd.f32 %v2129, %v2130
      %v2132 = vrot.slane %v2114, 4
      %v2133 = vadd.f32 %v2114, %v2132
      %v2134 = vrot.slane %v2133, 2
      %v2135 = vadd.f32 %v2133, %v2134
      %v2136 = vrot.slane %v2135, 1
      %v2137 = vadd.f32 %v2135, %v2136
      %v2138 = vrot.slane %v2115, 4
      %v2139 = vadd.f32 %v2115, %v2138
      %v2140 = vrot.slane %v2139, 2
      %v2141 = vadd.f32 %v2139, %v2140
      %v2142 = vrot.slane %v2141, 1
      %v2143 = vadd.f32 %v2141, %v2142
      %v2144 = vrot.slane %v2116, 4
      %v2145 = vadd.f32 %v2116, %v2144
      %v2146 = vrot.slane %v2145, 2
      %v2147 = vadd.f32 %v2145, %v2146
      %v2148 = vrot.slane %v2147, 1
      %v2149 = vadd.f32 %v2147, %v2148
      %v2150 = vrot.slane %v2117, 4
      %v2151 = vadd.f32 %v2117, %v2150
      %v2152 = vrot.slane %v2151, 2
      %v2153 = vadd.f32 %v2151, %v2152
      %v2154 = vrot.slane %v2153, 1
      %v2155 = vadd.f32 %v2153, %v2154
      %v2156 = vrot.slane %v2118, 4
      %v2157 = vadd.f32 %v2118, %v2156
      %v2158 = vrot.slane %v2157, 2
      %v2159 = vadd.f32 %v2157, %v2158
      %v2160 = vrot.slane %v2159, 1
      %v2161 = vadd.f32 %v2159, %v2160
      %v2162 = vrot.slane %v2119, 4
      %v2163 = vadd.f32 %v2119, %v2162
      %v2164 = vrot.slane %v2163, 2
      %v2165 = vadd.f32 %v2163, %v2164
      %v2166 = vrot.slane %v2165, 1
      %v2167 = vadd.f32 %v2165, %v2166
      %v2168 = vadd.f32 %v2125, 0.0
      %v2169 = vadd.f32 %v2131, 0.0
      %v2170 = vadd.f32 %v2137, 0.0
      %v2171 = vadd.f32 %v2143, 0.0
      %v2172 = vadd.f32 %v2149, 0.0
      %v2173 = vadd.f32 %v2155, 0.0
      %v2174 = vadd.f32 %v2161, 0.0
      %v2175 = vadd.f32 %v2167, 0.0
      %v2176 = vmul.f32 %v2168, 0.01
      %v2177 = vmul.f32 %v2169, 0.01
      %v2178 = vmul.f32 %v2170, 0.01
      %v2179 = vmul.f32 %v2171, 0.01
      %v2180 = vmul.f32 %v2172, 0.01
      %v2181 = vmul.f32 %v2173, 0.01
      %v2182 = vmul.f32 %v2174, 0.01
      %v2183 = vmul.f32 %v2175, 0.01
      %s2184 = scalar_lea.vmem %s8, 128
      %v2185 = vld [vmem:[%s2184] sm:$0xff]
      %v2186 = vld [vmem:[%s2184 + $0x8] sm:$0xff]
      %v2187 = vld [vmem:[%s2184 + $0x10] sm:$0xff]
      %v2188 = vld [vmem:[%s2184 + $0x18] sm:$0xff]
      %v2189 = vld [vmem:[%s2184 + $0x20] sm:$0xff]
      %v2190 = vld [vmem:[%s2184 + $0x28] sm:$0xff]
      %v2191 = vld [vmem:[%s2184 + $0x30] sm:$0xff]
      %v2192 = vld [vmem:[%s2184 + $0x38] sm:$0xff]
      %v2193 = vld [vmem:[%s2184 + $0x40] sm:$0xff]
      %v2194 = vld [vmem:[%s2184 + $0x48] sm:$0xff]
      %v2195 = vld [vmem:[%s2184 + $0x50] sm:$0xff]
      %v2196 = vld [vmem:[%s2184 + $0x58] sm:$0xff]
      %v2197 = vld [vmem:[%s2184 + $0x60] sm:$0xff]
      %v2198 = vld [vmem:[%s2184 + $0x68] sm:$0xff]
      %v2199 = vld [vmem:[%s2184 + $0x70] sm:$0xff]
      %v2200 = vld [vmem:[%s2184 + $0x78] sm:$0xff]
      %s2201 = scalar_lea.vmem %s9, 128
      %v2202 = vld [vmem:[%s2201] sm:$0xff]
      %v2203 = vld [vmem:[%s2201 + $0x8] sm:$0xff]
      %v2204 = vld [vmem:[%s2201 + $0x10] sm:$0xff]
      %v2205 = vld [vmem:[%s2201 + $0x18] sm:$0xff]
      %v2206 = vld [vmem:[%s2201 + $0x20] sm:$0xff]
      %v2207 = vld [vmem:[%s2201 + $0x28] sm:$0xff]
      %v2208 = vld [vmem:[%s2201 + $0x30] sm:$0xff]
      %v2209 = vld [vmem:[%s2201 + $0x38] sm:$0xff]
      %v2210 = vld [vmem:[%s2201 + $0x40] sm:$0xff]
      %v2211 = vld [vmem:[%s2201 + $0x48] sm:$0xff]
      %v2212 = vld [vmem:[%s2201 + $0x50] sm:$0xff]
      %v2213 = vld [vmem:[%s2201 + $0x58] sm:$0xff]
      %v2214 = vld [vmem:[%s2201 + $0x60] sm:$0xff]
      %v2215 = vld [vmem:[%s2201 + $0x68] sm:$0xff]
      %v2216 = vld [vmem:[%s2201 + $0x70] sm:$0xff]
      %v2217 = vld [vmem:[%s2201 + $0x78] sm:$0xff]
      %v2226 = vsel %vm1348, %v2177, %v2176
      %v2227 = vsel %vm1350, %v2178, %v2226
      %v2228 = vsel %vm1352, %v2179, %v2227
      %v2229 = vsel %vm1354, %v2180, %v2228
      %v2230 = vsel %vm1356, %v2181, %v2229
      %v2231 = vsel %vm1358, %v2182, %v2230
      %v2232 = vsel %vm1360, %v2183, %v2231
      %2234 = vmatprep.subr.mxu0 0.0
      %2235 = vmatpush1.msra.mxu0 %v2202
      %2236 = vmatprep.subr.mxu0 0.0
      %2237 = vmatpush1.msra.mxu0 %v2203
      %2238 = vmatprep.subr.mxu0 0.0
      %2239 = vmatpush1.msra.mxu0 %v2204
      %2240 = vmatprep.subr.mxu0 0.0
      %2241 = vmatpush1.msra.mxu0 %v2205
      %2242 = vmatprep.subr.mxu0 0.0
      %2243 = vmatpush1.msra.mxu0 %v2206
      %2244 = vmatprep.subr.mxu0 0.0
      %2245 = vmatpush1.msra.mxu0 %v2207
      %2246 = vmatprep.subr.mxu0 0.0
      %2247 = vmatpush1.msra.mxu0 %v2208
      %2248 = vmatprep.subr.mxu0 0.0
      %2249 = vmatpush1.msra.mxu0 %v2209
      %2250 = vmatprep.subr.mxu0 0.0
      %2251 = vmatpush1.msra.mxu0 %v2210
      %2252 = vmatprep.subr.mxu0 0.0
      %2253 = vmatpush1.msra.mxu0 %v2211
      %2254 = vmatprep.subr.mxu0 0.0
      %2255 = vmatpush1.msra.mxu0 %v2212
      %2256 = vmatprep.subr.mxu0 0.0
      %2257 = vmatpush1.msra.mxu0 %v2213
      %2258 = vmatprep.subr.mxu0 0.0
      %2259 = vmatpush1.msra.mxu0 %v2214
      %2260 = vmatprep.subr.mxu0 0.0
      %2261 = vmatpush1.msra.mxu0 %v2215
      %2262 = vmatprep.subr.mxu0 0.0
      %2263 = vmatpush1.msra.mxu0 %v2216
      %2264 = vmatprep.subr.mxu0 0.0
      %2265 = vmatpush1.msra.mxu0 %v2217
      %2266 = vmatprep.subr.mxu0 0.0
      %2267 = vmatpush1.msra.mxu0 0.0
      %2268 = vmatprep.subr.mxu0 0.0
      %2269 = vmatpush1.msra.mxu0 0.0
      %2270 = vmatprep.subr.mxu0 0.0
      %2271 = vmatpush1.msra.mxu0 0.0
      %2272 = vmatprep.subr.mxu0 0.0
      %2273 = vmatpush1.msra.mxu0 0.0
      %2274 = vmatprep.subr.mxu0 0.0
      %2275 = vmatpush1.msra.mxu0 0.0
      %2276 = vmatprep.subr.mxu0 0.0
      %2277 = vmatpush1.msra.mxu0 0.0
      %2278 = vmatprep.subr.mxu0 0.0
      %2279 = vmatpush1.msra.mxu0 0.0
      %2280 = vmatprep.subr.mxu0 0.0
      %2281 = vmatpush1.msra.mxu0 0.0
      %2282 = vmatprep.subr.mxu0 0.0
      %2283 = vmatpush1.msra.mxu0 0.0
      %2284 = vmatprep.subr.mxu0 0.0
      %2285 = vmatpush1.msra.mxu0 0.0
      %2286 = vmatprep.subr.mxu0 0.0
      %2287 = vmatpush1.msra.mxu0 0.0
      %2288 = vmatprep.subr.mxu0 0.0
      %2289 = vmatpush1.msra.mxu0 0.0
      %2290 = vmatprep.subr.mxu0 0.0
      %2291 = vmatpush1.msra.mxu0 0.0
      %2292 = vmatprep.subr.mxu0 0.0
      %2293 = vmatpush1.msra.mxu0 0.0
      %2294 = vmatprep.subr.mxu0 0.0
      %2295 = vmatpush1.msra.mxu0 0.0
      %2296 = vmatprep.subr.mxu0 0.0
      %2297 = vmatpush1.msra.mxu0 0.0
      %2298 = vmatprep.mubr.f32.mxu0 0.0
      %2299 = vmatmul.mubr.f32.gmra.mrb[0].mxu0 %v2232
      %v2300 = vpop.f32.mrb[0].mxu0
      %v2301 = vadd.f32 0.0, %v2300
      %v2302 = vpop.f32.mrb[0].mxu0
      %2303 = vdwg.mxu0
      %2304 = vmatprep.subr.mxu0 0.0
      %2305 = vmatpush1.msra.mxu0 %v2185
      %2306 = vmatprep.subr.mxu0 0.0
      %2307 = vmatpush1.msra.mxu0 %v2186
      %2308 = vmatprep.subr.mxu0 0.0
      %2309 = vmatpush1.msra.mxu0 %v2187
      %2310 = vmatprep.subr.mxu0 0.0
      %2311 = vmatpush1.msra.mxu0 %v2188
      %2312 = vmatprep.subr.mxu0 0.0
      %2313 = vmatpush1.msra.mxu0 %v2189
      %2314 = vmatprep.subr.mxu0 0.0
      %2315 = vmatpush1.msra.mxu0 %v2190
      %2316 = vmatprep.subr.mxu0 0.0
      %2317 = vmatpush1.msra.mxu0 %v2191
      %2318 = vmatprep.subr.mxu0 0.0
      %2319 = vmatpush1.msra.mxu0 %v2192
      %2320 = vmatprep.subr.mxu0 0.0
      %2321 = vmatpush1.msra.mxu0 %v2193
      %2322 = vmatprep.subr.mxu0 0.0
      %2323 = vmatpush1.msra.mxu0 %v2194
      %2324 = vmatprep.subr.mxu0 0.0
      %2325 = vmatpush1.msra.mxu0 %v2195
      %2326 = vmatprep.subr.mxu0 0.0
      %2327 = vmatpush1.msra.mxu0 %v2196
      %2328 = vmatprep.subr.mxu0 0.0
      %2329 = vmatpush1.msra.mxu0 %v2197
      %2330 = vmatprep.subr.mxu0 0.0
      %2331 = vmatpush1.msra.mxu0 %v2198
      %2332 = vmatprep.subr.mxu0 0.0
      %2333 = vmatpush1.msra.mxu0 %v2199
      %2334 = vmatprep.subr.mxu0 0.0
      %2335 = vmatpush1.msra.mxu0 %v2200
      %2336 = vmatprep.subr.mxu0 0.0
      %2337 = vmatpush1.msra.mxu0 0.0
      %2338 = vmatprep.subr.mxu0 0.0
      %2339 = vmatpush1.msra.mxu0 0.0
      %2340 = vmatprep.subr.mxu0 0.0
      %2341 = vmatpush1.msra.mxu0 0.0
      %2342 = vmatprep.subr.mxu0 0.0
      %2343 = vmatpush1.msra.mxu0 0.0
      %2344 = vmatprep.subr.mxu0 0.0
      %2345 = vmatpush1.msra.mxu0 0.0
      %2346 = vmatprep.subr.mxu0 0.0
      %2347 = vmatpush1.msra.mxu0 0.0
      %2348 = vmatprep.subr.mxu0 0.0
      %2349 = vmatpush1.msra.mxu0 0.0
      %2350 = vmatprep.subr.mxu0 0.0
      %2351 = vmatpush1.msra.mxu0 0.0
      %2352 = vmatprep.subr.mxu0 0.0
      %2353 = vmatpush1.msra.mxu0 0.0
      %2354 = vmatprep.subr.mxu0 0.0
      %2355 = vmatpush1.msra.mxu0 0.0
      %2356 = vmatprep.subr.mxu0 0.0
      %2357 = vmatpush1.msra.mxu0 0.0
      %2358 = vmatprep.subr.mxu0 0.0
      %2359 = vmatpush1.msra.mxu0 0.0
      %2360 = vmatprep.subr.mxu0 0.0
      %2361 = vmatpush1.msra.mxu0 0.0
      %2362 = vmatprep.subr.mxu0 0.0
      %2363 = vmatpush1.msra.mxu0 0.0
      %2364 = vmatprep.subr.mxu0 0.0
      %2365 = vmatpush1.msra.mxu0 0.0
      %2366 = vmatprep.subr.mxu0 0.0
      %2367 = vmatpush1.msra.mxu0 0.0
      %2368 = vmatprep.mubr.f32.mxu0 0.0
      %2369 = vmatmul.mubr.f32.gmra.mrb[0].mxu0 %v1611
      %v2370 = vpop.f32.mrb[0].mxu0
      %v2371 = vadd.f32 %v2301, %v2370
      %v2372 = vpop.f32.mrb[0].mxu0
      %2373 = vdwg.mxu0
      %s2374 = scalar_lea.vmem %s10, 1
      %v2375 = vld [vmem:[%s2374] sm:$0x1]
      %v2377 = vlaneseq
      %v2378 = vshrl.u32 %v2377, 7
      %v2379 = vsub.s32 0, %v2378
      %v2380 = vrot.slane %v2375, %v2379
      %v2382 = vadd.f32 %v2371, %v2380
      %v2383 = vxor.u32 %v2382, 2147483648
      %v2384 = vmul.f32 %v2383, 1.442695
      %v2385 = vpow.pop %v2384
      %v2386 = vadd.f32 %v2385, 1.0
      %v2387 = vrcp.pop %v2386
      %v2388 = vmul.f32 1.0, %v2387
      %v2389 = vmul.f32 %v2382, %v2388
      %s2390 = scalar_lea.vmem %s11, 128
      %v2391 = vld [vmem:[%s2390] sm:$0xff]
      %v2392 = vld [vmem:[%s2390 + $0x8] sm:$0xff]
      %v2393 = vld [vmem:[%s2390 + $0x10] sm:$0xff]
      %v2394 = vld [vmem:[%s2390 + $0x18] sm:$0xff]
      %v2395 = vld [vmem:[%s2390 + $0x20] sm:$0xff]
      %v2396 = vld [vmem:[%s2390 + $0x28] sm:$0xff]
      %v2397 = vld [vmem:[%s2390 + $0x30] sm:$0xff]
      %v2398 = vld [vmem:[%s2390 + $0x38] sm:$0xff]
      %v2399 = vld [vmem:[%s2390 + $0x40] sm:$0xff]
      %v2400 = vld [vmem:[%s2390 + $0x48] sm:$0xff]
      %v2401 = vld [vmem:[%s2390 + $0x50] sm:$0xff]
      %v2402 = vld [vmem:[%s2390 + $0x58] sm:$0xff]
      %v2403 = vld [vmem:[%s2390 + $0x60] sm:$0xff]
      %v2404 = vld [vmem:[%s2390 + $0x68] sm:$0xff]
      %v2405 = vld [vmem:[%s2390 + $0x70] sm:$0xff]
      %v2406 = vld [vmem:[%s2390 + $0x78] sm:$0xff]
      %s2407 = scalar_lea.vmem %s12, 1
      %v2408 = vld [vmem:[%s2407] sm:$0x1]
      %v2410 = vlaneseq
      %v2411 = vshrl.u32 %v2410, 7
      %v2412 = vsub.s32 0, %v2411
      %v2413 = vrot.slane %v2408, %v2412
      %2415 = vmatprep.subr.mxu0 0.0
      %2416 = vmatpush1.msra.mxu0 %v2391
      %2417 = vmatprep.subr.mxu0 0.0
      %2418 = vmatpush1.msra.mxu0 %v2392
      %2419 = vmatprep.subr.mxu0 0.0
      %2420 = vmatpush1.msra.mxu0 %v2393
      %2421 = vmatprep.subr.mxu0 0.0
      %2422 = vmatpush1.msra.mxu0 %v2394
      %2423 = vmatprep.subr.mxu0 0.0
      %2424 = vmatpush1.msra.mxu0 %v2395
      %2425 = vmatprep.subr.mxu0 0.0
      %2426 = vmatpush1.msra.mxu0 %v2396
      %2427 = vmatprep.subr.mxu0 0.0
      %2428 = vmatpush1.msra.mxu0 %v2397
      %2429 = vmatprep.subr.mxu0 0.0
      %2430 = vmatpush1.msra.mxu0 %v2398
      %2431 = vmatprep.subr.mxu0 0.0
      %2432 = vmatpush1.msra.mxu0 %v2399
      %2433 = vmatprep.subr.mxu0 0.0
      %2434 = vmatpush1.msra.mxu0 %v2400
      %2435 = vmatprep.subr.mxu0 0.0
      %2436 = vmatpush1.msra.mxu0 %v2401
      %2437 = vmatprep.subr.mxu0 0.0
      %2438 = vmatpush1.msra.mxu0 %v2402
      %2439 = vmatprep.subr.mxu0 0.0
      %2440 = vmatpush1.msra.mxu0 %v2403
      %2441 = vmatprep.subr.mxu0 0.0
      %2442 = vmatpush1.msra.mxu0 %v2404
      %2443 = vmatprep.subr.mxu0 0.0
      %2444 = vmatpush1.msra.mxu0 %v2405
      %2445 = vmatprep.subr.mxu0 0.0
      %2446 = vmatpush1.msra.mxu0 %v2406
      %2447 = vmatprep.subr.mxu0 0.0
      %2448 = vmatpush1.msra.mxu0 0.0
      %2449 = vmatprep.subr.mxu0 0.0
      %2450 = vmatpush1.msra.mxu0 0.0
      %2451 = vmatprep.subr.mxu0 0.0
      %2452 = vmatpush1.msra.mxu0 0.0
      %2453 = vmatprep.subr.mxu0 0.0
      %2454 = vmatpush1.msra.mxu0 0.0
      %2455 = vmatprep.subr.mxu0 0.0
      %2456 = vmatpush1.msra.mxu0 0.0
      %2457 = vmatprep.subr.mxu0 0.0
      %2458 = vmatpush1.msra.mxu0 0.0
      %2459 = vmatprep.subr.mxu0 0.0
      %2460 = vmatpush1.msra.mxu0 0.0
      %2461 = vmatprep.subr.mxu0 0.0
      %2462 = vmatpush1.msra.mxu0 0.0
      %2463 = vmatprep.subr.mxu0 0.0
      %2464 = vmatpush1.msra.mxu0 0.0
      %2465 = vmatprep.subr.mxu0 0.0
      %2466 = vmatpush1.msra.mxu0 0.0
      %2467 = vmatprep.subr.mxu0 0.0
      %2468 = vmatpush1.msra.mxu0 0.0
      %2469 = vmatprep.subr.mxu0 0.0
      %2470 = vmatpush1.msra.mxu0 0.0
      %2471 = vmatprep.subr.mxu0 0.0
      %2472 = vmatpush1.msra.mxu0 0.0
      %2473 = vmatprep.subr.mxu0 0.0
      %2474 = vmatpush1.msra.mxu0 0.0
      %2475 = vmatprep.subr.mxu0 0.0
      %2476 = vmatpush1.msra.mxu0 0.0
      %2477 = vmatprep.subr.mxu0 0.0
      %2478 = vmatpush1.msra.mxu0 0.0
      %2479 = vmatprep.mubr.f32.mxu0 0.0
      %2480 = vmatmul.mubr.f32.gmra.mrb[0].mxu0 %v2389
      %v2481 = vpop.f32.mrb[0].mxu0
      %v2482 = vadd.f32 %v2413, %v2481
      %v2483 = vpop.f32.mrb[0].mxu0
      %2484 = vdwg.mxu0
      %v2485 = vadd.f32 %v1611, %v2482
      %v2486 = vld [vmem:[%s13] sm:$0xff]
      %v2487 = vld [vmem:[%s13 + $0x8] sm:$0xff]
      %v2488 = vld [vmem:[%s13 + $0x10] sm:$0xff]
      %v2489 = vld [vmem:[%s13 + $0x18] sm:$0xff]
      %v2490 = vld [vmem:[%s13 + $0x20] sm:$0xff]
      %v2491 = vld [vmem:[%s13 + $0x28] sm:$0xff]
      %v2492 = vld [vmem:[%s13 + $0x30] sm:$0xff]
      %v2493 = vld [vmem:[%s13 + $0x38] sm:$0xff]
      %v2494 = vld [vmem:[%s13 + $0x40] sm:$0xff]
      %v2495 = vld [vmem:[%s13 + $0x48] sm:$0xff]
      %v2496 = vld [vmem:[%s13 + $0x50] sm:$0xff]
      %v2497 = vld [vmem:[%s13 + $0x58] sm:$0xff]
      %v2498 = vld [vmem:[%s13 + $0x60] sm:$0xff]
      %v2499 = vld [vmem:[%s13 + $0x68] sm:$0xff]
      %v2500 = vld [vmem:[%s13 + $0x70] sm:$0xff]
      %v2501 = vld [vmem:[%s13 + $0x78] sm:$0xff]
      %v2502 = vld [vmem:[%s13 + $0x80] sm:$0xff]
      %v2503 = vld [vmem:[%s13 + $0x88] sm:$0xff]
      %v2504 = vld [vmem:[%s13 + $0x90] sm:$0xff]
      %v2505 = vld [vmem:[%s13 + $0x98] sm:$0xff]
      %v2506 = vld [vmem:[%s13 + $0xa0] sm:$0xff]
      %v2507 = vld [vmem:[%s13 + $0xa8] sm:$0xff]
      %v2508 = vld [vmem:[%s13 + $0xb0] sm:$0xff]
      %v2509 = vld [vmem:[%s13 + $0xb8] sm:$0xff]
      %v2510 = vld [vmem:[%s13 + $0xc0] sm:$0xff]
      %v2511 = vld [vmem:[%s13 + $0xc8] sm:$0xff]
      %v2512 = vld [vmem:[%s13 + $0xd0] sm:$0xff]
      %v2513 = vld [vmem:[%s13 + $0xd8] sm:$0xff]
      %v2514 = vld [vmem:[%s13 + $0xe0] sm:$0xff]
      %v2515 = vld [vmem:[%s13 + $0xe8] sm:$0xff]
      %v2516 = vld [vmem:[%s13 + $0xf0] sm:$0xff]
      %v2517 = vld [vmem:[%s13 + $0xf8] sm:$0xff]
      %2518 = vmatprep.subr.mxu0 %v2487
      %2519 = vmatpush1.msra.mxu0 %v2486
      %2520 = vmatprep.subr.mxu0 %v2489
      %2521 = vmatpush1.msra.mxu0 %v2488
      %2522 = vmatprep.subr.mxu0 %v2491
      %2523 = vmatpush1.msra.mxu0 %v2490
      %2524 = vmatprep.subr.mxu0 %v2493
      %2525 = vmatpush1.msra.mxu0 %v2492
      %2526 = vmatprep.subr.mxu0 %v2495
      %2527 = vmatpush1.msra.mxu0 %v2494
      %2528 = vmatprep.subr.mxu0 %v2497
      %2529 = vmatpush1.msra.mxu0 %v2496
      %2530 = vmatprep.subr.mxu0 %v2499
      %2531 = vmatpush1.msra.mxu0 %v2498
      %2532 = vmatprep.subr.mxu0 %v2501
      %2533 = vmatpush1.msra.mxu0 %v2500
      %2534 = vmatprep.subr.mxu0 %v2503
      %2535 = vmatpush1.msra.mxu0 %v2502
      %2536 = vmatprep.subr.mxu0 %v2505
      %2537 = vmatpush1.msra.mxu0 %v2504
      %2538 = vmatprep.subr.mxu0 %v2507
      %2539 = vmatpush1.msra.mxu0 %v2506
      %2540 = vmatprep.subr.mxu0 %v2509
      %2541 = vmatpush1.msra.mxu0 %v2508
      %2542 = vmatprep.subr.mxu0 %v2511
      %2543 = vmatpush1.msra.mxu0 %v2510
      %2544 = vmatprep.subr.mxu0 %v2513
      %2545 = vmatpush1.msra.mxu0 %v2512
      %2546 = vmatprep.subr.mxu0 %v2515
      %2547 = vmatpush1.msra.mxu0 %v2514
      %2548 = vmatprep.subr.mxu0 %v2517
      %2549 = vmatpush1.msra.mxu0 %v2516
      %2550 = vmatprep.subr.mxu0 0.0
      %2551 = vmatpush1.msra.mxu0 0.0
      %2552 = vmatprep.subr.mxu0 0.0
      %2553 = vmatpush1.msra.mxu0 0.0
      %2554 = vmatprep.subr.mxu0 0.0
      %2555 = vmatpush1.msra.mxu0 0.0
      %2556 = vmatprep.subr.mxu0 0.0
      %2557 = vmatpush1.msra.mxu0 0.0
      %2558 = vmatprep.subr.mxu0 0.0
      %2559 = vmatpush1.msra.mxu0 0.0
      %2560 = vmatprep.subr.mxu0 0.0
      %2561 = vmatpush1.msra.mxu0 0.0
      %2562 = vmatprep.subr.mxu0 0.0
      %2563 = vmatpush1.msra.mxu0 0.0
      %2564 = vmatprep.subr.mxu0 0.0
      %2565 = vmatpush1.msra.mxu0 0.0
      %2566 = vmatprep.subr.mxu0 0.0
      %2567 = vmatpush1.msra.mxu0 0.0
      %2568 = vmatprep.subr.mxu0 0.0
      %2569 = vmatpush1.msra.mxu0 0.0
      %2570 = vmatprep.subr.mxu0 0.0
      %2571 = vmatpush1.msra.mxu0 0.0
      %2572 = vmatprep.subr.mxu0 0.0
      %2573 = vmatpush1.msra.mxu0 0.0
      %2574 = vmatprep.subr.mxu0 0.0
      %2575 = vmatpush1.msra.mxu0 0.0
      %2576 = vmatprep.subr.mxu0 0.0
      %2577 = vmatpush1.msra.mxu0 0.0
      %2578 = vmatprep.subr.mxu0 0.0
      %2579 = vmatpush1.msra.mxu0 0.0
      %2580 = vmatprep.subr.mxu0 0.0
      %2581 = vmatpush1.msra.mxu0 0.0
      %2582 = vmatprep.mubr.f32.mxu0 0.0
      %2583 = vmatmul.mubr.f32.gmra.mrb[0].mxu0 %v2485
      %v2584 = vpop.f32.mrb[0].mxu0
      %v2585 = vadd.f32 0.0, %v2584
      %v2586 = vpop.f32.mrb[0].mxu0
      %v2587 = vadd.f32 0.0, %v2586
      %2588 = vdwg.mxu0
      %v2590 = vcombine.high %v2585, %v2585
      %v2592 = vunpack.c.l.s4 1966171168
      %v2593 = vunpack.c.0.s8 %v2592
      %v2594 = vlaneseq
      %v2595 = vshrl.u32 %v2594, 7
      %v2596 = vsub.s32 %v2593, %v2595
      %v2597 = vrot.slane %v2585, %v2596
      %v2599 = vunpack.c.l.s4 1966171168
      %v2600 = vunpack.c.0.s8 %v2599
      %v2601 = vlaneseq
      %v2602 = vshrl.u32 %v2601, 7
      %v2603 = vsub.s32 %v2600, %v2602
      %v2604 = vrot.slane %v2590, %v2603
      %v2605 = vcombine.high %v2597, %v2597
      %v2606 = vcombine.high %v2604, %v2604
      %v2608 = vunpack.c.l.s4 1966171168
      %v2609 = vunpack.c.0.s8 %v2608
      %v2610 = vlaneseq
      %v2611 = vshrl.u32 %v2610, 7
      %v2612 = vsub.s32 %v2609, %v2611
      %v2613 = vrot.slane %v2597, %v2612
      %v2615 = vunpack.c.l.s4 1966171168
      %v2616 = vunpack.c.0.s8 %v2615
      %v2617 = vlaneseq
      %v2618 = vshrl.u32 %v2617, 7
      %v2619 = vsub.s32 %v2616, %v2618
      %v2620 = vrot.slane %v2604, %v2619
      %v2622 = vunpack.c.l.s4 1966171168
      %v2623 = vunpack.c.0.s8 %v2622
      %v2624 = vlaneseq
      %v2625 = vshrl.u32 %v2624, 7
      %v2626 = vsub.s32 %v2623, %v2625
      %v2627 = vrot.slane %v2605, %v2626
      %v2629 = vunpack.c.l.s4 1966171168
      %v2630 = vunpack.c.0.s8 %v2629
      %v2631 = vlaneseq
      %v2632 = vshrl.u32 %v2631, 7
      %v2633 = vsub.s32 %v2630, %v2632
      %v2634 = vrot.slane %v2606, %v2633
      %v2635 = vcombine.high %v2613, %v2613
      %v2636 = vcombine.high %v2620, %v2620
      %v2637 = vcombine.high %v2627, %v2627
      %v2638 = vcombine.high %v2634, %v2634
      %v2639 = vld [vmem:[%s14] sm:$0x1]
      %v2640 = vld [vmem:[%s15] sm:$0x1]
      %v2641 = vld [vmem:[%s16] sm:$0x1]
      %v2642 = vld [vmem:[%s19] sm:$0x1]
      %v2643 = vlaneseq
      %v2644 = vshrl.u32 %v2643, 7
      %v2645 = vsub.s32 0, %v2644
      %v2646 = vrot.slane %v2613, %v2645
      %v2647 = vlaneseq
      %v2648 = vshrl.u32 %v2647, 7
      %v2649 = vsub.s32 0, %v2648
      %v2650 = vrot.slane %v2627, %v2649
      %v2651 = vlaneseq
      %v2652 = vshrl.u32 %v2651, 7
      %v2653 = vsub.s32 0, %v2652
      %v2654 = vrot.slane %v2635, %v2653
      %v2655 = vlaneseq
      %v2656 = vshrl.u32 %v2655, 7
      %v2657 = vsub.s32 0, %v2656
      %v2658 = vrot.slane %v2637, %v2657
      %v2659 = vlaneseq
      %v2660 = vshrl.u32 %v2659, 7
      %v2661 = vsub.s32 0, %v2660
      %v2662 = vrot.slane %v2620, %v2661
      %v2663 = vlaneseq
      %v2664 = vshrl.u32 %v2663, 7
      %v2665 = vsub.s32 0, %v2664
      %v2666 = vrot.slane %v2634, %v2665
      %v2667 = vlaneseq
      %v2668 = vshrl.u32 %v2667, 7
      %v2669 = vsub.s32 0, %v2668
      %v2670 = vrot.slane %v2636, %v2669
      %v2671 = vlaneseq
      %v2672 = vshrl.u32 %v2671, 7
      %v2673 = vsub.s32 0, %v2672
      %v2674 = vrot.slane %v2638, %v2673
      %v2683 = vadd.f32 %v2646, %v2587
      %v2684 = vadd.f32 %v2650, %v2587
      %v2685 = vadd.f32 %v2654, %v2587
      %v2686 = vadd.f32 %v2658, %v2587
      %v2687 = vadd.f32 %v2662, %v2587
      %v2688 = vadd.f32 %v2666, %v2587
      %v2689 = vadd.f32 %v2670, %v2587
      %v2690 = vadd.f32 %v2674, %v2587
      %v2692 = vlaneseq
      %v2693 = vshrl.u32 %v2692, 7
      %v2694 = vsub.s32 0, %v2693
      %v2695 = vrot.slane %v2639, %v2694
      %v2697 = vmul.f32 %v896, %v2695
      %v2698 = vmul.f32 %v903, %v2695
      %v2699 = vmul.f32 %v910, %v2695
      %v2700 = vmul.f32 %v917, %v2695
      %v2701 = vmul.f32 %v924, %v2695
      %v2702 = vmul.f32 %v931, %v2695
      %v2703 = vmul.f32 %v938, %v2695
      %v2704 = vmul.f32 %v945, %v2695
      %v2705 = vadd.f32 %v2683, %v2697
      %v2706 = vadd.f32 %v2684, %v2698
      %v2707 = vadd.f32 %v2685, %v2699
      %v2708 = vadd.f32 %v2686, %v2700
      %v2709 = vadd.f32 %v2687, %v2701
      %v2710 = vadd.f32 %v2688, %v2702
      %v2711 = vadd.f32 %v2689, %v2703
      %v2712 = vadd.f32 %v2690, %v2704
      %v2714 = vlaneseq
      %v2715 = vshrl.u32 %v2714, 7
      %v2716 = vsub.s32 0, %v2715
      %v2717 = vrot.slane %v2640, %v2716
      %v2719 = vmul.f32 %v896, %v2717
      %v2720 = vmul.f32 %v903, %v2717
      %v2721 = vmul.f32 %v910, %v2717
      %v2722 = vmul.f32 %v917, %v2717
      %v2723 = vmul.f32 %v924, %v2717
      %v2724 = vmul.f32 %v931, %v2717
      %v2725 = vmul.f32 %v938, %v2717
      %v2726 = vmul.f32 %v945, %v2717
      %v2727 = vadd.f32 %v2705, %v2719
      %v2728 = vadd.f32 %v2706, %v2720
      %v2729 = vadd.f32 %v2707, %v2721
      %v2730 = vadd.f32 %v2708, %v2722
      %v2731 = vadd.f32 %v2709, %v2723
      %v2732 = vadd.f32 %v2710, %v2724
      %v2733 = vadd.f32 %v2711, %v2725
      %v2734 = vadd.f32 %v2712, %v2726
      %v2736 = vlaneseq
      %v2737 = vshrl.u32 %v2736, 7
      %v2738 = vsub.s32 0, %v2737
      %v2739 = vrot.slane %v2641, %v2738
      %v2741 = vadd.f32 %v2727, %v2739
      %v2742 = vadd.f32 %v2728, %v2739
      %v2743 = vadd.f32 %v2729, %v2739
      %v2744 = vadd.f32 %v2730, %v2739
      %v2745 = vadd.f32 %v2731, %v2739
      %v2746 = vadd.f32 %v2732, %v2739
      %v2747 = vadd.f32 %v2733, %v2739
      %v2748 = vadd.f32 %v2734, %v2739
      %v2749 = vxor.u32 %v2741, 2147483648
      %v2750 = vxor.u32 %v2742, 2147483648
      %v2751 = vxor.u32 %v2743, 2147483648
      %v2752 = vxor.u32 %v2744, 2147483648
      %v2753 = vxor.u32 %v2745, 2147483648
      %v2754 = vxor.u32 %v2746, 2147483648
      %v2755 = vxor.u32 %v2747, 2147483648
      %v2756 = vxor.u32 %v2748, 2147483648
      %v2757 = vmul.f32 %v2749, 1.442695
      %v2758 = vpow.pop %v2757
      %v2759 = vmul.f32 %v2750, 1.442695
      %v2760 = vpow.pop %v2759
      %v2761 = vmul.f32 %v2751, 1.442695
      %v2762 = vpow.pop %v2761
      %v2763 = vmul.f32 %v2752, 1.442695
      %v2764 = vpow.pop %v2763
      %v2765 = vmul.f32 %v2753, 1.442695
      %v2766 = vpow.pop %v2765
      %v2767 = vmul.f32 %v2754, 1.442695
      %v2768 = vpow.pop %v2767
      %v2769 = vmul.f32 %v2755, 1.442695
      %v2770 = vpow.pop %v2769
      %v2771 = vmul.f32 %v2756, 1.442695
      %v2772 = vpow.pop %v2771
      %v2773 = vadd.f32 %v2758, 1.0
      %v2774 = vadd.f32 %v2760, 1.0
      %v2775 = vadd.f32 %v2762, 1.0
      %v2776 = vadd.f32 %v2764, 1.0
      %v2777 = vadd.f32 %v2766, 1.0
      %v2778 = vadd.f32 %v2768, 1.0
      %v2779 = vadd.f32 %v2770, 1.0
      %v2780 = vadd.f32 %v2772, 1.0
      %v2781 = vrcp.pop %v2773
      %v2782 = vmul.f32 1.0, %v2781
      %v2783 = vrcp.pop %v2774
      %v2784 = vmul.f32 1.0, %v2783
      %v2785 = vrcp.pop %v2775
      %v2786 = vmul.f32 1.0, %v2785
      %v2787 = vrcp.pop %v2776
      %v2788 = vmul.f32 1.0, %v2787
      %v2789 = vrcp.pop %v2777
      %v2790 = vmul.f32 1.0, %v2789
      %v2791 = vrcp.pop %v2778
      %v2792 = vmul.f32 1.0, %v2791
      %v2793 = vrcp.pop %v2779
      %v2794 = vmul.f32 1.0, %v2793
      %v2795 = vrcp.pop %v2780
      %v2796 = vmul.f32 1.0, %v2795
      %v2797 = vmul.f32 %v2741, %v2782
      %v2798 = vmul.f32 %v2742, %v2784
      %v2799 = vmul.f32 %v2743, %v2786
      %v2800 = vmul.f32 %v2744, %v2788
      %v2801 = vmul.f32 %v2745, %v2790
      %v2802 = vmul.f32 %v2746, %v2792
      %v2803 = vmul.f32 %v2747, %v2794
      %v2804 = vmul.f32 %v2748, %v2796
      %v2805 = vld [vmem:[%s17] sm:$0xff]
      %v2806 = vld [vmem:[%s17 + $0x8] sm:$0xff]
      %v2807 = vld [vmem:[%s17 + $0x10] sm:$0xff]
      %v2808 = vld [vmem:[%s17 + $0x18] sm:$0xff]
      %v2809 = vld [vmem:[%s17 + $0x20] sm:$0xff]
      %v2810 = vld [vmem:[%s17 + $0x28] sm:$0xff]
      %v2811 = vld [vmem:[%s17 + $0x30] sm:$0xff]
      %v2812 = vld [vmem:[%s17 + $0x38] sm:$0xff]
      %v2813 = vld [vmem:[%s17 + $0x40] sm:$0xff]
      %v2814 = vld [vmem:[%s17 + $0x48] sm:$0xff]
      %v2815 = vld [vmem:[%s17 + $0x50] sm:$0xff]
      %v2816 = vld [vmem:[%s17 + $0x58] sm:$0xff]
      %v2817 = vld [vmem:[%s17 + $0x60] sm:$0xff]
      %v2818 = vld [vmem:[%s17 + $0x68] sm:$0xff]
      %v2819 = vld [vmem:[%s17 + $0x70] sm:$0xff]
      %v2820 = vld [vmem:[%s17 + $0x78] sm:$0xff]
      %v2821 = vld [vmem:[%s18] sm:$0x1]
      %v2823 = vlaneseq
      %v2824 = vshrl.u32 %v2823, 7
      %v2825 = vsub.s32 0, %v2824
      %v2826 = vrot.slane %v2821, %v2825
      %2828 = vmatprep.subr.mxu0 0.0
      %2829 = vmatpush1.msra.mxu0 %v2805
      %2830 = vmatprep.subr.mxu0 0.0
      %2831 = vmatpush1.msra.mxu0 %v2806
      %2832 = vmatprep.subr.mxu0 0.0
      %2833 = vmatpush1.msra.mxu0 %v2807
      %2834 = vmatprep.subr.mxu0 0.0
      %2835 = vmatpush1.msra.mxu0 %v2808
      %2836 = vmatprep.subr.mxu0 0.0
      %2837 = vmatpush1.msra.mxu0 %v2809
      %2838 = vmatprep.subr.mxu0 0.0
      %2839 = vmatpush1.msra.mxu0 %v2810
      %2840 = vmatprep.subr.mxu0 0.0
      %2841 = vmatpush1.msra.mxu0 %v2811
      %2842 = vmatprep.subr.mxu0 0.0
      %2843 = vmatpush1.msra.mxu0 %v2812
      %2844 = vmatprep.subr.mxu0 0.0
      %2845 = vmatpush1.msra.mxu0 %v2813
      %2846 = vmatprep.subr.mxu0 0.0
      %2847 = vmatpush1.msra.mxu0 %v2814
      %2848 = vmatprep.subr.mxu0 0.0
      %2849 = vmatpush1.msra.mxu0 %v2815
      %2850 = vmatprep.subr.mxu0 0.0
      %2851 = vmatpush1.msra.mxu0 %v2816
      %2852 = vmatprep.subr.mxu0 0.0
      %2853 = vmatpush1.msra.mxu0 %v2817
      %2854 = vmatprep.subr.mxu0 0.0
      %2855 = vmatpush1.msra.mxu0 %v2818
      %2856 = vmatprep.subr.mxu0 0.0
      %2857 = vmatpush1.msra.mxu0 %v2819
      %2858 = vmatprep.subr.mxu0 0.0
      %2859 = vmatpush1.msra.mxu0 %v2820
      %2860 = vmatprep.subr.mxu0 0.0
      %2861 = vmatpush1.msra.mxu0 0.0
      %2862 = vmatprep.subr.mxu0 0.0
      %2863 = vmatpush1.msra.mxu0 0.0
      %2864 = vmatprep.subr.mxu0 0.0
      %2865 = vmatpush1.msra.mxu0 0.0
      %2866 = vmatprep.subr.mxu0 0.0
      %2867 = vmatpush1.msra.mxu0 0.0
      %2868 = vmatprep.subr.mxu0 0.0
      %2869 = vmatpush1.msra.mxu0 0.0
      %2870 = vmatprep.subr.mxu0 0.0
      %2871 = vmatpush1.msra.mxu0 0.0
      %2872 = vmatprep.subr.mxu0 0.0
      %2873 = vmatpush1.msra.mxu0 0.0
      %2874 = vmatprep.subr.mxu0 0.0
      %2875 = vmatpush1.msra.mxu0 0.0
      %2876 = vmatprep.subr.mxu0 0.0
      %2877 = vmatpush1.msra.mxu0 0.0
      %2878 = vmatprep.subr.mxu0 0.0
      %2879 = vmatpush1.msra.mxu0 0.0
      %2880 = vmatprep.subr.mxu0 0.0
      %2881 = vmatpush1.msra.mxu0 0.0
      %2882 = vmatprep.subr.mxu0 0.0
      %2883 = vmatpush1.msra.mxu0 0.0
      %2884 = vmatprep.subr.mxu0 0.0
      %2885 = vmatpush1.msra.mxu0 0.0
      %2886 = vmatprep.subr.mxu0 0.0
      %2887 = vmatpush1.msra.mxu0 0.0
      %2888 = vmatprep.subr.mxu0 0.0
      %2889 = vmatpush1.msra.mxu0 0.0
      %2890 = vmatprep.subr.mxu0 0.0
      %2891 = vmatpush1.msra.mxu0 0.0
      %2892 = vmatprep.mubr.f32.mxu0 0.0
      %2893 = vmatmul.mubr.f32.gmra.mrb[0].mxu0 %v2797
      %v2894 = vpop.f32.mrb[0].mxu0
      %v2895 = vadd.f32 %v2826, %v2894
      %v2896 = vpop.f32.mrb[0].mxu0
      %2897 = vmatprep.mubr.f32.mxu0 0.0
      %2898 = vmatmul.mubr.f32.gmra.mrb[0].mxu0 %v2798
      %v2899 = vpop.f32.mrb[0].mxu0
      %v2900 = vadd.f32 %v2826, %v2899
      %v2901 = vpop.f32.mrb[0].mxu0
      %2902 = vmatprep.mubr.f32.mxu0 0.0
      %2903 = vmatmul.mubr.f32.gmra.mrb[0].mxu0 %v2799
      %v2904 = vpop.f32.mrb[0].mxu0
      %v2905 = vadd.f32 %v2826, %v2904
      %v2906 = vpop.f32.mrb[0].mxu0
      %2907 = vmatprep.mubr.f32.mxu0 0.0
      %2908 = vmatmul.mubr.f32.gmra.mrb[0].mxu0 %v2800
      %v2909 = vpop.f32.mrb[0].mxu0
      %v2910 = vadd.f32 %v2826, %v2909
      %v2911 = vpop.f32.mrb[0].mxu0
      %2912 = vmatprep.mubr.f32.mxu0 0.0
      %2913 = vmatmul.mubr.f32.gmra.mrb[0].mxu0 %v2801
      %v2914 = vpop.f32.mrb[0].mxu0
      %v2915 = vadd.f32 %v2826, %v2914
      %v2916 = vpop.f32.mrb[0].mxu0
      %2917 = vmatprep.mubr.f32.mxu0 0.0
      %2918 = vmatmul.mubr.f32.gmra.mrb[0].mxu0 %v2802
      %v2919 = vpop.f32.mrb[0].mxu0
      %v2920 = vadd.f32 %v2826, %v2919
      %v2921 = vpop.f32.mrb[0].mxu0
      %2922 = vmatprep.mubr.f32.mxu0 0.0
      %2923 = vmatmul.mubr.f32.gmra.mrb[0].mxu0 %v2803
      %v2924 = vpop.f32.mrb[0].mxu0
      %v2925 = vadd.f32 %v2826, %v2924
      %v2926 = vpop.f32.mrb[0].mxu0
      %2927 = vmatprep.mubr.f32.mxu0 0.0
      %2928 = vmatmul.mubr.f32.gmra.mrb[0].mxu0 %v2804
      %v2929 = vpop.f32.mrb[0].mxu0
      %v2930 = vadd.f32 %v2826, %v2929
      %v2931 = vpop.f32.mrb[0].mxu0
      %2932 = vdwg.mxu0
      %v2933 = vxor.u32 %v2895, 2147483648
      %v2934 = vxor.u32 %v2900, 2147483648
      %v2935 = vxor.u32 %v2905, 2147483648
      %v2936 = vxor.u32 %v2910, 2147483648
      %v2937 = vxor.u32 %v2915, 2147483648
      %v2938 = vxor.u32 %v2920, 2147483648
      %v2939 = vxor.u32 %v2925, 2147483648
      %v2940 = vxor.u32 %v2930, 2147483648
      %v2941 = vmul.f32 %v2933, 1.442695
      %v2942 = vpow.pop %v2941
      %v2943 = vmul.f32 %v2934, 1.442695
      %v2944 = vpow.pop %v2943
      %v2945 = vmul.f32 %v2935, 1.442695
      %v2946 = vpow.pop %v2945
      %v2947 = vmul.f32 %v2936, 1.442695
      %v2948 = vpow.pop %v2947
      %v2949 = vmul.f32 %v2937, 1.442695
      %v2950 = vpow.pop %v2949
      %v2951 = vmul.f32 %v2938, 1.442695
      %v2952 = vpow.pop %v2951
      %v2953 = vmul.f32 %v2939, 1.442695
      %v2954 = vpow.pop %v2953
      %v2955 = vmul.f32 %v2940, 1.442695
      %v2956 = vpow.pop %v2955
      %v2957 = vadd.f32 %v2942, 1.0
      %v2958 = vadd.f32 %v2944, 1.0
      %v2959 = vadd.f32 %v2946, 1.0
      %v2960 = vadd.f32 %v2948, 1.0
      %v2961 = vadd.f32 %v2950, 1.0
      %v2962 = vadd.f32 %v2952, 1.0
      %v2963 = vadd.f32 %v2954, 1.0
      %v2964 = vadd.f32 %v2956, 1.0
      %v2965 = vrcp.pop %v2957
      %v2966 = vmul.f32 1.0, %v2965
      %v2967 = vrcp.pop %v2958
      %v2968 = vmul.f32 1.0, %v2967
      %v2969 = vrcp.pop %v2959
      %v2970 = vmul.f32 1.0, %v2969
      %v2971 = vrcp.pop %v2960
      %v2972 = vmul.f32 1.0, %v2971
      %v2973 = vrcp.pop %v2961
      %v2974 = vmul.f32 1.0, %v2973
      %v2975 = vrcp.pop %v2962
      %v2976 = vmul.f32 1.0, %v2975
      %v2977 = vrcp.pop %v2963
      %v2978 = vmul.f32 1.0, %v2977
      %v2979 = vrcp.pop %v2964
      %v2980 = vmul.f32 1.0, %v2979
      %v2981 = vmul.f32 %v2895, %v2966
      %v2982 = vmul.f32 %v2900, %v2968
      %v2983 = vmul.f32 %v2905, %v2970
      %v2984 = vmul.f32 %v2910, %v2972
      %v2985 = vmul.f32 %v2915, %v2974
      %v2986 = vmul.f32 %v2920, %v2976
      %v2987 = vmul.f32 %v2925, %v2978
      %v2988 = vmul.f32 %v2930, %v2980
      %v2990 = vlaneseq
      %v2991 = vshrl.u32 %v2990, 7
      %v2992 = vsub.s32 0, %v2991
      %v2993 = vrot.slane %v2642, %v2992
      %v2995 = vmul.f32 %v2981, %v2993
      %v2996 = vmul.f32 %v2982, %v2993
      %v2997 = vmul.f32 %v2983, %v2993
      %v2998 = vmul.f32 %v2984, %v2993
      %v2999 = vmul.f32 %v2985, %v2993
      %v3000 = vmul.f32 %v2986, %v2993
      %v3001 = vmul.f32 %v2987, %v2993
      %v3002 = vmul.f32 %v2988, %v2993
      %3003 = vadd.xlane.f32.xlu0 %v2995
      %v3004 = vpop.xlane.xlu0 %3003
      %3005 = vadd.xlane.f32.xlu0 %v2996
      %v3006 = vpop.xlane.xlu0 %3005
      %3007 = vadd.xlane.f32.xlu0 %v2997
      %v3008 = vpop.xlane.xlu0 %3007
      %3009 = vadd.xlane.f32.xlu0 %v2998
      %v3010 = vpop.xlane.xlu0 %3009
      %3011 = vadd.xlane.f32.xlu0 %v2999
      %v3012 = vpop.xlane.xlu0 %3011
      %3013 = vadd.xlane.f32.xlu0 %v3000
      %v3014 = vpop.xlane.xlu0 %3013
      %3015 = vadd.xlane.f32.xlu0 %v3001
      %v3016 = vpop.xlane.xlu0 %3015
      %3017 = vadd.xlane.f32.xlu0 %v3002
      %v3018 = vpop.xlane.xlu0 %3017
      %v3027 = vlaneseq
      %v3028 = vand.u32 %v3027, 127
      %v3029 = vlaneseq
      %v3030 = vshrl.u32 %v3029, 7
      %v3031 = vsub.s32 %v3028, %v3030
      %v3032 = vrot.slane %v3004, %v3031
      %v3033 = vlaneseq
      %v3034 = vshrl.u32 %v3033, 7
      %v3035 = vsub.s32 %v3028, %v3034
      %v3036 = vrot.slane %v3006, %v3035
      %v3037 = vlaneseq
      %v3038 = vshrl.u32 %v3037, 7
      %v3039 = vsub.s32 %v3028, %v3038
      %v3040 = vrot.slane %v3008, %v3039
      %v3041 = vlaneseq
      %v3042 = vshrl.u32 %v3041, 7
      %v3043 = vsub.s32 %v3028, %v3042
      %v3044 = vrot.slane %v3010, %v3043
      %v3045 = vlaneseq
      %v3046 = vshrl.u32 %v3045, 7
      %v3047 = vsub.s32 %v3028, %v3046
      %v3048 = vrot.slane %v3012, %v3047
      %v3049 = vlaneseq
      %v3050 = vshrl.u32 %v3049, 7
      %v3051 = vsub.s32 %v3028, %v3050
      %v3052 = vrot.slane %v3014, %v3051
      %v3053 = vlaneseq
      %v3054 = vshrl.u32 %v3053, 7
      %v3055 = vsub.s32 %v3028, %v3054
      %v3056 = vrot.slane %v3016, %v3055
      %v3057 = vlaneseq
      %v3058 = vshrl.u32 %v3057, 7
      %v3059 = vsub.s32 %v3028, %v3058
      %v3060 = vrot.slane %v3018, %v3059
      %v3061 = vsel %vm1348, %v3036, %v3032
      %v3062 = vsel %vm1350, %v3040, %v3061
      %v3063 = vsel %vm1352, %v3044, %v3062
      %v3064 = vsel %vm1354, %v3048, %v3063
      %v3065 = vsel %vm1356, %v3052, %v3064
      %v3066 = vsel %vm1358, %v3056, %v3065
      %v3067 = vsel %vm1360, %v3060, %v3066
      %v3069 = vmul.f32 %v683, %v3067
      %vm3070 = vcmask 64512
      %v3071 = vsel %vm3070, %v3069, 0.0
      %3072 = vadd.xlane.f32.xlu0 %v3071
      %v3073 = vpop.xlane.xlu0 %3072
      %v3074 = vadd.f32 %v3073, 0.0
      %v3075 = vmul.f32 %v684, %v3067
      %v3076 = vsel %vm3070, %v3075, 0.0
      %3077 = vadd.xlane.f32.xlu0 %v3076
      %v3078 = vpop.xlane.xlu0 %3077
      %v3079 = vadd.f32 %v3078, 0.0
      %v3080 = vmul.f32 %v685, %v3067
      %v3081 = vsel %vm3070, %v3080, 0.0
      %3082 = vadd.xlane.f32.xlu0 %v3081
      %v3083 = vpop.xlane.xlu0 %3082
      %v3084 = vadd.f32 %v3083, 0.0
      %v3085 = vmul.f32 %v3074, 0.01
      %v3087 = vlaneseq
      %v3088 = vshrl.u32 %v3087, 7
      %v3089 = vsub.s32 %v3028, %v3088
      %v3090 = vrot.slane %v3085, %v3089
      %v3092 = vadd.f32 %v643, %v3090
      %v3093 = vmul.f32 %v3079, 0.01
      %v3095 = vlaneseq
      %v3096 = vshrl.u32 %v3095, 7
      %v3097 = vsub.s32 %v3028, %v3096
      %v3098 = vrot.slane %v3093, %v3097
      %v3100 = vadd.f32 %v643, %v3098
      %v3101 = vmul.f32 %v3084, 0.01
      %v3103 = vlaneseq
      %v3104 = vshrl.u32 %v3103, 7
      %v3105 = vsub.s32 %v3028, %v3104
      %v3106 = vrot.slane %v3101, %v3105
      %v3108 = vadd.f32 %v643, %v3106
      %v3109 = vlaneseq
      %v3110 = vshrl.u32 %v3109, 7
      %v3111 = vsub.s32 0, %v3110
      %v3112 = vrot.slane %v3092, %v3111
      %3114 = vbcast.lane.b32.xlu0 %v3112, 256
      %v3115 = vpop.permute.xlu0 %3114
      %v3116 = vsub.f32 %v3115, %v3112
      %v3117 = vlaneseq
      %v3118 = vshrl.u32 %v3117, 7
      %v3119 = vsub.s32 1, %v3118
      %v3120 = vrot.slane %v3100, %v3119
      %3122 = vbcast.lane.b32.xlu0 %v3120, 256
      %v3123 = vpop.permute.xlu0 %3122
      %v3124 = vsub.f32 %v3123, %v3120
      %v3125 = vlaneseq
      %v3126 = vshrl.u32 %v3125, 7
      %v3127 = vsub.s32 2, %v3126
      %v3128 = vrot.slane %v3108, %v3127
      %3130 = vbcast.lane.b32.xlu0 %v3128, 256
      %v3131 = vpop.permute.xlu0 %3130
      %v3132 = vsub.f32 %v3131, %v3128
      %v3133 = vmul.f32 %v3116, %v3116
      %v3134 = vmul.f32 %v3124, %v3124
      %v3135 = vadd.f32 %v3133, %v3134
      %v3136 = vmul.f32 %v3132, %v3132
      %v3137 = vadd.f32 %v3135, %v3136
      %v3138 = vadd.f32 %v3137, 1e-08
      %v3139 = vrsqrt.pop %v3138
      %v3140 = vmul.f32 %v3138, %v3139
      %vm3141 = vcmp.eq.f32.partialorder %v3138, inf
      %v3142 = vsel %vm3141, %v3138, %v3140
      %vm3143 = vcmp.eq.f32.partialorder %v3138, 0.0
      %v3144 = vand.u32 %v3138, 2147483648
      %v3145 = vsel %vm3143, %v3144, %v3142
      %v3146 = vadd.f32 %v3145, 1.0
      %v3147 = vrcp.pop %v3146
      %v3148 = vmul.f32 %v3116, %v3147
      %v3149 = vmul.f32 %v3124, %v3147
      %v3150 = vmul.f32 %v3132, %v3147
      %s3151 = scalar_lea.vmem %s2, 512
      %v3152 = vld [vmem:[%s3151] sm:$0xff]
      %v3153 = vld [vmem:[%s3151 + $0x8] sm:$0xff]
      %v3154 = vld [vmem:[%s3151 + $0x10] sm:$0xff]
      %v3155 = vld [vmem:[%s3151 + $0x18] sm:$0xff]
      %v3156 = vld [vmem:[%s3151 + $0x20] sm:$0xff]
      %v3157 = vld [vmem:[%s3151 + $0x28] sm:$0xff]
      %v3158 = vld [vmem:[%s3151 + $0x30] sm:$0xff]
      %v3159 = vld [vmem:[%s3151 + $0x38] sm:$0xff]
      %v3160 = vld [vmem:[%s3151 + $0x40] sm:$0xff]
      %v3161 = vld [vmem:[%s3151 + $0x48] sm:$0xff]
      %v3162 = vld [vmem:[%s3151 + $0x50] sm:$0xff]
      %v3163 = vld [vmem:[%s3151 + $0x58] sm:$0xff]
      %v3164 = vld [vmem:[%s3151 + $0x60] sm:$0xff]
      %v3165 = vld [vmem:[%s3151 + $0x68] sm:$0xff]
      %v3166 = vld [vmem:[%s3151 + $0x70] sm:$0xff]
      %v3167 = vld [vmem:[%s3151 + $0x78] sm:$0xff]
      %v3168 = vld [vmem:[%s3151 + $0x80] sm:$0xff]
      %v3169 = vld [vmem:[%s3151 + $0x88] sm:$0xff]
      %v3170 = vld [vmem:[%s3151 + $0x90] sm:$0xff]
      %v3171 = vld [vmem:[%s3151 + $0x98] sm:$0xff]
      %v3172 = vld [vmem:[%s3151 + $0xa0] sm:$0xff]
      %v3173 = vld [vmem:[%s3151 + $0xa8] sm:$0xff]
      %v3174 = vld [vmem:[%s3151 + $0xb0] sm:$0xff]
      %v3175 = vld [vmem:[%s3151 + $0xb8] sm:$0xff]
      %v3176 = vld [vmem:[%s3151 + $0xc0] sm:$0xff]
      %v3177 = vld [vmem:[%s3151 + $0xc8] sm:$0xff]
      %v3178 = vld [vmem:[%s3151 + $0xd0] sm:$0xff]
      %v3179 = vld [vmem:[%s3151 + $0xd8] sm:$0xff]
      %v3180 = vld [vmem:[%s3151 + $0xe0] sm:$0xff]
      %v3181 = vld [vmem:[%s3151 + $0xe8] sm:$0xff]
      %v3182 = vld [vmem:[%s3151 + $0xf0] sm:$0xff]
      %v3183 = vld [vmem:[%s3151 + $0xf8] sm:$0xff]
      %3184 = vmatprep.subr.mxu0 %v3153
      %3185 = vmatpush1.msra.mxu0 %v3152
      %3186 = vmatprep.subr.mxu0 %v3155
      %3187 = vmatpush1.msra.mxu0 %v3154
      %3188 = vmatprep.subr.mxu0 %v3157
      %3189 = vmatpush1.msra.mxu0 %v3156
      %3190 = vmatprep.subr.mxu0 %v3159
      %3191 = vmatpush1.msra.mxu0 %v3158
      %3192 = vmatprep.subr.mxu0 %v3161
      %3193 = vmatpush1.msra.mxu0 %v3160
      %3194 = vmatprep.subr.mxu0 %v3163
      %3195 = vmatpush1.msra.mxu0 %v3162
      %3196 = vmatprep.subr.mxu0 %v3165
      %3197 = vmatpush1.msra.mxu0 %v3164
      %3198 = vmatprep.subr.mxu0 %v3167
      %3199 = vmatpush1.msra.mxu0 %v3166
      %3200 = vmatprep.subr.mxu0 %v3169
      %3201 = vmatpush1.msra.mxu0 %v3168
      %3202 = vmatprep.subr.mxu0 %v3171
      %3203 = vmatpush1.msra.mxu0 %v3170
      %3204 = vmatprep.subr.mxu0 %v3173
      %3205 = vmatpush1.msra.mxu0 %v3172
      %3206 = vmatprep.subr.mxu0 %v3175
      %3207 = vmatpush1.msra.mxu0 %v3174
      %3208 = vmatprep.subr.mxu0 %v3177
      %3209 = vmatpush1.msra.mxu0 %v3176
      %3210 = vmatprep.subr.mxu0 %v3179
      %3211 = vmatpush1.msra.mxu0 %v3178
      %3212 = vmatprep.subr.mxu0 %v3181
      %3213 = vmatpush1.msra.mxu0 %v3180
      %3214 = vmatprep.subr.mxu0 %v3183
      %3215 = vmatpush1.msra.mxu0 %v3182
      %3216 = vmatprep.subr.mxu0 0.0
      %3217 = vmatpush1.msra.mxu0 0.0
      %3218 = vmatprep.subr.mxu0 0.0
      %3219 = vmatpush1.msra.mxu0 0.0
      %3220 = vmatprep.subr.mxu0 0.0
      %3221 = vmatpush1.msra.mxu0 0.0
      %3222 = vmatprep.subr.mxu0 0.0
      %3223 = vmatpush1.msra.mxu0 0.0
      %3224 = vmatprep.subr.mxu0 0.0
      %3225 = vmatpush1.msra.mxu0 0.0
      %3226 = vmatprep.subr.mxu0 0.0
      %3227 = vmatpush1.msra.mxu0 0.0
      %3228 = vmatprep.subr.mxu0 0.0
      %3229 = vmatpush1.msra.mxu0 0.0
      %3230 = vmatprep.subr.mxu0 0.0
      %3231 = vmatpush1.msra.mxu0 0.0
      %3232 = vmatprep.subr.mxu0 0.0
      %3233 = vmatpush1.msra.mxu0 0.0
      %3234 = vmatprep.subr.mxu0 0.0
      %3235 = vmatpush1.msra.mxu0 0.0
      %3236 = vmatprep.subr.mxu0 0.0
      %3237 = vmatpush1.msra.mxu0 0.0
      %3238 = vmatprep.subr.mxu0 0.0
      %3239 = vmatpush1.msra.mxu0 0.0
      %3240 = vmatprep.subr.mxu0 0.0
      %3241 = vmatpush1.msra.mxu0 0.0
      %3242 = vmatprep.subr.mxu0 0.0
      %3243 = vmatpush1.msra.mxu0 0.0
      %3244 = vmatprep.subr.mxu0 0.0
      %3245 = vmatpush1.msra.mxu0 0.0
      %3246 = vmatprep.subr.mxu0 0.0
      %3247 = vmatpush1.msra.mxu0 0.0
      %3248 = vmatprep.mubr.f32.mxu0 0.0
      %3249 = vmatmul.mubr.f32.gmra.mrb[0].mxu0 %v2485
      %v3250 = vpop.f32.mrb[0].mxu0
      %v3251 = vadd.f32 0.0, %v3250
      %v3252 = vpop.f32.mrb[0].mxu0
      %v3253 = vadd.f32 0.0, %v3252
      %3254 = vdwg.mxu0
      %v3256 = vcombine.high %v3251, %v3251
      %v3258 = vunpack.c.l.s4 1966171168
      %v3259 = vunpack.c.0.s8 %v3258
      %v3260 = vlaneseq
      %v3261 = vshrl.u32 %v3260, 7
      %v3262 = vsub.s32 %v3259, %v3261
      %v3263 = vrot.slane %v3251, %v3262
      %v3265 = vunpack.c.l.s4 1966171168
      %v3266 = vunpack.c.0.s8 %v3265
      %v3267 = vlaneseq
      %v3268 = vshrl.u32 %v3267, 7
      %v3269 = vsub.s32 %v3266, %v3268
      %v3270 = vrot.slane %v3256, %v3269
      %v3271 = vcombine.high %v3263, %v3263
      %v3272 = vcombine.high %v3270, %v3270
      %v3274 = vunpack.c.l.s4 1966171168
      %v3275 = vunpack.c.0.s8 %v3274
      %v3276 = vlaneseq
      %v3277 = vshrl.u32 %v3276, 7
      %v3278 = vsub.s32 %v3275, %v3277
      %v3279 = vrot.slane %v3263, %v3278
      %v3281 = vunpack.c.l.s4 1966171168
      %v3282 = vunpack.c.0.s8 %v3281
      %v3283 = vlaneseq
      %v3284 = vshrl.u32 %v3283, 7
      %v3285 = vsub.s32 %v3282, %v3284
      %v3286 = vrot.slane %v3270, %v3285
      %v3288 = vunpack.c.l.s4 1966171168
      %v3289 = vunpack.c.0.s8 %v3288
      %v3290 = vlaneseq
      %v3291 = vshrl.u32 %v3290, 7
      %v3292 = vsub.s32 %v3289, %v3291
      %v3293 = vrot.slane %v3271, %v3292
      %v3295 = vunpack.c.l.s4 1966171168
      %v3296 = vunpack.c.0.s8 %v3295
      %v3297 = vlaneseq
      %v3298 = vshrl.u32 %v3297, 7
      %v3299 = vsub.s32 %v3296, %v3298
      %v3300 = vrot.slane %v3272, %v3299
      %v3301 = vcombine.high %v3279, %v3279
      %v3302 = vcombine.high %v3286, %v3286
      %v3303 = vcombine.high %v3293, %v3293
      %v3304 = vcombine.high %v3300, %v3300
      %s3305 = scalar_lea.vmem %s3, 2
      %v3306 = vld [vmem:[%s3305] sm:$0x1]
      %s3307 = scalar_lea.vmem %s4, 2
      %v3308 = vld [vmem:[%s3307] sm:$0x1]
      %s3309 = scalar_lea.vmem %s5, 2
      %v3310 = vld [vmem:[%s3309] sm:$0x1]
      %v3311 = vlaneseq
      %v3312 = vshrl.u32 %v3311, 7
      %v3313 = vsub.s32 0, %v3312
      %v3314 = vrot.slane %v3279, %v3313
      %v3315 = vlaneseq
      %v3316 = vshrl.u32 %v3315, 7
      %v3317 = vsub.s32 0, %v3316
      %v3318 = vrot.slane %v3293, %v3317
      %v3319 = vlaneseq
      %v3320 = vshrl.u32 %v3319, 7
      %v3321 = vsub.s32 0, %v3320
      %v3322 = vrot.slane %v3301, %v3321
      %v3323 = vlaneseq
      %v3324 = vshrl.u32 %v3323, 7
      %v3325 = vsub.s32 0, %v3324
      %v3326 = vrot.slane %v3303, %v3325
      %v3327 = vlaneseq
      %v3328 = vshrl.u32 %v3327, 7
      %v3329 = vsub.s32 0, %v3328
      %v3330 = vrot.slane %v3286, %v3329
      %v3331 = vlaneseq
      %v3332 = vshrl.u32 %v3331, 7
      %v3333 = vsub.s32 0, %v3332
      %v3334 = vrot.slane %v3300, %v3333
      %v3335 = vlaneseq
      %v3336 = vshrl.u32 %v3335, 7
      %v3337 = vsub.s32 0, %v3336
      %v3338 = vrot.slane %v3302, %v3337
      %v3339 = vlaneseq
      %v3340 = vshrl.u32 %v3339, 7
      %v3341 = vsub.s32 0, %v3340
      %v3342 = vrot.slane %v3304, %v3341
      %v3351 = vadd.f32 %v3314, %v3253
      %v3352 = vadd.f32 %v3318, %v3253
      %v3353 = vadd.f32 %v3322, %v3253
      %v3354 = vadd.f32 %v3326, %v3253
      %v3355 = vadd.f32 %v3330, %v3253
      %v3356 = vadd.f32 %v3334, %v3253
      %v3357 = vadd.f32 %v3338, %v3253
      %v3358 = vadd.f32 %v3342, %v3253
      %v3359 = vlaneseq
      %v3360 = vshrl.u32 %v3359, 7
      %v3361 = vsub.s32 0, %v3360
      %v3362 = vrot.slane %v3137, %v3361
      %3364 = vbcast.lane.b32.xlu0 %v3362, 256
      %v3365 = vpop.permute.xlu0 %3364
      %v3366 = vlaneseq
      %v3367 = vshrl.u32 %v3366, 7
      %v3368 = vsub.s32 1, %v3367
      %v3369 = vrot.slane %v3137, %v3368
      %3371 = vbcast.lane.b32.xlu0 %v3369, 256
      %v3372 = vpop.permute.xlu0 %3371
      %v3373 = vlaneseq
      %v3374 = vshrl.u32 %v3373, 7
      %v3375 = vsub.s32 2, %v3374
      %v3376 = vrot.slane %v3137, %v3375
      %3378 = vbcast.lane.b32.xlu0 %v3376, 256
      %v3379 = vpop.permute.xlu0 %3378
      %v3380 = vlaneseq
      %v3381 = vshrl.u32 %v3380, 7
      %v3382 = vsub.s32 3, %v3381
      %v3383 = vrot.slane %v3137, %v3382
      %3385 = vbcast.lane.b32.xlu0 %v3383, 256
      %v3386 = vpop.permute.xlu0 %3385
      %v3387 = vlaneseq
      %v3388 = vshrl.u32 %v3387, 7
      %v3389 = vsub.s32 4, %v3388
      %v3390 = vrot.slane %v3137, %v3389
      %3392 = vbcast.lane.b32.xlu0 %v3390, 256
      %v3393 = vpop.permute.xlu0 %3392
      %v3394 = vlaneseq
      %v3395 = vshrl.u32 %v3394, 7
      %v3396 = vsub.s32 5, %v3395
      %v3397 = vrot.slane %v3137, %v3396
      %3399 = vbcast.lane.b32.xlu0 %v3397, 256
      %v3400 = vpop.permute.xlu0 %3399
      %v3401 = vlaneseq
      %v3402 = vshrl.u32 %v3401, 7
      %v3403 = vsub.s32 6, %v3402
      %v3404 = vrot.slane %v3137, %v3403
      %3406 = vbcast.lane.b32.xlu0 %v3404, 256
      %v3407 = vpop.permute.xlu0 %3406
      %v3408 = vlaneseq
      %v3409 = vshrl.u32 %v3408, 7
      %v3410 = vsub.s32 7, %v3409
      %v3411 = vrot.slane %v3137, %v3410
      %3413 = vbcast.lane.b32.xlu0 %v3411, 256
      %v3414 = vpop.permute.xlu0 %3413
      %v3416 = vlaneseq
      %v3417 = vshrl.u32 %v3416, 7
      %v3418 = vsub.s32 0, %v3417
      %v3419 = vrot.slane %v3306, %v3418
      %v3421 = vmul.f32 %v3365, %v3419
      %v3422 = vmul.f32 %v3372, %v3419
      %v3423 = vmul.f32 %v3379, %v3419
      %v3424 = vmul.f32 %v3386, %v3419
      %v3425 = vmul.f32 %v3393, %v3419
      %v3426 = vmul.f32 %v3400, %v3419
      %v3427 = vmul.f32 %v3407, %v3419
      %v3428 = vmul.f32 %v3414, %v3419
      %v3429 = vadd.f32 %v3351, %v3421
      %v3430 = vadd.f32 %v3352, %v3422
      %v3431 = vadd.f32 %v3353, %v3423
      %v3432 = vadd.f32 %v3354, %v3424
      %v3433 = vadd.f32 %v3355, %v3425
      %v3434 = vadd.f32 %v3356, %v3426
      %v3435 = vadd.f32 %v3357, %v3427
      %v3436 = vadd.f32 %v3358, %v3428
      %v3438 = vlaneseq
      %v3439 = vshrl.u32 %v3438, 7
      %v3440 = vsub.s32 0, %v3439
      %v3441 = vrot.slane %v3308, %v3440
      %v3443 = vmul.f32 %v896, %v3441
      %v3444 = vmul.f32 %v903, %v3441
      %v3445 = vmul.f32 %v910, %v3441
      %v3446 = vmul.f32 %v917, %v3441
      %v3447 = vmul.f32 %v924, %v3441
      %v3448 = vmul.f32 %v931, %v3441
      %v3449 = vmul.f32 %v938, %v3441
      %v3450 = vmul.f32 %v945, %v3441
      %v3451 = vadd.f32 %v3429, %v3443
      %v3452 = vadd.f32 %v3430, %v3444
      %v3453 = vadd.f32 %v3431, %v3445
      %v3454 = vadd.f32 %v3432, %v3446
      %v3455 = vadd.f32 %v3433, %v3447
      %v3456 = vadd.f32 %v3434, %v3448
      %v3457 = vadd.f32 %v3435, %v3449
      %v3458 = vadd.f32 %v3436, %v3450
      %v3460 = vlaneseq
      %v3461 = vshrl.u32 %v3460, 7
      %v3462 = vsub.s32 0, %v3461
      %v3463 = vrot.slane %v3310, %v3462
      %v3465 = vadd.f32 %v3451, %v3463
      %v3466 = vadd.f32 %v3452, %v3463
      %v3467 = vadd.f32 %v3453, %v3463
      %v3468 = vadd.f32 %v3454, %v3463
      %v3469 = vadd.f32 %v3455, %v3463
      %v3470 = vadd.f32 %v3456, %v3463
      %v3471 = vadd.f32 %v3457, %v3463
      %v3472 = vadd.f32 %v3458, %v3463
      %v3473 = vxor.u32 %v3465, 2147483648
      %v3474 = vxor.u32 %v3466, 2147483648
      %v3475 = vxor.u32 %v3467, 2147483648
      %v3476 = vxor.u32 %v3468, 2147483648
      %v3477 = vxor.u32 %v3469, 2147483648
      %v3478 = vxor.u32 %v3470, 2147483648
      %v3479 = vxor.u32 %v3471, 2147483648
      %v3480 = vxor.u32 %v3472, 2147483648
      %v3481 = vmul.f32 %v3473, 1.442695
      %v3482 = vpow.pop %v3481
      %v3483 = vmul.f32 %v3474, 1.442695
      %v3484 = vpow.pop %v3483
      %v3485 = vmul.f32 %v3475, 1.442695
      %v3486 = vpow.pop %v3485
      %v3487 = vmul.f32 %v3476, 1.442695
      %v3488 = vpow.pop %v3487
      %v3489 = vmul.f32 %v3477, 1.442695
      %v3490 = vpow.pop %v3489
      %v3491 = vmul.f32 %v3478, 1.442695
      %v3492 = vpow.pop %v3491
      %v3493 = vmul.f32 %v3479, 1.442695
      %v3494 = vpow.pop %v3493
      %v3495 = vmul.f32 %v3480, 1.442695
      %v3496 = vpow.pop %v3495
      %v3497 = vadd.f32 %v3482, 1.0
      %v3498 = vadd.f32 %v3484, 1.0
      %v3499 = vadd.f32 %v3486, 1.0
      %v3500 = vadd.f32 %v3488, 1.0
      %v3501 = vadd.f32 %v3490, 1.0
      %v3502 = vadd.f32 %v3492, 1.0
      %v3503 = vadd.f32 %v3494, 1.0
      %v3504 = vadd.f32 %v3496, 1.0
      %v3505 = vrcp.pop %v3497
      %v3506 = vmul.f32 1.0, %v3505
      %v3507 = vrcp.pop %v3498
      %v3508 = vmul.f32 1.0, %v3507
      %v3509 = vrcp.pop %v3499
      %v3510 = vmul.f32 1.0, %v3509
      %v3511 = vrcp.pop %v3500
      %v3512 = vmul.f32 1.0, %v3511
      %v3513 = vrcp.pop %v3501
      %v3514 = vmul.f32 1.0, %v3513
      %v3515 = vrcp.pop %v3502
      %v3516 = vmul.f32 1.0, %v3515
      %v3517 = vrcp.pop %v3503
      %v3518 = vmul.f32 1.0, %v3517
      %v3519 = vrcp.pop %v3504
      %v3520 = vmul.f32 1.0, %v3519
      %v3521 = vmul.f32 %v3465, %v3506
      %v3522 = vmul.f32 %v3466, %v3508
      %v3523 = vmul.f32 %v3467, %v3510
      %v3524 = vmul.f32 %v3468, %v3512
      %v3525 = vmul.f32 %v3469, %v3514
      %v3526 = vmul.f32 %v3470, %v3516
      %v3527 = vmul.f32 %v3471, %v3518
      %v3528 = vmul.f32 %v3472, %v3520
      %s3529 = scalar_lea.vmem %s6, 256
      %v3530 = vld [vmem:[%s3529] sm:$0xff]
      %v3531 = vld [vmem:[%s3529 + $0x8] sm:$0xff]
      %v3532 = vld [vmem:[%s3529 + $0x10] sm:$0xff]
      %v3533 = vld [vmem:[%s3529 + $0x18] sm:$0xff]
      %v3534 = vld [vmem:[%s3529 + $0x20] sm:$0xff]
      %v3535 = vld [vmem:[%s3529 + $0x28] sm:$0xff]
      %v3536 = vld [vmem:[%s3529 + $0x30] sm:$0xff]
      %v3537 = vld [vmem:[%s3529 + $0x38] sm:$0xff]
      %v3538 = vld [vmem:[%s3529 + $0x40] sm:$0xff]
      %v3539 = vld [vmem:[%s3529 + $0x48] sm:$0xff]
      %v3540 = vld [vmem:[%s3529 + $0x50] sm:$0xff]
      %v3541 = vld [vmem:[%s3529 + $0x58] sm:$0xff]
      %v3542 = vld [vmem:[%s3529 + $0x60] sm:$0xff]
      %v3543 = vld [vmem:[%s3529 + $0x68] sm:$0xff]
      %v3544 = vld [vmem:[%s3529 + $0x70] sm:$0xff]
      %v3545 = vld [vmem:[%s3529 + $0x78] sm:$0xff]
      %s3546 = scalar_lea.vmem %s7, 2
      %v3547 = vld [vmem:[%s3546] sm:$0x1]
      %v3549 = vlaneseq
      %v3550 = vshrl.u32 %v3549, 7
      %v3551 = vsub.s32 0, %v3550
      %v3552 = vrot.slane %v3547, %v3551
      %3554 = vmatprep.subr.mxu0 0.0
      %3555 = vmatpush1.msra.mxu0 %v3530
      %3556 = vmatprep.subr.mxu0 0.0
      %3557 = vmatpush1.msra.mxu0 %v3531
      %3558 = vmatprep.subr.mxu0 0.0
      %3559 = vmatpush1.msra.mxu0 %v3532
      %3560 = vmatprep.subr.mxu0 0.0
      %3561 = vmatpush1.msra.mxu0 %v3533
      %3562 = vmatprep.subr.mxu0 0.0
      %3563 = vmatpush1.msra.mxu0 %v3534
      %3564 = vmatprep.subr.mxu0 0.0
      %3565 = vmatpush1.msra.mxu0 %v3535
      %3566 = vmatprep.subr.mxu0 0.0
      %3567 = vmatpush1.msra.mxu0 %v3536
      %3568 = vmatprep.subr.mxu0 0.0
      %3569 = vmatpush1.msra.mxu0 %v3537
      %3570 = vmatprep.subr.mxu0 0.0
      %3571 = vmatpush1.msra.mxu0 %v3538
      %3572 = vmatprep.subr.mxu0 0.0
      %3573 = vmatpush1.msra.mxu0 %v3539
      %3574 = vmatprep.subr.mxu0 0.0
      %3575 = vmatpush1.msra.mxu0 %v3540
      %3576 = vmatprep.subr.mxu0 0.0
      %3577 = vmatpush1.msra.mxu0 %v3541
      %3578 = vmatprep.subr.mxu0 0.0
      %3579 = vmatpush1.msra.mxu0 %v3542
      %3580 = vmatprep.subr.mxu0 0.0
      %3581 = vmatpush1.msra.mxu0 %v3543
      %3582 = vmatprep.subr.mxu0 0.0
      %3583 = vmatpush1.msra.mxu0 %v3544
      %3584 = vmatprep.subr.mxu0 0.0
      %3585 = vmatpush1.msra.mxu0 %v3545
      %3586 = vmatprep.subr.mxu0 0.0
      %3587 = vmatpush1.msra.mxu0 0.0
      %3588 = vmatprep.subr.mxu0 0.0
      %3589 = vmatpush1.msra.mxu0 0.0
      %3590 = vmatprep.subr.mxu0 0.0
      %3591 = vmatpush1.msra.mxu0 0.0
      %3592 = vmatprep.subr.mxu0 0.0
      %3593 = vmatpush1.msra.mxu0 0.0
      %3594 = vmatprep.subr.mxu0 0.0
      %3595 = vmatpush1.msra.mxu0 0.0
      %3596 = vmatprep.subr.mxu0 0.0
      %3597 = vmatpush1.msra.mxu0 0.0
      %3598 = vmatprep.subr.mxu0 0.0
      %3599 = vmatpush1.msra.mxu0 0.0
      %3600 = vmatprep.subr.mxu0 0.0
      %3601 = vmatpush1.msra.mxu0 0.0
      %3602 = vmatprep.subr.mxu0 0.0
      %3603 = vmatpush1.msra.mxu0 0.0
      %3604 = vmatprep.subr.mxu0 0.0
      %3605 = vmatpush1.msra.mxu0 0.0
      %3606 = vmatprep.subr.mxu0 0.0
      %3607 = vmatpush1.msra.mxu0 0.0
      %3608 = vmatprep.subr.mxu0 0.0
      %3609 = vmatpush1.msra.mxu0 0.0
      %3610 = vmatprep.subr.mxu0 0.0
      %3611 = vmatpush1.msra.mxu0 0.0
      %3612 = vmatprep.subr.mxu0 0.0
      %3613 = vmatpush1.msra.mxu0 0.0
      %3614 = vmatprep.subr.mxu0 0.0
      %3615 = vmatpush1.msra.mxu0 0.0
      %3616 = vmatprep.subr.mxu0 0.0
      %3617 = vmatpush1.msra.mxu0 0.0
      %3618 = vmatprep.mubr.f32.mxu0 0.0
      %3619 = vmatmul.mubr.f32.gmra.mrb[0].mxu0 %v3521
      %v3620 = vpop.f32.mrb[0].mxu0
      %v3621 = vadd.f32 %v3552, %v3620
      %v3622 = vpop.f32.mrb[0].mxu0
      %3623 = vmatprep.mubr.f32.mxu0 0.0
      %3624 = vmatmul.mubr.f32.gmra.mrb[0].mxu0 %v3522
      %v3625 = vpop.f32.mrb[0].mxu0
      %v3626 = vadd.f32 %v3552, %v3625
      %v3627 = vpop.f32.mrb[0].mxu0
      %3628 = vmatprep.mubr.f32.mxu0 0.0
      %3629 = vmatmul.mubr.f32.gmra.mrb[0].mxu0 %v3523
      %v3630 = vpop.f32.mrb[0].mxu0
      %v3631 = vadd.f32 %v3552, %v3630
      %v3632 = vpop.f32.mrb[0].mxu0
      %3633 = vmatprep.mubr.f32.mxu0 0.0
      %3634 = vmatmul.mubr.f32.gmra.mrb[0].mxu0 %v3524
      %v3635 = vpop.f32.mrb[0].mxu0
      %v3636 = vadd.f32 %v3552, %v3635
      %v3637 = vpop.f32.mrb[0].mxu0
      %3638 = vmatprep.mubr.f32.mxu0 0.0
      %3639 = vmatmul.mubr.f32.gmra.mrb[0].mxu0 %v3525
      %v3640 = vpop.f32.mrb[0].mxu0
      %v3641 = vadd.f32 %v3552, %v3640
      %v3642 = vpop.f32.mrb[0].mxu0
      %3643 = vmatprep.mubr.f32.mxu0 0.0
      %3644 = vmatmul.mubr.f32.gmra.mrb[0].mxu0 %v3526
      %v3645 = vpop.f32.mrb[0].mxu0
      %v3646 = vadd.f32 %v3552, %v3645
      %v3647 = vpop.f32.mrb[0].mxu0
      %3648 = vmatprep.mubr.f32.mxu0 0.0
      %3649 = vmatmul.mubr.f32.gmra.mrb[0].mxu0 %v3527
      %v3650 = vpop.f32.mrb[0].mxu0
      %v3651 = vadd.f32 %v3552, %v3650
      %v3652 = vpop.f32.mrb[0].mxu0
      %3653 = vmatprep.mubr.f32.mxu0 0.0
      %3654 = vmatmul.mubr.f32.gmra.mrb[0].mxu0 %v3528
      %v3655 = vpop.f32.mrb[0].mxu0
      %v3656 = vadd.f32 %v3552, %v3655
      %v3657 = vpop.f32.mrb[0].mxu0
      %3658 = vdwg.mxu0
      %v3659 = vxor.u32 %v3621, 2147483648
      %v3660 = vxor.u32 %v3626, 2147483648
      %v3661 = vxor.u32 %v3631, 2147483648
      %v3662 = vxor.u32 %v3636, 2147483648
      %v3663 = vxor.u32 %v3641, 2147483648
      %v3664 = vxor.u32 %v3646, 2147483648
      %v3665 = vxor.u32 %v3651, 2147483648
      %v3666 = vxor.u32 %v3656, 2147483648
      %v3667 = vmul.f32 %v3659, 1.442695
      %v3668 = vpow.pop %v3667
      %v3669 = vmul.f32 %v3660, 1.442695
      %v3670 = vpow.pop %v3669
      %v3671 = vmul.f32 %v3661, 1.442695
      %v3672 = vpow.pop %v3671
      %v3673 = vmul.f32 %v3662, 1.442695
      %v3674 = vpow.pop %v3673
      %v3675 = vmul.f32 %v3663, 1.442695
      %v3676 = vpow.pop %v3675
      %v3677 = vmul.f32 %v3664, 1.442695
      %v3678 = vpow.pop %v3677
      %v3679 = vmul.f32 %v3665, 1.442695
      %v3680 = vpow.pop %v3679
      %v3681 = vmul.f32 %v3666, 1.442695
      %v3682 = vpow.pop %v3681
      %v3683 = vadd.f32 %v3668, 1.0
      %v3684 = vadd.f32 %v3670, 1.0
      %v3685 = vadd.f32 %v3672, 1.0
      %v3686 = vadd.f32 %v3674, 1.0
      %v3687 = vadd.f32 %v3676, 1.0
      %v3688 = vadd.f32 %v3678, 1.0
      %v3689 = vadd.f32 %v3680, 1.0
      %v3690 = vadd.f32 %v3682, 1.0
      %v3691 = vrcp.pop %v3683
      %v3692 = vmul.f32 1.0, %v3691
      %v3693 = vrcp.pop %v3684
      %v3694 = vmul.f32 1.0, %v3693
      %v3695 = vrcp.pop %v3685
      %v3696 = vmul.f32 1.0, %v3695
      %v3697 = vrcp.pop %v3686
      %v3698 = vmul.f32 1.0, %v3697
      %v3699 = vrcp.pop %v3687
      %v3700 = vmul.f32 1.0, %v3699
      %v3701 = vrcp.pop %v3688
      %v3702 = vmul.f32 1.0, %v3701
      %v3703 = vrcp.pop %v3689
      %v3704 = vmul.f32 1.0, %v3703
      %v3705 = vrcp.pop %v3690
      %v3706 = vmul.f32 1.0, %v3705
      %v3707 = vmul.f32 %v3621, %v3692
      %v3708 = vmul.f32 %v3626, %v3694
      %v3709 = vmul.f32 %v3631, %v3696
      %v3710 = vmul.f32 %v3636, %v3698
      %v3711 = vmul.f32 %v3641, %v3700
      %v3712 = vmul.f32 %v3646, %v3702
      %v3713 = vmul.f32 %v3651, %v3704
      %v3714 = vmul.f32 %v3656, %v3706
      %v3715 = vrot.slane %v3707, 4
      %v3716 = vadd.f32 %v3707, %v3715
      %v3717 = vrot.slane %v3716, 2
      %v3718 = vadd.f32 %v3716, %v3717
      %v3719 = vrot.slane %v3718, 1
      %v3720 = vadd.f32 %v3718, %v3719
      %v3721 = vrot.slane %v3708, 4
      %v3722 = vadd.f32 %v3708, %v3721
      %v3723 = vrot.slane %v3722, 2
      %v3724 = vadd.f32 %v3722, %v3723
      %v3725 = vrot.slane %v3724, 1
      %v3726 = vadd.f32 %v3724, %v3725
      %v3727 = vrot.slane %v3709, 4
      %v3728 = vadd.f32 %v3709, %v3727
      %v3729 = vrot.slane %v3728, 2
      %v3730 = vadd.f32 %v3728, %v3729
      %v3731 = vrot.slane %v3730, 1
      %v3732 = vadd.f32 %v3730, %v3731
      %v3733 = vrot.slane %v3710, 4
      %v3734 = vadd.f32 %v3710, %v3733
      %v3735 = vrot.slane %v3734, 2
      %v3736 = vadd.f32 %v3734, %v3735
      %v3737 = vrot.slane %v3736, 1
      %v3738 = vadd.f32 %v3736, %v3737
      %v3739 = vrot.slane %v3711, 4
      %v3740 = vadd.f32 %v3711, %v3739
      %v3741 = vrot.slane %v3740, 2
      %v3742 = vadd.f32 %v3740, %v3741
      %v3743 = vrot.slane %v3742, 1
      %v3744 = vadd.f32 %v3742, %v3743
      %v3745 = vrot.slane %v3712, 4
      %v3746 = vadd.f32 %v3712, %v3745
      %v3747 = vrot.slane %v3746, 2
      %v3748 = vadd.f32 %v3746, %v3747
      %v3749 = vrot.slane %v3748, 1
      %v3750 = vadd.f32 %v3748, %v3749
      %v3751 = vrot.slane %v3713, 4
      %v3752 = vadd.f32 %v3713, %v3751
      %v3753 = vrot.slane %v3752, 2
      %v3754 = vadd.f32 %v3752, %v3753
      %v3755 = vrot.slane %v3754, 1
      %v3756 = vadd.f32 %v3754, %v3755
      %v3757 = vrot.slane %v3714, 4
      %v3758 = vadd.f32 %v3714, %v3757
      %v3759 = vrot.slane %v3758, 2
      %v3760 = vadd.f32 %v3758, %v3759
      %v3761 = vrot.slane %v3760, 1
      %v3762 = vadd.f32 %v3760, %v3761
      %v3763 = vadd.f32 %v3720, 0.0
      %v3764 = vadd.f32 %v3726, 0.0
      %v3765 = vadd.f32 %v3732, 0.0
      %v3766 = vadd.f32 %v3738, 0.0
      %v3767 = vadd.f32 %v3744, 0.0
      %v3768 = vadd.f32 %v3750, 0.0
      %v3769 = vadd.f32 %v3756, 0.0
      %v3770 = vadd.f32 %v3762, 0.0
      %v3771 = vmul.f32 %v3763, 0.01
      %v3772 = vmul.f32 %v3764, 0.01
      %v3773 = vmul.f32 %v3765, 0.01
      %v3774 = vmul.f32 %v3766, 0.01
      %v3775 = vmul.f32 %v3767, 0.01
      %v3776 = vmul.f32 %v3768, 0.01
      %v3777 = vmul.f32 %v3769, 0.01
      %v3778 = vmul.f32 %v3770, 0.01
      %s3779 = scalar_lea.vmem %s8, 256
      %v3780 = vld [vmem:[%s3779] sm:$0xff]
      %v3781 = vld [vmem:[%s3779 + $0x8] sm:$0xff]
      %v3782 = vld [vmem:[%s3779 + $0x10] sm:$0xff]
      %v3783 = vld [vmem:[%s3779 + $0x18] sm:$0xff]
      %v3784 = vld [vmem:[%s3779 + $0x20] sm:$0xff]
      %v3785 = vld [vmem:[%s3779 + $0x28] sm:$0xff]
      %v3786 = vld [vmem:[%s3779 + $0x30] sm:$0xff]
      %v3787 = vld [vmem:[%s3779 + $0x38] sm:$0xff]
      %v3788 = vld [vmem:[%s3779 + $0x40] sm:$0xff]
      %v3789 = vld [vmem:[%s3779 + $0x48] sm:$0xff]
      %v3790 = vld [vmem:[%s3779 + $0x50] sm:$0xff]
      %v3791 = vld [vmem:[%s3779 + $0x58] sm:$0xff]
      %v3792 = vld [vmem:[%s3779 + $0x60] sm:$0xff]
      %v3793 = vld [vmem:[%s3779 + $0x68] sm:$0xff]
      %v3794 = vld [vmem:[%s3779 + $0x70] sm:$0xff]
      %v3795 = vld [vmem:[%s3779 + $0x78] sm:$0xff]
      %s3796 = scalar_lea.vmem %s9, 256
      %v3797 = vld [vmem:[%s3796] sm:$0xff]
      %v3798 = vld [vmem:[%s3796 + $0x8] sm:$0xff]
      %v3799 = vld [vmem:[%s3796 + $0x10] sm:$0xff]
      %v3800 = vld [vmem:[%s3796 + $0x18] sm:$0xff]
      %v3801 = vld [vmem:[%s3796 + $0x20] sm:$0xff]
      %v3802 = vld [vmem:[%s3796 + $0x28] sm:$0xff]
      %v3803 = vld [vmem:[%s3796 + $0x30] sm:$0xff]
      %v3804 = vld [vmem:[%s3796 + $0x38] sm:$0xff]
      %v3805 = vld [vmem:[%s3796 + $0x40] sm:$0xff]
      %v3806 = vld [vmem:[%s3796 + $0x48] sm:$0xff]
      %v3807 = vld [vmem:[%s3796 + $0x50] sm:$0xff]
      %v3808 = vld [vmem:[%s3796 + $0x58] sm:$0xff]
      %v3809 = vld [vmem:[%s3796 + $0x60] sm:$0xff]
      %v3810 = vld [vmem:[%s3796 + $0x68] sm:$0xff]
      %v3811 = vld [vmem:[%s3796 + $0x70] sm:$0xff]
      %v3812 = vld [vmem:[%s3796 + $0x78] sm:$0xff]
      %v3821 = vsel %vm1348, %v3772, %v3771
      %v3822 = vsel %vm1350, %v3773, %v3821
      %v3823 = vsel %vm1352, %v3774, %v3822
      %v3824 = vsel %vm1354, %v3775, %v3823
      %v3825 = vsel %vm1356, %v3776, %v3824
      %v3826 = vsel %vm1358, %v3777, %v3825
      %v3827 = vsel %vm1360, %v3778, %v3826
      %3829 = vmatprep.subr.mxu0 0.0
      %3830 = vmatpush1.msra.mxu0 %v3797
      %3831 = vmatprep.subr.mxu0 0.0
      %3832 = vmatpush1.msra.mxu0 %v3798
      %3833 = vmatprep.subr.mxu0 0.0
      %3834 = vmatpush1.msra.mxu0 %v3799
      %3835 = vmatprep.subr.mxu0 0.0
      %3836 = vmatpush1.msra.mxu0 %v3800
      %3837 = vmatprep.subr.mxu0 0.0
      %3838 = vmatpush1.msra.mxu0 %v3801
      %3839 = vmatprep.subr.mxu0 0.0
      %3840 = vmatpush1.msra.mxu0 %v3802
      %3841 = vmatprep.subr.mxu0 0.0
      %3842 = vmatpush1.msra.mxu0 %v3803
      %3843 = vmatprep.subr.mxu0 0.0
      %3844 = vmatpush1.msra.mxu0 %v3804
      %3845 = vmatprep.subr.mxu0 0.0
      %3846 = vmatpush1.msra.mxu0 %v3805
      %3847 = vmatprep.subr.mxu0 0.0
      %3848 = vmatpush1.msra.mxu0 %v3806
      %3849 = vmatprep.subr.mxu0 0.0
      %3850 = vmatpush1.msra.mxu0 %v3807
      %3851 = vmatprep.subr.mxu0 0.0
      %3852 = vmatpush1.msra.mxu0 %v3808
      %3853 = vmatprep.subr.mxu0 0.0
      %3854 = vmatpush1.msra.mxu0 %v3809
      %3855 = vmatprep.subr.mxu0 0.0
      %3856 = vmatpush1.msra.mxu0 %v3810
      %3857 = vmatprep.subr.mxu0 0.0
      %3858 = vmatpush1.msra.mxu0 %v3811
      %3859 = vmatprep.subr.mxu0 0.0
      %3860 = vmatpush1.msra.mxu0 %v3812
      %3861 = vmatprep.subr.mxu0 0.0
      %3862 = vmatpush1.msra.mxu0 0.0
      %3863 = vmatprep.subr.mxu0 0.0
      %3864 = vmatpush1.msra.mxu0 0.0
      %3865 = vmatprep.subr.mxu0 0.0
      %3866 = vmatpush1.msra.mxu0 0.0
      %3867 = vmatprep.subr.mxu0 0.0
      %3868 = vmatpush1.msra.mxu0 0.0
      %3869 = vmatprep.subr.mxu0 0.0
      %3870 = vmatpush1.msra.mxu0 0.0
      %3871 = vmatprep.subr.mxu0 0.0
      %3872 = vmatpush1.msra.mxu0 0.0
      %3873 = vmatprep.subr.mxu0 0.0
      %3874 = vmatpush1.msra.mxu0 0.0
      %3875 = vmatprep.subr.mxu0 0.0
      %3876 = vmatpush1.msra.mxu0 0.0
      %3877 = vmatprep.subr.mxu0 0.0
      %3878 = vmatpush1.msra.mxu0 0.0
      %3879 = vmatprep.subr.mxu0 0.0
      %3880 = vmatpush1.msra.mxu0 0.0
      %3881 = vmatprep.subr.mxu0 0.0
      %3882 = vmatpush1.msra.mxu0 0.0
      %3883 = vmatprep.subr.mxu0 0.0
      %3884 = vmatpush1.msra.mxu0 0.0
      %3885 = vmatprep.subr.mxu0 0.0
      %3886 = vmatpush1.msra.mxu0 0.0
      %3887 = vmatprep.subr.mxu0 0.0
      %3888 = vmatpush1.msra.mxu0 0.0
      %3889 = vmatprep.subr.mxu0 0.0
      %3890 = vmatpush1.msra.mxu0 0.0
      %3891 = vmatprep.subr.mxu0 0.0
      %3892 = vmatpush1.msra.mxu0 0.0
      %3893 = vmatprep.mubr.f32.mxu0 0.0
      %3894 = vmatmul.mubr.f32.gmra.mrb[0].mxu0 %v3827
      %v3895 = vpop.f32.mrb[0].mxu0
      %v3896 = vadd.f32 0.0, %v3895
      %v3897 = vpop.f32.mrb[0].mxu0
      %3898 = vdwg.mxu0
      %3899 = vmatprep.subr.mxu0 0.0
      %3900 = vmatpush1.msra.mxu0 %v3780
      %3901 = vmatprep.subr.mxu0 0.0
      %3902 = vmatpush1.msra.mxu0 %v3781
      %3903 = vmatprep.subr.mxu0 0.0
      %3904 = vmatpush1.msra.mxu0 %v3782
      %3905 = vmatprep.subr.mxu0 0.0
      %3906 = vmatpush1.msra.mxu0 %v3783
      %3907 = vmatprep.subr.mxu0 0.0
      %3908 = vmatpush1.msra.mxu0 %v3784
      %3909 = vmatprep.subr.mxu0 0.0
      %3910 = vmatpush1.msra.mxu0 %v3785
      %3911 = vmatprep.subr.mxu0 0.0
      %3912 = vmatpush1.msra.mxu0 %v3786
      %3913 = vmatprep.subr.mxu0 0.0
      %3914 = vmatpush1.msra.mxu0 %v3787
      %3915 = vmatprep.subr.mxu0 0.0
      %3916 = vmatpush1.msra.mxu0 %v3788
      %3917 = vmatprep.subr.mxu0 0.0
      %3918 = vmatpush1.msra.mxu0 %v3789
      %3919 = vmatprep.subr.mxu0 0.0
      %3920 = vmatpush1.msra.mxu0 %v3790
      %3921 = vmatprep.subr.mxu0 0.0
      %3922 = vmatpush1.msra.mxu0 %v3791
      %3923 = vmatprep.subr.mxu0 0.0
      %3924 = vmatpush1.msra.mxu0 %v3792
      %3925 = vmatprep.subr.mxu0 0.0
      %3926 = vmatpush1.msra.mxu0 %v3793
      %3927 = vmatprep.subr.mxu0 0.0
      %3928 = vmatpush1.msra.mxu0 %v3794
      %3929 = vmatprep.subr.mxu0 0.0
      %3930 = vmatpush1.msra.mxu0 %v3795
      %3931 = vmatprep.subr.mxu0 0.0
      %3932 = vmatpush1.msra.mxu0 0.0
      %3933 = vmatprep.subr.mxu0 0.0
      %3934 = vmatpush1.msra.mxu0 0.0
      %3935 = vmatprep.subr.mxu0 0.0
      %3936 = vmatpush1.msra.mxu0 0.0
      %3937 = vmatprep.subr.mxu0 0.0
      %3938 = vmatpush1.msra.mxu0 0.0
      %3939 = vmatprep.subr.mxu0 0.0
      %3940 = vmatpush1.msra.mxu0 0.0
      %3941 = vmatprep.subr.mxu0 0.0
      %3942 = vmatpush1.msra.mxu0 0.0
      %3943 = vmatprep.subr.mxu0 0.0
      %3944 = vmatpush1.msra.mxu0 0.0
      %3945 = vmatprep.subr.mxu0 0.0
      %3946 = vmatpush1.msra.mxu0 0.0
      %3947 = vmatprep.subr.mxu0 0.0
      %3948 = vmatpush1.msra.mxu0 0.0
      %3949 = vmatprep.subr.mxu0 0.0
      %3950 = vmatpush1.msra.mxu0 0.0
      %3951 = vmatprep.subr.mxu0 0.0
      %3952 = vmatpush1.msra.mxu0 0.0
      %3953 = vmatprep.subr.mxu0 0.0
      %3954 = vmatpush1.msra.mxu0 0.0
      %3955 = vmatprep.subr.mxu0 0.0
      %3956 = vmatpush1.msra.mxu0 0.0
      %3957 = vmatprep.subr.mxu0 0.0
      %3958 = vmatpush1.msra.mxu0 0.0
      %3959 = vmatprep.subr.mxu0 0.0
      %3960 = vmatpush1.msra.mxu0 0.0
      %3961 = vmatprep.subr.mxu0 0.0
      %3962 = vmatpush1.msra.mxu0 0.0
      %3963 = vmatprep.mubr.f32.mxu0 0.0
      %3964 = vmatmul.mubr.f32.gmra.mrb[0].mxu0 %v2485
      %v3965 = vpop.f32.mrb[0].mxu0
      %v3966 = vadd.f32 %v3896, %v3965
      %v3967 = vpop.f32.mrb[0].mxu0
      %3968 = vdwg.mxu0
      %s3969 = scalar_lea.vmem %s10, 2
      %v3970 = vld [vmem:[%s3969] sm:$0x1]
      %v3972 = vlaneseq
      %v3973 = vshrl.u32 %v3972, 7
      %v3974 = vsub.s32 0, %v3973
      %v3975 = vrot.slane %v3970, %v3974
      %v3977 = vadd.f32 %v3966, %v3975
      %v3978 = vxor.u32 %v3977, 2147483648
      %v3979 = vmul.f32 %v3978, 1.442695
      %v3980 = vpow.pop %v3979
      %v3981 = vadd.f32 %v3980, 1.0
      %v3982 = vrcp.pop %v3981
      %v3983 = vmul.f32 1.0, %v3982
      %v3984 = vmul.f32 %v3977, %v3983
      %s3985 = scalar_lea.vmem %s11, 256
      %v3986 = vld [vmem:[%s3985] sm:$0xff]
      %v3987 = vld [vmem:[%s3985 + $0x8] sm:$0xff]
      %v3988 = vld [vmem:[%s3985 + $0x10] sm:$0xff]
      %v3989 = vld [vmem:[%s3985 + $0x18] sm:$0xff]
      %v3990 = vld [vmem:[%s3985 + $0x20] sm:$0xff]
      %v3991 = vld [vmem:[%s3985 + $0x28] sm:$0xff]
      %v3992 = vld [vmem:[%s3985 + $0x30] sm:$0xff]
      %v3993 = vld [vmem:[%s3985 + $0x38] sm:$0xff]
      %v3994 = vld [vmem:[%s3985 + $0x40] sm:$0xff]
      %v3995 = vld [vmem:[%s3985 + $0x48] sm:$0xff]
      %v3996 = vld [vmem:[%s3985 + $0x50] sm:$0xff]
      %v3997 = vld [vmem:[%s3985 + $0x58] sm:$0xff]
      %v3998 = vld [vmem:[%s3985 + $0x60] sm:$0xff]
      %v3999 = vld [vmem:[%s3985 + $0x68] sm:$0xff]
      %v4000 = vld [vmem:[%s3985 + $0x70] sm:$0xff]
      %v4001 = vld [vmem:[%s3985 + $0x78] sm:$0xff]
      %s4002 = scalar_lea.vmem %s12, 2
      %v4003 = vld [vmem:[%s4002] sm:$0x1]
      %v4005 = vlaneseq
      %v4006 = vshrl.u32 %v4005, 7
      %v4007 = vsub.s32 0, %v4006
      %v4008 = vrot.slane %v4003, %v4007
      %4010 = vmatprep.subr.mxu0 0.0
      %4011 = vmatpush1.msra.mxu0 %v3986
      %4012 = vmatprep.subr.mxu0 0.0
      %4013 = vmatpush1.msra.mxu0 %v3987
      %4014 = vmatprep.subr.mxu0 0.0
      %4015 = vmatpush1.msra.mxu0 %v3988
      %4016 = vmatprep.subr.mxu0 0.0
      %4017 = vmatpush1.msra.mxu0 %v3989
      %4018 = vmatprep.subr.mxu0 0.0
      %4019 = vmatpush1.msra.mxu0 %v3990
      %4020 = vmatprep.subr.mxu0 0.0
      %4021 = vmatpush1.msra.mxu0 %v3991
      %4022 = vmatprep.subr.mxu0 0.0
      %4023 = vmatpush1.msra.mxu0 %v3992
      %4024 = vmatprep.subr.mxu0 0.0
      %4025 = vmatpush1.msra.mxu0 %v3993
      %4026 = vmatprep.subr.mxu0 0.0
      %4027 = vmatpush1.msra.mxu0 %v3994
      %4028 = vmatprep.subr.mxu0 0.0
      %4029 = vmatpush1.msra.mxu0 %v3995
      %4030 = vmatprep.subr.mxu0 0.0
      %4031 = vmatpush1.msra.mxu0 %v3996
      %4032 = vmatprep.subr.mxu0 0.0
      %4033 = vmatpush1.msra.mxu0 %v3997
      %4034 = vmatprep.subr.mxu0 0.0
      %4035 = vmatpush1.msra.mxu0 %v3998
      %4036 = vmatprep.subr.mxu0 0.0
      %4037 = vmatpush1.msra.mxu0 %v3999
      %4038 = vmatprep.subr.mxu0 0.0
      %4039 = vmatpush1.msra.mxu0 %v4000
      %4040 = vmatprep.subr.mxu0 0.0
      %4041 = vmatpush1.msra.mxu0 %v4001
      %4042 = vmatprep.subr.mxu0 0.0
      %4043 = vmatpush1.msra.mxu0 0.0
      %4044 = vmatprep.subr.mxu0 0.0
      %4045 = vmatpush1.msra.mxu0 0.0
      %4046 = vmatprep.subr.mxu0 0.0
      %4047 = vmatpush1.msra.mxu0 0.0
      %4048 = vmatprep.subr.mxu0 0.0
      %4049 = vmatpush1.msra.mxu0 0.0
      %4050 = vmatprep.subr.mxu0 0.0
      %4051 = vmatpush1.msra.mxu0 0.0
      %4052 = vmatprep.subr.mxu0 0.0
      %4053 = vmatpush1.msra.mxu0 0.0
      %4054 = vmatprep.subr.mxu0 0.0
      %4055 = vmatpush1.msra.mxu0 0.0
      %4056 = vmatprep.subr.mxu0 0.0
      %4057 = vmatpush1.msra.mxu0 0.0
      %4058 = vmatprep.subr.mxu0 0.0
      %4059 = vmatpush1.msra.mxu0 0.0
      %4060 = vmatprep.subr.mxu0 0.0
      %4061 = vmatpush1.msra.mxu0 0.0
      %4062 = vmatprep.subr.mxu0 0.0
      %4063 = vmatpush1.msra.mxu0 0.0
      %4064 = vmatprep.subr.mxu0 0.0
      %4065 = vmatpush1.msra.mxu0 0.0
      %4066 = vmatprep.subr.mxu0 0.0
      %4067 = vmatpush1.msra.mxu0 0.0
      %4068 = vmatprep.subr.mxu0 0.0
      %4069 = vmatpush1.msra.mxu0 0.0
      %4070 = vmatprep.subr.mxu0 0.0
      %4071 = vmatpush1.msra.mxu0 0.0
      %4072 = vmatprep.subr.mxu0 0.0
      %4073 = vmatpush1.msra.mxu0 0.0
      %4074 = vmatprep.mubr.f32.mxu0 0.0
      %4075 = vmatmul.mubr.f32.gmra.mrb[0].mxu0 %v3984
      %v4076 = vpop.f32.mrb[0].mxu0
      %v4077 = vadd.f32 %v4008, %v4076
      %v4078 = vpop.f32.mrb[0].mxu0
      %4079 = vdwg.mxu0
      %v4080 = vadd.f32 %v2485, %v4077
      %s4081 = scalar_lea.vmem %s2, 768
      %v4082 = vld [vmem:[%s4081] sm:$0xff]
      %v4083 = vld [vmem:[%s4081 + $0x8] sm:$0xff]
      %v4084 = vld [vmem:[%s4081 + $0x10] sm:$0xff]
      %v4085 = vld [vmem:[%s4081 + $0x18] sm:$0xff]
      %v4086 = vld [vmem:[%s4081 + $0x20] sm:$0xff]
      %v4087 = vld [vmem:[%s4081 + $0x28] sm:$0xff]
      %v4088 = vld [vmem:[%s4081 + $0x30] sm:$0xff]
      %v4089 = vld [vmem:[%s4081 + $0x38] sm:$0xff]
      %v4090 = vld [vmem:[%s4081 + $0x40] sm:$0xff]
      %v4091 = vld [vmem:[%s4081 + $0x48] sm:$0xff]
      %v4092 = vld [vmem:[%s4081 + $0x50] sm:$0xff]
      %v4093 = vld [vmem:[%s4081 + $0x58] sm:$0xff]
      %v4094 = vld [vmem:[%s4081 + $0x60] sm:$0xff]
      %v4095 = vld [vmem:[%s4081 + $0x68] sm:$0xff]
      %v4096 = vld [vmem:[%s4081 + $0x70] sm:$0xff]
      %v4097 = vld [vmem:[%s4081 + $0x78] sm:$0xff]
      %v4098 = vld [vmem:[%s4081 + $0x80] sm:$0xff]
      %v4099 = vld [vmem:[%s4081 + $0x88] sm:$0xff]
      %v4100 = vld [vmem:[%s4081 + $0x90] sm:$0xff]
      %v4101 = vld [vmem:[%s4081 + $0x98] sm:$0xff]
      %v4102 = vld [vmem:[%s4081 + $0xa0] sm:$0xff]
      %v4103 = vld [vmem:[%s4081 + $0xa8] sm:$0xff]
      %v4104 = vld [vmem:[%s4081 + $0xb0] sm:$0xff]
      %v4105 = vld [vmem:[%s4081 + $0xb8] sm:$0xff]
      %v4106 = vld [vmem:[%s4081 + $0xc0] sm:$0xff]
      %v4107 = vld [vmem:[%s4081 + $0xc8] sm:$0xff]
      %v4108 = vld [vmem:[%s4081 + $0xd0] sm:$0xff]
      %v4109 = vld [vmem:[%s4081 + $0xd8] sm:$0xff]
      %v4110 = vld [vmem:[%s4081 + $0xe0] sm:$0xff]
      %v4111 = vld [vmem:[%s4081 + $0xe8] sm:$0xff]
      %v4112 = vld [vmem:[%s4081 + $0xf0] sm:$0xff]
      %v4113 = vld [vmem:[%s4081 + $0xf8] sm:$0xff]
      %4114 = vmatprep.subr.mxu0 %v4083
      %4115 = vmatpush1.msra.mxu0 %v4082
      %4116 = vmatprep.subr.mxu0 %v4085
      %4117 = vmatpush1.msra.mxu0 %v4084
      %4118 = vmatprep.subr.mxu0 %v4087
      %4119 = vmatpush1.msra.mxu0 %v4086
      %4120 = vmatprep.subr.mxu0 %v4089
      %4121 = vmatpush1.msra.mxu0 %v4088
      %4122 = vmatprep.subr.mxu0 %v4091
      %4123 = vmatpush1.msra.mxu0 %v4090
      %4124 = vmatprep.subr.mxu0 %v4093
      %4125 = vmatpush1.msra.mxu0 %v4092
      %4126 = vmatprep.subr.mxu0 %v4095
      %4127 = vmatpush1.msra.mxu0 %v4094
      %4128 = vmatprep.subr.mxu0 %v4097
      %4129 = vmatpush1.msra.mxu0 %v4096
      %4130 = vmatprep.subr.mxu0 %v4099
      %4131 = vmatpush1.msra.mxu0 %v4098
      %4132 = vmatprep.subr.mxu0 %v4101
      %4133 = vmatpush1.msra.mxu0 %v4100
      %4134 = vmatprep.subr.mxu0 %v4103
      %4135 = vmatpush1.msra.mxu0 %v4102
      %4136 = vmatprep.subr.mxu0 %v4105
      %4137 = vmatpush1.msra.mxu0 %v4104
      %4138 = vmatprep.subr.mxu0 %v4107
      %4139 = vmatpush1.msra.mxu0 %v4106
      %4140 = vmatprep.subr.mxu0 %v4109
      %4141 = vmatpush1.msra.mxu0 %v4108
      %4142 = vmatprep.subr.mxu0 %v4111
      %4143 = vmatpush1.msra.mxu0 %v4110
      %4144 = vmatprep.subr.mxu0 %v4113
      %4145 = vmatpush1.msra.mxu0 %v4112
      %4146 = vmatprep.subr.mxu0 0.0
      %4147 = vmatpush1.msra.mxu0 0.0
      %4148 = vmatprep.subr.mxu0 0.0
      %4149 = vmatpush1.msra.mxu0 0.0
      %4150 = vmatprep.subr.mxu0 0.0
      %4151 = vmatpush1.msra.mxu0 0.0
      %4152 = vmatprep.subr.mxu0 0.0
      %4153 = vmatpush1.msra.mxu0 0.0
      %4154 = vmatprep.subr.mxu0 0.0
      %4155 = vmatpush1.msra.mxu0 0.0
      %4156 = vmatprep.subr.mxu0 0.0
      %4157 = vmatpush1.msra.mxu0 0.0
      %4158 = vmatprep.subr.mxu0 0.0
      %4159 = vmatpush1.msra.mxu0 0.0
      %4160 = vmatprep.subr.mxu0 0.0
      %4161 = vmatpush1.msra.mxu0 0.0
      %4162 = vmatprep.subr.mxu0 0.0
      %4163 = vmatpush1.msra.mxu0 0.0
      %4164 = vmatprep.subr.mxu0 0.0
      %4165 = vmatpush1.msra.mxu0 0.0
      %4166 = vmatprep.subr.mxu0 0.0
      %4167 = vmatpush1.msra.mxu0 0.0
      %4168 = vmatprep.subr.mxu0 0.0
      %4169 = vmatpush1.msra.mxu0 0.0
      %4170 = vmatprep.subr.mxu0 0.0
      %4171 = vmatpush1.msra.mxu0 0.0
      %4172 = vmatprep.subr.mxu0 0.0
      %4173 = vmatpush1.msra.mxu0 0.0
      %4174 = vmatprep.subr.mxu0 0.0
      %4175 = vmatpush1.msra.mxu0 0.0
      %4176 = vmatprep.subr.mxu0 0.0
      %4177 = vmatpush1.msra.mxu0 0.0
      %4178 = vmatprep.mubr.f32.mxu0 0.0
      %4179 = vmatmul.mubr.f32.gmra.mrb[0].mxu0 %v4080
      %v4180 = vpop.f32.mrb[0].mxu0
      %v4181 = vadd.f32 0.0, %v4180
      %v4182 = vpop.f32.mrb[0].mxu0
      %v4183 = vadd.f32 0.0, %v4182
      %4184 = vdwg.mxu0
      %v4186 = vcombine.high %v4181, %v4181
      %v4188 = vunpack.c.l.s4 1966171168
      %v4189 = vunpack.c.0.s8 %v4188
      %v4190 = vlaneseq
      %v4191 = vshrl.u32 %v4190, 7
      %v4192 = vsub.s32 %v4189, %v4191
      %v4193 = vrot.slane %v4181, %v4192
      %v4195 = vunpack.c.l.s4 1966171168
      %v4196 = vunpack.c.0.s8 %v4195
      %v4197 = vlaneseq
      %v4198 = vshrl.u32 %v4197, 7
      %v4199 = vsub.s32 %v4196, %v4198
      %v4200 = vrot.slane %v4186, %v4199
      %v4201 = vcombine.high %v4193, %v4193
      %v4202 = vcombine.high %v4200, %v4200
      %v4204 = vunpack.c.l.s4 1966171168
      %v4205 = vunpack.c.0.s8 %v4204
      %v4206 = vlaneseq
      %v4207 = vshrl.u32 %v4206, 7
      %v4208 = vsub.s32 %v4205, %v4207
      %v4209 = vrot.slane %v4193, %v4208
      %v4211 = vunpack.c.l.s4 1966171168
      %v4212 = vunpack.c.0.s8 %v4211
      %v4213 = vlaneseq
      %v4214 = vshrl.u32 %v4213, 7
      %v4215 = vsub.s32 %v4212, %v4214
      %v4216 = vrot.slane %v4200, %v4215
      %v4218 = vunpack.c.l.s4 1966171168
      %v4219 = vunpack.c.0.s8 %v4218
      %v4220 = vlaneseq
      %v4221 = vshrl.u32 %v4220, 7
      %v4222 = vsub.s32 %v4219, %v4221
      %v4223 = vrot.slane %v4201, %v4222
      %v4225 = vunpack.c.l.s4 1966171168
      %v4226 = vunpack.c.0.s8 %v4225
      %v4227 = vlaneseq
      %v4228 = vshrl.u32 %v4227, 7
      %v4229 = vsub.s32 %v4226, %v4228
      %v4230 = vrot.slane %v4202, %v4229
      %v4231 = vcombine.high %v4209, %v4209
      %v4232 = vcombine.high %v4216, %v4216
      %v4233 = vcombine.high %v4223, %v4223
      %v4234 = vcombine.high %v4230, %v4230
      %s4235 = scalar_lea.vmem %s3, 3
      %v4236 = vld [vmem:[%s4235] sm:$0x1]
      %s4237 = scalar_lea.vmem %s4, 3
      %v4238 = vld [vmem:[%s4237] sm:$0x1]
      %s4239 = scalar_lea.vmem %s5, 3
      %v4240 = vld [vmem:[%s4239] sm:$0x1]
      %v4241 = vlaneseq
      %v4242 = vshrl.u32 %v4241, 7
      %v4243 = vsub.s32 0, %v4242
      %v4244 = vrot.slane %v4209, %v4243
      %v4245 = vlaneseq
      %v4246 = vshrl.u32 %v4245, 7
      %v4247 = vsub.s32 0, %v4246
      %v4248 = vrot.slane %v4223, %v4247
      %v4249 = vlaneseq
      %v4250 = vshrl.u32 %v4249, 7
      %v4251 = vsub.s32 0, %v4250
      %v4252 = vrot.slane %v4231, %v4251
      %v4253 = vlaneseq
      %v4254 = vshrl.u32 %v4253, 7
      %v4255 = vsub.s32 0, %v4254
      %v4256 = vrot.slane %v4233, %v4255
      %v4257 = vlaneseq
      %v4258 = vshrl.u32 %v4257, 7
      %v4259 = vsub.s32 0, %v4258
      %v4260 = vrot.slane %v4216, %v4259
      %v4261 = vlaneseq
      %v4262 = vshrl.u32 %v4261, 7
      %v4263 = vsub.s32 0, %v4262
      %v4264 = vrot.slane %v4230, %v4263
      %v4265 = vlaneseq
      %v4266 = vshrl.u32 %v4265, 7
      %v4267 = vsub.s32 0, %v4266
      %v4268 = vrot.slane %v4232, %v4267
      %v4269 = vlaneseq
      %v4270 = vshrl.u32 %v4269, 7
      %v4271 = vsub.s32 0, %v4270
      %v4272 = vrot.slane %v4234, %v4271
      %v4281 = vadd.f32 %v4244, %v4183
      %v4282 = vadd.f32 %v4248, %v4183
      %v4283 = vadd.f32 %v4252, %v4183
      %v4284 = vadd.f32 %v4256, %v4183
      %v4285 = vadd.f32 %v4260, %v4183
      %v4286 = vadd.f32 %v4264, %v4183
      %v4287 = vadd.f32 %v4268, %v4183
      %v4288 = vadd.f32 %v4272, %v4183
      %v4290 = vlaneseq
      %v4291 = vshrl.u32 %v4290, 7
      %v4292 = vsub.s32 0, %v4291
      %v4293 = vrot.slane %v4236, %v4292
      %v4295 = vmul.f32 %v3365, %v4293
      %v4296 = vmul.f32 %v3372, %v4293
      %v4297 = vmul.f32 %v3379, %v4293
      %v4298 = vmul.f32 %v3386, %v4293
      %v4299 = vmul.f32 %v3393, %v4293
      %v4300 = vmul.f32 %v3400, %v4293
      %v4301 = vmul.f32 %v3407, %v4293
      %v4302 = vmul.f32 %v3414, %v4293
      %v4303 = vadd.f32 %v4281, %v4295
      %v4304 = vadd.f32 %v4282, %v4296
      %v4305 = vadd.f32 %v4283, %v4297
      %v4306 = vadd.f32 %v4284, %v4298
      %v4307 = vadd.f32 %v4285, %v4299
      %v4308 = vadd.f32 %v4286, %v4300
      %v4309 = vadd.f32 %v4287, %v4301
      %v4310 = vadd.f32 %v4288, %v4302
      %v4312 = vlaneseq
      %v4313 = vshrl.u32 %v4312, 7
      %v4314 = vsub.s32 0, %v4313
      %v4315 = vrot.slane %v4238, %v4314
      %v4317 = vmul.f32 %v896, %v4315
      %v4318 = vmul.f32 %v903, %v4315
      %v4319 = vmul.f32 %v910, %v4315
      %v4320 = vmul.f32 %v917, %v4315
      %v4321 = vmul.f32 %v924, %v4315
      %v4322 = vmul.f32 %v931, %v4315
      %v4323 = vmul.f32 %v938, %v4315
      %v4324 = vmul.f32 %v945, %v4315
      %v4325 = vadd.f32 %v4303, %v4317
      %v4326 = vadd.f32 %v4304, %v4318
      %v4327 = vadd.f32 %v4305, %v4319
      %v4328 = vadd.f32 %v4306, %v4320
      %v4329 = vadd.f32 %v4307, %v4321
      %v4330 = vadd.f32 %v4308, %v4322
      %v4331 = vadd.f32 %v4309, %v4323
      %v4332 = vadd.f32 %v4310, %v4324
      %v4334 = vlaneseq
      %v4335 = vshrl.u32 %v4334, 7
      %v4336 = vsub.s32 0, %v4335
      %v4337 = vrot.slane %v4240, %v4336
      %v4339 = vadd.f32 %v4325, %v4337
      %v4340 = vadd.f32 %v4326, %v4337
      %v4341 = vadd.f32 %v4327, %v4337
      %v4342 = vadd.f32 %v4328, %v4337
      %v4343 = vadd.f32 %v4329, %v4337
      %v4344 = vadd.f32 %v4330, %v4337
      %v4345 = vadd.f32 %v4331, %v4337
      %v4346 = vadd.f32 %v4332, %v4337
      %v4347 = vxor.u32 %v4339, 2147483648
      %v4348 = vxor.u32 %v4340, 2147483648
      %v4349 = vxor.u32 %v4341, 2147483648
      %v4350 = vxor.u32 %v4342, 2147483648
      %v4351 = vxor.u32 %v4343, 2147483648
      %v4352 = vxor.u32 %v4344, 2147483648
      %v4353 = vxor.u32 %v4345, 2147483648
      %v4354 = vxor.u32 %v4346, 2147483648
      %v4355 = vmul.f32 %v4347, 1.442695
      %v4356 = vpow.pop %v4355
      %v4357 = vmul.f32 %v4348, 1.442695
      %v4358 = vpow.pop %v4357
      %v4359 = vmul.f32 %v4349, 1.442695
      %v4360 = vpow.pop %v4359
      %v4361 = vmul.f32 %v4350, 1.442695
      %v4362 = vpow.pop %v4361
      %v4363 = vmul.f32 %v4351, 1.442695
      %v4364 = vpow.pop %v4363
      %v4365 = vmul.f32 %v4352, 1.442695
      %v4366 = vpow.pop %v4365
      %v4367 = vmul.f32 %v4353, 1.442695
      %v4368 = vpow.pop %v4367
      %v4369 = vmul.f32 %v4354, 1.442695
      %v4370 = vpow.pop %v4369
      %v4371 = vadd.f32 %v4356, 1.0
      %v4372 = vadd.f32 %v4358, 1.0
      %v4373 = vadd.f32 %v4360, 1.0
      %v4374 = vadd.f32 %v4362, 1.0
      %v4375 = vadd.f32 %v4364, 1.0
      %v4376 = vadd.f32 %v4366, 1.0
      %v4377 = vadd.f32 %v4368, 1.0
      %v4378 = vadd.f32 %v4370, 1.0
      %v4379 = vrcp.pop %v4371
      %v4380 = vmul.f32 1.0, %v4379
      %v4381 = vrcp.pop %v4372
      %v4382 = vmul.f32 1.0, %v4381
      %v4383 = vrcp.pop %v4373
      %v4384 = vmul.f32 1.0, %v4383
      %v4385 = vrcp.pop %v4374
      %v4386 = vmul.f32 1.0, %v4385
      %v4387 = vrcp.pop %v4375
      %v4388 = vmul.f32 1.0, %v4387
      %v4389 = vrcp.pop %v4376
      %v4390 = vmul.f32 1.0, %v4389
      %v4391 = vrcp.pop %v4377
      %v4392 = vmul.f32 1.0, %v4391
      %v4393 = vrcp.pop %v4378
      %v4394 = vmul.f32 1.0, %v4393
      %v4395 = vmul.f32 %v4339, %v4380
      %v4396 = vmul.f32 %v4340, %v4382
      %v4397 = vmul.f32 %v4341, %v4384
      %v4398 = vmul.f32 %v4342, %v4386
      %v4399 = vmul.f32 %v4343, %v4388
      %v4400 = vmul.f32 %v4344, %v4390
      %v4401 = vmul.f32 %v4345, %v4392
      %v4402 = vmul.f32 %v4346, %v4394
      %s4403 = scalar_lea.vmem %s6, 384
      %v4404 = vld [vmem:[%s4403] sm:$0xff]
      %v4405 = vld [vmem:[%s4403 + $0x8] sm:$0xff]
      %v4406 = vld [vmem:[%s4403 + $0x10] sm:$0xff]
      %v4407 = vld [vmem:[%s4403 + $0x18] sm:$0xff]
      %v4408 = vld [vmem:[%s4403 + $0x20] sm:$0xff]
      %v4409 = vld [vmem:[%s4403 + $0x28] sm:$0xff]
      %v4410 = vld [vmem:[%s4403 + $0x30] sm:$0xff]
      %v4411 = vld [vmem:[%s4403 + $0x38] sm:$0xff]
      %v4412 = vld [vmem:[%s4403 + $0x40] sm:$0xff]
      %v4413 = vld [vmem:[%s4403 + $0x48] sm:$0xff]
      %v4414 = vld [vmem:[%s4403 + $0x50] sm:$0xff]
      %v4415 = vld [vmem:[%s4403 + $0x58] sm:$0xff]
      %v4416 = vld [vmem:[%s4403 + $0x60] sm:$0xff]
      %v4417 = vld [vmem:[%s4403 + $0x68] sm:$0xff]
      %v4418 = vld [vmem:[%s4403 + $0x70] sm:$0xff]
      %v4419 = vld [vmem:[%s4403 + $0x78] sm:$0xff]
      %s4420 = scalar_lea.vmem %s7, 3
      %v4421 = vld [vmem:[%s4420] sm:$0x1]
      %v4423 = vlaneseq
      %v4424 = vshrl.u32 %v4423, 7
      %v4425 = vsub.s32 0, %v4424
      %v4426 = vrot.slane %v4421, %v4425
      %4428 = vmatprep.subr.mxu0 0.0
      %4429 = vmatpush1.msra.mxu0 %v4404
      %4430 = vmatprep.subr.mxu0 0.0
      %4431 = vmatpush1.msra.mxu0 %v4405
      %4432 = vmatprep.subr.mxu0 0.0
      %4433 = vmatpush1.msra.mxu0 %v4406
      %4434 = vmatprep.subr.mxu0 0.0
      %4435 = vmatpush1.msra.mxu0 %v4407
      %4436 = vmatprep.subr.mxu0 0.0
      %4437 = vmatpush1.msra.mxu0 %v4408
      %4438 = vmatprep.subr.mxu0 0.0
      %4439 = vmatpush1.msra.mxu0 %v4409
      %4440 = vmatprep.subr.mxu0 0.0
      %4441 = vmatpush1.msra.mxu0 %v4410
      %4442 = vmatprep.subr.mxu0 0.0
      %4443 = vmatpush1.msra.mxu0 %v4411
      %4444 = vmatprep.subr.mxu0 0.0
      %4445 = vmatpush1.msra.mxu0 %v4412
      %4446 = vmatprep.subr.mxu0 0.0
      %4447 = vmatpush1.msra.mxu0 %v4413
      %4448 = vmatprep.subr.mxu0 0.0
      %4449 = vmatpush1.msra.mxu0 %v4414
      %4450 = vmatprep.subr.mxu0 0.0
      %4451 = vmatpush1.msra.mxu0 %v4415
      %4452 = vmatprep.subr.mxu0 0.0
      %4453 = vmatpush1.msra.mxu0 %v4416
      %4454 = vmatprep.subr.mxu0 0.0
      %4455 = vmatpush1.msra.mxu0 %v4417
      %4456 = vmatprep.subr.mxu0 0.0
      %4457 = vmatpush1.msra.mxu0 %v4418
      %4458 = vmatprep.subr.mxu0 0.0
      %4459 = vmatpush1.msra.mxu0 %v4419
      %4460 = vmatprep.subr.mxu0 0.0
      %4461 = vmatpush1.msra.mxu0 0.0
      %4462 = vmatprep.subr.mxu0 0.0
      %4463 = vmatpush1.msra.mxu0 0.0
      %4464 = vmatprep.subr.mxu0 0.0
      %4465 = vmatpush1.msra.mxu0 0.0
      %4466 = vmatprep.subr.mxu0 0.0
      %4467 = vmatpush1.msra.mxu0 0.0
      %4468 = vmatprep.subr.mxu0 0.0
      %4469 = vmatpush1.msra.mxu0 0.0
      %4470 = vmatprep.subr.mxu0 0.0
      %4471 = vmatpush1.msra.mxu0 0.0
      %4472 = vmatprep.subr.mxu0 0.0
      %4473 = vmatpush1.msra.mxu0 0.0
      %4474 = vmatprep.subr.mxu0 0.0
      %4475 = vmatpush1.msra.mxu0 0.0
      %4476 = vmatprep.subr.mxu0 0.0
      %4477 = vmatpush1.msra.mxu0 0.0
      %4478 = vmatprep.subr.mxu0 0.0
      %4479 = vmatpush1.msra.mxu0 0.0
      %4480 = vmatprep.subr.mxu0 0.0
      %4481 = vmatpush1.msra.mxu0 0.0
      %4482 = vmatprep.subr.mxu0 0.0
      %4483 = vmatpush1.msra.mxu0 0.0
      %4484 = vmatprep.subr.mxu0 0.0
      %4485 = vmatpush1.msra.mxu0 0.0
      %4486 = vmatprep.subr.mxu0 0.0
      %4487 = vmatpush1.msra.mxu0 0.0
      %4488 = vmatprep.subr.mxu0 0.0
      %4489 = vmatpush1.msra.mxu0 0.0
      %4490 = vmatprep.subr.mxu0 0.0
      %4491 = vmatpush1.msra.mxu0 0.0
      %4492 = vmatprep.mubr.f32.mxu0 0.0
      %4493 = vmatmul.mubr.f32.gmra.mrb[0].mxu0 %v4395
      %v4494 = vpop.f32.mrb[0].mxu0
      %v4495 = vadd.f32 %v4426, %v4494
      %v4496 = vpop.f32.mrb[0].mxu0
      %4497 = vmatprep.mubr.f32.mxu0 0.0
      %4498 = vmatmul.mubr.f32.gmra.mrb[0].mxu0 %v4396
      %v4499 = vpop.f32.mrb[0].mxu0
      %v4500 = vadd.f32 %v4426, %v4499
      %v4501 = vpop.f32.mrb[0].mxu0
      %4502 = vmatprep.mubr.f32.mxu0 0.0
      %4503 = vmatmul.mubr.f32.gmra.mrb[0].mxu0 %v4397
      %v4504 = vpop.f32.mrb[0].mxu0
      %v4505 = vadd.f32 %v4426, %v4504
      %v4506 = vpop.f32.mrb[0].mxu0
      %4507 = vmatprep.mubr.f32.mxu0 0.0
      %4508 = vmatmul.mubr.f32.gmra.mrb[0].mxu0 %v4398
      %v4509 = vpop.f32.mrb[0].mxu0
      %v4510 = vadd.f32 %v4426, %v4509
      %v4511 = vpop.f32.mrb[0].mxu0
      %4512 = vmatprep.mubr.f32.mxu0 0.0
      %4513 = vmatmul.mubr.f32.gmra.mrb[0].mxu0 %v4399
      %v4514 = vpop.f32.mrb[0].mxu0
      %v4515 = vadd.f32 %v4426, %v4514
      %v4516 = vpop.f32.mrb[0].mxu0
      %4517 = vmatprep.mubr.f32.mxu0 0.0
      %4518 = vmatmul.mubr.f32.gmra.mrb[0].mxu0 %v4400
      %v4519 = vpop.f32.mrb[0].mxu0
      %v4520 = vadd.f32 %v4426, %v4519
      %v4521 = vpop.f32.mrb[0].mxu0
      %4522 = vmatprep.mubr.f32.mxu0 0.0
      %4523 = vmatmul.mubr.f32.gmra.mrb[0].mxu0 %v4401
      %v4524 = vpop.f32.mrb[0].mxu0
      %v4525 = vadd.f32 %v4426, %v4524
      %v4526 = vpop.f32.mrb[0].mxu0
      %4527 = vmatprep.mubr.f32.mxu0 0.0
      %4528 = vmatmul.mubr.f32.gmra.mrb[0].mxu0 %v4402
      %v4529 = vpop.f32.mrb[0].mxu0
      %v4530 = vadd.f32 %v4426, %v4529
      %v4531 = vpop.f32.mrb[0].mxu0
      %4532 = vdwg.mxu0
      %v4533 = vxor.u32 %v4495, 2147483648
      %v4534 = vxor.u32 %v4500, 2147483648
      %v4535 = vxor.u32 %v4505, 2147483648
      %v4536 = vxor.u32 %v4510, 2147483648
      %v4537 = vxor.u32 %v4515, 2147483648
      %v4538 = vxor.u32 %v4520, 2147483648
      %v4539 = vxor.u32 %v4525, 2147483648
      %v4540 = vxor.u32 %v4530, 2147483648
      %v4541 = vmul.f32 %v4533, 1.442695
      %v4542 = vpow.pop %v4541
      %v4543 = vmul.f32 %v4534, 1.442695
      %v4544 = vpow.pop %v4543
      %v4545 = vmul.f32 %v4535, 1.442695
      %v4546 = vpow.pop %v4545
      %v4547 = vmul.f32 %v4536, 1.442695
      %v4548 = vpow.pop %v4547
      %v4549 = vmul.f32 %v4537, 1.442695
      %v4550 = vpow.pop %v4549
      %v4551 = vmul.f32 %v4538, 1.442695
      %v4552 = vpow.pop %v4551
      %v4553 = vmul.f32 %v4539, 1.442695
      %v4554 = vpow.pop %v4553
      %v4555 = vmul.f32 %v4540, 1.442695
      %v4556 = vpow.pop %v4555
      %v4557 = vadd.f32 %v4542, 1.0
      %v4558 = vadd.f32 %v4544, 1.0
      %v4559 = vadd.f32 %v4546, 1.0
      %v4560 = vadd.f32 %v4548, 1.0
      %v4561 = vadd.f32 %v4550, 1.0
      %v4562 = vadd.f32 %v4552, 1.0
      %v4563 = vadd.f32 %v4554, 1.0
      %v4564 = vadd.f32 %v4556, 1.0
      %v4565 = vrcp.pop %v4557
      %v4566 = vmul.f32 1.0, %v4565
      %v4567 = vrcp.pop %v4558
      %v4568 = vmul.f32 1.0, %v4567
      %v4569 = vrcp.pop %v4559
      %v4570 = vmul.f32 1.0, %v4569
      %v4571 = vrcp.pop %v4560
      %v4572 = vmul.f32 1.0, %v4571
      %v4573 = vrcp.pop %v4561
      %v4574 = vmul.f32 1.0, %v4573
      %v4575 = vrcp.pop %v4562
      %v4576 = vmul.f32 1.0, %v4575
      %v4577 = vrcp.pop %v4563
      %v4578 = vmul.f32 1.0, %v4577
      %v4579 = vrcp.pop %v4564
      %v4580 = vmul.f32 1.0, %v4579
      %v4581 = vmul.f32 %v4495, %v4566
      %v4582 = vmul.f32 %v4500, %v4568
      %v4583 = vmul.f32 %v4505, %v4570
      %v4584 = vmul.f32 %v4510, %v4572
      %v4585 = vmul.f32 %v4515, %v4574
      %v4586 = vmul.f32 %v4520, %v4576
      %v4587 = vmul.f32 %v4525, %v4578
      %v4588 = vmul.f32 %v4530, %v4580
      %v4589 = vrot.slane %v4581, 4
      %v4590 = vadd.f32 %v4581, %v4589
      %v4591 = vrot.slane %v4590, 2
      %v4592 = vadd.f32 %v4590, %v4591
      %v4593 = vrot.slane %v4592, 1
      %v4594 = vadd.f32 %v4592, %v4593
      %v4595 = vrot.slane %v4582, 4
      %v4596 = vadd.f32 %v4582, %v4595
      %v4597 = vrot.slane %v4596, 2
      %v4598 = vadd.f32 %v4596, %v4597
      %v4599 = vrot.slane %v4598, 1
      %v4600 = vadd.f32 %v4598, %v4599
      %v4601 = vrot.slane %v4583, 4
      %v4602 = vadd.f32 %v4583, %v4601
      %v4603 = vrot.slane %v4602, 2
      %v4604 = vadd.f32 %v4602, %v4603
      %v4605 = vrot.slane %v4604, 1
      %v4606 = vadd.f32 %v4604, %v4605
      %v4607 = vrot.slane %v4584, 4
      %v4608 = vadd.f32 %v4584, %v4607
      %v4609 = vrot.slane %v4608, 2
      %v4610 = vadd.f32 %v4608, %v4609
      %v4611 = vrot.slane %v4610, 1
      %v4612 = vadd.f32 %v4610, %v4611
      %v4613 = vrot.slane %v4585, 4
      %v4614 = vadd.f32 %v4585, %v4613
      %v4615 = vrot.slane %v4614, 2
      %v4616 = vadd.f32 %v4614, %v4615
      %v4617 = vrot.slane %v4616, 1
      %v4618 = vadd.f32 %v4616, %v4617
      %v4619 = vrot.slane %v4586, 4
      %v4620 = vadd.f32 %v4586, %v4619
      %v4621 = vrot.slane %v4620, 2
      %v4622 = vadd.f32 %v4620, %v4621
      %v4623 = vrot.slane %v4622, 1
      %v4624 = vadd.f32 %v4622, %v4623
      %v4625 = vrot.slane %v4587, 4
      %v4626 = vadd.f32 %v4587, %v4625
      %v4627 = vrot.slane %v4626, 2
      %v4628 = vadd.f32 %v4626, %v4627
      %v4629 = vrot.slane %v4628, 1
      %v4630 = vadd.f32 %v4628, %v4629
      %v4631 = vrot.slane %v4588, 4
      %v4632 = vadd.f32 %v4588, %v4631
      %v4633 = vrot.slane %v4632, 2
      %v4634 = vadd.f32 %v4632, %v4633
      %v4635 = vrot.slane %v4634, 1
      %v4636 = vadd.f32 %v4634, %v4635
      %v4637 = vadd.f32 %v4594, 0.0
      %v4638 = vadd.f32 %v4600, 0.0
      %v4639 = vadd.f32 %v4606, 0.0
      %v4640 = vadd.f32 %v4612, 0.0
      %v4641 = vadd.f32 %v4618, 0.0
      %v4642 = vadd.f32 %v4624, 0.0
      %v4643 = vadd.f32 %v4630, 0.0
      %v4644 = vadd.f32 %v4636, 0.0
      %v4645 = vmul.f32 %v4637, 0.01
      %v4646 = vmul.f32 %v4638, 0.01
      %v4647 = vmul.f32 %v4639, 0.01
      %v4648 = vmul.f32 %v4640, 0.01
      %v4649 = vmul.f32 %v4641, 0.01
      %v4650 = vmul.f32 %v4642, 0.01
      %v4651 = vmul.f32 %v4643, 0.01
      %v4652 = vmul.f32 %v4644, 0.01
      %s4653 = scalar_lea.vmem %s8, 384
      %v4654 = vld [vmem:[%s4653] sm:$0xff]
      %v4655 = vld [vmem:[%s4653 + $0x8] sm:$0xff]
      %v4656 = vld [vmem:[%s4653 + $0x10] sm:$0xff]
      %v4657 = vld [vmem:[%s4653 + $0x18] sm:$0xff]
      %v4658 = vld [vmem:[%s4653 + $0x20] sm:$0xff]
      %v4659 = vld [vmem:[%s4653 + $0x28] sm:$0xff]
      %v4660 = vld [vmem:[%s4653 + $0x30] sm:$0xff]
      %v4661 = vld [vmem:[%s4653 + $0x38] sm:$0xff]
      %v4662 = vld [vmem:[%s4653 + $0x40] sm:$0xff]
      %v4663 = vld [vmem:[%s4653 + $0x48] sm:$0xff]
      %v4664 = vld [vmem:[%s4653 + $0x50] sm:$0xff]
      %v4665 = vld [vmem:[%s4653 + $0x58] sm:$0xff]
      %v4666 = vld [vmem:[%s4653 + $0x60] sm:$0xff]
      %v4667 = vld [vmem:[%s4653 + $0x68] sm:$0xff]
      %v4668 = vld [vmem:[%s4653 + $0x70] sm:$0xff]
      %v4669 = vld [vmem:[%s4653 + $0x78] sm:$0xff]
      %s4670 = scalar_lea.vmem %s9, 384
      %v4671 = vld [vmem:[%s4670] sm:$0xff]
      %v4672 = vld [vmem:[%s4670 + $0x8] sm:$0xff]
      %v4673 = vld [vmem:[%s4670 + $0x10] sm:$0xff]
      %v4674 = vld [vmem:[%s4670 + $0x18] sm:$0xff]
      %v4675 = vld [vmem:[%s4670 + $0x20] sm:$0xff]
      %v4676 = vld [vmem:[%s4670 + $0x28] sm:$0xff]
      %v4677 = vld [vmem:[%s4670 + $0x30] sm:$0xff]
      %v4678 = vld [vmem:[%s4670 + $0x38] sm:$0xff]
      %v4679 = vld [vmem:[%s4670 + $0x40] sm:$0xff]
      %v4680 = vld [vmem:[%s4670 + $0x48] sm:$0xff]
      %v4681 = vld [vmem:[%s4670 + $0x50] sm:$0xff]
      %v4682 = vld [vmem:[%s4670 + $0x58] sm:$0xff]
      %v4683 = vld [vmem:[%s4670 + $0x60] sm:$0xff]
      %v4684 = vld [vmem:[%s4670 + $0x68] sm:$0xff]
      %v4685 = vld [vmem:[%s4670 + $0x70] sm:$0xff]
      %v4686 = vld [vmem:[%s4670 + $0x78] sm:$0xff]
      %v4695 = vsel %vm1348, %v4646, %v4645
      %v4696 = vsel %vm1350, %v4647, %v4695
      %v4697 = vsel %vm1352, %v4648, %v4696
      %v4698 = vsel %vm1354, %v4649, %v4697
      %v4699 = vsel %vm1356, %v4650, %v4698
      %v4700 = vsel %vm1358, %v4651, %v4699
      %v4701 = vsel %vm1360, %v4652, %v4700
      %4703 = vmatprep.subr.mxu0 0.0
      %4704 = vmatpush1.msra.mxu0 %v4671
      %4705 = vmatprep.subr.mxu0 0.0
      %4706 = vmatpush1.msra.mxu0 %v4672
      %4707 = vmatprep.subr.mxu0 0.0
      %4708 = vmatpush1.msra.mxu0 %v4673
      %4709 = vmatprep.subr.mxu0 0.0
      %4710 = vmatpush1.msra.mxu0 %v4674
      %4711 = vmatprep.subr.mxu0 0.0
      %4712 = vmatpush1.msra.mxu0 %v4675
      %4713 = vmatprep.subr.mxu0 0.0
      %4714 = vmatpush1.msra.mxu0 %v4676
      %4715 = vmatprep.subr.mxu0 0.0
      %4716 = vmatpush1.msra.mxu0 %v4677
      %4717 = vmatprep.subr.mxu0 0.0
      %4718 = vmatpush1.msra.mxu0 %v4678
      %4719 = vmatprep.subr.mxu0 0.0
      %4720 = vmatpush1.msra.mxu0 %v4679
      %4721 = vmatprep.subr.mxu0 0.0
      %4722 = vmatpush1.msra.mxu0 %v4680
      %4723 = vmatprep.subr.mxu0 0.0
      %4724 = vmatpush1.msra.mxu0 %v4681
      %4725 = vmatprep.subr.mxu0 0.0
      %4726 = vmatpush1.msra.mxu0 %v4682
      %4727 = vmatprep.subr.mxu0 0.0
      %4728 = vmatpush1.msra.mxu0 %v4683
      %4729 = vmatprep.subr.mxu0 0.0
      %4730 = vmatpush1.msra.mxu0 %v4684
      %4731 = vmatprep.subr.mxu0 0.0
      %4732 = vmatpush1.msra.mxu0 %v4685
      %4733 = vmatprep.subr.mxu0 0.0
      %4734 = vmatpush1.msra.mxu0 %v4686
      %4735 = vmatprep.subr.mxu0 0.0
      %4736 = vmatpush1.msra.mxu0 0.0
      %4737 = vmatprep.subr.mxu0 0.0
      %4738 = vmatpush1.msra.mxu0 0.0
      %4739 = vmatprep.subr.mxu0 0.0
      %4740 = vmatpush1.msra.mxu0 0.0
      %4741 = vmatprep.subr.mxu0 0.0
      %4742 = vmatpush1.msra.mxu0 0.0
      %4743 = vmatprep.subr.mxu0 0.0
      %4744 = vmatpush1.msra.mxu0 0.0
      %4745 = vmatprep.subr.mxu0 0.0
      %4746 = vmatpush1.msra.mxu0 0.0
      %4747 = vmatprep.subr.mxu0 0.0
      %4748 = vmatpush1.msra.mxu0 0.0
      %4749 = vmatprep.subr.mxu0 0.0
      %4750 = vmatpush1.msra.mxu0 0.0
      %4751 = vmatprep.subr.mxu0 0.0
      %4752 = vmatpush1.msra.mxu0 0.0
      %4753 = vmatprep.subr.mxu0 0.0
      %4754 = vmatpush1.msra.mxu0 0.0
      %4755 = vmatprep.subr.mxu0 0.0
      %4756 = vmatpush1.msra.mxu0 0.0
      %4757 = vmatprep.subr.mxu0 0.0
      %4758 = vmatpush1.msra.mxu0 0.0
      %4759 = vmatprep.subr.mxu0 0.0
      %4760 = vmatpush1.msra.mxu0 0.0
      %4761 = vmatprep.subr.mxu0 0.0
      %4762 = vmatpush1.msra.mxu0 0.0
      %4763 = vmatprep.subr.mxu0 0.0
      %4764 = vmatpush1.msra.mxu0 0.0
      %4765 = vmatprep.subr.mxu0 0.0
      %4766 = vmatpush1.msra.mxu0 0.0
      %4767 = vmatprep.mubr.f32.mxu0 0.0
      %4768 = vmatmul.mubr.f32.gmra.mrb[0].mxu0 %v4701
      %v4769 = vpop.f32.mrb[0].mxu0
      %v4770 = vadd.f32 0.0, %v4769
      %v4771 = vpop.f32.mrb[0].mxu0
      %4772 = vdwg.mxu0
      %4773 = vmatprep.subr.mxu0 0.0
      %4774 = vmatpush1.msra.mxu0 %v4654
      %4775 = vmatprep.subr.mxu0 0.0
      %4776 = vmatpush1.msra.mxu0 %v4655
      %4777 = vmatprep.subr.mxu0 0.0
      %4778 = vmatpush1.msra.mxu0 %v4656
      %4779 = vmatprep.subr.mxu0 0.0
      %4780 = vmatpush1.msra.mxu0 %v4657
      %4781 = vmatprep.subr.mxu0 0.0
      %4782 = vmatpush1.msra.mxu0 %v4658
      %4783 = vmatprep.subr.mxu0 0.0
      %4784 = vmatpush1.msra.mxu0 %v4659
      %4785 = vmatprep.subr.mxu0 0.0
      %4786 = vmatpush1.msra.mxu0 %v4660
      %4787 = vmatprep.subr.mxu0 0.0
      %4788 = vmatpush1.msra.mxu0 %v4661
      %4789 = vmatprep.subr.mxu0 0.0
      %4790 = vmatpush1.msra.mxu0 %v4662
      %4791 = vmatprep.subr.mxu0 0.0
      %4792 = vmatpush1.msra.mxu0 %v4663
      %4793 = vmatprep.subr.mxu0 0.0
      %4794 = vmatpush1.msra.mxu0 %v4664
      %4795 = vmatprep.subr.mxu0 0.0
      %4796 = vmatpush1.msra.mxu0 %v4665
      %4797 = vmatprep.subr.mxu0 0.0
      %4798 = vmatpush1.msra.mxu0 %v4666
      %4799 = vmatprep.subr.mxu0 0.0
      %4800 = vmatpush1.msra.mxu0 %v4667
      %4801 = vmatprep.subr.mxu0 0.0
      %4802 = vmatpush1.msra.mxu0 %v4668
      %4803 = vmatprep.subr.mxu0 0.0
      %4804 = vmatpush1.msra.mxu0 %v4669
      %4805 = vmatprep.subr.mxu0 0.0
      %4806 = vmatpush1.msra.mxu0 0.0
      %4807 = vmatprep.subr.mxu0 0.0
      %4808 = vmatpush1.msra.mxu0 0.0
      %4809 = vmatprep.subr.mxu0 0.0
      %4810 = vmatpush1.msra.mxu0 0.0
      %4811 = vmatprep.subr.mxu0 0.0
      %4812 = vmatpush1.msra.mxu0 0.0
      %4813 = vmatprep.subr.mxu0 0.0
      %4814 = vmatpush1.msra.mxu0 0.0
      %4815 = vmatprep.subr.mxu0 0.0
      %4816 = vmatpush1.msra.mxu0 0.0
      %4817 = vmatprep.subr.mxu0 0.0
      %4818 = vmatpush1.msra.mxu0 0.0
      %4819 = vmatprep.subr.mxu0 0.0
      %4820 = vmatpush1.msra.mxu0 0.0
      %4821 = vmatprep.subr.mxu0 0.0
      %4822 = vmatpush1.msra.mxu0 0.0
      %4823 = vmatprep.subr.mxu0 0.0
      %4824 = vmatpush1.msra.mxu0 0.0
      %4825 = vmatprep.subr.mxu0 0.0
      %4826 = vmatpush1.msra.mxu0 0.0
      %4827 = vmatprep.subr.mxu0 0.0
      %4828 = vmatpush1.msra.mxu0 0.0
      %4829 = vmatprep.subr.mxu0 0.0
      %4830 = vmatpush1.msra.mxu0 0.0
      %4831 = vmatprep.subr.mxu0 0.0
      %4832 = vmatpush1.msra.mxu0 0.0
      %4833 = vmatprep.subr.mxu0 0.0
      %4834 = vmatpush1.msra.mxu0 0.0
      %4835 = vmatprep.subr.mxu0 0.0
      %4836 = vmatpush1.msra.mxu0 0.0
      %4837 = vmatprep.mubr.f32.mxu0 0.0
      %4838 = vmatmul.mubr.f32.gmra.mrb[0].mxu0 %v4080
      %v4839 = vpop.f32.mrb[0].mxu0
      %v4840 = vadd.f32 %v4770, %v4839
      %v4841 = vpop.f32.mrb[0].mxu0
      %4842 = vdwg.mxu0
      %s4843 = scalar_lea.vmem %s10, 3
      %v4844 = vld [vmem:[%s4843] sm:$0x1]
      %v4846 = vlaneseq
      %v4847 = vshrl.u32 %v4846, 7
      %v4848 = vsub.s32 0, %v4847
      %v4849 = vrot.slane %v4844, %v4848
      %v4851 = vadd.f32 %v4840, %v4849
      %v4852 = vxor.u32 %v4851, 2147483648
      %v4853 = vmul.f32 %v4852, 1.442695
      %v4854 = vpow.pop %v4853
      %v4855 = vadd.f32 %v4854, 1.0
      %v4856 = vrcp.pop %v4855
      %v4857 = vmul.f32 1.0, %v4856
      %v4858 = vmul.f32 %v4851, %v4857
      %s4859 = scalar_lea.vmem %s11, 384
      %v4860 = vld [vmem:[%s4859] sm:$0xff]
      %v4861 = vld [vmem:[%s4859 + $0x8] sm:$0xff]
      %v4862 = vld [vmem:[%s4859 + $0x10] sm:$0xff]
      %v4863 = vld [vmem:[%s4859 + $0x18] sm:$0xff]
      %v4864 = vld [vmem:[%s4859 + $0x20] sm:$0xff]
      %v4865 = vld [vmem:[%s4859 + $0x28] sm:$0xff]
      %v4866 = vld [vmem:[%s4859 + $0x30] sm:$0xff]
      %v4867 = vld [vmem:[%s4859 + $0x38] sm:$0xff]
      %v4868 = vld [vmem:[%s4859 + $0x40] sm:$0xff]
      %v4869 = vld [vmem:[%s4859 + $0x48] sm:$0xff]
      %v4870 = vld [vmem:[%s4859 + $0x50] sm:$0xff]
      %v4871 = vld [vmem:[%s4859 + $0x58] sm:$0xff]
      %v4872 = vld [vmem:[%s4859 + $0x60] sm:$0xff]
      %v4873 = vld [vmem:[%s4859 + $0x68] sm:$0xff]
      %v4874 = vld [vmem:[%s4859 + $0x70] sm:$0xff]
      %v4875 = vld [vmem:[%s4859 + $0x78] sm:$0xff]
      %s4876 = scalar_lea.vmem %s12, 3
      %v4877 = vld [vmem:[%s4876] sm:$0x1]
      %v4879 = vlaneseq
      %v4880 = vshrl.u32 %v4879, 7
      %v4881 = vsub.s32 0, %v4880
      %v4882 = vrot.slane %v4877, %v4881
      %4884 = vmatprep.subr.mxu0 0.0
      %4885 = vmatpush1.msra.mxu0 %v4860
      %4886 = vmatprep.subr.mxu0 0.0
      %4887 = vmatpush1.msra.mxu0 %v4861
      %4888 = vmatprep.subr.mxu0 0.0
      %4889 = vmatpush1.msra.mxu0 %v4862
      %4890 = vmatprep.subr.mxu0 0.0
      %4891 = vmatpush1.msra.mxu0 %v4863
      %4892 = vmatprep.subr.mxu0 0.0
      %4893 = vmatpush1.msra.mxu0 %v4864
      %4894 = vmatprep.subr.mxu0 0.0
      %4895 = vmatpush1.msra.mxu0 %v4865
      %4896 = vmatprep.subr.mxu0 0.0
      %4897 = vmatpush1.msra.mxu0 %v4866
      %4898 = vmatprep.subr.mxu0 0.0
      %4899 = vmatpush1.msra.mxu0 %v4867
      %4900 = vmatprep.subr.mxu0 0.0
      %4901 = vmatpush1.msra.mxu0 %v4868
      %4902 = vmatprep.subr.mxu0 0.0
      %4903 = vmatpush1.msra.mxu0 %v4869
      %4904 = vmatprep.subr.mxu0 0.0
      %4905 = vmatpush1.msra.mxu0 %v4870
      %4906 = vmatprep.subr.mxu0 0.0
      %4907 = vmatpush1.msra.mxu0 %v4871
      %4908 = vmatprep.subr.mxu0 0.0
      %4909 = vmatpush1.msra.mxu0 %v4872
      %4910 = vmatprep.subr.mxu0 0.0
      %4911 = vmatpush1.msra.mxu0 %v4873
      %4912 = vmatprep.subr.mxu0 0.0
      %4913 = vmatpush1.msra.mxu0 %v4874
      %4914 = vmatprep.subr.mxu0 0.0
      %4915 = vmatpush1.msra.mxu0 %v4875
      %4916 = vmatprep.subr.mxu0 0.0
      %4917 = vmatpush1.msra.mxu0 0.0
      %4918 = vmatprep.subr.mxu0 0.0
      %4919 = vmatpush1.msra.mxu0 0.0
      %4920 = vmatprep.subr.mxu0 0.0
      %4921 = vmatpush1.msra.mxu0 0.0
      %4922 = vmatprep.subr.mxu0 0.0
      %4923 = vmatpush1.msra.mxu0 0.0
      %4924 = vmatprep.subr.mxu0 0.0
      %4925 = vmatpush1.msra.mxu0 0.0
      %4926 = vmatprep.subr.mxu0 0.0
      %4927 = vmatpush1.msra.mxu0 0.0
      %4928 = vmatprep.subr.mxu0 0.0
      %4929 = vmatpush1.msra.mxu0 0.0
      %4930 = vmatprep.subr.mxu0 0.0
      %4931 = vmatpush1.msra.mxu0 0.0
      %4932 = vmatprep.subr.mxu0 0.0
      %4933 = vmatpush1.msra.mxu0 0.0
      %4934 = vmatprep.subr.mxu0 0.0
      %4935 = vmatpush1.msra.mxu0 0.0
      %4936 = vmatprep.subr.mxu0 0.0
      %4937 = vmatpush1.msra.mxu0 0.0
      %4938 = vmatprep.subr.mxu0 0.0
      %4939 = vmatpush1.msra.mxu0 0.0
      %4940 = vmatprep.subr.mxu0 0.0
      %4941 = vmatpush1.msra.mxu0 0.0
      %4942 = vmatprep.subr.mxu0 0.0
      %4943 = vmatpush1.msra.mxu0 0.0
      %4944 = vmatprep.subr.mxu0 0.0
      %4945 = vmatpush1.msra.mxu0 0.0
      %4946 = vmatprep.subr.mxu0 0.0
      %4947 = vmatpush1.msra.mxu0 0.0
      %4948 = vmatprep.mubr.f32.mxu0 0.0
      %4949 = vmatmul.mubr.f32.gmra.mrb[0].mxu0 %v4858
      %v4950 = vpop.f32.mrb[0].mxu0
      %v4951 = vadd.f32 %v4882, %v4950
      %v4952 = vpop.f32.mrb[0].mxu0
      %4953 = vdwg.mxu0
      %v4954 = vadd.f32 %v4080, %v4951
      %s4955 = scalar_lea.vmem %s13, 256
      %v4956 = vld [vmem:[%s4955] sm:$0xff]
      %v4957 = vld [vmem:[%s4955 + $0x8] sm:$0xff]
      %v4958 = vld [vmem:[%s4955 + $0x10] sm:$0xff]
      %v4959 = vld [vmem:[%s4955 + $0x18] sm:$0xff]
      %v4960 = vld [vmem:[%s4955 + $0x20] sm:$0xff]
      %v4961 = vld [vmem:[%s4955 + $0x28] sm:$0xff]
      %v4962 = vld [vmem:[%s4955 + $0x30] sm:$0xff]
      %v4963 = vld [vmem:[%s4955 + $0x38] sm:$0xff]
      %v4964 = vld [vmem:[%s4955 + $0x40] sm:$0xff]
      %v4965 = vld [vmem:[%s4955 + $0x48] sm:$0xff]
      %v4966 = vld [vmem:[%s4955 + $0x50] sm:$0xff]
      %v4967 = vld [vmem:[%s4955 + $0x58] sm:$0xff]
      %v4968 = vld [vmem:[%s4955 + $0x60] sm:$0xff]
      %v4969 = vld [vmem:[%s4955 + $0x68] sm:$0xff]
      %v4970 = vld [vmem:[%s4955 + $0x70] sm:$0xff]
      %v4971 = vld [vmem:[%s4955 + $0x78] sm:$0xff]
      %v4972 = vld [vmem:[%s4955 + $0x80] sm:$0xff]
      %v4973 = vld [vmem:[%s4955 + $0x88] sm:$0xff]
      %v4974 = vld [vmem:[%s4955 + $0x90] sm:$0xff]
      %v4975 = vld [vmem:[%s4955 + $0x98] sm:$0xff]
      %v4976 = vld [vmem:[%s4955 + $0xa0] sm:$0xff]
      %v4977 = vld [vmem:[%s4955 + $0xa8] sm:$0xff]
      %v4978 = vld [vmem:[%s4955 + $0xb0] sm:$0xff]
      %v4979 = vld [vmem:[%s4955 + $0xb8] sm:$0xff]
      %v4980 = vld [vmem:[%s4955 + $0xc0] sm:$0xff]
      %v4981 = vld [vmem:[%s4955 + $0xc8] sm:$0xff]
      %v4982 = vld [vmem:[%s4955 + $0xd0] sm:$0xff]
      %v4983 = vld [vmem:[%s4955 + $0xd8] sm:$0xff]
      %v4984 = vld [vmem:[%s4955 + $0xe0] sm:$0xff]
      %v4985 = vld [vmem:[%s4955 + $0xe8] sm:$0xff]
      %v4986 = vld [vmem:[%s4955 + $0xf0] sm:$0xff]
      %v4987 = vld [vmem:[%s4955 + $0xf8] sm:$0xff]
      %4988 = vmatprep.subr.mxu0 %v4957
      %4989 = vmatpush1.msra.mxu0 %v4956
      %4990 = vmatprep.subr.mxu0 %v4959
      %4991 = vmatpush1.msra.mxu0 %v4958
      %4992 = vmatprep.subr.mxu0 %v4961
      %4993 = vmatpush1.msra.mxu0 %v4960
      %4994 = vmatprep.subr.mxu0 %v4963
      %4995 = vmatpush1.msra.mxu0 %v4962
      %4996 = vmatprep.subr.mxu0 %v4965
      %4997 = vmatpush1.msra.mxu0 %v4964
      %4998 = vmatprep.subr.mxu0 %v4967
      %4999 = vmatpush1.msra.mxu0 %v4966
      %5000 = vmatprep.subr.mxu0 %v4969
      %5001 = vmatpush1.msra.mxu0 %v4968
      %5002 = vmatprep.subr.mxu0 %v4971
      %5003 = vmatpush1.msra.mxu0 %v4970
      %5004 = vmatprep.subr.mxu0 %v4973
      %5005 = vmatpush1.msra.mxu0 %v4972
      %5006 = vmatprep.subr.mxu0 %v4975
      %5007 = vmatpush1.msra.mxu0 %v4974
      %5008 = vmatprep.subr.mxu0 %v4977
      %5009 = vmatpush1.msra.mxu0 %v4976
      %5010 = vmatprep.subr.mxu0 %v4979
      %5011 = vmatpush1.msra.mxu0 %v4978
      %5012 = vmatprep.subr.mxu0 %v4981
      %5013 = vmatpush1.msra.mxu0 %v4980
      %5014 = vmatprep.subr.mxu0 %v4983
      %5015 = vmatpush1.msra.mxu0 %v4982
      %5016 = vmatprep.subr.mxu0 %v4985
      %5017 = vmatpush1.msra.mxu0 %v4984
      %5018 = vmatprep.subr.mxu0 %v4987
      %5019 = vmatpush1.msra.mxu0 %v4986
      %5020 = vmatprep.subr.mxu0 0.0
      %5021 = vmatpush1.msra.mxu0 0.0
      %5022 = vmatprep.subr.mxu0 0.0
      %5023 = vmatpush1.msra.mxu0 0.0
      %5024 = vmatprep.subr.mxu0 0.0
      %5025 = vmatpush1.msra.mxu0 0.0
      %5026 = vmatprep.subr.mxu0 0.0
      %5027 = vmatpush1.msra.mxu0 0.0
      %5028 = vmatprep.subr.mxu0 0.0
      %5029 = vmatpush1.msra.mxu0 0.0
      %5030 = vmatprep.subr.mxu0 0.0
      %5031 = vmatpush1.msra.mxu0 0.0
      %5032 = vmatprep.subr.mxu0 0.0
      %5033 = vmatpush1.msra.mxu0 0.0
      %5034 = vmatprep.subr.mxu0 0.0
      %5035 = vmatpush1.msra.mxu0 0.0
      %5036 = vmatprep.subr.mxu0 0.0
      %5037 = vmatpush1.msra.mxu0 0.0
      %5038 = vmatprep.subr.mxu0 0.0
      %5039 = vmatpush1.msra.mxu0 0.0
      %5040 = vmatprep.subr.mxu0 0.0
      %5041 = vmatpush1.msra.mxu0 0.0
      %5042 = vmatprep.subr.mxu0 0.0
      %5043 = vmatpush1.msra.mxu0 0.0
      %5044 = vmatprep.subr.mxu0 0.0
      %5045 = vmatpush1.msra.mxu0 0.0
      %5046 = vmatprep.subr.mxu0 0.0
      %5047 = vmatpush1.msra.mxu0 0.0
      %5048 = vmatprep.subr.mxu0 0.0
      %5049 = vmatpush1.msra.mxu0 0.0
      %5050 = vmatprep.subr.mxu0 0.0
      %5051 = vmatpush1.msra.mxu0 0.0
      %5052 = vmatprep.mubr.f32.mxu0 0.0
      %5053 = vmatmul.mubr.f32.gmra.mrb[0].mxu0 %v4954
      %v5054 = vpop.f32.mrb[0].mxu0
      %v5055 = vadd.f32 0.0, %v5054
      %v5056 = vpop.f32.mrb[0].mxu0
      %v5057 = vadd.f32 0.0, %v5056
      %5058 = vdwg.mxu0
      %v5060 = vcombine.high %v5055, %v5055
      %v5062 = vunpack.c.l.s4 1966171168
      %v5063 = vunpack.c.0.s8 %v5062
      %v5064 = vlaneseq
      %v5065 = vshrl.u32 %v5064, 7
      %v5066 = vsub.s32 %v5063, %v5065
      %v5067 = vrot.slane %v5055, %v5066
      %v5069 = vunpack.c.l.s4 1966171168
      %v5070 = vunpack.c.0.s8 %v5069
      %v5071 = vlaneseq
      %v5072 = vshrl.u32 %v5071, 7
      %v5073 = vsub.s32 %v5070, %v5072
      %v5074 = vrot.slane %v5060, %v5073
      %v5075 = vcombine.high %v5067, %v5067
      %v5076 = vcombine.high %v5074, %v5074
      %v5078 = vunpack.c.l.s4 1966171168
      %v5079 = vunpack.c.0.s8 %v5078
      %v5080 = vlaneseq
      %v5081 = vshrl.u32 %v5080, 7
      %v5082 = vsub.s32 %v5079, %v5081
      %v5083 = vrot.slane %v5067, %v5082
      %v5085 = vunpack.c.l.s4 1966171168
      %v5086 = vunpack.c.0.s8 %v5085
      %v5087 = vlaneseq
      %v5088 = vshrl.u32 %v5087, 7
      %v5089 = vsub.s32 %v5086, %v5088
      %v5090 = vrot.slane %v5074, %v5089
      %v5092 = vunpack.c.l.s4 1966171168
      %v5093 = vunpack.c.0.s8 %v5092
      %v5094 = vlaneseq
      %v5095 = vshrl.u32 %v5094, 7
      %v5096 = vsub.s32 %v5093, %v5095
      %v5097 = vrot.slane %v5075, %v5096
      %v5099 = vunpack.c.l.s4 1966171168
      %v5100 = vunpack.c.0.s8 %v5099
      %v5101 = vlaneseq
      %v5102 = vshrl.u32 %v5101, 7
      %v5103 = vsub.s32 %v5100, %v5102
      %v5104 = vrot.slane %v5076, %v5103
      %v5105 = vcombine.high %v5083, %v5083
      %v5106 = vcombine.high %v5090, %v5090
      %v5107 = vcombine.high %v5097, %v5097
      %v5108 = vcombine.high %v5104, %v5104
      %s5109 = scalar_lea.vmem %s14, 1
      %v5110 = vld [vmem:[%s5109] sm:$0x1]
      %s5111 = scalar_lea.vmem %s15, 1
      %v5112 = vld [vmem:[%s5111] sm:$0x1]
      %s5113 = scalar_lea.vmem %s16, 1
      %v5114 = vld [vmem:[%s5113] sm:$0x1]
      %s5115 = scalar_lea.vmem %s19, 1
      %v5116 = vld [vmem:[%s5115] sm:$0x1]
      %v5117 = vlaneseq
      %v5118 = vshrl.u32 %v5117, 7
      %v5119 = vsub.s32 0, %v5118
      %v5120 = vrot.slane %v5083, %v5119
      %v5121 = vlaneseq
      %v5122 = vshrl.u32 %v5121, 7
      %v5123 = vsub.s32 0, %v5122
      %v5124 = vrot.slane %v5097, %v5123
      %v5125 = vlaneseq
      %v5126 = vshrl.u32 %v5125, 7
      %v5127 = vsub.s32 0, %v5126
      %v5128 = vrot.slane %v5105, %v5127
      %v5129 = vlaneseq
      %v5130 = vshrl.u32 %v5129, 7
      %v5131 = vsub.s32 0, %v5130
      %v5132 = vrot.slane %v5107, %v5131
      %v5133 = vlaneseq
      %v5134 = vshrl.u32 %v5133, 7
      %v5135 = vsub.s32 0, %v5134
      %v5136 = vrot.slane %v5090, %v5135
      %v5137 = vlaneseq
      %v5138 = vshrl.u32 %v5137, 7
      %v5139 = vsub.s32 0, %v5138
      %v5140 = vrot.slane %v5104, %v5139
      %v5141 = vlaneseq
      %v5142 = vshrl.u32 %v5141, 7
      %v5143 = vsub.s32 0, %v5142
      %v5144 = vrot.slane %v5106, %v5143
      %v5145 = vlaneseq
      %v5146 = vshrl.u32 %v5145, 7
      %v5147 = vsub.s32 0, %v5146
      %v5148 = vrot.slane %v5108, %v5147
      %v5157 = vadd.f32 %v5120, %v5057
      %v5158 = vadd.f32 %v5124, %v5057
      %v5159 = vadd.f32 %v5128, %v5057
      %v5160 = vadd.f32 %v5132, %v5057
      %v5161 = vadd.f32 %v5136, %v5057
      %v5162 = vadd.f32 %v5140, %v5057
      %v5163 = vadd.f32 %v5144, %v5057
      %v5164 = vadd.f32 %v5148, %v5057
      %v5166 = vlaneseq
      %v5167 = vshrl.u32 %v5166, 7
      %v5168 = vsub.s32 0, %v5167
      %v5169 = vrot.slane %v5110, %v5168
      %v5171 = vmul.f32 %v3365, %v5169
      %v5172 = vmul.f32 %v3372, %v5169
      %v5173 = vmul.f32 %v3379, %v5169
      %v5174 = vmul.f32 %v3386, %v5169
      %v5175 = vmul.f32 %v3393, %v5169
      %v5176 = vmul.f32 %v3400, %v5169
      %v5177 = vmul.f32 %v3407, %v5169
      %v5178 = vmul.f32 %v3414, %v5169
      %v5179 = vadd.f32 %v5157, %v5171
      %v5180 = vadd.f32 %v5158, %v5172
      %v5181 = vadd.f32 %v5159, %v5173
      %v5182 = vadd.f32 %v5160, %v5174
      %v5183 = vadd.f32 %v5161, %v5175
      %v5184 = vadd.f32 %v5162, %v5176
      %v5185 = vadd.f32 %v5163, %v5177
      %v5186 = vadd.f32 %v5164, %v5178
      %v5188 = vlaneseq
      %v5189 = vshrl.u32 %v5188, 7
      %v5190 = vsub.s32 0, %v5189
      %v5191 = vrot.slane %v5112, %v5190
      %v5193 = vmul.f32 %v896, %v5191
      %v5194 = vmul.f32 %v903, %v5191
      %v5195 = vmul.f32 %v910, %v5191
      %v5196 = vmul.f32 %v917, %v5191
      %v5197 = vmul.f32 %v924, %v5191
      %v5198 = vmul.f32 %v931, %v5191
      %v5199 = vmul.f32 %v938, %v5191
      %v5200 = vmul.f32 %v945, %v5191
      %v5201 = vadd.f32 %v5179, %v5193
      %v5202 = vadd.f32 %v5180, %v5194
      %v5203 = vadd.f32 %v5181, %v5195
      %v5204 = vadd.f32 %v5182, %v5196
      %v5205 = vadd.f32 %v5183, %v5197
      %v5206 = vadd.f32 %v5184, %v5198
      %v5207 = vadd.f32 %v5185, %v5199
      %v5208 = vadd.f32 %v5186, %v5200
      %v5210 = vlaneseq
      %v5211 = vshrl.u32 %v5210, 7
      %v5212 = vsub.s32 0, %v5211
      %v5213 = vrot.slane %v5114, %v5212
      %v5215 = vadd.f32 %v5201, %v5213
      %v5216 = vadd.f32 %v5202, %v5213
      %v5217 = vadd.f32 %v5203, %v5213
      %v5218 = vadd.f32 %v5204, %v5213
      %v5219 = vadd.f32 %v5205, %v5213
      %v5220 = vadd.f32 %v5206, %v5213
      %v5221 = vadd.f32 %v5207, %v5213
      %v5222 = vadd.f32 %v5208, %v5213
      %v5223 = vxor.u32 %v5215, 2147483648
      %v5224 = vxor.u32 %v5216, 2147483648
      %v5225 = vxor.u32 %v5217, 2147483648
      %v5226 = vxor.u32 %v5218, 2147483648
      %v5227 = vxor.u32 %v5219, 2147483648
      %v5228 = vxor.u32 %v5220, 2147483648
      %v5229 = vxor.u32 %v5221, 2147483648
      %v5230 = vxor.u32 %v5222, 2147483648
      %v5231 = vmul.f32 %v5223, 1.442695
      %v5232 = vpow.pop %v5231
      %v5233 = vmul.f32 %v5224, 1.442695
      %v5234 = vpow.pop %v5233
      %v5235 = vmul.f32 %v5225, 1.442695
      %v5236 = vpow.pop %v5235
      %v5237 = vmul.f32 %v5226, 1.442695
      %v5238 = vpow.pop %v5237
      %v5239 = vmul.f32 %v5227, 1.442695
      %v5240 = vpow.pop %v5239
      %v5241 = vmul.f32 %v5228, 1.442695
      %v5242 = vpow.pop %v5241
      %v5243 = vmul.f32 %v5229, 1.442695
      %v5244 = vpow.pop %v5243
      %v5245 = vmul.f32 %v5230, 1.442695
      %v5246 = vpow.pop %v5245
      %v5247 = vadd.f32 %v5232, 1.0
      %v5248 = vadd.f32 %v5234, 1.0
      %v5249 = vadd.f32 %v5236, 1.0
      %v5250 = vadd.f32 %v5238, 1.0
      %v5251 = vadd.f32 %v5240, 1.0
      %v5252 = vadd.f32 %v5242, 1.0
      %v5253 = vadd.f32 %v5244, 1.0
      %v5254 = vadd.f32 %v5246, 1.0
      %v5255 = vrcp.pop %v5247
      %v5256 = vmul.f32 1.0, %v5255
      %v5257 = vrcp.pop %v5248
      %v5258 = vmul.f32 1.0, %v5257
      %v5259 = vrcp.pop %v5249
      %v5260 = vmul.f32 1.0, %v5259
      %v5261 = vrcp.pop %v5250
      %v5262 = vmul.f32 1.0, %v5261
      %v5263 = vrcp.pop %v5251
      %v5264 = vmul.f32 1.0, %v5263
      %v5265 = vrcp.pop %v5252
      %v5266 = vmul.f32 1.0, %v5265
      %v5267 = vrcp.pop %v5253
      %v5268 = vmul.f32 1.0, %v5267
      %v5269 = vrcp.pop %v5254
      %v5270 = vmul.f32 1.0, %v5269
      %v5271 = vmul.f32 %v5215, %v5256
      %v5272 = vmul.f32 %v5216, %v5258
      %v5273 = vmul.f32 %v5217, %v5260
      %v5274 = vmul.f32 %v5218, %v5262
      %v5275 = vmul.f32 %v5219, %v5264
      %v5276 = vmul.f32 %v5220, %v5266
      %v5277 = vmul.f32 %v5221, %v5268
      %v5278 = vmul.f32 %v5222, %v5270
      %s5279 = scalar_lea.vmem %s17, 128
      %v5280 = vld [vmem:[%s5279] sm:$0xff]
      %v5281 = vld [vmem:[%s5279 + $0x8] sm:$0xff]
      %v5282 = vld [vmem:[%s5279 + $0x10] sm:$0xff]
      %v5283 = vld [vmem:[%s5279 + $0x18] sm:$0xff]
      %v5284 = vld [vmem:[%s5279 + $0x20] sm:$0xff]
      %v5285 = vld [vmem:[%s5279 + $0x28] sm:$0xff]
      %v5286 = vld [vmem:[%s5279 + $0x30] sm:$0xff]
      %v5287 = vld [vmem:[%s5279 + $0x38] sm:$0xff]
      %v5288 = vld [vmem:[%s5279 + $0x40] sm:$0xff]
      %v5289 = vld [vmem:[%s5279 + $0x48] sm:$0xff]
      %v5290 = vld [vmem:[%s5279 + $0x50] sm:$0xff]
      %v5291 = vld [vmem:[%s5279 + $0x58] sm:$0xff]
      %v5292 = vld [vmem:[%s5279 + $0x60] sm:$0xff]
      %v5293 = vld [vmem:[%s5279 + $0x68] sm:$0xff]
      %v5294 = vld [vmem:[%s5279 + $0x70] sm:$0xff]
      %v5295 = vld [vmem:[%s5279 + $0x78] sm:$0xff]
      %s5296 = scalar_lea.vmem %s18, 1
      %v5297 = vld [vmem:[%s5296] sm:$0x1]
      %v5299 = vlaneseq
      %v5300 = vshrl.u32 %v5299, 7
      %v5301 = vsub.s32 0, %v5300
      %v5302 = vrot.slane %v5297, %v5301
      %5304 = vmatprep.subr.mxu0 0.0
      %5305 = vmatpush1.msra.mxu0 %v5280
      %5306 = vmatprep.subr.mxu0 0.0
      %5307 = vmatpush1.msra.mxu0 %v5281
      %5308 = vmatprep.subr.mxu0 0.0
      %5309 = vmatpush1.msra.mxu0 %v5282
      %5310 = vmatprep.subr.mxu0 0.0
      %5311 = vmatpush1.msra.mxu0 %v5283
      %5312 = vmatprep.subr.mxu0 0.0
      %5313 = vmatpush1.msra.mxu0 %v5284
      %5314 = vmatprep.subr.mxu0 0.0
      %5315 = vmatpush1.msra.mxu0 %v5285
      %5316 = vmatprep.subr.mxu0 0.0
      %5317 = vmatpush1.msra.mxu0 %v5286
      %5318 = vmatprep.subr.mxu0 0.0
      %5319 = vmatpush1.msra.mxu0 %v5287
      %5320 = vmatprep.subr.mxu0 0.0
      %5321 = vmatpush1.msra.mxu0 %v5288
      %5322 = vmatprep.subr.mxu0 0.0
      %5323 = vmatpush1.msra.mxu0 %v5289
      %5324 = vmatprep.subr.mxu0 0.0
      %5325 = vmatpush1.msra.mxu0 %v5290
      %5326 = vmatprep.subr.mxu0 0.0
      %5327 = vmatpush1.msra.mxu0 %v5291
      %5328 = vmatprep.subr.mxu0 0.0
      %5329 = vmatpush1.msra.mxu0 %v5292
      %5330 = vmatprep.subr.mxu0 0.0
      %5331 = vmatpush1.msra.mxu0 %v5293
      %5332 = vmatprep.subr.mxu0 0.0
      %5333 = vmatpush1.msra.mxu0 %v5294
      %5334 = vmatprep.subr.mxu0 0.0
      %5335 = vmatpush1.msra.mxu0 %v5295
      %5336 = vmatprep.subr.mxu0 0.0
      %5337 = vmatpush1.msra.mxu0 0.0
      %5338 = vmatprep.subr.mxu0 0.0
      %5339 = vmatpush1.msra.mxu0 0.0
      %5340 = vmatprep.subr.mxu0 0.0
      %5341 = vmatpush1.msra.mxu0 0.0
      %5342 = vmatprep.subr.mxu0 0.0
      %5343 = vmatpush1.msra.mxu0 0.0
      %5344 = vmatprep.subr.mxu0 0.0
      %5345 = vmatpush1.msra.mxu0 0.0
      %5346 = vmatprep.subr.mxu0 0.0
      %5347 = vmatpush1.msra.mxu0 0.0
      %5348 = vmatprep.subr.mxu0 0.0
      %5349 = vmatpush1.msra.mxu0 0.0
      %5350 = vmatprep.subr.mxu0 0.0
      %5351 = vmatpush1.msra.mxu0 0.0
      %5352 = vmatprep.subr.mxu0 0.0
      %5353 = vmatpush1.msra.mxu0 0.0
      %5354 = vmatprep.subr.mxu0 0.0
      %5355 = vmatpush1.msra.mxu0 0.0
      %5356 = vmatprep.subr.mxu0 0.0
      %5357 = vmatpush1.msra.mxu0 0.0
      %5358 = vmatprep.subr.mxu0 0.0
      %5359 = vmatpush1.msra.mxu0 0.0
      %5360 = vmatprep.subr.mxu0 0.0
      %5361 = vmatpush1.msra.mxu0 0.0
      %5362 = vmatprep.subr.mxu0 0.0
      %5363 = vmatpush1.msra.mxu0 0.0
      %5364 = vmatprep.subr.mxu0 0.0
      %5365 = vmatpush1.msra.mxu0 0.0
      %5366 = vmatprep.subr.mxu0 0.0
      %5367 = vmatpush1.msra.mxu0 0.0
      %5368 = vmatprep.mubr.f32.mxu0 0.0
      %5369 = vmatmul.mubr.f32.gmra.mrb[0].mxu0 %v5271
      %v5370 = vpop.f32.mrb[0].mxu0
      %v5371 = vadd.f32 %v5302, %v5370
      %v5372 = vpop.f32.mrb[0].mxu0
      %5373 = vmatprep.mubr.f32.mxu0 0.0
      %5374 = vmatmul.mubr.f32.gmra.mrb[0].mxu0 %v5272
      %v5375 = vpop.f32.mrb[0].mxu0
      %v5376 = vadd.f32 %v5302, %v5375
      %v5377 = vpop.f32.mrb[0].mxu0
      %5378 = vmatprep.mubr.f32.mxu0 0.0
      %5379 = vmatmul.mubr.f32.gmra.mrb[0].mxu0 %v5273
      %v5380 = vpop.f32.mrb[0].mxu0
      %v5381 = vadd.f32 %v5302, %v5380
      %v5382 = vpop.f32.mrb[0].mxu0
      %5383 = vmatprep.mubr.f32.mxu0 0.0
      %5384 = vmatmul.mubr.f32.gmra.mrb[0].mxu0 %v5274
      %v5385 = vpop.f32.mrb[0].mxu0
      %v5386 = vadd.f32 %v5302, %v5385
      %v5387 = vpop.f32.mrb[0].mxu0
      %5388 = vmatprep.mubr.f32.mxu0 0.0
      %5389 = vmatmul.mubr.f32.gmra.mrb[0].mxu0 %v5275
      %v5390 = vpop.f32.mrb[0].mxu0
      %v5391 = vadd.f32 %v5302, %v5390
      %v5392 = vpop.f32.mrb[0].mxu0
      %5393 = vmatprep.mubr.f32.mxu0 0.0
      %5394 = vmatmul.mubr.f32.gmra.mrb[0].mxu0 %v5276
      %v5395 = vpop.f32.mrb[0].mxu0
      %v5396 = vadd.f32 %v5302, %v5395
      %v5397 = vpop.f32.mrb[0].mxu0
      %5398 = vmatprep.mubr.f32.mxu0 0.0
      %5399 = vmatmul.mubr.f32.gmra.mrb[0].mxu0 %v5277
      %v5400 = vpop.f32.mrb[0].mxu0
      %v5401 = vadd.f32 %v5302, %v5400
      %v5402 = vpop.f32.mrb[0].mxu0
      %5403 = vmatprep.mubr.f32.mxu0 0.0
      %5404 = vmatmul.mubr.f32.gmra.mrb[0].mxu0 %v5278
      %v5405 = vpop.f32.mrb[0].mxu0
      %v5406 = vadd.f32 %v5302, %v5405
      %v5407 = vpop.f32.mrb[0].mxu0
      %5408 = vdwg.mxu0
      %v5409 = vxor.u32 %v5371, 2147483648
      %v5410 = vxor.u32 %v5376, 2147483648
      %v5411 = vxor.u32 %v5381, 2147483648
      %v5412 = vxor.u32 %v5386, 2147483648
      %v5413 = vxor.u32 %v5391, 2147483648
      %v5414 = vxor.u32 %v5396, 2147483648
      %v5415 = vxor.u32 %v5401, 2147483648
      %v5416 = vxor.u32 %v5406, 2147483648
      %v5417 = vmul.f32 %v5409, 1.442695
      %v5418 = vpow.pop %v5417
      %v5419 = vmul.f32 %v5410, 1.442695
      %v5420 = vpow.pop %v5419
      %v5421 = vmul.f32 %v5411, 1.442695
      %v5422 = vpow.pop %v5421
      %v5423 = vmul.f32 %v5412, 1.442695
      %v5424 = vpow.pop %v5423
      %v5425 = vmul.f32 %v5413, 1.442695
      %v5426 = vpow.pop %v5425
      %v5427 = vmul.f32 %v5414, 1.442695
      %v5428 = vpow.pop %v5427
      %v5429 = vmul.f32 %v5415, 1.442695
      %v5430 = vpow.pop %v5429
      %v5431 = vmul.f32 %v5416, 1.442695
      %v5432 = vpow.pop %v5431
      %v5433 = vadd.f32 %v5418, 1.0
      %v5434 = vadd.f32 %v5420, 1.0
      %v5435 = vadd.f32 %v5422, 1.0
      %v5436 = vadd.f32 %v5424, 1.0
      %v5437 = vadd.f32 %v5426, 1.0
      %v5438 = vadd.f32 %v5428, 1.0
      %v5439 = vadd.f32 %v5430, 1.0
      %v5440 = vadd.f32 %v5432, 1.0
      %v5441 = vrcp.pop %v5433
      %v5442 = vmul.f32 1.0, %v5441
      %v5443 = vrcp.pop %v5434
      %v5444 = vmul.f32 1.0, %v5443
      %v5445 = vrcp.pop %v5435
      %v5446 = vmul.f32 1.0, %v5445
      %v5447 = vrcp.pop %v5436
      %v5448 = vmul.f32 1.0, %v5447
      %v5449 = vrcp.pop %v5437
      %v5450 = vmul.f32 1.0, %v5449
      %v5451 = vrcp.pop %v5438
      %v5452 = vmul.f32 1.0, %v5451
      %v5453 = vrcp.pop %v5439
      %v5454 = vmul.f32 1.0, %v5453
      %v5455 = vrcp.pop %v5440
      %v5456 = vmul.f32 1.0, %v5455
      %v5457 = vmul.f32 %v5371, %v5442
      %v5458 = vmul.f32 %v5376, %v5444
      %v5459 = vmul.f32 %v5381, %v5446
      %v5460 = vmul.f32 %v5386, %v5448
      %v5461 = vmul.f32 %v5391, %v5450
      %v5462 = vmul.f32 %v5396, %v5452
      %v5463 = vmul.f32 %v5401, %v5454
      %v5464 = vmul.f32 %v5406, %v5456
      %v5466 = vlaneseq
      %v5467 = vshrl.u32 %v5466, 7
      %v5468 = vsub.s32 0, %v5467
      %v5469 = vrot.slane %v5116, %v5468
      %v5471 = vmul.f32 %v5457, %v5469
      %v5472 = vmul.f32 %v5458, %v5469
      %v5473 = vmul.f32 %v5459, %v5469
      %v5474 = vmul.f32 %v5460, %v5469
      %v5475 = vmul.f32 %v5461, %v5469
      %v5476 = vmul.f32 %v5462, %v5469
      %v5477 = vmul.f32 %v5463, %v5469
      %v5478 = vmul.f32 %v5464, %v5469
      %5479 = vadd.xlane.f32.xlu0 %v5471
      %v5480 = vpop.xlane.xlu0 %5479
      %5481 = vadd.xlane.f32.xlu0 %v5472
      %v5482 = vpop.xlane.xlu0 %5481
      %5483 = vadd.xlane.f32.xlu0 %v5473
      %v5484 = vpop.xlane.xlu0 %5483
      %5485 = vadd.xlane.f32.xlu0 %v5474
      %v5486 = vpop.xlane.xlu0 %5485
      %5487 = vadd.xlane.f32.xlu0 %v5475
      %v5488 = vpop.xlane.xlu0 %5487
      %5489 = vadd.xlane.f32.xlu0 %v5476
      %v5490 = vpop.xlane.xlu0 %5489
      %5491 = vadd.xlane.f32.xlu0 %v5477
      %v5492 = vpop.xlane.xlu0 %5491
      %5493 = vadd.xlane.f32.xlu0 %v5478
      %v5494 = vpop.xlane.xlu0 %5493
      %v5503 = vlaneseq
      %v5504 = vshrl.u32 %v5503, 7
      %v5505 = vsub.s32 %v3028, %v5504
      %v5506 = vrot.slane %v5480, %v5505
      %v5507 = vlaneseq
      %v5508 = vshrl.u32 %v5507, 7
      %v5509 = vsub.s32 %v3028, %v5508
      %v5510 = vrot.slane %v5482, %v5509
      %v5511 = vlaneseq
      %v5512 = vshrl.u32 %v5511, 7
      %v5513 = vsub.s32 %v3028, %v5512
      %v5514 = vrot.slane %v5484, %v5513
      %v5515 = vlaneseq
      %v5516 = vshrl.u32 %v5515, 7
      %v5517 = vsub.s32 %v3028, %v5516
      %v5518 = vrot.slane %v5486, %v5517
      %v5519 = vlaneseq
      %v5520 = vshrl.u32 %v5519, 7
      %v5521 = vsub.s32 %v3028, %v5520
      %v5522 = vrot.slane %v5488, %v5521
      %v5523 = vlaneseq
      %v5524 = vshrl.u32 %v5523, 7
      %v5525 = vsub.s32 %v3028, %v5524
      %v5526 = vrot.slane %v5490, %v5525
      %v5527 = vlaneseq
      %v5528 = vshrl.u32 %v5527, 7
      %v5529 = vsub.s32 %v3028, %v5528
      %v5530 = vrot.slane %v5492, %v5529
      %v5531 = vlaneseq
      %v5532 = vshrl.u32 %v5531, 7
      %v5533 = vsub.s32 %v3028, %v5532
      %v5534 = vrot.slane %v5494, %v5533
      %v5535 = vsel %vm1348, %v5510, %v5506
      %v5536 = vsel %vm1350, %v5514, %v5535
      %v5537 = vsel %vm1352, %v5518, %v5536
      %v5538 = vsel %vm1354, %v5522, %v5537
      %v5539 = vsel %vm1356, %v5526, %v5538
      %v5540 = vsel %vm1358, %v5530, %v5539
      %v5541 = vsel %vm1360, %v5534, %v5540
      %v5543 = vmul.f32 %v3148, %v5541
      %v5544 = vsel %vm3070, %v5543, 0.0
      %5545 = vadd.xlane.f32.xlu0 %v5544
      %v5546 = vpop.xlane.xlu0 %5545
      %v5547 = vadd.f32 %v5546, 0.0
      %v5548 = vmul.f32 %v3149, %v5541
      %v5549 = vsel %vm3070, %v5548, 0.0
      %5550 = vadd.xlane.f32.xlu0 %v5549
      %v5551 = vpop.xlane.xlu0 %5550
      %v5552 = vadd.f32 %v5551, 0.0
      %v5553 = vmul.f32 %v3150, %v5541
      %v5554 = vsel %vm3070, %v5553, 0.0
      %5555 = vadd.xlane.f32.xlu0 %v5554
      %v5556 = vpop.xlane.xlu0 %5555
      %v5557 = vadd.f32 %v5556, 0.0
      %v5558 = vmul.f32 %v5547, 0.01
      %v5560 = vlaneseq
      %v5561 = vshrl.u32 %v5560, 7
      %v5562 = vsub.s32 %v3028, %v5561
      %v5563 = vrot.slane %v5558, %v5562
      %v5565 = vadd.f32 %v3092, %v5563
      %v5566 = vmul.f32 %v5552, 0.01
      %v5568 = vlaneseq
      %v5569 = vshrl.u32 %v5568, 7
      %v5570 = vsub.s32 %v3028, %v5569
      %v5571 = vrot.slane %v5566, %v5570
      %v5573 = vadd.f32 %v3100, %v5571
      %v5574 = vmul.f32 %v5557, 0.01
      %v5576 = vlaneseq
      %v5577 = vshrl.u32 %v5576, 7
      %v5578 = vsub.s32 %v3028, %v5577
      %v5579 = vrot.slane %v5574, %v5578
      %v5581 = vadd.f32 %v3108, %v5579
      %v5582 = vlaneseq
      %v5583 = vshrl.u32 %v5582, 7
      %v5584 = vsub.s32 0, %v5583
      %v5585 = vrot.slane %v5565, %v5584
      %5587 = vbcast.lane.b32.xlu0 %v5585, 256
      %v5588 = vpop.permute.xlu0 %5587
      %v5589 = vsub.f32 %v5588, %v5585
      %v5590 = vlaneseq
      %v5591 = vshrl.u32 %v5590, 7
      %v5592 = vsub.s32 1, %v5591
      %v5593 = vrot.slane %v5573, %v5592
      %5595 = vbcast.lane.b32.xlu0 %v5593, 256
      %v5596 = vpop.permute.xlu0 %5595
      %v5597 = vsub.f32 %v5596, %v5593
      %v5598 = vlaneseq
      %v5599 = vshrl.u32 %v5598, 7
      %v5600 = vsub.s32 2, %v5599
      %v5601 = vrot.slane %v5581, %v5600
      %5603 = vbcast.lane.b32.xlu0 %v5601, 256
      %v5604 = vpop.permute.xlu0 %5603
      %v5605 = vsub.f32 %v5604, %v5601
      %v5606 = vmul.f32 %v5589, %v5589
      %v5607 = vmul.f32 %v5597, %v5597
      %v5608 = vadd.f32 %v5606, %v5607
      %v5609 = vmul.f32 %v5605, %v5605
      %v5610 = vadd.f32 %v5608, %v5609
      %v5611 = vadd.f32 %v5610, 1e-08
      %v5612 = vrsqrt.pop %v5611
      %v5613 = vmul.f32 %v5611, %v5612
      %vm5614 = vcmp.eq.f32.partialorder %v5611, inf
      %v5615 = vsel %vm5614, %v5611, %v5613
      %vm5616 = vcmp.eq.f32.partialorder %v5611, 0.0
      %v5617 = vand.u32 %v5611, 2147483648
      %v5618 = vsel %vm5616, %v5617, %v5615
      %v5619 = vadd.f32 %v5618, 1.0
      %v5620 = vrcp.pop %v5619
      %v5621 = vmul.f32 %v5589, %v5620
      %v5622 = vmul.f32 %v5597, %v5620
      %v5623 = vmul.f32 %v5605, %v5620
      %s5624 = scalar_lea.vmem %s2, 1024
      %v5625 = vld [vmem:[%s5624] sm:$0xff]
      %v5626 = vld [vmem:[%s5624 + $0x8] sm:$0xff]
      %v5627 = vld [vmem:[%s5624 + $0x10] sm:$0xff]
      %v5628 = vld [vmem:[%s5624 + $0x18] sm:$0xff]
      %v5629 = vld [vmem:[%s5624 + $0x20] sm:$0xff]
      %v5630 = vld [vmem:[%s5624 + $0x28] sm:$0xff]
      %v5631 = vld [vmem:[%s5624 + $0x30] sm:$0xff]
      %v5632 = vld [vmem:[%s5624 + $0x38] sm:$0xff]
      %v5633 = vld [vmem:[%s5624 + $0x40] sm:$0xff]
      %v5634 = vld [vmem:[%s5624 + $0x48] sm:$0xff]
      %v5635 = vld [vmem:[%s5624 + $0x50] sm:$0xff]
      %v5636 = vld [vmem:[%s5624 + $0x58] sm:$0xff]
      %v5637 = vld [vmem:[%s5624 + $0x60] sm:$0xff]
      %v5638 = vld [vmem:[%s5624 + $0x68] sm:$0xff]
      %v5639 = vld [vmem:[%s5624 + $0x70] sm:$0xff]
      %v5640 = vld [vmem:[%s5624 + $0x78] sm:$0xff]
      %v5641 = vld [vmem:[%s5624 + $0x80] sm:$0xff]
      %v5642 = vld [vmem:[%s5624 + $0x88] sm:$0xff]
      %v5643 = vld [vmem:[%s5624 + $0x90] sm:$0xff]
      %v5644 = vld [vmem:[%s5624 + $0x98] sm:$0xff]
      %v5645 = vld [vmem:[%s5624 + $0xa0] sm:$0xff]
      %v5646 = vld [vmem:[%s5624 + $0xa8] sm:$0xff]
      %v5647 = vld [vmem:[%s5624 + $0xb0] sm:$0xff]
      %v5648 = vld [vmem:[%s5624 + $0xb8] sm:$0xff]
      %v5649 = vld [vmem:[%s5624 + $0xc0] sm:$0xff]
      %v5650 = vld [vmem:[%s5624 + $0xc8] sm:$0xff]
      %v5651 = vld [vmem:[%s5624 + $0xd0] sm:$0xff]
      %v5652 = vld [vmem:[%s5624 + $0xd8] sm:$0xff]
      %v5653 = vld [vmem:[%s5624 + $0xe0] sm:$0xff]
      %v5654 = vld [vmem:[%s5624 + $0xe8] sm:$0xff]
      %v5655 = vld [vmem:[%s5624 + $0xf0] sm:$0xff]
      %v5656 = vld [vmem:[%s5624 + $0xf8] sm:$0xff]
      %5657 = vmatprep.subr.mxu0 %v5626
      %5658 = vmatpush1.msra.mxu0 %v5625
      %5659 = vmatprep.subr.mxu0 %v5628
      %5660 = vmatpush1.msra.mxu0 %v5627
      %5661 = vmatprep.subr.mxu0 %v5630
      %5662 = vmatpush1.msra.mxu0 %v5629
      %5663 = vmatprep.subr.mxu0 %v5632
      %5664 = vmatpush1.msra.mxu0 %v5631
      %5665 = vmatprep.subr.mxu0 %v5634
      %5666 = vmatpush1.msra.mxu0 %v5633
      %5667 = vmatprep.subr.mxu0 %v5636
      %5668 = vmatpush1.msra.mxu0 %v5635
      %5669 = vmatprep.subr.mxu0 %v5638
      %5670 = vmatpush1.msra.mxu0 %v5637
      %5671 = vmatprep.subr.mxu0 %v5640
      %5672 = vmatpush1.msra.mxu0 %v5639
      %5673 = vmatprep.subr.mxu0 %v5642
      %5674 = vmatpush1.msra.mxu0 %v5641
      %5675 = vmatprep.subr.mxu0 %v5644
      %5676 = vmatpush1.msra.mxu0 %v5643
      %5677 = vmatprep.subr.mxu0 %v5646
      %5678 = vmatpush1.msra.mxu0 %v5645
      %5679 = vmatprep.subr.mxu0 %v5648
      %5680 = vmatpush1.msra.mxu0 %v5647
      %5681 = vmatprep.subr.mxu0 %v5650
      %5682 = vmatpush1.msra.mxu0 %v5649
      %5683 = vmatprep.subr.mxu0 %v5652
      %5684 = vmatpush1.msra.mxu0 %v5651
      %5685 = vmatprep.subr.mxu0 %v5654
      %5686 = vmatpush1.msra.mxu0 %v5653
      %5687 = vmatprep.subr.mxu0 %v5656
      %5688 = vmatpush1.msra.mxu0 %v5655
      %5689 = vmatprep.subr.mxu0 0.0
      %5690 = vmatpush1.msra.mxu0 0.0
      %5691 = vmatprep.subr.mxu0 0.0
      %5692 = vmatpush1.msra.mxu0 0.0
      %5693 = vmatprep.subr.mxu0 0.0
      %5694 = vmatpush1.msra.mxu0 0.0
      %5695 = vmatprep.subr.mxu0 0.0
      %5696 = vmatpush1.msra.mxu0 0.0
      %5697 = vmatprep.subr.mxu0 0.0
      %5698 = vmatpush1.msra.mxu0 0.0
      %5699 = vmatprep.subr.mxu0 0.0
      %5700 = vmatpush1.msra.mxu0 0.0
      %5701 = vmatprep.subr.mxu0 0.0
      %5702 = vmatpush1.msra.mxu0 0.0
      %5703 = vmatprep.subr.mxu0 0.0
      %5704 = vmatpush1.msra.mxu0 0.0
      %5705 = vmatprep.subr.mxu0 0.0
      %5706 = vmatpush1.msra.mxu0 0.0
      %5707 = vmatprep.subr.mxu0 0.0
      %5708 = vmatpush1.msra.mxu0 0.0
      %5709 = vmatprep.subr.mxu0 0.0
      %5710 = vmatpush1.msra.mxu0 0.0
      %5711 = vmatprep.subr.mxu0 0.0
      %5712 = vmatpush1.msra.mxu0 0.0
      %5713 = vmatprep.subr.mxu0 0.0
      %5714 = vmatpush1.msra.mxu0 0.0
      %5715 = vmatprep.subr.mxu0 0.0
      %5716 = vmatpush1.msra.mxu0 0.0
      %5717 = vmatprep.subr.mxu0 0.0
      %5718 = vmatpush1.msra.mxu0 0.0
      %5719 = vmatprep.subr.mxu0 0.0
      %5720 = vmatpush1.msra.mxu0 0.0
      %5721 = vmatprep.mubr.f32.mxu0 0.0
      %5722 = vmatmul.mubr.f32.gmra.mrb[0].mxu0 %v4954
      %v5723 = vpop.f32.mrb[0].mxu0
      %v5724 = vadd.f32 0.0, %v5723
      %v5725 = vpop.f32.mrb[0].mxu0
      %v5726 = vadd.f32 0.0, %v5725
      %5727 = vdwg.mxu0
      %v5729 = vcombine.high %v5724, %v5724
      %v5731 = vunpack.c.l.s4 1966171168
      %v5732 = vunpack.c.0.s8 %v5731
      %v5733 = vlaneseq
      %v5734 = vshrl.u32 %v5733, 7
      %v5735 = vsub.s32 %v5732, %v5734
      %v5736 = vrot.slane %v5724, %v5735
      %v5738 = vunpack.c.l.s4 1966171168
      %v5739 = vunpack.c.0.s8 %v5738
      %v5740 = vlaneseq
      %v5741 = vshrl.u32 %v5740, 7
      %v5742 = vsub.s32 %v5739, %v5741
      %v5743 = vrot.slane %v5729, %v5742
      %v5744 = vcombine.high %v5736, %v5736
      %v5745 = vcombine.high %v5743, %v5743
      %v5747 = vunpack.c.l.s4 1966171168
      %v5748 = vunpack.c.0.s8 %v5747
      %v5749 = vlaneseq
      %v5750 = vshrl.u32 %v5749, 7
      %v5751 = vsub.s32 %v5748, %v5750
      %v5752 = vrot.slane %v5736, %v5751
      %v5754 = vunpack.c.l.s4 1966171168
      %v5755 = vunpack.c.0.s8 %v5754
      %v5756 = vlaneseq
      %v5757 = vshrl.u32 %v5756, 7
      %v5758 = vsub.s32 %v5755, %v5757
      %v5759 = vrot.slane %v5743, %v5758
      %v5761 = vunpack.c.l.s4 1966171168
      %v5762 = vunpack.c.0.s8 %v5761
      %v5763 = vlaneseq
      %v5764 = vshrl.u32 %v5763, 7
      %v5765 = vsub.s32 %v5762, %v5764
      %v5766 = vrot.slane %v5744, %v5765
      %v5768 = vunpack.c.l.s4 1966171168
      %v5769 = vunpack.c.0.s8 %v5768
      %v5770 = vlaneseq
      %v5771 = vshrl.u32 %v5770, 7
      %v5772 = vsub.s32 %v5769, %v5771
      %v5773 = vrot.slane %v5745, %v5772
      %v5774 = vcombine.high %v5752, %v5752
      %v5775 = vcombine.high %v5759, %v5759
      %v5776 = vcombine.high %v5766, %v5766
      %v5777 = vcombine.high %v5773, %v5773
      %s5778 = scalar_lea.vmem %s3, 4
      %v5779 = vld [vmem:[%s5778] sm:$0x1]
      %s5780 = scalar_lea.vmem %s4, 4
      %v5781 = vld [vmem:[%s5780] sm:$0x1]
      %s5782 = scalar_lea.vmem %s5, 4
      %v5783 = vld [vmem:[%s5782] sm:$0x1]
      %v5784 = vlaneseq
      %v5785 = vshrl.u32 %v5784, 7
      %v5786 = vsub.s32 0, %v5785
      %v5787 = vrot.slane %v5752, %v5786
      %v5788 = vlaneseq
      %v5789 = vshrl.u32 %v5788, 7
      %v5790 = vsub.s32 0, %v5789
      %v5791 = vrot.slane %v5766, %v5790
      %v5792 = vlaneseq
      %v5793 = vshrl.u32 %v5792, 7
      %v5794 = vsub.s32 0, %v5793
      %v5795 = vrot.slane %v5774, %v5794
      %v5796 = vlaneseq
      %v5797 = vshrl.u32 %v5796, 7
      %v5798 = vsub.s32 0, %v5797
      %v5799 = vrot.slane %v5776, %v5798
      %v5800 = vlaneseq
      %v5801 = vshrl.u32 %v5800, 7
      %v5802 = vsub.s32 0, %v5801
      %v5803 = vrot.slane %v5759, %v5802
      %v5804 = vlaneseq
      %v5805 = vshrl.u32 %v5804, 7
      %v5806 = vsub.s32 0, %v5805
      %v5807 = vrot.slane %v5773, %v5806
      %v5808 = vlaneseq
      %v5809 = vshrl.u32 %v5808, 7
      %v5810 = vsub.s32 0, %v5809
      %v5811 = vrot.slane %v5775, %v5810
      %v5812 = vlaneseq
      %v5813 = vshrl.u32 %v5812, 7
      %v5814 = vsub.s32 0, %v5813
      %v5815 = vrot.slane %v5777, %v5814
      %v5824 = vadd.f32 %v5787, %v5726
      %v5825 = vadd.f32 %v5791, %v5726
      %v5826 = vadd.f32 %v5795, %v5726
      %v5827 = vadd.f32 %v5799, %v5726
      %v5828 = vadd.f32 %v5803, %v5726
      %v5829 = vadd.f32 %v5807, %v5726
      %v5830 = vadd.f32 %v5811, %v5726
      %v5831 = vadd.f32 %v5815, %v5726
      %v5832 = vlaneseq
      %v5833 = vshrl.u32 %v5832, 7
      %v5834 = vsub.s32 0, %v5833
      %v5835 = vrot.slane %v5610, %v5834
      %5837 = vbcast.lane.b32.xlu0 %v5835, 256
      %v5838 = vpop.permute.xlu0 %5837
      %v5839 = vlaneseq
      %v5840 = vshrl.u32 %v5839, 7
      %v5841 = vsub.s32 1, %v5840
      %v5842 = vrot.slane %v5610, %v5841
      %5844 = vbcast.lane.b32.xlu0 %v5842, 256
      %v5845 = vpop.permute.xlu0 %5844
      %v5846 = vlaneseq
      %v5847 = vshrl.u32 %v5846, 7
      %v5848 = vsub.s32 2, %v5847
      %v5849 = vrot.slane %v5610, %v5848
      %5851 = vbcast.lane.b32.xlu0 %v5849, 256
      %v5852 = vpop.permute.xlu0 %5851
      %v5853 = vlaneseq
      %v5854 = vshrl.u32 %v5853, 7
      %v5855 = vsub.s32 3, %v5854
      %v5856 = vrot.slane %v5610, %v5855
      %5858 = vbcast.lane.b32.xlu0 %v5856, 256
      %v5859 = vpop.permute.xlu0 %5858
      %v5860 = vlaneseq
      %v5861 = vshrl.u32 %v5860, 7
      %v5862 = vsub.s32 4, %v5861
      %v5863 = vrot.slane %v5610, %v5862
      %5865 = vbcast.lane.b32.xlu0 %v5863, 256
      %v5866 = vpop.permute.xlu0 %5865
      %v5867 = vlaneseq
      %v5868 = vshrl.u32 %v5867, 7
      %v5869 = vsub.s32 5, %v5868
      %v5870 = vrot.slane %v5610, %v5869
      %5872 = vbcast.lane.b32.xlu0 %v5870, 256
      %v5873 = vpop.permute.xlu0 %5872
      %v5874 = vlaneseq
      %v5875 = vshrl.u32 %v5874, 7
      %v5876 = vsub.s32 6, %v5875
      %v5877 = vrot.slane %v5610, %v5876
      %5879 = vbcast.lane.b32.xlu0 %v5877, 256
      %v5880 = vpop.permute.xlu0 %5879
      %v5881 = vlaneseq
      %v5882 = vshrl.u32 %v5881, 7
      %v5883 = vsub.s32 7, %v5882
      %v5884 = vrot.slane %v5610, %v5883
      %5886 = vbcast.lane.b32.xlu0 %v5884, 256
      %v5887 = vpop.permute.xlu0 %5886
      %v5889 = vlaneseq
      %v5890 = vshrl.u32 %v5889, 7
      %v5891 = vsub.s32 0, %v5890
      %v5892 = vrot.slane %v5779, %v5891
      %v5894 = vmul.f32 %v5838, %v5892
      %v5895 = vmul.f32 %v5845, %v5892
      %v5896 = vmul.f32 %v5852, %v5892
      %v5897 = vmul.f32 %v5859, %v5892
      %v5898 = vmul.f32 %v5866, %v5892
      %v5899 = vmul.f32 %v5873, %v5892
      %v5900 = vmul.f32 %v5880, %v5892
      %v5901 = vmul.f32 %v5887, %v5892
      %v5902 = vadd.f32 %v5824, %v5894
      %v5903 = vadd.f32 %v5825, %v5895
      %v5904 = vadd.f32 %v5826, %v5896
      %v5905 = vadd.f32 %v5827, %v5897
      %v5906 = vadd.f32 %v5828, %v5898
      %v5907 = vadd.f32 %v5829, %v5899
      %v5908 = vadd.f32 %v5830, %v5900
      %v5909 = vadd.f32 %v5831, %v5901
      %v5911 = vlaneseq
      %v5912 = vshrl.u32 %v5911, 7
      %v5913 = vsub.s32 0, %v5912
      %v5914 = vrot.slane %v5781, %v5913
      %v5916 = vmul.f32 %v896, %v5914
      %v5917 = vmul.f32 %v903, %v5914
      %v5918 = vmul.f32 %v910, %v5914
      %v5919 = vmul.f32 %v917, %v5914
      %v5920 = vmul.f32 %v924, %v5914
      %v5921 = vmul.f32 %v931, %v5914
      %v5922 = vmul.f32 %v938, %v5914
      %v5923 = vmul.f32 %v945, %v5914
      %v5924 = vadd.f32 %v5902, %v5916
      %v5925 = vadd.f32 %v5903, %v5917
      %v5926 = vadd.f32 %v5904, %v5918
      %v5927 = vadd.f32 %v5905, %v5919
      %v5928 = vadd.f32 %v5906, %v5920
      %v5929 = vadd.f32 %v5907, %v5921
      %v5930 = vadd.f32 %v5908, %v5922
      %v5931 = vadd.f32 %v5909, %v5923
      %v5933 = vlaneseq
      %v5934 = vshrl.u32 %v5933, 7
      %v5935 = vsub.s32 0, %v5934
      %v5936 = vrot.slane %v5783, %v5935
      %v5938 = vadd.f32 %v5924, %v5936
      %v5939 = vadd.f32 %v5925, %v5936
      %v5940 = vadd.f32 %v5926, %v5936
      %v5941 = vadd.f32 %v5927, %v5936
      %v5942 = vadd.f32 %v5928, %v5936
      %v5943 = vadd.f32 %v5929, %v5936
      %v5944 = vadd.f32 %v5930, %v5936
      %v5945 = vadd.f32 %v5931, %v5936
      %v5946 = vxor.u32 %v5938, 2147483648
      %v5947 = vxor.u32 %v5939, 2147483648
      %v5948 = vxor.u32 %v5940, 2147483648
      %v5949 = vxor.u32 %v5941, 2147483648
      %v5950 = vxor.u32 %v5942, 2147483648
      %v5951 = vxor.u32 %v5943, 2147483648
      %v5952 = vxor.u32 %v5944, 2147483648
      %v5953 = vxor.u32 %v5945, 2147483648
      %v5954 = vmul.f32 %v5946, 1.442695
      %v5955 = vpow.pop %v5954
      %v5956 = vmul.f32 %v5947, 1.442695
      %v5957 = vpow.pop %v5956
      %v5958 = vmul.f32 %v5948, 1.442695
      %v5959 = vpow.pop %v5958
      %v5960 = vmul.f32 %v5949, 1.442695
      %v5961 = vpow.pop %v5960
      %v5962 = vmul.f32 %v5950, 1.442695
      %v5963 = vpow.pop %v5962
      %v5964 = vmul.f32 %v5951, 1.442695
      %v5965 = vpow.pop %v5964
      %v5966 = vmul.f32 %v5952, 1.442695
      %v5967 = vpow.pop %v5966
      %v5968 = vmul.f32 %v5953, 1.442695
      %v5969 = vpow.pop %v5968
      %v5970 = vadd.f32 %v5955, 1.0
      %v5971 = vadd.f32 %v5957, 1.0
      %v5972 = vadd.f32 %v5959, 1.0
      %v5973 = vadd.f32 %v5961, 1.0
      %v5974 = vadd.f32 %v5963, 1.0
      %v5975 = vadd.f32 %v5965, 1.0
      %v5976 = vadd.f32 %v5967, 1.0
      %v5977 = vadd.f32 %v5969, 1.0
      %v5978 = vrcp.pop %v5970
      %v5979 = vmul.f32 1.0, %v5978
      %v5980 = vrcp.pop %v5971
      %v5981 = vmul.f32 1.0, %v5980
      %v5982 = vrcp.pop %v5972
      %v5983 = vmul.f32 1.0, %v5982
      %v5984 = vrcp.pop %v5973
      %v5985 = vmul.f32 1.0, %v5984
      %v5986 = vrcp.pop %v5974
      %v5987 = vmul.f32 1.0, %v5986
      %v5988 = vrcp.pop %v5975
      %v5989 = vmul.f32 1.0, %v5988
      %v5990 = vrcp.pop %v5976
      %v5991 = vmul.f32 1.0, %v5990
      %v5992 = vrcp.pop %v5977
      %v5993 = vmul.f32 1.0, %v5992
      %v5994 = vmul.f32 %v5938, %v5979
      %v5995 = vmul.f32 %v5939, %v5981
      %v5996 = vmul.f32 %v5940, %v5983
      %v5997 = vmul.f32 %v5941, %v5985
      %v5998 = vmul.f32 %v5942, %v5987
      %v5999 = vmul.f32 %v5943, %v5989
      %v6000 = vmul.f32 %v5944, %v5991
      %v6001 = vmul.f32 %v5945, %v5993
      %s6002 = scalar_lea.vmem %s6, 512
      %v6003 = vld [vmem:[%s6002] sm:$0xff]
      %v6004 = vld [vmem:[%s6002 + $0x8] sm:$0xff]
      %v6005 = vld [vmem:[%s6002 + $0x10] sm:$0xff]
      %v6006 = vld [vmem:[%s6002 + $0x18] sm:$0xff]
      %v6007 = vld [vmem:[%s6002 + $0x20] sm:$0xff]
      %v6008 = vld [vmem:[%s6002 + $0x28] sm:$0xff]
      %v6009 = vld [vmem:[%s6002 + $0x30] sm:$0xff]
      %v6010 = vld [vmem:[%s6002 + $0x38] sm:$0xff]
      %v6011 = vld [vmem:[%s6002 + $0x40] sm:$0xff]
      %v6012 = vld [vmem:[%s6002 + $0x48] sm:$0xff]
      %v6013 = vld [vmem:[%s6002 + $0x50] sm:$0xff]
      %v6014 = vld [vmem:[%s6002 + $0x58] sm:$0xff]
      %v6015 = vld [vmem:[%s6002 + $0x60] sm:$0xff]
      %v6016 = vld [vmem:[%s6002 + $0x68] sm:$0xff]
      %v6017 = vld [vmem:[%s6002 + $0x70] sm:$0xff]
      %v6018 = vld [vmem:[%s6002 + $0x78] sm:$0xff]
      %s6019 = scalar_lea.vmem %s7, 4
      %v6020 = vld [vmem:[%s6019] sm:$0x1]
      %v6022 = vlaneseq
      %v6023 = vshrl.u32 %v6022, 7
      %v6024 = vsub.s32 0, %v6023
      %v6025 = vrot.slane %v6020, %v6024
      %6027 = vmatprep.subr.mxu0 0.0
      %6028 = vmatpush1.msra.mxu0 %v6003
      %6029 = vmatprep.subr.mxu0 0.0
      %6030 = vmatpush1.msra.mxu0 %v6004
      %6031 = vmatprep.subr.mxu0 0.0
      %6032 = vmatpush1.msra.mxu0 %v6005
      %6033 = vmatprep.subr.mxu0 0.0
      %6034 = vmatpush1.msra.mxu0 %v6006
      %6035 = vmatprep.subr.mxu0 0.0
      %6036 = vmatpush1.msra.mxu0 %v6007
      %6037 = vmatprep.subr.mxu0 0.0
      %6038 = vmatpush1.msra.mxu0 %v6008
      %6039 = vmatprep.subr.mxu0 0.0
      %6040 = vmatpush1.msra.mxu0 %v6009
      %6041 = vmatprep.subr.mxu0 0.0
      %6042 = vmatpush1.msra.mxu0 %v6010
      %6043 = vmatprep.subr.mxu0 0.0
      %6044 = vmatpush1.msra.mxu0 %v6011
      %6045 = vmatprep.subr.mxu0 0.0
      %6046 = vmatpush1.msra.mxu0 %v6012
      %6047 = vmatprep.subr.mxu0 0.0
      %6048 = vmatpush1.msra.mxu0 %v6013
      %6049 = vmatprep.subr.mxu0 0.0
      %6050 = vmatpush1.msra.mxu0 %v6014
      %6051 = vmatprep.subr.mxu0 0.0
      %6052 = vmatpush1.msra.mxu0 %v6015
      %6053 = vmatprep.subr.mxu0 0.0
      %6054 = vmatpush1.msra.mxu0 %v6016
      %6055 = vmatprep.subr.mxu0 0.0
      %6056 = vmatpush1.msra.mxu0 %v6017
      %6057 = vmatprep.subr.mxu0 0.0
      %6058 = vmatpush1.msra.mxu0 %v6018
      %6059 = vmatprep.subr.mxu0 0.0
      %6060 = vmatpush1.msra.mxu0 0.0
      %6061 = vmatprep.subr.mxu0 0.0
      %6062 = vmatpush1.msra.mxu0 0.0
      %6063 = vmatprep.subr.mxu0 0.0
      %6064 = vmatpush1.msra.mxu0 0.0
      %6065 = vmatprep.subr.mxu0 0.0
      %6066 = vmatpush1.msra.mxu0 0.0
      %6067 = vmatprep.subr.mxu0 0.0
      %6068 = vmatpush1.msra.mxu0 0.0
      %6069 = vmatprep.subr.mxu0 0.0
      %6070 = vmatpush1.msra.mxu0 0.0
      %6071 = vmatprep.subr.mxu0 0.0
      %6072 = vmatpush1.msra.mxu0 0.0
      %6073 = vmatprep.subr.mxu0 0.0
      %6074 = vmatpush1.msra.mxu0 0.0
      %6075 = vmatprep.subr.mxu0 0.0
      %6076 = vmatpush1.msra.mxu0 0.0
      %6077 = vmatprep.subr.mxu0 0.0
      %6078 = vmatpush1.msra.mxu0 0.0
      %6079 = vmatprep.subr.mxu0 0.0
      %6080 = vmatpush1.msra.mxu0 0.0
      %6081 = vmatprep.subr.mxu0 0.0
      %6082 = vmatpush1.msra.mxu0 0.0
      %6083 = vmatprep.subr.mxu0 0.0
      %6084 = vmatpush1.msra.mxu0 0.0
      %6085 = vmatprep.subr.mxu0 0.0
      %6086 = vmatpush1.msra.mxu0 0.0
      %6087 = vmatprep.subr.mxu0 0.0
      %6088 = vmatpush1.msra.mxu0 0.0
      %6089 = vmatprep.subr.mxu0 0.0
      %6090 = vmatpush1.msra.mxu0 0.0
      %6091 = vmatprep.mubr.f32.mxu0 0.0
      %6092 = vmatmul.mubr.f32.gmra.mrb[0].mxu0 %v5994
      %v6093 = vpop.f32.mrb[0].mxu0
      %v6094 = vadd.f32 %v6025, %v6093
      %v6095 = vpop.f32.mrb[0].mxu0
      %6096 = vmatprep.mubr.f32.mxu0 0.0
      %6097 = vmatmul.mubr.f32.gmra.mrb[0].mxu0 %v5995
      %v6098 = vpop.f32.mrb[0].mxu0
      %v6099 = vadd.f32 %v6025, %v6098
      %v6100 = vpop.f32.mrb[0].mxu0
      %6101 = vmatprep.mubr.f32.mxu0 0.0
      %6102 = vmatmul.mubr.f32.gmra.mrb[0].mxu0 %v5996
      %v6103 = vpop.f32.mrb[0].mxu0
      %v6104 = vadd.f32 %v6025, %v6103
      %v6105 = vpop.f32.mrb[0].mxu0
      %6106 = vmatprep.mubr.f32.mxu0 0.0
      %6107 = vmatmul.mubr.f32.gmra.mrb[0].mxu0 %v5997
      %v6108 = vpop.f32.mrb[0].mxu0
      %v6109 = vadd.f32 %v6025, %v6108
      %v6110 = vpop.f32.mrb[0].mxu0
      %6111 = vmatprep.mubr.f32.mxu0 0.0
      %6112 = vmatmul.mubr.f32.gmra.mrb[0].mxu0 %v5998
      %v6113 = vpop.f32.mrb[0].mxu0
      %v6114 = vadd.f32 %v6025, %v6113
      %v6115 = vpop.f32.mrb[0].mxu0
      %6116 = vmatprep.mubr.f32.mxu0 0.0
      %6117 = vmatmul.mubr.f32.gmra.mrb[0].mxu0 %v5999
      %v6118 = vpop.f32.mrb[0].mxu0
      %v6119 = vadd.f32 %v6025, %v6118
      %v6120 = vpop.f32.mrb[0].mxu0
      %6121 = vmatprep.mubr.f32.mxu0 0.0
      %6122 = vmatmul.mubr.f32.gmra.mrb[0].mxu0 %v6000
      %v6123 = vpop.f32.mrb[0].mxu0
      %v6124 = vadd.f32 %v6025, %v6123
      %v6125 = vpop.f32.mrb[0].mxu0
      %6126 = vmatprep.mubr.f32.mxu0 0.0
      %6127 = vmatmul.mubr.f32.gmra.mrb[0].mxu0 %v6001
      %v6128 = vpop.f32.mrb[0].mxu0
      %v6129 = vadd.f32 %v6025, %v6128
      %v6130 = vpop.f32.mrb[0].mxu0
      %6131 = vdwg.mxu0
      %v6132 = vxor.u32 %v6094, 2147483648
      %v6133 = vxor.u32 %v6099, 2147483648
      %v6134 = vxor.u32 %v6104, 2147483648
      %v6135 = vxor.u32 %v6109, 2147483648
      %v6136 = vxor.u32 %v6114, 2147483648
      %v6137 = vxor.u32 %v6119, 2147483648
      %v6138 = vxor.u32 %v6124, 2147483648
      %v6139 = vxor.u32 %v6129, 2147483648
      %v6140 = vmul.f32 %v6132, 1.442695
      %v6141 = vpow.pop %v6140
      %v6142 = vmul.f32 %v6133, 1.442695
      %v6143 = vpow.pop %v6142
      %v6144 = vmul.f32 %v6134, 1.442695
      %v6145 = vpow.pop %v6144
      %v6146 = vmul.f32 %v6135, 1.442695
      %v6147 = vpow.pop %v6146
      %v6148 = vmul.f32 %v6136, 1.442695
      %v6149 = vpow.pop %v6148
      %v6150 = vmul.f32 %v6137, 1.442695
      %v6151 = vpow.pop %v6150
      %v6152 = vmul.f32 %v6138, 1.442695
      %v6153 = vpow.pop %v6152
      %v6154 = vmul.f32 %v6139, 1.442695
      %v6155 = vpow.pop %v6154
      %v6156 = vadd.f32 %v6141, 1.0
      %v6157 = vadd.f32 %v6143, 1.0
      %v6158 = vadd.f32 %v6145, 1.0
      %v6159 = vadd.f32 %v6147, 1.0
      %v6160 = vadd.f32 %v6149, 1.0
      %v6161 = vadd.f32 %v6151, 1.0
      %v6162 = vadd.f32 %v6153, 1.0
      %v6163 = vadd.f32 %v6155, 1.0
      %v6164 = vrcp.pop %v6156
      %v6165 = vmul.f32 1.0, %v6164
      %v6166 = vrcp.pop %v6157
      %v6167 = vmul.f32 1.0, %v6166
      %v6168 = vrcp.pop %v6158
      %v6169 = vmul.f32 1.0, %v6168
      %v6170 = vrcp.pop %v6159
      %v6171 = vmul.f32 1.0, %v6170
      %v6172 = vrcp.pop %v6160
      %v6173 = vmul.f32 1.0, %v6172
      %v6174 = vrcp.pop %v6161
      %v6175 = vmul.f32 1.0, %v6174
      %v6176 = vrcp.pop %v6162
      %v6177 = vmul.f32 1.0, %v6176
      %v6178 = vrcp.pop %v6163
      %v6179 = vmul.f32 1.0, %v6178
      %v6180 = vmul.f32 %v6094, %v6165
      %v6181 = vmul.f32 %v6099, %v6167
      %v6182 = vmul.f32 %v6104, %v6169
      %v6183 = vmul.f32 %v6109, %v6171
      %v6184 = vmul.f32 %v6114, %v6173
      %v6185 = vmul.f32 %v6119, %v6175
      %v6186 = vmul.f32 %v6124, %v6177
      %v6187 = vmul.f32 %v6129, %v6179
      %v6188 = vrot.slane %v6180, 4
      %v6189 = vadd.f32 %v6180, %v6188
      %v6190 = vrot.slane %v6189, 2
      %v6191 = vadd.f32 %v6189, %v6190
      %v6192 = vrot.slane %v6191, 1
      %v6193 = vadd.f32 %v6191, %v6192
      %v6194 = vrot.slane %v6181, 4
      %v6195 = vadd.f32 %v6181, %v6194
      %v6196 = vrot.slane %v6195, 2
      %v6197 = vadd.f32 %v6195, %v6196
      %v6198 = vrot.slane %v6197, 1
      %v6199 = vadd.f32 %v6197, %v6198
      %v6200 = vrot.slane %v6182, 4
      %v6201 = vadd.f32 %v6182, %v6200
      %v6202 = vrot.slane %v6201, 2
      %v6203 = vadd.f32 %v6201, %v6202
      %v6204 = vrot.slane %v6203, 1
      %v6205 = vadd.f32 %v6203, %v6204
      %v6206 = vrot.slane %v6183, 4
      %v6207 = vadd.f32 %v6183, %v6206
      %v6208 = vrot.slane %v6207, 2
      %v6209 = vadd.f32 %v6207, %v6208
      %v6210 = vrot.slane %v6209, 1
      %v6211 = vadd.f32 %v6209, %v6210
      %v6212 = vrot.slane %v6184, 4
      %v6213 = vadd.f32 %v6184, %v6212
      %v6214 = vrot.slane %v6213, 2
      %v6215 = vadd.f32 %v6213, %v6214
      %v6216 = vrot.slane %v6215, 1
      %v6217 = vadd.f32 %v6215, %v6216
      %v6218 = vrot.slane %v6185, 4
      %v6219 = vadd.f32 %v6185, %v6218
      %v6220 = vrot.slane %v6219, 2
      %v6221 = vadd.f32 %v6219, %v6220
      %v6222 = vrot.slane %v6221, 1
      %v6223 = vadd.f32 %v6221, %v6222
      %v6224 = vrot.slane %v6186, 4
      %v6225 = vadd.f32 %v6186, %v6224
      %v6226 = vrot.slane %v6225, 2
      %v6227 = vadd.f32 %v6225, %v6226
      %v6228 = vrot.slane %v6227, 1
      %v6229 = vadd.f32 %v6227, %v6228
      %v6230 = vrot.slane %v6187, 4
      %v6231 = vadd.f32 %v6187, %v6230
      %v6232 = vrot.slane %v6231, 2
      %v6233 = vadd.f32 %v6231, %v6232
      %v6234 = vrot.slane %v6233, 1
      %v6235 = vadd.f32 %v6233, %v6234
      %v6236 = vadd.f32 %v6193, 0.0
      %v6237 = vadd.f32 %v6199, 0.0
      %v6238 = vadd.f32 %v6205, 0.0
      %v6239 = vadd.f32 %v6211, 0.0
      %v6240 = vadd.f32 %v6217, 0.0
      %v6241 = vadd.f32 %v6223, 0.0
      %v6242 = vadd.f32 %v6229, 0.0
      %v6243 = vadd.f32 %v6235, 0.0
      %v6244 = vmul.f32 %v6236, 0.01
      %v6245 = vmul.f32 %v6237, 0.01
      %v6246 = vmul.f32 %v6238, 0.01
      %v6247 = vmul.f32 %v6239, 0.01
      %v6248 = vmul.f32 %v6240, 0.01
      %v6249 = vmul.f32 %v6241, 0.01
      %v6250 = vmul.f32 %v6242, 0.01
      %v6251 = vmul.f32 %v6243, 0.01
      %s6252 = scalar_lea.vmem %s8, 512
      %v6253 = vld [vmem:[%s6252] sm:$0xff]
      %v6254 = vld [vmem:[%s6252 + $0x8] sm:$0xff]
      %v6255 = vld [vmem:[%s6252 + $0x10] sm:$0xff]
      %v6256 = vld [vmem:[%s6252 + $0x18] sm:$0xff]
      %v6257 = vld [vmem:[%s6252 + $0x20] sm:$0xff]
      %v6258 = vld [vmem:[%s6252 + $0x28] sm:$0xff]
      %v6259 = vld [vmem:[%s6252 + $0x30] sm:$0xff]
      %v6260 = vld [vmem:[%s6252 + $0x38] sm:$0xff]
      %v6261 = vld [vmem:[%s6252 + $0x40] sm:$0xff]
      %v6262 = vld [vmem:[%s6252 + $0x48] sm:$0xff]
      %v6263 = vld [vmem:[%s6252 + $0x50] sm:$0xff]
      %v6264 = vld [vmem:[%s6252 + $0x58] sm:$0xff]
      %v6265 = vld [vmem:[%s6252 + $0x60] sm:$0xff]
      %v6266 = vld [vmem:[%s6252 + $0x68] sm:$0xff]
      %v6267 = vld [vmem:[%s6252 + $0x70] sm:$0xff]
      %v6268 = vld [vmem:[%s6252 + $0x78] sm:$0xff]
      %s6269 = scalar_lea.vmem %s9, 512
      %v6270 = vld [vmem:[%s6269] sm:$0xff]
      %v6271 = vld [vmem:[%s6269 + $0x8] sm:$0xff]
      %v6272 = vld [vmem:[%s6269 + $0x10] sm:$0xff]
      %v6273 = vld [vmem:[%s6269 + $0x18] sm:$0xff]
      %v6274 = vld [vmem:[%s6269 + $0x20] sm:$0xff]
      %v6275 = vld [vmem:[%s6269 + $0x28] sm:$0xff]
      %v6276 = vld [vmem:[%s6269 + $0x30] sm:$0xff]
      %v6277 = vld [vmem:[%s6269 + $0x38] sm:$0xff]
      %v6278 = vld [vmem:[%s6269 + $0x40] sm:$0xff]
      %v6279 = vld [vmem:[%s6269 + $0x48] sm:$0xff]
      %v6280 = vld [vmem:[%s6269 + $0x50] sm:$0xff]
      %v6281 = vld [vmem:[%s6269 + $0x58] sm:$0xff]
      %v6282 = vld [vmem:[%s6269 + $0x60] sm:$0xff]
      %v6283 = vld [vmem:[%s6269 + $0x68] sm:$0xff]
      %v6284 = vld [vmem:[%s6269 + $0x70] sm:$0xff]
      %v6285 = vld [vmem:[%s6269 + $0x78] sm:$0xff]
      %v6294 = vsel %vm1348, %v6245, %v6244
      %v6295 = vsel %vm1350, %v6246, %v6294
      %v6296 = vsel %vm1352, %v6247, %v6295
      %v6297 = vsel %vm1354, %v6248, %v6296
      %v6298 = vsel %vm1356, %v6249, %v6297
      %v6299 = vsel %vm1358, %v6250, %v6298
      %v6300 = vsel %vm1360, %v6251, %v6299
      %6302 = vmatprep.subr.mxu0 0.0
      %6303 = vmatpush1.msra.mxu0 %v6270
      %6304 = vmatprep.subr.mxu0 0.0
      %6305 = vmatpush1.msra.mxu0 %v6271
      %6306 = vmatprep.subr.mxu0 0.0
      %6307 = vmatpush1.msra.mxu0 %v6272
      %6308 = vmatprep.subr.mxu0 0.0
      %6309 = vmatpush1.msra.mxu0 %v6273
      %6310 = vmatprep.subr.mxu0 0.0
      %6311 = vmatpush1.msra.mxu0 %v6274
      %6312 = vmatprep.subr.mxu0 0.0
      %6313 = vmatpush1.msra.mxu0 %v6275
      %6314 = vmatprep.subr.mxu0 0.0
      %6315 = vmatpush1.msra.mxu0 %v6276
      %6316 = vmatprep.subr.mxu0 0.0
      %6317 = vmatpush1.msra.mxu0 %v6277
      %6318 = vmatprep.subr.mxu0 0.0
      %6319 = vmatpush1.msra.mxu0 %v6278
      %6320 = vmatprep.subr.mxu0 0.0
      %6321 = vmatpush1.msra.mxu0 %v6279
      %6322 = vmatprep.subr.mxu0 0.0
      %6323 = vmatpush1.msra.mxu0 %v6280
      %6324 = vmatprep.subr.mxu0 0.0
      %6325 = vmatpush1.msra.mxu0 %v6281
      %6326 = vmatprep.subr.mxu0 0.0
      %6327 = vmatpush1.msra.mxu0 %v6282
      %6328 = vmatprep.subr.mxu0 0.0
      %6329 = vmatpush1.msra.mxu0 %v6283
      %6330 = vmatprep.subr.mxu0 0.0
      %6331 = vmatpush1.msra.mxu0 %v6284
      %6332 = vmatprep.subr.mxu0 0.0
      %6333 = vmatpush1.msra.mxu0 %v6285
      %6334 = vmatprep.subr.mxu0 0.0
      %6335 = vmatpush1.msra.mxu0 0.0
      %6336 = vmatprep.subr.mxu0 0.0
      %6337 = vmatpush1.msra.mxu0 0.0
      %6338 = vmatprep.subr.mxu0 0.0
      %6339 = vmatpush1.msra.mxu0 0.0
      %6340 = vmatprep.subr.mxu0 0.0
      %6341 = vmatpush1.msra.mxu0 0.0
      %6342 = vmatprep.subr.mxu0 0.0
      %6343 = vmatpush1.msra.mxu0 0.0
      %6344 = vmatprep.subr.mxu0 0.0
      %6345 = vmatpush1.msra.mxu0 0.0
      %6346 = vmatprep.subr.mxu0 0.0
      %6347 = vmatpush1.msra.mxu0 0.0
      %6348 = vmatprep.subr.mxu0 0.0
      %6349 = vmatpush1.msra.mxu0 0.0
      %6350 = vmatprep.subr.mxu0 0.0
      %6351 = vmatpush1.msra.mxu0 0.0
      %6352 = vmatprep.subr.mxu0 0.0
      %6353 = vmatpush1.msra.mxu0 0.0
      %6354 = vmatprep.subr.mxu0 0.0
      %6355 = vmatpush1.msra.mxu0 0.0
      %6356 = vmatprep.subr.mxu0 0.0
      %6357 = vmatpush1.msra.mxu0 0.0
      %6358 = vmatprep.subr.mxu0 0.0
      %6359 = vmatpush1.msra.mxu0 0.0
      %6360 = vmatprep.subr.mxu0 0.0
      %6361 = vmatpush1.msra.mxu0 0.0
      %6362 = vmatprep.subr.mxu0 0.0
      %6363 = vmatpush1.msra.mxu0 0.0
      %6364 = vmatprep.subr.mxu0 0.0
      %6365 = vmatpush1.msra.mxu0 0.0
      %6366 = vmatprep.mubr.f32.mxu0 0.0
      %6367 = vmatmul.mubr.f32.gmra.mrb[0].mxu0 %v6300
      %v6368 = vpop.f32.mrb[0].mxu0
      %v6369 = vadd.f32 0.0, %v6368
      %v6370 = vpop.f32.mrb[0].mxu0
      %6371 = vdwg.mxu0
      %6372 = vmatprep.subr.mxu0 0.0
      %6373 = vmatpush1.msra.mxu0 %v6253
      %6374 = vmatprep.subr.mxu0 0.0
      %6375 = vmatpush1.msra.mxu0 %v6254
      %6376 = vmatprep.subr.mxu0 0.0
      %6377 = vmatpush1.msra.mxu0 %v6255
      %6378 = vmatprep.subr.mxu0 0.0
      %6379 = vmatpush1.msra.mxu0 %v6256
      %6380 = vmatprep.subr.mxu0 0.0
      %6381 = vmatpush1.msra.mxu0 %v6257
      %6382 = vmatprep.subr.mxu0 0.0
      %6383 = vmatpush1.msra.mxu0 %v6258
      %6384 = vmatprep.subr.mxu0 0.0
      %6385 = vmatpush1.msra.mxu0 %v6259
      %6386 = vmatprep.subr.mxu0 0.0
      %6387 = vmatpush1.msra.mxu0 %v6260
      %6388 = vmatprep.subr.mxu0 0.0
      %6389 = vmatpush1.msra.mxu0 %v6261
      %6390 = vmatprep.subr.mxu0 0.0
      %6391 = vmatpush1.msra.mxu0 %v6262
      %6392 = vmatprep.subr.mxu0 0.0
      %6393 = vmatpush1.msra.mxu0 %v6263
      %6394 = vmatprep.subr.mxu0 0.0
      %6395 = vmatpush1.msra.mxu0 %v6264
      %6396 = vmatprep.subr.mxu0 0.0
      %6397 = vmatpush1.msra.mxu0 %v6265
      %6398 = vmatprep.subr.mxu0 0.0
      %6399 = vmatpush1.msra.mxu0 %v6266
      %6400 = vmatprep.subr.mxu0 0.0
      %6401 = vmatpush1.msra.mxu0 %v6267
      %6402 = vmatprep.subr.mxu0 0.0
      %6403 = vmatpush1.msra.mxu0 %v6268
      %6404 = vmatprep.subr.mxu0 0.0
      %6405 = vmatpush1.msra.mxu0 0.0
      %6406 = vmatprep.subr.mxu0 0.0
      %6407 = vmatpush1.msra.mxu0 0.0
      %6408 = vmatprep.subr.mxu0 0.0
      %6409 = vmatpush1.msra.mxu0 0.0
      %6410 = vmatprep.subr.mxu0 0.0
      %6411 = vmatpush1.msra.mxu0 0.0
      %6412 = vmatprep.subr.mxu0 0.0
      %6413 = vmatpush1.msra.mxu0 0.0
      %6414 = vmatprep.subr.mxu0 0.0
      %6415 = vmatpush1.msra.mxu0 0.0
      %6416 = vmatprep.subr.mxu0 0.0
      %6417 = vmatpush1.msra.mxu0 0.0
      %6418 = vmatprep.subr.mxu0 0.0
      %6419 = vmatpush1.msra.mxu0 0.0
      %6420 = vmatprep.subr.mxu0 0.0
      %6421 = vmatpush1.msra.mxu0 0.0
      %6422 = vmatprep.subr.mxu0 0.0
      %6423 = vmatpush1.msra.mxu0 0.0
      %6424 = vmatprep.subr.mxu0 0.0
      %6425 = vmatpush1.msra.mxu0 0.0
      %6426 = vmatprep.subr.mxu0 0.0
      %6427 = vmatpush1.msra.mxu0 0.0
      %6428 = vmatprep.subr.mxu0 0.0
      %6429 = vmatpush1.msra.mxu0 0.0
      %6430 = vmatprep.subr.mxu0 0.0
      %6431 = vmatpush1.msra.mxu0 0.0
      %6432 = vmatprep.subr.mxu0 0.0
      %6433 = vmatpush1.msra.mxu0 0.0
      %6434 = vmatprep.subr.mxu0 0.0
      %6435 = vmatpush1.msra.mxu0 0.0
      %6436 = vmatprep.mubr.f32.mxu0 0.0
      %6437 = vmatmul.mubr.f32.gmra.mrb[0].mxu0 %v4954
      %v6438 = vpop.f32.mrb[0].mxu0
      %v6439 = vadd.f32 %v6369, %v6438
      %v6440 = vpop.f32.mrb[0].mxu0
      %6441 = vdwg.mxu0
      %s6442 = scalar_lea.vmem %s10, 4
      %v6443 = vld [vmem:[%s6442] sm:$0x1]
      %v6445 = vlaneseq
      %v6446 = vshrl.u32 %v6445, 7
      %v6447 = vsub.s32 0, %v6446
      %v6448 = vrot.slane %v6443, %v6447
      %v6450 = vadd.f32 %v6439, %v6448
      %v6451 = vxor.u32 %v6450, 2147483648
      %v6452 = vmul.f32 %v6451, 1.442695
      %v6453 = vpow.pop %v6452
      %v6454 = vadd.f32 %v6453, 1.0
      %v6455 = vrcp.pop %v6454
      %v6456 = vmul.f32 1.0, %v6455
      %v6457 = vmul.f32 %v6450, %v6456
      %s6458 = scalar_lea.vmem %s11, 512
      %v6459 = vld [vmem:[%s6458] sm:$0xff]
      %v6460 = vld [vmem:[%s6458 + $0x8] sm:$0xff]
      %v6461 = vld [vmem:[%s6458 + $0x10] sm:$0xff]
      %v6462 = vld [vmem:[%s6458 + $0x18] sm:$0xff]
      %v6463 = vld [vmem:[%s6458 + $0x20] sm:$0xff]
      %v6464 = vld [vmem:[%s6458 + $0x28] sm:$0xff]
      %v6465 = vld [vmem:[%s6458 + $0x30] sm:$0xff]
      %v6466 = vld [vmem:[%s6458 + $0x38] sm:$0xff]
      %v6467 = vld [vmem:[%s6458 + $0x40] sm:$0xff]
      %v6468 = vld [vmem:[%s6458 + $0x48] sm:$0xff]
      %v6469 = vld [vmem:[%s6458 + $0x50] sm:$0xff]
      %v6470 = vld [vmem:[%s6458 + $0x58] sm:$0xff]
      %v6471 = vld [vmem:[%s6458 + $0x60] sm:$0xff]
      %v6472 = vld [vmem:[%s6458 + $0x68] sm:$0xff]
      %v6473 = vld [vmem:[%s6458 + $0x70] sm:$0xff]
      %v6474 = vld [vmem:[%s6458 + $0x78] sm:$0xff]
      %s6475 = scalar_lea.vmem %s12, 4
      %v6476 = vld [vmem:[%s6475] sm:$0x1]
      %v6478 = vlaneseq
      %v6479 = vshrl.u32 %v6478, 7
      %v6480 = vsub.s32 0, %v6479
      %v6481 = vrot.slane %v6476, %v6480
      %6483 = vmatprep.subr.mxu0 0.0
      %6484 = vmatpush1.msra.mxu0 %v6459
      %6485 = vmatprep.subr.mxu0 0.0
      %6486 = vmatpush1.msra.mxu0 %v6460
      %6487 = vmatprep.subr.mxu0 0.0
      %6488 = vmatpush1.msra.mxu0 %v6461
      %6489 = vmatprep.subr.mxu0 0.0
      %6490 = vmatpush1.msra.mxu0 %v6462
      %6491 = vmatprep.subr.mxu0 0.0
      %6492 = vmatpush1.msra.mxu0 %v6463
      %6493 = vmatprep.subr.mxu0 0.0
      %6494 = vmatpush1.msra.mxu0 %v6464
      %6495 = vmatprep.subr.mxu0 0.0
      %6496 = vmatpush1.msra.mxu0 %v6465
      %6497 = vmatprep.subr.mxu0 0.0
      %6498 = vmatpush1.msra.mxu0 %v6466
      %6499 = vmatprep.subr.mxu0 0.0
      %6500 = vmatpush1.msra.mxu0 %v6467
      %6501 = vmatprep.subr.mxu0 0.0
      %6502 = vmatpush1.msra.mxu0 %v6468
      %6503 = vmatprep.subr.mxu0 0.0
      %6504 = vmatpush1.msra.mxu0 %v6469
      %6505 = vmatprep.subr.mxu0 0.0
      %6506 = vmatpush1.msra.mxu0 %v6470
      %6507 = vmatprep.subr.mxu0 0.0
      %6508 = vmatpush1.msra.mxu0 %v6471
      %6509 = vmatprep.subr.mxu0 0.0
      %6510 = vmatpush1.msra.mxu0 %v6472
      %6511 = vmatprep.subr.mxu0 0.0
      %6512 = vmatpush1.msra.mxu0 %v6473
      %6513 = vmatprep.subr.mxu0 0.0
      %6514 = vmatpush1.msra.mxu0 %v6474
      %6515 = vmatprep.subr.mxu0 0.0
      %6516 = vmatpush1.msra.mxu0 0.0
      %6517 = vmatprep.subr.mxu0 0.0
      %6518 = vmatpush1.msra.mxu0 0.0
      %6519 = vmatprep.subr.mxu0 0.0
      %6520 = vmatpush1.msra.mxu0 0.0
      %6521 = vmatprep.subr.mxu0 0.0
      %6522 = vmatpush1.msra.mxu0 0.0
      %6523 = vmatprep.subr.mxu0 0.0
      %6524 = vmatpush1.msra.mxu0 0.0
      %6525 = vmatprep.subr.mxu0 0.0
      %6526 = vmatpush1.msra.mxu0 0.0
      %6527 = vmatprep.subr.mxu0 0.0
      %6528 = vmatpush1.msra.mxu0 0.0
      %6529 = vmatprep.subr.mxu0 0.0
      %6530 = vmatpush1.msra.mxu0 0.0
      %6531 = vmatprep.subr.mxu0 0.0
      %6532 = vmatpush1.msra.mxu0 0.0
      %6533 = vmatprep.subr.mxu0 0.0
      %6534 = vmatpush1.msra.mxu0 0.0
      %6535 = vmatprep.subr.mxu0 0.0
      %6536 = vmatpush1.msra.mxu0 0.0
      %6537 = vmatprep.subr.mxu0 0.0
      %6538 = vmatpush1.msra.mxu0 0.0
      %6539 = vmatprep.subr.mxu0 0.0
      %6540 = vmatpush1.msra.mxu0 0.0
      %6541 = vmatprep.subr.mxu0 0.0
      %6542 = vmatpush1.msra.mxu0 0.0
      %6543 = vmatprep.subr.mxu0 0.0
      %6544 = vmatpush1.msra.mxu0 0.0
      %6545 = vmatprep.subr.mxu0 0.0
      %6546 = vmatpush1.msra.mxu0 0.0
      %6547 = vmatprep.mubr.f32.mxu0 0.0
      %6548 = vmatmul.mubr.f32.gmra.mrb[0].mxu0 %v6457
      %v6549 = vpop.f32.mrb[0].mxu0
      %v6550 = vadd.f32 %v6481, %v6549
      %v6551 = vpop.f32.mrb[0].mxu0
      %6552 = vdwg.mxu0
      %v6553 = vadd.f32 %v4954, %v6550
      %s6554 = scalar_lea.vmem %s2, 1280
      %v6555 = vld [vmem:[%s6554] sm:$0xff]
      %v6556 = vld [vmem:[%s6554 + $0x8] sm:$0xff]
      %v6557 = vld [vmem:[%s6554 + $0x10] sm:$0xff]
      %v6558 = vld [vmem:[%s6554 + $0x18] sm:$0xff]
      %v6559 = vld [vmem:[%s6554 + $0x20] sm:$0xff]
      %v6560 = vld [vmem:[%s6554 + $0x28] sm:$0xff]
      %v6561 = vld [vmem:[%s6554 + $0x30] sm:$0xff]
      %v6562 = vld [vmem:[%s6554 + $0x38] sm:$0xff]
      %v6563 = vld [vmem:[%s6554 + $0x40] sm:$0xff]
      %v6564 = vld [vmem:[%s6554 + $0x48] sm:$0xff]
      %v6565 = vld [vmem:[%s6554 + $0x50] sm:$0xff]
      %v6566 = vld [vmem:[%s6554 + $0x58] sm:$0xff]
      %v6567 = vld [vmem:[%s6554 + $0x60] sm:$0xff]
      %v6568 = vld [vmem:[%s6554 + $0x68] sm:$0xff]
      %v6569 = vld [vmem:[%s6554 + $0x70] sm:$0xff]
      %v6570 = vld [vmem:[%s6554 + $0x78] sm:$0xff]
      %v6571 = vld [vmem:[%s6554 + $0x80] sm:$0xff]
      %v6572 = vld [vmem:[%s6554 + $0x88] sm:$0xff]
      %v6573 = vld [vmem:[%s6554 + $0x90] sm:$0xff]
      %v6574 = vld [vmem:[%s6554 + $0x98] sm:$0xff]
      %v6575 = vld [vmem:[%s6554 + $0xa0] sm:$0xff]
      %v6576 = vld [vmem:[%s6554 + $0xa8] sm:$0xff]
      %v6577 = vld [vmem:[%s6554 + $0xb0] sm:$0xff]
      %v6578 = vld [vmem:[%s6554 + $0xb8] sm:$0xff]
      %v6579 = vld [vmem:[%s6554 + $0xc0] sm:$0xff]
      %v6580 = vld [vmem:[%s6554 + $0xc8] sm:$0xff]
      %v6581 = vld [vmem:[%s6554 + $0xd0] sm:$0xff]
      %v6582 = vld [vmem:[%s6554 + $0xd8] sm:$0xff]
      %v6583 = vld [vmem:[%s6554 + $0xe0] sm:$0xff]
      %v6584 = vld [vmem:[%s6554 + $0xe8] sm:$0xff]
      %v6585 = vld [vmem:[%s6554 + $0xf0] sm:$0xff]
      %v6586 = vld [vmem:[%s6554 + $0xf8] sm:$0xff]
      %6587 = vmatprep.subr.mxu0 %v6556
      %6588 = vmatpush1.msra.mxu0 %v6555
      %6589 = vmatprep.subr.mxu0 %v6558
      %6590 = vmatpush1.msra.mxu0 %v6557
      %6591 = vmatprep.subr.mxu0 %v6560
      %6592 = vmatpush1.msra.mxu0 %v6559
      %6593 = vmatprep.subr.mxu0 %v6562
      %6594 = vmatpush1.msra.mxu0 %v6561
      %6595 = vmatprep.subr.mxu0 %v6564
      %6596 = vmatpush1.msra.mxu0 %v6563
      %6597 = vmatprep.subr.mxu0 %v6566
      %6598 = vmatpush1.msra.mxu0 %v6565
      %6599 = vmatprep.subr.mxu0 %v6568
      %6600 = vmatpush1.msra.mxu0 %v6567
      %6601 = vmatprep.subr.mxu0 %v6570
      %6602 = vmatpush1.msra.mxu0 %v6569
      %6603 = vmatprep.subr.mxu0 %v6572
      %6604 = vmatpush1.msra.mxu0 %v6571
      %6605 = vmatprep.subr.mxu0 %v6574
      %6606 = vmatpush1.msra.mxu0 %v6573
      %6607 = vmatprep.subr.mxu0 %v6576
      %6608 = vmatpush1.msra.mxu0 %v6575
      %6609 = vmatprep.subr.mxu0 %v6578
      %6610 = vmatpush1.msra.mxu0 %v6577
      %6611 = vmatprep.subr.mxu0 %v6580
      %6612 = vmatpush1.msra.mxu0 %v6579
      %6613 = vmatprep.subr.mxu0 %v6582
      %6614 = vmatpush1.msra.mxu0 %v6581
      %6615 = vmatprep.subr.mxu0 %v6584
      %6616 = vmatpush1.msra.mxu0 %v6583
      %6617 = vmatprep.subr.mxu0 %v6586
      %6618 = vmatpush1.msra.mxu0 %v6585
      %6619 = vmatprep.subr.mxu0 0.0
      %6620 = vmatpush1.msra.mxu0 0.0
      %6621 = vmatprep.subr.mxu0 0.0
      %6622 = vmatpush1.msra.mxu0 0.0
      %6623 = vmatprep.subr.mxu0 0.0
      %6624 = vmatpush1.msra.mxu0 0.0
      %6625 = vmatprep.subr.mxu0 0.0
      %6626 = vmatpush1.msra.mxu0 0.0
      %6627 = vmatprep.subr.mxu0 0.0
      %6628 = vmatpush1.msra.mxu0 0.0
      %6629 = vmatprep.subr.mxu0 0.0
      %6630 = vmatpush1.msra.mxu0 0.0
      %6631 = vmatprep.subr.mxu0 0.0
      %6632 = vmatpush1.msra.mxu0 0.0
      %6633 = vmatprep.subr.mxu0 0.0
      %6634 = vmatpush1.msra.mxu0 0.0
      %6635 = vmatprep.subr.mxu0 0.0
      %6636 = vmatpush1.msra.mxu0 0.0
      %6637 = vmatprep.subr.mxu0 0.0
      %6638 = vmatpush1.msra.mxu0 0.0
      %6639 = vmatprep.subr.mxu0 0.0
      %6640 = vmatpush1.msra.mxu0 0.0
      %6641 = vmatprep.subr.mxu0 0.0
      %6642 = vmatpush1.msra.mxu0 0.0
      %6643 = vmatprep.subr.mxu0 0.0
      %6644 = vmatpush1.msra.mxu0 0.0
      %6645 = vmatprep.subr.mxu0 0.0
      %6646 = vmatpush1.msra.mxu0 0.0
      %6647 = vmatprep.subr.mxu0 0.0
      %6648 = vmatpush1.msra.mxu0 0.0
      %6649 = vmatprep.subr.mxu0 0.0
      %6650 = vmatpush1.msra.mxu0 0.0
      %6651 = vmatprep.mubr.f32.mxu0 0.0
      %6652 = vmatmul.mubr.f32.gmra.mrb[0].mxu0 %v6553
      %v6653 = vpop.f32.mrb[0].mxu0
      %v6654 = vadd.f32 0.0, %v6653
      %v6655 = vpop.f32.mrb[0].mxu0
      %v6656 = vadd.f32 0.0, %v6655
      %6657 = vdwg.mxu0
      %v6659 = vcombine.high %v6654, %v6654
      %v6661 = vunpack.c.l.s4 1966171168
      %v6662 = vunpack.c.0.s8 %v6661
      %v6663 = vlaneseq
      %v6664 = vshrl.u32 %v6663, 7
      %v6665 = vsub.s32 %v6662, %v6664
      %v6666 = vrot.slane %v6654, %v6665
      %v6668 = vunpack.c.l.s4 1966171168
      %v6669 = vunpack.c.0.s8 %v6668
      %v6670 = vlaneseq
      %v6671 = vshrl.u32 %v6670, 7
      %v6672 = vsub.s32 %v6669, %v6671
      %v6673 = vrot.slane %v6659, %v6672
      %v6674 = vcombine.high %v6666, %v6666
      %v6675 = vcombine.high %v6673, %v6673
      %v6677 = vunpack.c.l.s4 1966171168
      %v6678 = vunpack.c.0.s8 %v6677
      %v6679 = vlaneseq
      %v6680 = vshrl.u32 %v6679, 7
      %v6681 = vsub.s32 %v6678, %v6680
      %v6682 = vrot.slane %v6666, %v6681
      %v6684 = vunpack.c.l.s4 1966171168
      %v6685 = vunpack.c.0.s8 %v6684
      %v6686 = vlaneseq
      %v6687 = vshrl.u32 %v6686, 7
      %v6688 = vsub.s32 %v6685, %v6687
      %v6689 = vrot.slane %v6673, %v6688
      %v6691 = vunpack.c.l.s4 1966171168
      %v6692 = vunpack.c.0.s8 %v6691
      %v6693 = vlaneseq
      %v6694 = vshrl.u32 %v6693, 7
      %v6695 = vsub.s32 %v6692, %v6694
      %v6696 = vrot.slane %v6674, %v6695
      %v6698 = vunpack.c.l.s4 1966171168
      %v6699 = vunpack.c.0.s8 %v6698
      %v6700 = vlaneseq
      %v6701 = vshrl.u32 %v6700, 7
      %v6702 = vsub.s32 %v6699, %v6701
      %v6703 = vrot.slane %v6675, %v6702
      %v6704 = vcombine.high %v6682, %v6682
      %v6705 = vcombine.high %v6689, %v6689
      %v6706 = vcombine.high %v6696, %v6696
      %v6707 = vcombine.high %v6703, %v6703
      %s6708 = scalar_lea.vmem %s3, 5
      %v6709 = vld [vmem:[%s6708] sm:$0x1]
      %s6710 = scalar_lea.vmem %s4, 5
      %v6711 = vld [vmem:[%s6710] sm:$0x1]
      %s6712 = scalar_lea.vmem %s5, 5
      %v6713 = vld [vmem:[%s6712] sm:$0x1]
      %v6714 = vlaneseq
      %v6715 = vshrl.u32 %v6714, 7
      %v6716 = vsub.s32 0, %v6715
      %v6717 = vrot.slane %v6682, %v6716
      %v6718 = vlaneseq
      %v6719 = vshrl.u32 %v6718, 7
      %v6720 = vsub.s32 0, %v6719
      %v6721 = vrot.slane %v6696, %v6720
      %v6722 = vlaneseq
      %v6723 = vshrl.u32 %v6722, 7
      %v6724 = vsub.s32 0, %v6723
      %v6725 = vrot.slane %v6704, %v6724
      %v6726 = vlaneseq
      %v6727 = vshrl.u32 %v6726, 7
      %v6728 = vsub.s32 0, %v6727
      %v6729 = vrot.slane %v6706, %v6728
      %v6730 = vlaneseq
      %v6731 = vshrl.u32 %v6730, 7
      %v6732 = vsub.s32 0, %v6731
      %v6733 = vrot.slane %v6689, %v6732
      %v6734 = vlaneseq
      %v6735 = vshrl.u32 %v6734, 7
      %v6736 = vsub.s32 0, %v6735
      %v6737 = vrot.slane %v6703, %v6736
      %v6738 = vlaneseq
      %v6739 = vshrl.u32 %v6738, 7
      %v6740 = vsub.s32 0, %v6739
      %v6741 = vrot.slane %v6705, %v6740
      %v6742 = vlaneseq
      %v6743 = vshrl.u32 %v6742, 7
      %v6744 = vsub.s32 0, %v6743
      %v6745 = vrot.slane %v6707, %v6744
      %v6754 = vadd.f32 %v6717, %v6656
      %v6755 = vadd.f32 %v6721, %v6656
      %v6756 = vadd.f32 %v6725, %v6656
      %v6757 = vadd.f32 %v6729, %v6656
      %v6758 = vadd.f32 %v6733, %v6656
      %v6759 = vadd.f32 %v6737, %v6656
      %v6760 = vadd.f32 %v6741, %v6656
      %v6761 = vadd.f32 %v6745, %v6656
      %v6763 = vlaneseq
      %v6764 = vshrl.u32 %v6763, 7
      %v6765 = vsub.s32 0, %v6764
      %v6766 = vrot.slane %v6709, %v6765
      %v6768 = vmul.f32 %v5838, %v6766
      %v6769 = vmul.f32 %v5845, %v6766
      %v6770 = vmul.f32 %v5852, %v6766
      %v6771 = vmul.f32 %v5859, %v6766
      %v6772 = vmul.f32 %v5866, %v6766
      %v6773 = vmul.f32 %v5873, %v6766
      %v6774 = vmul.f32 %v5880, %v6766
      %v6775 = vmul.f32 %v5887, %v6766
      %v6776 = vadd.f32 %v6754, %v6768
      %v6777 = vadd.f32 %v6755, %v6769
      %v6778 = vadd.f32 %v6756, %v6770
      %v6779 = vadd.f32 %v6757, %v6771
      %v6780 = vadd.f32 %v6758, %v6772
      %v6781 = vadd.f32 %v6759, %v6773
      %v6782 = vadd.f32 %v6760, %v6774
      %v6783 = vadd.f32 %v6761, %v6775
      %v6785 = vlaneseq
      %v6786 = vshrl.u32 %v6785, 7
      %v6787 = vsub.s32 0, %v6786
      %v6788 = vrot.slane %v6711, %v6787
      %v6790 = vmul.f32 %v896, %v6788
      %v6791 = vmul.f32 %v903, %v6788
      %v6792 = vmul.f32 %v910, %v6788
      %v6793 = vmul.f32 %v917, %v6788
      %v6794 = vmul.f32 %v924, %v6788
      %v6795 = vmul.f32 %v931, %v6788
      %v6796 = vmul.f32 %v938, %v6788
      %v6797 = vmul.f32 %v945, %v6788
      %v6798 = vadd.f32 %v6776, %v6790
      %v6799 = vadd.f32 %v6777, %v6791
      %v6800 = vadd.f32 %v6778, %v6792
      %v6801 = vadd.f32 %v6779, %v6793
      %v6802 = vadd.f32 %v6780, %v6794
      %v6803 = vadd.f32 %v6781, %v6795
      %v6804 = vadd.f32 %v6782, %v6796
      %v6805 = vadd.f32 %v6783, %v6797
      %v6807 = vlaneseq
      %v6808 = vshrl.u32 %v6807, 7
      %v6809 = vsub.s32 0, %v6808
      %v6810 = vrot.slane %v6713, %v6809
      %v6812 = vadd.f32 %v6798, %v6810
      %v6813 = vadd.f32 %v6799, %v6810
      %v6814 = vadd.f32 %v6800, %v6810
      %v6815 = vadd.f32 %v6801, %v6810
      %v6816 = vadd.f32 %v6802, %v6810
      %v6817 = vadd.f32 %v6803, %v6810
      %v6818 = vadd.f32 %v6804, %v6810
      %v6819 = vadd.f32 %v6805, %v6810
      %v6820 = vxor.u32 %v6812, 2147483648
      %v6821 = vxor.u32 %v6813, 2147483648
      %v6822 = vxor.u32 %v6814, 2147483648
      %v6823 = vxor.u32 %v6815, 2147483648
      %v6824 = vxor.u32 %v6816, 2147483648
      %v6825 = vxor.u32 %v6817, 2147483648
      %v6826 = vxor.u32 %v6818, 2147483648
      %v6827 = vxor.u32 %v6819, 2147483648
      %v6828 = vmul.f32 %v6820, 1.442695
      %v6829 = vpow.pop %v6828
      %v6830 = vmul.f32 %v6821, 1.442695
      %v6831 = vpow.pop %v6830
      %v6832 = vmul.f32 %v6822, 1.442695
      %v6833 = vpow.pop %v6832
      %v6834 = vmul.f32 %v6823, 1.442695
      %v6835 = vpow.pop %v6834
      %v6836 = vmul.f32 %v6824, 1.442695
      %v6837 = vpow.pop %v6836
      %v6838 = vmul.f32 %v6825, 1.442695
      %v6839 = vpow.pop %v6838
      %v6840 = vmul.f32 %v6826, 1.442695
      %v6841 = vpow.pop %v6840
      %v6842 = vmul.f32 %v6827, 1.442695
      %v6843 = vpow.pop %v6842
      %v6844 = vadd.f32 %v6829, 1.0
      %v6845 = vadd.f32 %v6831, 1.0
      %v6846 = vadd.f32 %v6833, 1.0
      %v6847 = vadd.f32 %v6835, 1.0
      %v6848 = vadd.f32 %v6837, 1.0
      %v6849 = vadd.f32 %v6839, 1.0
      %v6850 = vadd.f32 %v6841, 1.0
      %v6851 = vadd.f32 %v6843, 1.0
      %v6852 = vrcp.pop %v6844
      %v6853 = vmul.f32 1.0, %v6852
      %v6854 = vrcp.pop %v6845
      %v6855 = vmul.f32 1.0, %v6854
      %v6856 = vrcp.pop %v6846
      %v6857 = vmul.f32 1.0, %v6856
      %v6858 = vrcp.pop %v6847
      %v6859 = vmul.f32 1.0, %v6858
      %v6860 = vrcp.pop %v6848
      %v6861 = vmul.f32 1.0, %v6860
      %v6862 = vrcp.pop %v6849
      %v6863 = vmul.f32 1.0, %v6862
      %v6864 = vrcp.pop %v6850
      %v6865 = vmul.f32 1.0, %v6864
      %v6866 = vrcp.pop %v6851
      %v6867 = vmul.f32 1.0, %v6866
      %v6868 = vmul.f32 %v6812, %v6853
      %v6869 = vmul.f32 %v6813, %v6855
      %v6870 = vmul.f32 %v6814, %v6857
      %v6871 = vmul.f32 %v6815, %v6859
      %v6872 = vmul.f32 %v6816, %v6861
      %v6873 = vmul.f32 %v6817, %v6863
      %v6874 = vmul.f32 %v6818, %v6865
      %v6875 = vmul.f32 %v6819, %v6867
      %s6876 = scalar_lea.vmem %s6, 640
      %v6877 = vld [vmem:[%s6876] sm:$0xff]
      %v6878 = vld [vmem:[%s6876 + $0x8] sm:$0xff]
      %v6879 = vld [vmem:[%s6876 + $0x10] sm:$0xff]
      %v6880 = vld [vmem:[%s6876 + $0x18] sm:$0xff]
      %v6881 = vld [vmem:[%s6876 + $0x20] sm:$0xff]
      %v6882 = vld [vmem:[%s6876 + $0x28] sm:$0xff]
      %v6883 = vld [vmem:[%s6876 + $0x30] sm:$0xff]
      %v6884 = vld [vmem:[%s6876 + $0x38] sm:$0xff]
      %v6885 = vld [vmem:[%s6876 + $0x40] sm:$0xff]
      %v6886 = vld [vmem:[%s6876 + $0x48] sm:$0xff]
      %v6887 = vld [vmem:[%s6876 + $0x50] sm:$0xff]
      %v6888 = vld [vmem:[%s6876 + $0x58] sm:$0xff]
      %v6889 = vld [vmem:[%s6876 + $0x60] sm:$0xff]
      %v6890 = vld [vmem:[%s6876 + $0x68] sm:$0xff]
      %v6891 = vld [vmem:[%s6876 + $0x70] sm:$0xff]
      %v6892 = vld [vmem:[%s6876 + $0x78] sm:$0xff]
      %s6893 = scalar_lea.vmem %s7, 5
      %v6894 = vld [vmem:[%s6893] sm:$0x1]
      %v6896 = vlaneseq
      %v6897 = vshrl.u32 %v6896, 7
      %v6898 = vsub.s32 0, %v6897
      %v6899 = vrot.slane %v6894, %v6898
      %6901 = vmatprep.subr.mxu0 0.0
      %6902 = vmatpush1.msra.mxu0 %v6877
      %6903 = vmatprep.subr.mxu0 0.0
      %6904 = vmatpush1.msra.mxu0 %v6878
      %6905 = vmatprep.subr.mxu0 0.0
      %6906 = vmatpush1.msra.mxu0 %v6879
      %6907 = vmatprep.subr.mxu0 0.0
      %6908 = vmatpush1.msra.mxu0 %v6880
      %6909 = vmatprep.subr.mxu0 0.0
      %6910 = vmatpush1.msra.mxu0 %v6881
      %6911 = vmatprep.subr.mxu0 0.0
      %6912 = vmatpush1.msra.mxu0 %v6882
      %6913 = vmatprep.subr.mxu0 0.0
      %6914 = vmatpush1.msra.mxu0 %v6883
      %6915 = vmatprep.subr.mxu0 0.0
      %6916 = vmatpush1.msra.mxu0 %v6884
      %6917 = vmatprep.subr.mxu0 0.0
      %6918 = vmatpush1.msra.mxu0 %v6885
      %6919 = vmatprep.subr.mxu0 0.0
      %6920 = vmatpush1.msra.mxu0 %v6886
      %6921 = vmatprep.subr.mxu0 0.0
      %6922 = vmatpush1.msra.mxu0 %v6887
      %6923 = vmatprep.subr.mxu0 0.0
      %6924 = vmatpush1.msra.mxu0 %v6888
      %6925 = vmatprep.subr.mxu0 0.0
      %6926 = vmatpush1.msra.mxu0 %v6889
      %6927 = vmatprep.subr.mxu0 0.0
      %6928 = vmatpush1.msra.mxu0 %v6890
      %6929 = vmatprep.subr.mxu0 0.0
      %6930 = vmatpush1.msra.mxu0 %v6891
      %6931 = vmatprep.subr.mxu0 0.0
      %6932 = vmatpush1.msra.mxu0 %v6892
      %6933 = vmatprep.subr.mxu0 0.0
      %6934 = vmatpush1.msra.mxu0 0.0
      %6935 = vmatprep.subr.mxu0 0.0
      %6936 = vmatpush1.msra.mxu0 0.0
      %6937 = vmatprep.subr.mxu0 0.0
      %6938 = vmatpush1.msra.mxu0 0.0
      %6939 = vmatprep.subr.mxu0 0.0
      %6940 = vmatpush1.msra.mxu0 0.0
      %6941 = vmatprep.subr.mxu0 0.0
      %6942 = vmatpush1.msra.mxu0 0.0
      %6943 = vmatprep.subr.mxu0 0.0
      %6944 = vmatpush1.msra.mxu0 0.0
      %6945 = vmatprep.subr.mxu0 0.0
      %6946 = vmatpush1.msra.mxu0 0.0
      %6947 = vmatprep.subr.mxu0 0.0
      %6948 = vmatpush1.msra.mxu0 0.0
      %6949 = vmatprep.subr.mxu0 0.0
      %6950 = vmatpush1.msra.mxu0 0.0
      %6951 = vmatprep.subr.mxu0 0.0
      %6952 = vmatpush1.msra.mxu0 0.0
      %6953 = vmatprep.subr.mxu0 0.0
      %6954 = vmatpush1.msra.mxu0 0.0
      %6955 = vmatprep.subr.mxu0 0.0
      %6956 = vmatpush1.msra.mxu0 0.0
      %6957 = vmatprep.subr.mxu0 0.0
      %6958 = vmatpush1.msra.mxu0 0.0
      %6959 = vmatprep.subr.mxu0 0.0
      %6960 = vmatpush1.msra.mxu0 0.0
      %6961 = vmatprep.subr.mxu0 0.0
      %6962 = vmatpush1.msra.mxu0 0.0
      %6963 = vmatprep.subr.mxu0 0.0
      %6964 = vmatpush1.msra.mxu0 0.0
      %6965 = vmatprep.mubr.f32.mxu0 0.0
      %6966 = vmatmul.mubr.f32.gmra.mrb[0].mxu0 %v6868
      %v6967 = vpop.f32.mrb[0].mxu0
      %v6968 = vadd.f32 %v6899, %v6967
      %v6969 = vpop.f32.mrb[0].mxu0
      %6970 = vmatprep.mubr.f32.mxu0 0.0
      %6971 = vmatmul.mubr.f32.gmra.mrb[0].mxu0 %v6869
      %v6972 = vpop.f32.mrb[0].mxu0
      %v6973 = vadd.f32 %v6899, %v6972
      %v6974 = vpop.f32.mrb[0].mxu0
      %6975 = vmatprep.mubr.f32.mxu0 0.0
      %6976 = vmatmul.mubr.f32.gmra.mrb[0].mxu0 %v6870
      %v6977 = vpop.f32.mrb[0].mxu0
      %v6978 = vadd.f32 %v6899, %v6977
      %v6979 = vpop.f32.mrb[0].mxu0
      %6980 = vmatprep.mubr.f32.mxu0 0.0
      %6981 = vmatmul.mubr.f32.gmra.mrb[0].mxu0 %v6871
      %v6982 = vpop.f32.mrb[0].mxu0
      %v6983 = vadd.f32 %v6899, %v6982
      %v6984 = vpop.f32.mrb[0].mxu0
      %6985 = vmatprep.mubr.f32.mxu0 0.0
      %6986 = vmatmul.mubr.f32.gmra.mrb[0].mxu0 %v6872
      %v6987 = vpop.f32.mrb[0].mxu0
      %v6988 = vadd.f32 %v6899, %v6987
      %v6989 = vpop.f32.mrb[0].mxu0
      %6990 = vmatprep.mubr.f32.mxu0 0.0
      %6991 = vmatmul.mubr.f32.gmra.mrb[0].mxu0 %v6873
      %v6992 = vpop.f32.mrb[0].mxu0
      %v6993 = vadd.f32 %v6899, %v6992
      %v6994 = vpop.f32.mrb[0].mxu0
      %6995 = vmatprep.mubr.f32.mxu0 0.0
      %6996 = vmatmul.mubr.f32.gmra.mrb[0].mxu0 %v6874
      %v6997 = vpop.f32.mrb[0].mxu0
      %v6998 = vadd.f32 %v6899, %v6997
      %v6999 = vpop.f32.mrb[0].mxu0
      %7000 = vmatprep.mubr.f32.mxu0 0.0
      %7001 = vmatmul.mubr.f32.gmra.mrb[0].mxu0 %v6875
      %v7002 = vpop.f32.mrb[0].mxu0
      %v7003 = vadd.f32 %v6899, %v7002
      %v7004 = vpop.f32.mrb[0].mxu0
      %7005 = vdwg.mxu0
      %v7006 = vxor.u32 %v6968, 2147483648
      %v7007 = vxor.u32 %v6973, 2147483648
      %v7008 = vxor.u32 %v6978, 2147483648
      %v7009 = vxor.u32 %v6983, 2147483648
      %v7010 = vxor.u32 %v6988, 2147483648
      %v7011 = vxor.u32 %v6993, 2147483648
      %v7012 = vxor.u32 %v6998, 2147483648
      %v7013 = vxor.u32 %v7003, 2147483648
      %v7014 = vmul.f32 %v7006, 1.442695
      %v7015 = vpow.pop %v7014
      %v7016 = vmul.f32 %v7007, 1.442695
      %v7017 = vpow.pop %v7016
      %v7018 = vmul.f32 %v7008, 1.442695
      %v7019 = vpow.pop %v7018
      %v7020 = vmul.f32 %v7009, 1.442695
      %v7021 = vpow.pop %v7020
      %v7022 = vmul.f32 %v7010, 1.442695
      %v7023 = vpow.pop %v7022
      %v7024 = vmul.f32 %v7011, 1.442695
      %v7025 = vpow.pop %v7024
      %v7026 = vmul.f32 %v7012, 1.442695
      %v7027 = vpow.pop %v7026
      %v7028 = vmul.f32 %v7013, 1.442695
      %v7029 = vpow.pop %v7028
      %v7030 = vadd.f32 %v7015, 1.0
      %v7031 = vadd.f32 %v7017, 1.0
      %v7032 = vadd.f32 %v7019, 1.0
      %v7033 = vadd.f32 %v7021, 1.0
      %v7034 = vadd.f32 %v7023, 1.0
      %v7035 = vadd.f32 %v7025, 1.0
      %v7036 = vadd.f32 %v7027, 1.0
      %v7037 = vadd.f32 %v7029, 1.0
      %v7038 = vrcp.pop %v7030
      %v7039 = vmul.f32 1.0, %v7038
      %v7040 = vrcp.pop %v7031
      %v7041 = vmul.f32 1.0, %v7040
      %v7042 = vrcp.pop %v7032
      %v7043 = vmul.f32 1.0, %v7042
      %v7044 = vrcp.pop %v7033
      %v7045 = vmul.f32 1.0, %v7044
      %v7046 = vrcp.pop %v7034
      %v7047 = vmul.f32 1.0, %v7046
      %v7048 = vrcp.pop %v7035
      %v7049 = vmul.f32 1.0, %v7048
      %v7050 = vrcp.pop %v7036
      %v7051 = vmul.f32 1.0, %v7050
      %v7052 = vrcp.pop %v7037
      %v7053 = vmul.f32 1.0, %v7052
      %v7054 = vmul.f32 %v6968, %v7039
      %v7055 = vmul.f32 %v6973, %v7041
      %v7056 = vmul.f32 %v6978, %v7043
      %v7057 = vmul.f32 %v6983, %v7045
      %v7058 = vmul.f32 %v6988, %v7047
      %v7059 = vmul.f32 %v6993, %v7049
      %v7060 = vmul.f32 %v6998, %v7051
      %v7061 = vmul.f32 %v7003, %v7053
      %v7062 = vrot.slane %v7054, 4
      %v7063 = vadd.f32 %v7054, %v7062
      %v7064 = vrot.slane %v7063, 2
      %v7065 = vadd.f32 %v7063, %v7064
      %v7066 = vrot.slane %v7065, 1
      %v7067 = vadd.f32 %v7065, %v7066
      %v7068 = vrot.slane %v7055, 4
      %v7069 = vadd.f32 %v7055, %v7068
      %v7070 = vrot.slane %v7069, 2
      %v7071 = vadd.f32 %v7069, %v7070
      %v7072 = vrot.slane %v7071, 1
      %v7073 = vadd.f32 %v7071, %v7072
      %v7074 = vrot.slane %v7056, 4
      %v7075 = vadd.f32 %v7056, %v7074
      %v7076 = vrot.slane %v7075, 2
      %v7077 = vadd.f32 %v7075, %v7076
      %v7078 = vrot.slane %v7077, 1
      %v7079 = vadd.f32 %v7077, %v7078
      %v7080 = vrot.slane %v7057, 4
      %v7081 = vadd.f32 %v7057, %v7080
      %v7082 = vrot.slane %v7081, 2
      %v7083 = vadd.f32 %v7081, %v7082
      %v7084 = vrot.slane %v7083, 1
      %v7085 = vadd.f32 %v7083, %v7084
      %v7086 = vrot.slane %v7058, 4
      %v7087 = vadd.f32 %v7058, %v7086
      %v7088 = vrot.slane %v7087, 2
      %v7089 = vadd.f32 %v7087, %v7088
      %v7090 = vrot.slane %v7089, 1
      %v7091 = vadd.f32 %v7089, %v7090
      %v7092 = vrot.slane %v7059, 4
      %v7093 = vadd.f32 %v7059, %v7092
      %v7094 = vrot.slane %v7093, 2
      %v7095 = vadd.f32 %v7093, %v7094
      %v7096 = vrot.slane %v7095, 1
      %v7097 = vadd.f32 %v7095, %v7096
      %v7098 = vrot.slane %v7060, 4
      %v7099 = vadd.f32 %v7060, %v7098
      %v7100 = vrot.slane %v7099, 2
      %v7101 = vadd.f32 %v7099, %v7100
      %v7102 = vrot.slane %v7101, 1
      %v7103 = vadd.f32 %v7101, %v7102
      %v7104 = vrot.slane %v7061, 4
      %v7105 = vadd.f32 %v7061, %v7104
      %v7106 = vrot.slane %v7105, 2
      %v7107 = vadd.f32 %v7105, %v7106
      %v7108 = vrot.slane %v7107, 1
      %v7109 = vadd.f32 %v7107, %v7108
      %v7110 = vadd.f32 %v7067, 0.0
      %v7111 = vadd.f32 %v7073, 0.0
      %v7112 = vadd.f32 %v7079, 0.0
      %v7113 = vadd.f32 %v7085, 0.0
      %v7114 = vadd.f32 %v7091, 0.0
      %v7115 = vadd.f32 %v7097, 0.0
      %v7116 = vadd.f32 %v7103, 0.0
      %v7117 = vadd.f32 %v7109, 0.0
      %v7118 = vmul.f32 %v7110, 0.01
      %v7119 = vmul.f32 %v7111, 0.01
      %v7120 = vmul.f32 %v7112, 0.01
      %v7121 = vmul.f32 %v7113, 0.01
      %v7122 = vmul.f32 %v7114, 0.01
      %v7123 = vmul.f32 %v7115, 0.01
      %v7124 = vmul.f32 %v7116, 0.01
      %v7125 = vmul.f32 %v7117, 0.01
      %s7126 = scalar_lea.vmem %s8, 640
      %v7127 = vld [vmem:[%s7126] sm:$0xff]
      %v7128 = vld [vmem:[%s7126 + $0x8] sm:$0xff]
      %v7129 = vld [vmem:[%s7126 + $0x10] sm:$0xff]
      %v7130 = vld [vmem:[%s7126 + $0x18] sm:$0xff]
      %v7131 = vld [vmem:[%s7126 + $0x20] sm:$0xff]
      %v7132 = vld [vmem:[%s7126 + $0x28] sm:$0xff]
      %v7133 = vld [vmem:[%s7126 + $0x30] sm:$0xff]
      %v7134 = vld [vmem:[%s7126 + $0x38] sm:$0xff]
      %v7135 = vld [vmem:[%s7126 + $0x40] sm:$0xff]
      %v7136 = vld [vmem:[%s7126 + $0x48] sm:$0xff]
      %v7137 = vld [vmem:[%s7126 + $0x50] sm:$0xff]
      %v7138 = vld [vmem:[%s7126 + $0x58] sm:$0xff]
      %v7139 = vld [vmem:[%s7126 + $0x60] sm:$0xff]
      %v7140 = vld [vmem:[%s7126 + $0x68] sm:$0xff]
      %v7141 = vld [vmem:[%s7126 + $0x70] sm:$0xff]
      %v7142 = vld [vmem:[%s7126 + $0x78] sm:$0xff]
      %s7143 = scalar_lea.vmem %s9, 640
      %v7144 = vld [vmem:[%s7143] sm:$0xff]
      %v7145 = vld [vmem:[%s7143 + $0x8] sm:$0xff]
      %v7146 = vld [vmem:[%s7143 + $0x10] sm:$0xff]
      %v7147 = vld [vmem:[%s7143 + $0x18] sm:$0xff]
      %v7148 = vld [vmem:[%s7143 + $0x20] sm:$0xff]
      %v7149 = vld [vmem:[%s7143 + $0x28] sm:$0xff]
      %v7150 = vld [vmem:[%s7143 + $0x30] sm:$0xff]
      %v7151 = vld [vmem:[%s7143 + $0x38] sm:$0xff]
      %v7152 = vld [vmem:[%s7143 + $0x40] sm:$0xff]
      %v7153 = vld [vmem:[%s7143 + $0x48] sm:$0xff]
      %v7154 = vld [vmem:[%s7143 + $0x50] sm:$0xff]
      %v7155 = vld [vmem:[%s7143 + $0x58] sm:$0xff]
      %v7156 = vld [vmem:[%s7143 + $0x60] sm:$0xff]
      %v7157 = vld [vmem:[%s7143 + $0x68] sm:$0xff]
      %v7158 = vld [vmem:[%s7143 + $0x70] sm:$0xff]
      %v7159 = vld [vmem:[%s7143 + $0x78] sm:$0xff]
      %v7168 = vsel %vm1348, %v7119, %v7118
      %v7169 = vsel %vm1350, %v7120, %v7168
      %v7170 = vsel %vm1352, %v7121, %v7169
      %v7171 = vsel %vm1354, %v7122, %v7170
      %v7172 = vsel %vm1356, %v7123, %v7171
      %v7173 = vsel %vm1358, %v7124, %v7172
      %v7174 = vsel %vm1360, %v7125, %v7173
      %7176 = vmatprep.subr.mxu0 0.0
      %7177 = vmatpush1.msra.mxu0 %v7144
      %7178 = vmatprep.subr.mxu0 0.0
      %7179 = vmatpush1.msra.mxu0 %v7145
      %7180 = vmatprep.subr.mxu0 0.0
      %7181 = vmatpush1.msra.mxu0 %v7146
      %7182 = vmatprep.subr.mxu0 0.0
      %7183 = vmatpush1.msra.mxu0 %v7147
      %7184 = vmatprep.subr.mxu0 0.0
      %7185 = vmatpush1.msra.mxu0 %v7148
      %7186 = vmatprep.subr.mxu0 0.0
      %7187 = vmatpush1.msra.mxu0 %v7149
      %7188 = vmatprep.subr.mxu0 0.0
      %7189 = vmatpush1.msra.mxu0 %v7150
      %7190 = vmatprep.subr.mxu0 0.0
      %7191 = vmatpush1.msra.mxu0 %v7151
      %7192 = vmatprep.subr.mxu0 0.0
      %7193 = vmatpush1.msra.mxu0 %v7152
      %7194 = vmatprep.subr.mxu0 0.0
      %7195 = vmatpush1.msra.mxu0 %v7153
      %7196 = vmatprep.subr.mxu0 0.0
      %7197 = vmatpush1.msra.mxu0 %v7154
      %7198 = vmatprep.subr.mxu0 0.0
      %7199 = vmatpush1.msra.mxu0 %v7155
      %7200 = vmatprep.subr.mxu0 0.0
      %7201 = vmatpush1.msra.mxu0 %v7156
      %7202 = vmatprep.subr.mxu0 0.0
      %7203 = vmatpush1.msra.mxu0 %v7157
      %7204 = vmatprep.subr.mxu0 0.0
      %7205 = vmatpush1.msra.mxu0 %v7158
      %7206 = vmatprep.subr.mxu0 0.0
      %7207 = vmatpush1.msra.mxu0 %v7159
      %7208 = vmatprep.subr.mxu0 0.0
      %7209 = vmatpush1.msra.mxu0 0.0
      %7210 = vmatprep.subr.mxu0 0.0
      %7211 = vmatpush1.msra.mxu0 0.0
      %7212 = vmatprep.subr.mxu0 0.0
      %7213 = vmatpush1.msra.mxu0 0.0
      %7214 = vmatprep.subr.mxu0 0.0
      %7215 = vmatpush1.msra.mxu0 0.0
      %7216 = vmatprep.subr.mxu0 0.0
      %7217 = vmatpush1.msra.mxu0 0.0
      %7218 = vmatprep.subr.mxu0 0.0
      %7219 = vmatpush1.msra.mxu0 0.0
      %7220 = vmatprep.subr.mxu0 0.0
      %7221 = vmatpush1.msra.mxu0 0.0
      %7222 = vmatprep.subr.mxu0 0.0
      %7223 = vmatpush1.msra.mxu0 0.0
      %7224 = vmatprep.subr.mxu0 0.0
      %7225 = vmatpush1.msra.mxu0 0.0
      %7226 = vmatprep.subr.mxu0 0.0
      %7227 = vmatpush1.msra.mxu0 0.0
      %7228 = vmatprep.subr.mxu0 0.0
      %7229 = vmatpush1.msra.mxu0 0.0
      %7230 = vmatprep.subr.mxu0 0.0
      %7231 = vmatpush1.msra.mxu0 0.0
      %7232 = vmatprep.subr.mxu0 0.0
      %7233 = vmatpush1.msra.mxu0 0.0
      %7234 = vmatprep.subr.mxu0 0.0
      %7235 = vmatpush1.msra.mxu0 0.0
      %7236 = vmatprep.subr.mxu0 0.0
      %7237 = vmatpush1.msra.mxu0 0.0
      %7238 = vmatprep.subr.mxu0 0.0
      %7239 = vmatpush1.msra.mxu0 0.0
      %7240 = vmatprep.mubr.f32.mxu0 0.0
      %7241 = vmatmul.mubr.f32.gmra.mrb[0].mxu0 %v7174
      %v7242 = vpop.f32.mrb[0].mxu0
      %v7243 = vadd.f32 0.0, %v7242
      %v7244 = vpop.f32.mrb[0].mxu0
      %7245 = vdwg.mxu0
      %7246 = vmatprep.subr.mxu0 0.0
      %7247 = vmatpush1.msra.mxu0 %v7127
      %7248 = vmatprep.subr.mxu0 0.0
      %7249 = vmatpush1.msra.mxu0 %v7128
      %7250 = vmatprep.subr.mxu0 0.0
      %7251 = vmatpush1.msra.mxu0 %v7129
      %7252 = vmatprep.subr.mxu0 0.0
      %7253 = vmatpush1.msra.mxu0 %v7130
      %7254 = vmatprep.subr.mxu0 0.0
      %7255 = vmatpush1.msra.mxu0 %v7131
      %7256 = vmatprep.subr.mxu0 0.0
      %7257 = vmatpush1.msra.mxu0 %v7132
      %7258 = vmatprep.subr.mxu0 0.0
      %7259 = vmatpush1.msra.mxu0 %v7133
      %7260 = vmatprep.subr.mxu0 0.0
      %7261 = vmatpush1.msra.mxu0 %v7134
      %7262 = vmatprep.subr.mxu0 0.0
      %7263 = vmatpush1.msra.mxu0 %v7135
      %7264 = vmatprep.subr.mxu0 0.0
      %7265 = vmatpush1.msra.mxu0 %v7136
      %7266 = vmatprep.subr.mxu0 0.0
      %7267 = vmatpush1.msra.mxu0 %v7137
      %7268 = vmatprep.subr.mxu0 0.0
      %7269 = vmatpush1.msra.mxu0 %v7138
      %7270 = vmatprep.subr.mxu0 0.0
      %7271 = vmatpush1.msra.mxu0 %v7139
      %7272 = vmatprep.subr.mxu0 0.0
      %7273 = vmatpush1.msra.mxu0 %v7140
      %7274 = vmatprep.subr.mxu0 0.0
      %7275 = vmatpush1.msra.mxu0 %v7141
      %7276 = vmatprep.subr.mxu0 0.0
      %7277 = vmatpush1.msra.mxu0 %v7142
      %7278 = vmatprep.subr.mxu0 0.0
      %7279 = vmatpush1.msra.mxu0 0.0
      %7280 = vmatprep.subr.mxu0 0.0
      %7281 = vmatpush1.msra.mxu0 0.0
      %7282 = vmatprep.subr.mxu0 0.0
      %7283 = vmatpush1.msra.mxu0 0.0
      %7284 = vmatprep.subr.mxu0 0.0
      %7285 = vmatpush1.msra.mxu0 0.0
      %7286 = vmatprep.subr.mxu0 0.0
      %7287 = vmatpush1.msra.mxu0 0.0
      %7288 = vmatprep.subr.mxu0 0.0
      %7289 = vmatpush1.msra.mxu0 0.0
      %7290 = vmatprep.subr.mxu0 0.0
      %7291 = vmatpush1.msra.mxu0 0.0
      %7292 = vmatprep.subr.mxu0 0.0
      %7293 = vmatpush1.msra.mxu0 0.0
      %7294 = vmatprep.subr.mxu0 0.0
      %7295 = vmatpush1.msra.mxu0 0.0
      %7296 = vmatprep.subr.mxu0 0.0
      %7297 = vmatpush1.msra.mxu0 0.0
      %7298 = vmatprep.subr.mxu0 0.0
      %7299 = vmatpush1.msra.mxu0 0.0
      %7300 = vmatprep.subr.mxu0 0.0
      %7301 = vmatpush1.msra.mxu0 0.0
      %7302 = vmatprep.subr.mxu0 0.0
      %7303 = vmatpush1.msra.mxu0 0.0
      %7304 = vmatprep.subr.mxu0 0.0
      %7305 = vmatpush1.msra.mxu0 0.0
      %7306 = vmatprep.subr.mxu0 0.0
      %7307 = vmatpush1.msra.mxu0 0.0
      %7308 = vmatprep.subr.mxu0 0.0
      %7309 = vmatpush1.msra.mxu0 0.0
      %7310 = vmatprep.mubr.f32.mxu0 0.0
      %7311 = vmatmul.mubr.f32.gmra.mrb[0].mxu0 %v6553
      %v7312 = vpop.f32.mrb[0].mxu0
      %v7313 = vadd.f32 %v7243, %v7312
      %v7314 = vpop.f32.mrb[0].mxu0
      %7315 = vdwg.mxu0
      %s7316 = scalar_lea.vmem %s10, 5
      %v7317 = vld [vmem:[%s7316] sm:$0x1]
      %v7319 = vlaneseq
      %v7320 = vshrl.u32 %v7319, 7
      %v7321 = vsub.s32 0, %v7320
      %v7322 = vrot.slane %v7317, %v7321
      %v7324 = vadd.f32 %v7313, %v7322
      %v7325 = vxor.u32 %v7324, 2147483648
      %v7326 = vmul.f32 %v7325, 1.442695
      %v7327 = vpow.pop %v7326
      %v7328 = vadd.f32 %v7327, 1.0
      %v7329 = vrcp.pop %v7328
      %v7330 = vmul.f32 1.0, %v7329
      %v7331 = vmul.f32 %v7324, %v7330
      %s7332 = scalar_lea.vmem %s11, 640
      %v7333 = vld [vmem:[%s7332] sm:$0xff]
      %v7334 = vld [vmem:[%s7332 + $0x8] sm:$0xff]
      %v7335 = vld [vmem:[%s7332 + $0x10] sm:$0xff]
      %v7336 = vld [vmem:[%s7332 + $0x18] sm:$0xff]
      %v7337 = vld [vmem:[%s7332 + $0x20] sm:$0xff]
      %v7338 = vld [vmem:[%s7332 + $0x28] sm:$0xff]
      %v7339 = vld [vmem:[%s7332 + $0x30] sm:$0xff]
      %v7340 = vld [vmem:[%s7332 + $0x38] sm:$0xff]
      %v7341 = vld [vmem:[%s7332 + $0x40] sm:$0xff]
      %v7342 = vld [vmem:[%s7332 + $0x48] sm:$0xff]
      %v7343 = vld [vmem:[%s7332 + $0x50] sm:$0xff]
      %v7344 = vld [vmem:[%s7332 + $0x58] sm:$0xff]
      %v7345 = vld [vmem:[%s7332 + $0x60] sm:$0xff]
      %v7346 = vld [vmem:[%s7332 + $0x68] sm:$0xff]
      %v7347 = vld [vmem:[%s7332 + $0x70] sm:$0xff]
      %v7348 = vld [vmem:[%s7332 + $0x78] sm:$0xff]
      %s7349 = scalar_lea.vmem %s12, 5
      %v7350 = vld [vmem:[%s7349] sm:$0x1]
      %v7352 = vlaneseq
      %v7353 = vshrl.u32 %v7352, 7
      %v7354 = vsub.s32 0, %v7353
      %v7355 = vrot.slane %v7350, %v7354
      %7357 = vmatprep.subr.mxu0 0.0
      %7358 = vmatpush1.msra.mxu0 %v7333
      %7359 = vmatprep.subr.mxu0 0.0
      %7360 = vmatpush1.msra.mxu0 %v7334
      %7361 = vmatprep.subr.mxu0 0.0
      %7362 = vmatpush1.msra.mxu0 %v7335
      %7363 = vmatprep.subr.mxu0 0.0
      %7364 = vmatpush1.msra.mxu0 %v7336
      %7365 = vmatprep.subr.mxu0 0.0
      %7366 = vmatpush1.msra.mxu0 %v7337
      %7367 = vmatprep.subr.mxu0 0.0
      %7368 = vmatpush1.msra.mxu0 %v7338
      %7369 = vmatprep.subr.mxu0 0.0
      %7370 = vmatpush1.msra.mxu0 %v7339
      %7371 = vmatprep.subr.mxu0 0.0
      %7372 = vmatpush1.msra.mxu0 %v7340
      %7373 = vmatprep.subr.mxu0 0.0
      %7374 = vmatpush1.msra.mxu0 %v7341
      %7375 = vmatprep.subr.mxu0 0.0
      %7376 = vmatpush1.msra.mxu0 %v7342
      %7377 = vmatprep.subr.mxu0 0.0
      %7378 = vmatpush1.msra.mxu0 %v7343
      %7379 = vmatprep.subr.mxu0 0.0
      %7380 = vmatpush1.msra.mxu0 %v7344
      %7381 = vmatprep.subr.mxu0 0.0
      %7382 = vmatpush1.msra.mxu0 %v7345
      %7383 = vmatprep.subr.mxu0 0.0
      %7384 = vmatpush1.msra.mxu0 %v7346
      %7385 = vmatprep.subr.mxu0 0.0
      %7386 = vmatpush1.msra.mxu0 %v7347
      %7387 = vmatprep.subr.mxu0 0.0
      %7388 = vmatpush1.msra.mxu0 %v7348
      %7389 = vmatprep.subr.mxu0 0.0
      %7390 = vmatpush1.msra.mxu0 0.0
      %7391 = vmatprep.subr.mxu0 0.0
      %7392 = vmatpush1.msra.mxu0 0.0
      %7393 = vmatprep.subr.mxu0 0.0
      %7394 = vmatpush1.msra.mxu0 0.0
      %7395 = vmatprep.subr.mxu0 0.0
      %7396 = vmatpush1.msra.mxu0 0.0
      %7397 = vmatprep.subr.mxu0 0.0
      %7398 = vmatpush1.msra.mxu0 0.0
      %7399 = vmatprep.subr.mxu0 0.0
      %7400 = vmatpush1.msra.mxu0 0.0
      %7401 = vmatprep.subr.mxu0 0.0
      %7402 = vmatpush1.msra.mxu0 0.0
      %7403 = vmatprep.subr.mxu0 0.0
      %7404 = vmatpush1.msra.mxu0 0.0
      %7405 = vmatprep.subr.mxu0 0.0
      %7406 = vmatpush1.msra.mxu0 0.0
      %7407 = vmatprep.subr.mxu0 0.0
      %7408 = vmatpush1.msra.mxu0 0.0
      %7409 = vmatprep.subr.mxu0 0.0
      %7410 = vmatpush1.msra.mxu0 0.0
      %7411 = vmatprep.subr.mxu0 0.0
      %7412 = vmatpush1.msra.mxu0 0.0
      %7413 = vmatprep.subr.mxu0 0.0
      %7414 = vmatpush1.msra.mxu0 0.0
      %7415 = vmatprep.subr.mxu0 0.0
      %7416 = vmatpush1.msra.mxu0 0.0
      %7417 = vmatprep.subr.mxu0 0.0
      %7418 = vmatpush1.msra.mxu0 0.0
      %7419 = vmatprep.subr.mxu0 0.0
      %7420 = vmatpush1.msra.mxu0 0.0
      %7421 = vmatprep.mubr.f32.mxu0 0.0
      %7422 = vmatmul.mubr.f32.gmra.mrb[0].mxu0 %v7331
      %v7423 = vpop.f32.mrb[0].mxu0
      %v7424 = vadd.f32 %v7355, %v7423
      %v7425 = vpop.f32.mrb[0].mxu0
      %7426 = vdwg.mxu0
      %v7427 = vadd.f32 %v6553, %v7424
      %s7428 = scalar_lea.vmem %s13, 512
      %v7429 = vld [vmem:[%s7428] sm:$0xff]
      %v7430 = vld [vmem:[%s7428 + $0x8] sm:$0xff]
      %v7431 = vld [vmem:[%s7428 + $0x10] sm:$0xff]
      %v7432 = vld [vmem:[%s7428 + $0x18] sm:$0xff]
      %v7433 = vld [vmem:[%s7428 + $0x20] sm:$0xff]
      %v7434 = vld [vmem:[%s7428 + $0x28] sm:$0xff]
      %v7435 = vld [vmem:[%s7428 + $0x30] sm:$0xff]
      %v7436 = vld [vmem:[%s7428 + $0x38] sm:$0xff]
      %v7437 = vld [vmem:[%s7428 + $0x40] sm:$0xff]
      %v7438 = vld [vmem:[%s7428 + $0x48] sm:$0xff]
      %v7439 = vld [vmem:[%s7428 + $0x50] sm:$0xff]
      %v7440 = vld [vmem:[%s7428 + $0x58] sm:$0xff]
      %v7441 = vld [vmem:[%s7428 + $0x60] sm:$0xff]
      %v7442 = vld [vmem:[%s7428 + $0x68] sm:$0xff]
      %v7443 = vld [vmem:[%s7428 + $0x70] sm:$0xff]
      %v7444 = vld [vmem:[%s7428 + $0x78] sm:$0xff]
      %v7445 = vld [vmem:[%s7428 + $0x80] sm:$0xff]
      %v7446 = vld [vmem:[%s7428 + $0x88] sm:$0xff]
      %v7447 = vld [vmem:[%s7428 + $0x90] sm:$0xff]
      %v7448 = vld [vmem:[%s7428 + $0x98] sm:$0xff]
      %v7449 = vld [vmem:[%s7428 + $0xa0] sm:$0xff]
      %v7450 = vld [vmem:[%s7428 + $0xa8] sm:$0xff]
      %v7451 = vld [vmem:[%s7428 + $0xb0] sm:$0xff]
      %v7452 = vld [vmem:[%s7428 + $0xb8] sm:$0xff]
      %v7453 = vld [vmem:[%s7428 + $0xc0] sm:$0xff]
      %v7454 = vld [vmem:[%s7428 + $0xc8] sm:$0xff]
      %v7455 = vld [vmem:[%s7428 + $0xd0] sm:$0xff]
      %v7456 = vld [vmem:[%s7428 + $0xd8] sm:$0xff]
      %v7457 = vld [vmem:[%s7428 + $0xe0] sm:$0xff]
      %v7458 = vld [vmem:[%s7428 + $0xe8] sm:$0xff]
      %v7459 = vld [vmem:[%s7428 + $0xf0] sm:$0xff]
      %v7460 = vld [vmem:[%s7428 + $0xf8] sm:$0xff]
      %7461 = vmatprep.subr.mxu0 %v7430
      %7462 = vmatpush1.msra.mxu0 %v7429
      %7463 = vmatprep.subr.mxu0 %v7432
      %7464 = vmatpush1.msra.mxu0 %v7431
      %7465 = vmatprep.subr.mxu0 %v7434
      %7466 = vmatpush1.msra.mxu0 %v7433
      %7467 = vmatprep.subr.mxu0 %v7436
      %7468 = vmatpush1.msra.mxu0 %v7435
      %7469 = vmatprep.subr.mxu0 %v7438
      %7470 = vmatpush1.msra.mxu0 %v7437
      %7471 = vmatprep.subr.mxu0 %v7440
      %7472 = vmatpush1.msra.mxu0 %v7439
      %7473 = vmatprep.subr.mxu0 %v7442
      %7474 = vmatpush1.msra.mxu0 %v7441
      %7475 = vmatprep.subr.mxu0 %v7444
      %7476 = vmatpush1.msra.mxu0 %v7443
      %7477 = vmatprep.subr.mxu0 %v7446
      %7478 = vmatpush1.msra.mxu0 %v7445
      %7479 = vmatprep.subr.mxu0 %v7448
      %7480 = vmatpush1.msra.mxu0 %v7447
      %7481 = vmatprep.subr.mxu0 %v7450
      %7482 = vmatpush1.msra.mxu0 %v7449
      %7483 = vmatprep.subr.mxu0 %v7452
      %7484 = vmatpush1.msra.mxu0 %v7451
      %7485 = vmatprep.subr.mxu0 %v7454
      %7486 = vmatpush1.msra.mxu0 %v7453
      %7487 = vmatprep.subr.mxu0 %v7456
      %7488 = vmatpush1.msra.mxu0 %v7455
      %7489 = vmatprep.subr.mxu0 %v7458
      %7490 = vmatpush1.msra.mxu0 %v7457
      %7491 = vmatprep.subr.mxu0 %v7460
      %7492 = vmatpush1.msra.mxu0 %v7459
      %7493 = vmatprep.subr.mxu0 0.0
      %7494 = vmatpush1.msra.mxu0 0.0
      %7495 = vmatprep.subr.mxu0 0.0
      %7496 = vmatpush1.msra.mxu0 0.0
      %7497 = vmatprep.subr.mxu0 0.0
      %7498 = vmatpush1.msra.mxu0 0.0
      %7499 = vmatprep.subr.mxu0 0.0
      %7500 = vmatpush1.msra.mxu0 0.0
      %7501 = vmatprep.subr.mxu0 0.0
      %7502 = vmatpush1.msra.mxu0 0.0
      %7503 = vmatprep.subr.mxu0 0.0
      %7504 = vmatpush1.msra.mxu0 0.0
      %7505 = vmatprep.subr.mxu0 0.0
      %7506 = vmatpush1.msra.mxu0 0.0
      %7507 = vmatprep.subr.mxu0 0.0
      %7508 = vmatpush1.msra.mxu0 0.0
      %7509 = vmatprep.subr.mxu0 0.0
      %7510 = vmatpush1.msra.mxu0 0.0
      %7511 = vmatprep.subr.mxu0 0.0
      %7512 = vmatpush1.msra.mxu0 0.0
      %7513 = vmatprep.subr.mxu0 0.0
      %7514 = vmatpush1.msra.mxu0 0.0
      %7515 = vmatprep.subr.mxu0 0.0
      %7516 = vmatpush1.msra.mxu0 0.0
      %7517 = vmatprep.subr.mxu0 0.0
      %7518 = vmatpush1.msra.mxu0 0.0
      %7519 = vmatprep.subr.mxu0 0.0
      %7520 = vmatpush1.msra.mxu0 0.0
      %7521 = vmatprep.subr.mxu0 0.0
      %7522 = vmatpush1.msra.mxu0 0.0
      %7523 = vmatprep.subr.mxu0 0.0
      %7524 = vmatpush1.msra.mxu0 0.0
      %7525 = vmatprep.mubr.f32.mxu0 0.0
      %7526 = vmatmul.mubr.f32.gmra.mrb[0].mxu0 %v7427
      %v7527 = vpop.f32.mrb[0].mxu0
      %v7528 = vadd.f32 0.0, %v7527
      %v7529 = vpop.f32.mrb[0].mxu0
      %v7530 = vadd.f32 0.0, %v7529
      %7531 = vdwg.mxu0
      %v7533 = vcombine.high %v7528, %v7528
      %v7535 = vunpack.c.l.s4 1966171168
      %v7536 = vunpack.c.0.s8 %v7535
      %v7537 = vlaneseq
      %v7538 = vshrl.u32 %v7537, 7
      %v7539 = vsub.s32 %v7536, %v7538
      %v7540 = vrot.slane %v7528, %v7539
      %v7542 = vunpack.c.l.s4 1966171168
      %v7543 = vunpack.c.0.s8 %v7542
      %v7544 = vlaneseq
      %v7545 = vshrl.u32 %v7544, 7
      %v7546 = vsub.s32 %v7543, %v7545
      %v7547 = vrot.slane %v7533, %v7546
      %v7548 = vcombine.high %v7540, %v7540
      %v7549 = vcombine.high %v7547, %v7547
      %v7551 = vunpack.c.l.s4 1966171168
      %v7552 = vunpack.c.0.s8 %v7551
      %v7553 = vlaneseq
      %v7554 = vshrl.u32 %v7553, 7
      %v7555 = vsub.s32 %v7552, %v7554
      %v7556 = vrot.slane %v7540, %v7555
      %v7558 = vunpack.c.l.s4 1966171168
      %v7559 = vunpack.c.0.s8 %v7558
      %v7560 = vlaneseq
      %v7561 = vshrl.u32 %v7560, 7
      %v7562 = vsub.s32 %v7559, %v7561
      %v7563 = vrot.slane %v7547, %v7562
      %v7565 = vunpack.c.l.s4 1966171168
      %v7566 = vunpack.c.0.s8 %v7565
      %v7567 = vlaneseq
      %v7568 = vshrl.u32 %v7567, 7
      %v7569 = vsub.s32 %v7566, %v7568
      %v7570 = vrot.slane %v7548, %v7569
      %v7572 = vunpack.c.l.s4 1966171168
      %v7573 = vunpack.c.0.s8 %v7572
      %v7574 = vlaneseq
      %v7575 = vshrl.u32 %v7574, 7
      %v7576 = vsub.s32 %v7573, %v7575
      %v7577 = vrot.slane %v7549, %v7576
      %v7578 = vcombine.high %v7556, %v7556
      %v7579 = vcombine.high %v7563, %v7563
      %v7580 = vcombine.high %v7570, %v7570
      %v7581 = vcombine.high %v7577, %v7577
      %s7582 = scalar_lea.vmem %s14, 2
      %v7583 = vld [vmem:[%s7582] sm:$0x1]
      %s7584 = scalar_lea.vmem %s15, 2
      %v7585 = vld [vmem:[%s7584] sm:$0x1]
      %s7586 = scalar_lea.vmem %s16, 2
      %v7587 = vld [vmem:[%s7586] sm:$0x1]
      %s7588 = scalar_lea.vmem %s19, 2
      %v7589 = vld [vmem:[%s7588] sm:$0x1]
      %v7590 = vlaneseq
      %v7591 = vshrl.u32 %v7590, 7
      %v7592 = vsub.s32 0, %v7591
      %v7593 = vrot.slane %v7556, %v7592
      %v7594 = vlaneseq
      %v7595 = vshrl.u32 %v7594, 7
      %v7596 = vsub.s32 0, %v7595
      %v7597 = vrot.slane %v7570, %v7596
      %v7598 = vlaneseq
      %v7599 = vshrl.u32 %v7598, 7
      %v7600 = vsub.s32 0, %v7599
      %v7601 = vrot.slane %v7578, %v7600
      %v7602 = vlaneseq
      %v7603 = vshrl.u32 %v7602, 7
      %v7604 = vsub.s32 0, %v7603
      %v7605 = vrot.slane %v7580, %v7604
      %v7606 = vlaneseq
      %v7607 = vshrl.u32 %v7606, 7
      %v7608 = vsub.s32 0, %v7607
      %v7609 = vrot.slane %v7563, %v7608
      %v7610 = vlaneseq
      %v7611 = vshrl.u32 %v7610, 7
      %v7612 = vsub.s32 0, %v7611
      %v7613 = vrot.slane %v7577, %v7612
      %v7614 = vlaneseq
      %v7615 = vshrl.u32 %v7614, 7
      %v7616 = vsub.s32 0, %v7615
      %v7617 = vrot.slane %v7579, %v7616
      %v7618 = vlaneseq
      %v7619 = vshrl.u32 %v7618, 7
      %v7620 = vsub.s32 0, %v7619
      %v7621 = vrot.slane %v7581, %v7620
      %v7630 = vadd.f32 %v7593, %v7530
      %v7631 = vadd.f32 %v7597, %v7530
      %v7632 = vadd.f32 %v7601, %v7530
      %v7633 = vadd.f32 %v7605, %v7530
      %v7634 = vadd.f32 %v7609, %v7530
      %v7635 = vadd.f32 %v7613, %v7530
      %v7636 = vadd.f32 %v7617, %v7530
      %v7637 = vadd.f32 %v7621, %v7530
      %v7639 = vlaneseq
      %v7640 = vshrl.u32 %v7639, 7
      %v7641 = vsub.s32 0, %v7640
      %v7642 = vrot.slane %v7583, %v7641
      %v7644 = vmul.f32 %v5838, %v7642
      %v7645 = vmul.f32 %v5845, %v7642
      %v7646 = vmul.f32 %v5852, %v7642
      %v7647 = vmul.f32 %v5859, %v7642
      %v7648 = vmul.f32 %v5866, %v7642
      %v7649 = vmul.f32 %v5873, %v7642
      %v7650 = vmul.f32 %v5880, %v7642
      %v7651 = vmul.f32 %v5887, %v7642
      %v7652 = vadd.f32 %v7630, %v7644
      %v7653 = vadd.f32 %v7631, %v7645
      %v7654 = vadd.f32 %v7632, %v7646
      %v7655 = vadd.f32 %v7633, %v7647
      %v7656 = vadd.f32 %v7634, %v7648
      %v7657 = vadd.f32 %v7635, %v7649
      %v7658 = vadd.f32 %v7636, %v7650
      %v7659 = vadd.f32 %v7637, %v7651
      %v7661 = vlaneseq
      %v7662 = vshrl.u32 %v7661, 7
      %v7663 = vsub.s32 0, %v7662
      %v7664 = vrot.slane %v7585, %v7663
      %v7666 = vmul.f32 %v896, %v7664
      %v7667 = vmul.f32 %v903, %v7664
      %v7668 = vmul.f32 %v910, %v7664
      %v7669 = vmul.f32 %v917, %v7664
      %v7670 = vmul.f32 %v924, %v7664
      %v7671 = vmul.f32 %v931, %v7664
      %v7672 = vmul.f32 %v938, %v7664
      %v7673 = vmul.f32 %v945, %v7664
      %v7674 = vadd.f32 %v7652, %v7666
      %v7675 = vadd.f32 %v7653, %v7667
      %v7676 = vadd.f32 %v7654, %v7668
      %v7677 = vadd.f32 %v7655, %v7669
      %v7678 = vadd.f32 %v7656, %v7670
      %v7679 = vadd.f32 %v7657, %v7671
      %v7680 = vadd.f32 %v7658, %v7672
      %v7681 = vadd.f32 %v7659, %v7673
      %v7683 = vlaneseq
      %v7684 = vshrl.u32 %v7683, 7
      %v7685 = vsub.s32 0, %v7684
      %v7686 = vrot.slane %v7587, %v7685
      %v7688 = vadd.f32 %v7674, %v7686
      %v7689 = vadd.f32 %v7675, %v7686
      %v7690 = vadd.f32 %v7676, %v7686
      %v7691 = vadd.f32 %v7677, %v7686
      %v7692 = vadd.f32 %v7678, %v7686
      %v7693 = vadd.f32 %v7679, %v7686
      %v7694 = vadd.f32 %v7680, %v7686
      %v7695 = vadd.f32 %v7681, %v7686
      %v7696 = vxor.u32 %v7688, 2147483648
      %v7697 = vxor.u32 %v7689, 2147483648
      %v7698 = vxor.u32 %v7690, 2147483648
      %v7699 = vxor.u32 %v7691, 2147483648
      %v7700 = vxor.u32 %v7692, 2147483648
      %v7701 = vxor.u32 %v7693, 2147483648
      %v7702 = vxor.u32 %v7694, 2147483648
      %v7703 = vxor.u32 %v7695, 2147483648
      %v7704 = vmul.f32 %v7696, 1.442695
      %v7705 = vpow.pop %v7704
      %v7706 = vmul.f32 %v7697, 1.442695
      %v7707 = vpow.pop %v7706
      %v7708 = vmul.f32 %v7698, 1.442695
      %v7709 = vpow.pop %v7708
      %v7710 = vmul.f32 %v7699, 1.442695
      %v7711 = vpow.pop %v7710
      %v7712 = vmul.f32 %v7700, 1.442695
      %v7713 = vpow.pop %v7712
      %v7714 = vmul.f32 %v7701, 1.442695
      %v7715 = vpow.pop %v7714
      %v7716 = vmul.f32 %v7702, 1.442695
      %v7717 = vpow.pop %v7716
      %v7718 = vmul.f32 %v7703, 1.442695
      %v7719 = vpow.pop %v7718
      %v7720 = vadd.f32 %v7705, 1.0
      %v7721 = vadd.f32 %v7707, 1.0
      %v7722 = vadd.f32 %v7709, 1.0
      %v7723 = vadd.f32 %v7711, 1.0
      %v7724 = vadd.f32 %v7713, 1.0
      %v7725 = vadd.f32 %v7715, 1.0
      %v7726 = vadd.f32 %v7717, 1.0
      %v7727 = vadd.f32 %v7719, 1.0
      %v7728 = vrcp.pop %v7720
      %v7729 = vmul.f32 1.0, %v7728
      %v7730 = vrcp.pop %v7721
      %v7731 = vmul.f32 1.0, %v7730
      %v7732 = vrcp.pop %v7722
      %v7733 = vmul.f32 1.0, %v7732
      %v7734 = vrcp.pop %v7723
      %v7735 = vmul.f32 1.0, %v7734
      %v7736 = vrcp.pop %v7724
      %v7737 = vmul.f32 1.0, %v7736
      %v7738 = vrcp.pop %v7725
      %v7739 = vmul.f32 1.0, %v7738
      %v7740 = vrcp.pop %v7726
      %v7741 = vmul.f32 1.0, %v7740
      %v7742 = vrcp.pop %v7727
      %v7743 = vmul.f32 1.0, %v7742
      %v7744 = vmul.f32 %v7688, %v7729
      %v7745 = vmul.f32 %v7689, %v7731
      %v7746 = vmul.f32 %v7690, %v7733
      %v7747 = vmul.f32 %v7691, %v7735
      %v7748 = vmul.f32 %v7692, %v7737
      %v7749 = vmul.f32 %v7693, %v7739
      %v7750 = vmul.f32 %v7694, %v7741
      %v7751 = vmul.f32 %v7695, %v7743
      %s7752 = scalar_lea.vmem %s17, 256
      %v7753 = vld [vmem:[%s7752] sm:$0xff]
      %v7754 = vld [vmem:[%s7752 + $0x8] sm:$0xff]
      %v7755 = vld [vmem:[%s7752 + $0x10] sm:$0xff]
      %v7756 = vld [vmem:[%s7752 + $0x18] sm:$0xff]
      %v7757 = vld [vmem:[%s7752 + $0x20] sm:$0xff]
      %v7758 = vld [vmem:[%s7752 + $0x28] sm:$0xff]
      %v7759 = vld [vmem:[%s7752 + $0x30] sm:$0xff]
      %v7760 = vld [vmem:[%s7752 + $0x38] sm:$0xff]
      %v7761 = vld [vmem:[%s7752 + $0x40] sm:$0xff]
      %v7762 = vld [vmem:[%s7752 + $0x48] sm:$0xff]
      %v7763 = vld [vmem:[%s7752 + $0x50] sm:$0xff]
      %v7764 = vld [vmem:[%s7752 + $0x58] sm:$0xff]
      %v7765 = vld [vmem:[%s7752 + $0x60] sm:$0xff]
      %v7766 = vld [vmem:[%s7752 + $0x68] sm:$0xff]
      %v7767 = vld [vmem:[%s7752 + $0x70] sm:$0xff]
      %v7768 = vld [vmem:[%s7752 + $0x78] sm:$0xff]
      %s7769 = scalar_lea.vmem %s18, 2
      %v7770 = vld [vmem:[%s7769] sm:$0x1]
      %v7772 = vlaneseq
      %v7773 = vshrl.u32 %v7772, 7
      %v7774 = vsub.s32 0, %v7773
      %v7775 = vrot.slane %v7770, %v7774
      %7777 = vmatprep.subr.mxu0 0.0
      %7778 = vmatpush1.msra.mxu0 %v7753
      %7779 = vmatprep.subr.mxu0 0.0
      %7780 = vmatpush1.msra.mxu0 %v7754
      %7781 = vmatprep.subr.mxu0 0.0
      %7782 = vmatpush1.msra.mxu0 %v7755
      %7783 = vmatprep.subr.mxu0 0.0
      %7784 = vmatpush1.msra.mxu0 %v7756
      %7785 = vmatprep.subr.mxu0 0.0
      %7786 = vmatpush1.msra.mxu0 %v7757
      %7787 = vmatprep.subr.mxu0 0.0
      %7788 = vmatpush1.msra.mxu0 %v7758
      %7789 = vmatprep.subr.mxu0 0.0
      %7790 = vmatpush1.msra.mxu0 %v7759
      %7791 = vmatprep.subr.mxu0 0.0
      %7792 = vmatpush1.msra.mxu0 %v7760
      %7793 = vmatprep.subr.mxu0 0.0
      %7794 = vmatpush1.msra.mxu0 %v7761
      %7795 = vmatprep.subr.mxu0 0.0
      %7796 = vmatpush1.msra.mxu0 %v7762
      %7797 = vmatprep.subr.mxu0 0.0
      %7798 = vmatpush1.msra.mxu0 %v7763
      %7799 = vmatprep.subr.mxu0 0.0
      %7800 = vmatpush1.msra.mxu0 %v7764
      %7801 = vmatprep.subr.mxu0 0.0
      %7802 = vmatpush1.msra.mxu0 %v7765
      %7803 = vmatprep.subr.mxu0 0.0
      %7804 = vmatpush1.msra.mxu0 %v7766
      %7805 = vmatprep.subr.mxu0 0.0
      %7806 = vmatpush1.msra.mxu0 %v7767
      %7807 = vmatprep.subr.mxu0 0.0
      %7808 = vmatpush1.msra.mxu0 %v7768
      %7809 = vmatprep.subr.mxu0 0.0
      %7810 = vmatpush1.msra.mxu0 0.0
      %7811 = vmatprep.subr.mxu0 0.0
      %7812 = vmatpush1.msra.mxu0 0.0
      %7813 = vmatprep.subr.mxu0 0.0
      %7814 = vmatpush1.msra.mxu0 0.0
      %7815 = vmatprep.subr.mxu0 0.0
      %7816 = vmatpush1.msra.mxu0 0.0
      %7817 = vmatprep.subr.mxu0 0.0
      %7818 = vmatpush1.msra.mxu0 0.0
      %7819 = vmatprep.subr.mxu0 0.0
      %7820 = vmatpush1.msra.mxu0 0.0
      %7821 = vmatprep.subr.mxu0 0.0
      %7822 = vmatpush1.msra.mxu0 0.0
      %7823 = vmatprep.subr.mxu0 0.0
      %7824 = vmatpush1.msra.mxu0 0.0
      %7825 = vmatprep.subr.mxu0 0.0
      %7826 = vmatpush1.msra.mxu0 0.0
      %7827 = vmatprep.subr.mxu0 0.0
      %7828 = vmatpush1.msra.mxu0 0.0
      %7829 = vmatprep.subr.mxu0 0.0
      %7830 = vmatpush1.msra.mxu0 0.0
      %7831 = vmatprep.subr.mxu0 0.0
      %7832 = vmatpush1.msra.mxu0 0.0
      %7833 = vmatprep.subr.mxu0 0.0
      %7834 = vmatpush1.msra.mxu0 0.0
      %7835 = vmatprep.subr.mxu0 0.0
      %7836 = vmatpush1.msra.mxu0 0.0
      %7837 = vmatprep.subr.mxu0 0.0
      %7838 = vmatpush1.msra.mxu0 0.0
      %7839 = vmatprep.subr.mxu0 0.0
      %7840 = vmatpush1.msra.mxu0 0.0
      %7841 = vmatprep.mubr.f32.mxu0 0.0
      %7842 = vmatmul.mubr.f32.gmra.mrb[0].mxu0 %v7744
      %v7843 = vpop.f32.mrb[0].mxu0
      %v7844 = vadd.f32 %v7775, %v7843
      %v7845 = vpop.f32.mrb[0].mxu0
      %7846 = vmatprep.mubr.f32.mxu0 0.0
      %7847 = vmatmul.mubr.f32.gmra.mrb[0].mxu0 %v7745
      %v7848 = vpop.f32.mrb[0].mxu0
      %v7849 = vadd.f32 %v7775, %v7848
      %v7850 = vpop.f32.mrb[0].mxu0
      %7851 = vmatprep.mubr.f32.mxu0 0.0
      %7852 = vmatmul.mubr.f32.gmra.mrb[0].mxu0 %v7746
      %v7853 = vpop.f32.mrb[0].mxu0
      %v7854 = vadd.f32 %v7775, %v7853
      %v7855 = vpop.f32.mrb[0].mxu0
      %7856 = vmatprep.mubr.f32.mxu0 0.0
      %7857 = vmatmul.mubr.f32.gmra.mrb[0].mxu0 %v7747
      %v7858 = vpop.f32.mrb[0].mxu0
      %v7859 = vadd.f32 %v7775, %v7858
      %v7860 = vpop.f32.mrb[0].mxu0
      %7861 = vmatprep.mubr.f32.mxu0 0.0
      %7862 = vmatmul.mubr.f32.gmra.mrb[0].mxu0 %v7748
      %v7863 = vpop.f32.mrb[0].mxu0
      %v7864 = vadd.f32 %v7775, %v7863
      %v7865 = vpop.f32.mrb[0].mxu0
      %7866 = vmatprep.mubr.f32.mxu0 0.0
      %7867 = vmatmul.mubr.f32.gmra.mrb[0].mxu0 %v7749
      %v7868 = vpop.f32.mrb[0].mxu0
      %v7869 = vadd.f32 %v7775, %v7868
      %v7870 = vpop.f32.mrb[0].mxu0
      %7871 = vmatprep.mubr.f32.mxu0 0.0
      %7872 = vmatmul.mubr.f32.gmra.mrb[0].mxu0 %v7750
      %v7873 = vpop.f32.mrb[0].mxu0
      %v7874 = vadd.f32 %v7775, %v7873
      %v7875 = vpop.f32.mrb[0].mxu0
      %7876 = vmatprep.mubr.f32.mxu0 0.0
      %7877 = vmatmul.mubr.f32.gmra.mrb[0].mxu0 %v7751
      %v7878 = vpop.f32.mrb[0].mxu0
      %v7879 = vadd.f32 %v7775, %v7878
      %v7880 = vpop.f32.mrb[0].mxu0
      %7881 = vdwg.mxu0
      %v7882 = vxor.u32 %v7844, 2147483648
      %v7883 = vxor.u32 %v7849, 2147483648
      %v7884 = vxor.u32 %v7854, 2147483648
      %v7885 = vxor.u32 %v7859, 2147483648
      %v7886 = vxor.u32 %v7864, 2147483648
      %v7887 = vxor.u32 %v7869, 2147483648
      %v7888 = vxor.u32 %v7874, 2147483648
      %v7889 = vxor.u32 %v7879, 2147483648
      %v7890 = vmul.f32 %v7882, 1.442695
      %v7891 = vpow.pop %v7890
      %v7892 = vmul.f32 %v7883, 1.442695
      %v7893 = vpow.pop %v7892
      %v7894 = vmul.f32 %v7884, 1.442695
      %v7895 = vpow.pop %v7894
      %v7896 = vmul.f32 %v7885, 1.442695
      %v7897 = vpow.pop %v7896
      %v7898 = vmul.f32 %v7886, 1.442695
      %v7899 = vpow.pop %v7898
      %v7900 = vmul.f32 %v7887, 1.442695
      %v7901 = vpow.pop %v7900
      %v7902 = vmul.f32 %v7888, 1.442695
      %v7903 = vpow.pop %v7902
      %v7904 = vmul.f32 %v7889, 1.442695
      %v7905 = vpow.pop %v7904
      %v7906 = vadd.f32 %v7891, 1.0
      %v7907 = vadd.f32 %v7893, 1.0
      %v7908 = vadd.f32 %v7895, 1.0
      %v7909 = vadd.f32 %v7897, 1.0
      %v7910 = vadd.f32 %v7899, 1.0
      %v7911 = vadd.f32 %v7901, 1.0
      %v7912 = vadd.f32 %v7903, 1.0
      %v7913 = vadd.f32 %v7905, 1.0
      %v7914 = vrcp.pop %v7906
      %v7915 = vmul.f32 1.0, %v7914
      %v7916 = vrcp.pop %v7907
      %v7917 = vmul.f32 1.0, %v7916
      %v7918 = vrcp.pop %v7908
      %v7919 = vmul.f32 1.0, %v7918
      %v7920 = vrcp.pop %v7909
      %v7921 = vmul.f32 1.0, %v7920
      %v7922 = vrcp.pop %v7910
      %v7923 = vmul.f32 1.0, %v7922
      %v7924 = vrcp.pop %v7911
      %v7925 = vmul.f32 1.0, %v7924
      %v7926 = vrcp.pop %v7912
      %v7927 = vmul.f32 1.0, %v7926
      %v7928 = vrcp.pop %v7913
      %v7929 = vmul.f32 1.0, %v7928
      %v7930 = vmul.f32 %v7844, %v7915
      %v7931 = vmul.f32 %v7849, %v7917
      %v7932 = vmul.f32 %v7854, %v7919
      %v7933 = vmul.f32 %v7859, %v7921
      %v7934 = vmul.f32 %v7864, %v7923
      %v7935 = vmul.f32 %v7869, %v7925
      %v7936 = vmul.f32 %v7874, %v7927
      %v7937 = vmul.f32 %v7879, %v7929
      %v7939 = vlaneseq
      %v7940 = vshrl.u32 %v7939, 7
      %v7941 = vsub.s32 0, %v7940
      %v7942 = vrot.slane %v7589, %v7941
      %v7944 = vmul.f32 %v7930, %v7942
      %v7945 = vmul.f32 %v7931, %v7942
      %v7946 = vmul.f32 %v7932, %v7942
      %v7947 = vmul.f32 %v7933, %v7942
      %v7948 = vmul.f32 %v7934, %v7942
      %v7949 = vmul.f32 %v7935, %v7942
      %v7950 = vmul.f32 %v7936, %v7942
      %v7951 = vmul.f32 %v7937, %v7942
      %7952 = vadd.xlane.f32.xlu0 %v7944
      %v7953 = vpop.xlane.xlu0 %7952
      %7954 = vadd.xlane.f32.xlu0 %v7945
      %v7955 = vpop.xlane.xlu0 %7954
      %7956 = vadd.xlane.f32.xlu0 %v7946
      %v7957 = vpop.xlane.xlu0 %7956
      %7958 = vadd.xlane.f32.xlu0 %v7947
      %v7959 = vpop.xlane.xlu0 %7958
      %7960 = vadd.xlane.f32.xlu0 %v7948
      %v7961 = vpop.xlane.xlu0 %7960
      %7962 = vadd.xlane.f32.xlu0 %v7949
      %v7963 = vpop.xlane.xlu0 %7962
      %7964 = vadd.xlane.f32.xlu0 %v7950
      %v7965 = vpop.xlane.xlu0 %7964
      %7966 = vadd.xlane.f32.xlu0 %v7951
      %v7967 = vpop.xlane.xlu0 %7966
      %v7976 = vlaneseq
      %v7977 = vshrl.u32 %v7976, 7
      %v7978 = vsub.s32 %v3028, %v7977
      %v7979 = vrot.slane %v7953, %v7978
      %v7980 = vlaneseq
      %v7981 = vshrl.u32 %v7980, 7
      %v7982 = vsub.s32 %v3028, %v7981
      %v7983 = vrot.slane %v7955, %v7982
      %v7984 = vlaneseq
      %v7985 = vshrl.u32 %v7984, 7
      %v7986 = vsub.s32 %v3028, %v7985
      %v7987 = vrot.slane %v7957, %v7986
      %v7988 = vlaneseq
      %v7989 = vshrl.u32 %v7988, 7
      %v7990 = vsub.s32 %v3028, %v7989
      %v7991 = vrot.slane %v7959, %v7990
      %v7992 = vlaneseq
      %v7993 = vshrl.u32 %v7992, 7
      %v7994 = vsub.s32 %v3028, %v7993
      %v7995 = vrot.slane %v7961, %v7994
      %v7996 = vlaneseq
      %v7997 = vshrl.u32 %v7996, 7
      %v7998 = vsub.s32 %v3028, %v7997
      %v7999 = vrot.slane %v7963, %v7998
      %v8000 = vlaneseq
      %v8001 = vshrl.u32 %v8000, 7
      %v8002 = vsub.s32 %v3028, %v8001
      %v8003 = vrot.slane %v7965, %v8002
      %v8004 = vlaneseq
      %v8005 = vshrl.u32 %v8004, 7
      %v8006 = vsub.s32 %v3028, %v8005
      %v8007 = vrot.slane %v7967, %v8006
      %v8008 = vsel %vm1348, %v7983, %v7979
      %v8009 = vsel %vm1350, %v7987, %v8008
      %v8010 = vsel %vm1352, %v7991, %v8009
      %v8011 = vsel %vm1354, %v7995, %v8010
      %v8012 = vsel %vm1356, %v7999, %v8011
      %v8013 = vsel %vm1358, %v8003, %v8012
      %v8014 = vsel %vm1360, %v8007, %v8013
      %v8016 = vmul.f32 %v5621, %v8014
      %v8017 = vsel %vm3070, %v8016, 0.0
      %8018 = vadd.xlane.f32.xlu0 %v8017
      %v8019 = vpop.xlane.xlu0 %8018
      %v8020 = vadd.f32 %v8019, 0.0
      %v8021 = vmul.f32 %v5622, %v8014
      %v8022 = vsel %vm3070, %v8021, 0.0
      %8023 = vadd.xlane.f32.xlu0 %v8022
      %v8024 = vpop.xlane.xlu0 %8023
      %v8025 = vadd.f32 %v8024, 0.0
      %v8026 = vmul.f32 %v5623, %v8014
      %v8027 = vsel %vm3070, %v8026, 0.0
      %8028 = vadd.xlane.f32.xlu0 %v8027
      %v8029 = vpop.xlane.xlu0 %8028
      %v8030 = vadd.f32 %v8029, 0.0
      %v8031 = vmul.f32 %v8020, 0.01
      %v8033 = vlaneseq
      %v8034 = vshrl.u32 %v8033, 7
      %v8035 = vsub.s32 %v3028, %v8034
      %v8036 = vrot.slane %v8031, %v8035
      %v8038 = vadd.f32 %v5565, %v8036
      %v8039 = vmul.f32 %v8025, 0.01
      %v8041 = vlaneseq
      %v8042 = vshrl.u32 %v8041, 7
      %v8043 = vsub.s32 %v3028, %v8042
      %v8044 = vrot.slane %v8039, %v8043
      %v8046 = vadd.f32 %v5573, %v8044
      %v8047 = vmul.f32 %v8030, 0.01
      %v8049 = vlaneseq
      %v8050 = vshrl.u32 %v8049, 7
      %v8051 = vsub.s32 %v3028, %v8050
      %v8052 = vrot.slane %v8047, %v8051
      %v8054 = vadd.f32 %v5581, %v8052
      %vm8055 = vcmask 1040384
      %v8056 = vsel %vm8055, %v8038, %v8046
      %vm8057 = vcmask 1041408
      %v8058 = vsel %vm8057, %v8056, %v8054
      %vm8059 = vcmask 59392
      %8060 = vst.msk [vmem:[%s641] sm:$0x7] %vm8059, %v8058
      %p8061 = scmp.lt.s32.totalorder %s31, 1
      %s8062 = scalar_select %p8061, %s31, 1
      %s8063 = smul.addr %s8062, 4
      %s8064 = scalar_lea.vmem %s20, %s8063
      // Predicated region
      $region101: #{egnn_forward.1} parent=99 // pred_check
        %p8065 = pneg %p479
      $region102: #{egnn_forward.1} parent=99 // pred_check_branch
        %8067 = sbr.rel (%p8065) target = $region104
      $region103: #{egnn_forward.1} parent=99 // pred_region
        _
      $region104: #{egnn_forward.1} parent=99 // pred_fallthru
        _
    $region100: #{egnn_forward.1} parent=5 // pred_fallthru
      _
    %p8068 = scmp.le.s32.totalorder 2, %s26
    // Predicated region
    $region105: #{egnn_forward.1} parent=5 // pred_check
      %p8069 = pneg %p8068
    $region106: #{egnn_forward.1} parent=5 // pred_check_branch
      %8071 = sbr.rel (%p8069) target = $region108
    $region107: #{egnn_forward.1} parent=5 // pred_region
      %s8072 = ssub.s32 %s26, 2
      // Predicated region
      $region109: #{egnn_forward.1} parent=107 // pred_check
        %p8073 = pneg %p485
      $region110: #{egnn_forward.1} parent=107 // pred_check_branch
        %8075 = sbr.rel (%p8073) target = $region112
      $region111: #{egnn_forward.1} parent=107 // pred_region
        %p8076 = scmp.lt.s32.totalorder %s32, 1
        %s8077 = scalar_select %p8076, %s32, 1
        %s8078 = smul.addr %s8077, 4
        %s8079 = scalar_lea.vmem %s20, %s8078
      $region112: #{egnn_forward.1} parent=107 // pred_fallthru
        _
    $region108: #{egnn_forward.1} parent=5 // pred_fallthru
      _
  $region6: #{egnn_forward.1} parent=0 // loop_footer
    %s30 = sadd.s32 1, %s26
  $region7: #{egnn_forward.1} parent=0 // loop_footer_branch
    %25 = sbr.rel target = $region3
  $region8: #{egnn_forward.1} parent=0 // loop_exit
    _

</llo_original>
